<compile_context>
chip_gen: v6e
topology: v6e:2x2x1
jax: 0.10.0
libtpu: 0.0.40
codegen_flags: <defaults>
</compile_context>

<pallas_src>
import jax
import jax.numpy as jnp
from jax.experimental import pallas as pl
from jax.experimental.pallas import tpu as pltpu

EPS = 1e-5
LANES = 128


def _zero_border(ref, ph, pw):
    """Zero only the ph/pw-wide spatial border of an (N, Hp, Wp, Cp) scratch."""
    N, Hp, Wp, Cp = ref.shape
    ref[:, :ph, :, :] = jnp.zeros((N, ph, Wp, Cp), jnp.float32)
    ref[:, Hp - ph:, :, :] = jnp.zeros((N, ph, Wp, Cp), jnp.float32)
    ref[:, :, :pw, :] = jnp.zeros((N, Hp, pw, Cp), jnp.float32)
    ref[:, :, Wp - pw:, :] = jnp.zeros((N, Hp, pw, Cp), jnp.float32)


def _bn_affine(acc, g, b, m_rows):
    """Fused single-pass batch-norm: per-channel scale/shift from sum & sum-sq."""
    inv_m = 1.0 / m_rows
    mean = jnp.sum(acc, axis=0, keepdims=True) * inv_m
    var = jnp.maximum(
        jnp.sum(acc * acc, axis=0, keepdims=True) * inv_m - mean * mean, 0.0)
    scale = g * jax.lax.rsqrt(var + EPS)
    shift = b - mean * scale
    return scale, shift


def _basic_block_kernel(x_ref, w1_ref, g1_ref, b1_ref, w2_ref, g2_ref, b2_ref,
                        out_ref, pad1_ref, pad2_ref, col_ref):
    # x_ref    : (N, H, W, Cp)       unpadded NHWC input, channels padded to Cp
    # w*_ref   : (9*Cp, Cp)          conv taps stacked row-major over (ki,kj), Cin->Cout
    # g*/b*    : (1, Cp)             batch-norm gamma / beta (zero in padded channels)
    # out_ref  : (N, H, W, Cp)
    # pad1_ref : (N, H+2,  W+2,  Cp) VMEM scratch: zero-padded conv1 input
    # pad2_ref : (N, H+2d, W+2d, Cp) VMEM scratch: zero-padded (dilated) conv2 input
    # col_ref  : (N*H*W, 9*Cp)       VMEM im2col scratch, reused for both convs
    N, H, W, Cp = x_ref.shape
    M = N * H * W
    d = (pad2_ref.shape[1] - H) // 2          # conv2 dilation (padding == dilation)

    # ---- stage x into the conv1 halo scratch (zero only the 1-px border) ----
    _zero_border(pad1_ref, 1, 1)
    pad1_ref[:, 1:1 + H, 1:1 + W, :] = x_ref[...]

    # ---- conv1: single im2col matmul (M, 9Cp) x (9Cp, Cp) ----
    for t in range(9):
        ki, kj = t // 3, t % 3
        col_ref[:, t * Cp:(t + 1) * Cp] = (
            pad1_ref[:, ki:ki + H, kj:kj + W, :].reshape(M, Cp))
    acc1 = jnp.dot(col_ref[...], w1_ref[...], preferred_element_type=jnp.float32)

    # ---- bn1 (fused batch stats) + relu, staged straight into the conv2 halo ----
    scale1, shift1 = _bn_affine(acc1, g1_ref[...], b1_ref[...], M)
    y1 = jnp.maximum(acc1 * scale1 + shift1, 0.0)
    _zero_border(pad2_ref, d, d)
    pad2_ref[:, d:d + H, d:d + W, :] = y1.reshape(N, H, W, Cp)

    # ---- conv2: 3x3 with dilation d, again one im2col matmul ----
    for t in range(9):
        ki, kj = t // 3, t % 3
        oi, oj = ki * d, kj * d
        col_ref[:, t * Cp:(t + 1) * Cp] = (
            pad2_ref[:, oi:oi + H, oj:oj + W, :].reshape(M, Cp))
    acc2 = jnp.dot(col_ref[...], w2_ref[...], preferred_element_type=jnp.float32)

    # ---- bn2 + residual add + relu (lane-dense store) ----
    scale2, shift2 = _bn_affine(acc2, g2_ref[...], b2_ref[...], M)
    y2 = acc2 * scale2 + shift2
    out = jnp.maximum(y2 + x_ref[...].reshape(M, Cp), 0.0)
    out_ref[...] = out.reshape(N, H, W, Cp)


def basic_block_with_dilation(x_nchw, params, dilation=2):
    """Fused Pallas forward of BasicBlockWithDilation (stride=1, downsample=None)."""
    N, C, H, W = x_nchw.shape
    d = dilation
    Cp = ((C + LANES - 1) // LANES) * LANES

    # NCHW -> NHWC with channels zero-padded to the lane width (layout glue
    # only; no spatial padding in HBM -- the conv halo is built in-kernel).
    x_nhwc = jnp.transpose(x_nchw, (0, 2, 3, 1)).astype(jnp.float32)
    x_nhwc = jnp.pad(x_nhwc, ((0, 0), (0, 0), (0, 0), (0, Cp - C)))

    # torch conv weight (Cout, Cin, 3, 3) -> (3, 3, Cin, Cout), channel-padded,
    # stacked into a (9*Cp, Cp) im2col weight matrix (tap-major, row-major ki,kj).
    def pack_w(w):
        wt = jnp.transpose(w, (2, 3, 1, 0)).astype(jnp.float32)
        wt = jnp.pad(wt, ((0, 0), (0, 0), (0, Cp - C), (0, Cp - C)))
        return wt.reshape(9 * Cp, Cp)

    def pack_vec(v):
        return jnp.pad(v.astype(jnp.float32), (0, Cp - C)).reshape(1, Cp)

    w1, w2 = pack_w(params["w1"]), pack_w(params["w2"])
    g1, b1 = pack_vec(params["g1"]), pack_vec(params["b1"])
    g2, b2 = pack_vec(params["g2"]), pack_vec(params["b2"])

    vmem = pl.BlockSpec(memory_space=pltpu.MemorySpace.VMEM)
    out_nhwc = pl.pallas_call(
        _basic_block_kernel,
        out_shape=jax.ShapeDtypeStruct((N, H, W, Cp), jnp.float32),
        in_specs=[vmem] * 7,
        out_specs=vmem,
        scratch_shapes=[
            pltpu.VMEM((N, H + 2, W + 2, Cp), jnp.float32),          # conv1 halo
            pltpu.VMEM((N, H + 2 * d, W + 2 * d, Cp), jnp.float32),  # conv2 halo
            pltpu.VMEM((N * H * W, 9 * Cp), jnp.float32),            # im2col buffer
        ],
        compiler_params=pltpu.CompilerParams(
            vmem_limit_bytes=32 * 1024 * 1024),   # explicit; safe on v5e/v6e/v7x
    )(x_nhwc, w1, g1, b1, w2, g2, b2)

    # Drop the channel padding and return to NCHW.
    return jnp.transpose(out_nhwc[..., :C], (0, 3, 1, 2))


def reference_forward(x, params, dilation=2):
    """Pure-JAX reference (mirrors the PyTorch forward in training mode)."""
    def conv(inp, w, dil):
        return jax.lax.conv_general_dilated(
            inp, w, window_strides=(1, 1),
            padding=((dil, dil), (dil, dil)), rhs_dilation=(dil, dil),
            dimension_numbers=("NCHW", "OIHW", "NCHW"),
            precision=jax.lax.Precision.HIGHEST)

    def bn(inp, g, b):
        mean = jnp.mean(inp, axis=(0, 2, 3), keepdims=True)
        var = jnp.mean((inp - mean) ** 2, axis=(0, 2, 3), keepdims=True)
        return ((inp - mean) * jax.lax.rsqrt(var + EPS)
                * g.reshape(1, -1, 1, 1) + b.reshape(1, -1, 1, 1))

    out = jax.nn.relu(bn(conv(x, params["w1"], 1), params["g1"], params["b1"]))
    out = bn(conv(out, params["w2"], dilation), params["g2"], params["b2"])
    return jax.nn.relu(out + x)


def make_params(key, planes):
    k1, k2, k3, k4, k5, k6 = jax.random.split(key, 6)
    fan = planes * 9
    std = (2.0 / fan) ** 0.5
    return {
        "w1": std * jax.random.normal(k1, (planes, planes, 3, 3), jnp.float32),
        "w2": std * jax.random.normal(k2, (planes, planes, 3, 3), jnp.float32),
        "g1": 1.0 + 0.1 * jax.random.normal(k3, (planes,), jnp.float32),
        "b1": 0.1 * jax.random.normal(k4, (planes,), jnp.float32),
        "g2": 1.0 + 0.1 * jax.random.normal(k5, (planes,), jnp.float32),
        "b2": 0.1 * jax.random.normal(k6, (planes,), jnp.float32),
    }


if __name__ == "__main__":
    key = jax.random.PRNGKey(0)
    kx, kp = jax.random.split(key)

    N, C, H, W = 2, 4, 16, 16          # inplanes == planes == 4, stride=1, downsample=None
    dilation = 2
    x = jax.random.normal(kx, (N, C, H, W), jnp.float32)
    params = make_params(kp, C)

    out = jax.block_until_ready(basic_block_with_dilation(x, params, dilation=dilation))
    ref = jax.block_until_ready(reference_forward(x, params, dilation=dilation))

    assert out.shape == ref.shape == (N, C, H, W)
    max_err = float(jnp.max(jnp.abs(out - ref)))
    assert jnp.allclose(out, ref, rtol=2e-3, atol=2e-3), max_err

    print("KERNEL_OK")
</pallas_src>

<mosaic_0001>
module attributes {stable_mosaic.version = 11 : i64} {
  func.func @_basic_block_kernel(%arg0: memref<2x16x16x128xf32, #tpu.memory_space<vmem>>, %arg1: memref<1152x128xf32, #tpu.memory_space<vmem>>, %arg2: memref<1x128xf32, #tpu.memory_space<vmem>>, %arg3: memref<1x128xf32, #tpu.memory_space<vmem>>, %arg4: memref<1152x128xf32, #tpu.memory_space<vmem>>, %arg5: memref<1x128xf32, #tpu.memory_space<vmem>>, %arg6: memref<1x128xf32, #tpu.memory_space<vmem>>, %arg7: memref<2x16x16x128xf32, #tpu.memory_space<vmem>>, %arg8: memref<2x18x18x128xf32, #tpu.memory_space<vmem>>, %arg9: memref<2x20x20x128xf32, #tpu.memory_space<vmem>>, %arg10: memref<512x1152xf32, #tpu.memory_space<vmem>>) attributes {dimension_semantics = [], scalar_prefetch = 0 : i64, scratch_operands = 3 : i64, tpu.core_type = #tpu.core_type<tc>} {
    %cst = arith.constant 0.000000e+00 : f32
    %0 = vector.broadcast %cst : f32 to vector<2x1x18x128xf32>
    %c0 = arith.constant 0 : index
    %c0_0 = arith.constant 0 : index
    %c0_1 = arith.constant 0 : index
    %c0_2 = arith.constant 0 : index
    %1 = vector.load %arg8[%c0, %c0_0, %c0_1, %c0_2] : memref<2x18x18x128xf32, #tpu.memory_space<vmem>>, vector<2x1x18x128xf32>
    tpu.vector_store %arg8[%c0, %c0_0, %c0_1, %c0_2], %0 {strides = array<i32>} : memref<2x18x18x128xf32, #tpu.memory_space<vmem>>, vector<2x1x18x128xf32>,
    %cst_3 = arith.constant 0.000000e+00 : f32
    %2 = vector.broadcast %cst_3 : f32 to vector<2x1x18x128xf32>
    %c0_4 = arith.constant 0 : index
    %c17 = arith.constant 17 : index
    %c0_5 = arith.constant 0 : index
    %c0_6 = arith.constant 0 : index
    %3 = vector.load %arg8[%c0_4, %c17, %c0_5, %c0_6] : memref<2x18x18x128xf32, #tpu.memory_space<vmem>>, vector<2x1x18x128xf32>
    tpu.vector_store %arg8[%c0_4, %c17, %c0_5, %c0_6], %2 {strides = array<i32>} : memref<2x18x18x128xf32, #tpu.memory_space<vmem>>, vector<2x1x18x128xf32>,
    %cst_7 = arith.constant 0.000000e+00 : f32
    %4 = vector.broadcast %cst_7 : f32 to vector<2x18x1x128xf32>
    %c0_8 = arith.constant 0 : index
    %c0_9 = arith.constant 0 : index
    %c0_10 = arith.constant 0 : index
    %c0_11 = arith.constant 0 : index
    %5 = vector.load %arg8[%c0_8, %c0_9, %c0_10, %c0_11] : memref<2x18x18x128xf32, #tpu.memory_space<vmem>>, vector<2x18x1x128xf32>
    tpu.vector_store %arg8[%c0_8, %c0_9, %c0_10, %c0_11], %4 {strides = array<i32>} : memref<2x18x18x128xf32, #tpu.memory_space<vmem>>, vector<2x18x1x128xf32>,
    %cst_12 = arith.constant 0.000000e+00 : f32
    %6 = vector.broadcast %cst_12 : f32 to vector<2x18x1x128xf32>
    %c0_13 = arith.constant 0 : index
    %c0_14 = arith.constant 0 : index
    %c17_15 = arith.constant 17 : index
    %c0_16 = arith.constant 0 : index
    %7 = vector.load %arg8[%c0_13, %c0_14, %c17_15, %c0_16] : memref<2x18x18x128xf32, #tpu.memory_space<vmem>>, vector<2x18x1x128xf32>
    tpu.vector_store %arg8[%c0_13, %c0_14, %c17_15, %c0_16], %6 {strides = array<i32>} : memref<2x18x18x128xf32, #tpu.memory_space<vmem>>, vector<2x18x1x128xf32>,
    %c0_17 = arith.constant 0 : index
    %c0_18 = arith.constant 0 : index
    %c0_19 = arith.constant 0 : index
    %c0_20 = arith.constant 0 : index
    %8 = vector.load %arg0[%c0_17, %c0_18, %c0_19, %c0_20] : memref<2x16x16x128xf32, #tpu.memory_space<vmem>>, vector<2x16x16x128xf32>
    %c0_21 = arith.constant 0 : index
    %c1 = arith.constant 1 : index
    %c1_22 = arith.constant 1 : index
    %c0_23 = arith.constant 0 : index
    %9 = vector.load %arg8[%c0_21, %c1, %c1_22, %c0_23] : memref<2x18x18x128xf32, #tpu.memory_space<vmem>>, vector<2x16x16x128xf32>
    tpu.vector_store %arg8[%c0_21, %c1, %c1_22, %c0_23], %8 {strides = array<i32>} : memref<2x18x18x128xf32, #tpu.memory_space<vmem>>, vector<2x16x16x128xf32>,
    %c0_24 = arith.constant 0 : index
    %c0_25 = arith.constant 0 : index
    %c0_26 = arith.constant 0 : index
    %c0_27 = arith.constant 0 : index
    %10 = vector.load %arg8[%c0_24, %c0_25, %c0_26, %c0_27] : memref<2x18x18x128xf32, #tpu.memory_space<vmem>>, vector<2x16x16x128xf32>
    %11 = vector.shape_cast %10 : vector<2x16x16x128xf32> to vector<512x128xf32>
    %c0_28 = arith.constant 0 : index
    %c0_29 = arith.constant 0 : index
    %12 = vector.load %arg10[%c0_28, %c0_29] : memref<512x1152xf32, #tpu.memory_space<vmem>>, vector<512x128xf32>
    tpu.vector_store %arg10[%c0_28, %c0_29], %11 {strides = array<i32>} : memref<512x1152xf32, #tpu.memory_space<vmem>>, vector<512x128xf32>,
    %c0_30 = arith.constant 0 : index
    %c0_31 = arith.constant 0 : index
    %c1_32 = arith.constant 1 : index
    %c0_33 = arith.constant 0 : index
    %13 = vector.load %arg8[%c0_30, %c0_31, %c1_32, %c0_33] : memref<2x18x18x128xf32, #tpu.memory_space<vmem>>, vector<2x16x16x128xf32>
    %14 = vector.shape_cast %13 : vector<2x16x16x128xf32> to vector<512x128xf32>
    %c0_34 = arith.constant 0 : index
    %c128 = arith.constant 128 : index
    %15 = vector.load %arg10[%c0_34, %c128] : memref<512x1152xf32, #tpu.memory_space<vmem>>, vector<512x128xf32>
    tpu.vector_store %arg10[%c0_34, %c128], %14 {strides = array<i32>} : memref<512x1152xf32, #tpu.memory_space<vmem>>, vector<512x128xf32>,
    %c0_35 = arith.constant 0 : index
    %c0_36 = arith.constant 0 : index
    %c2 = arith.constant 2 : index
    %c0_37 = arith.constant 0 : index
    %16 = vector.load %arg8[%c0_35, %c0_36, %c2, %c0_37] : memref<2x18x18x128xf32, #tpu.memory_space<vmem>>, vector<2x16x16x128xf32>
    %17 = vector.shape_cast %16 : vector<2x16x16x128xf32> to vector<512x128xf32>
    %c0_38 = arith.constant 0 : index
    %c256 = arith.constant 256 : index
    %18 = vector.load %arg10[%c0_38, %c256] : memref<512x1152xf32, #tpu.memory_space<vmem>>, vector<512x128xf32>
    tpu.vector_store %arg10[%c0_38, %c256], %17 {strides = array<i32>} : memref<512x1152xf32, #tpu.memory_space<vmem>>, vector<512x128xf32>,
    %c0_39 = arith.constant 0 : index
    %c1_40 = arith.constant 1 : index
    %c0_41 = arith.constant 0 : index
    %c0_42 = arith.constant 0 : index
    %19 = vector.load %arg8[%c0_39, %c1_40, %c0_41, %c0_42] : memref<2x18x18x128xf32, #tpu.memory_space<vmem>>, vector<2x16x16x128xf32>
    %20 = vector.shape_cast %19 : vector<2x16x16x128xf32> to vector<512x128xf32>
    %c0_43 = arith.constant 0 : index
    %c384 = arith.constant 384 : index
    %21 = vector.load %arg10[%c0_43, %c384] : memref<512x1152xf32, #tpu.memory_space<vmem>>, vector<512x128xf32>
    tpu.vector_store %arg10[%c0_43, %c384], %20 {strides = array<i32>} : memref<512x1152xf32, #tpu.memory_space<vmem>>, vector<512x128xf32>,
    %c0_44 = arith.constant 0 : index
    %c1_45 = arith.constant 1 : index
    %c1_46 = arith.constant 1 : index
    %c0_47 = arith.constant 0 : index
    %22 = vector.load %arg8[%c0_44, %c1_45, %c1_46, %c0_47] : memref<2x18x18x128xf32, #tpu.memory_space<vmem>>, vector<2x16x16x128xf32>
    %23 = vector.shape_cast %22 : vector<2x16x16x128xf32> to vector<512x128xf32>
    %c0_48 = arith.constant 0 : index
    %c512 = arith.constant 512 : index
    %24 = vector.load %arg10[%c0_48, %c512] : memref<512x1152xf32, #tpu.memory_space<vmem>>, vector<512x128xf32>
    tpu.vector_store %arg10[%c0_48, %c512], %23 {strides = array<i32>} : memref<512x1152xf32, #tpu.memory_space<vmem>>, vector<512x128xf32>,
    %c0_49 = arith.constant 0 : index
    %c1_50 = arith.constant 1 : index
    %c2_51 = arith.constant 2 : index
    %c0_52 = arith.constant 0 : index
    %25 = vector.load %arg8[%c0_49, %c1_50, %c2_51, %c0_52] : memref<2x18x18x128xf32, #tpu.memory_space<vmem>>, vector<2x16x16x128xf32>
    %26 = vector.shape_cast %25 : vector<2x16x16x128xf32> to vector<512x128xf32>
    %c0_53 = arith.constant 0 : index
    %c640 = arith.constant 640 : index
    %27 = vector.load %arg10[%c0_53, %c640] : memref<512x1152xf32, #tpu.memory_space<vmem>>, vector<512x128xf32>
    tpu.vector_store %arg10[%c0_53, %c640], %26 {strides = array<i32>} : memref<512x1152xf32, #tpu.memory_space<vmem>>, vector<512x128xf32>,
    %c0_54 = arith.constant 0 : index
    %c2_55 = arith.constant 2 : index
    %c0_56 = arith.constant 0 : index
    %c0_57 = arith.constant 0 : index
    %28 = vector.load %arg8[%c0_54, %c2_55, %c0_56, %c0_57] : memref<2x18x18x128xf32, #tpu.memory_space<vmem>>, vector<2x16x16x128xf32>
    %29 = vector.shape_cast %28 : vector<2x16x16x128xf32> to vector<512x128xf32>
    %c0_58 = arith.constant 0 : index
    %c768 = arith.constant 768 : index
    %30 = vector.load %arg10[%c0_58, %c768] : memref<512x1152xf32, #tpu.memory_space<vmem>>, vector<512x128xf32>
    tpu.vector_store %arg10[%c0_58, %c768], %29 {strides = array<i32>} : memref<512x1152xf32, #tpu.memory_space<vmem>>, vector<512x128xf32>,
    %c0_59 = arith.constant 0 : index
    %c2_60 = arith.constant 2 : index
    %c1_61 = arith.constant 1 : index
    %c0_62 = arith.constant 0 : index
    %31 = vector.load %arg8[%c0_59, %c2_60, %c1_61, %c0_62] : memref<2x18x18x128xf32, #tpu.memory_space<vmem>>, vector<2x16x16x128xf32>
    %32 = vector.shape_cast %31 : vector<2x16x16x128xf32> to vector<512x128xf32>
    %c0_63 = arith.constant 0 : index
    %c896 = arith.constant 896 : index
    %33 = vector.load %arg10[%c0_63, %c896] : memref<512x1152xf32, #tpu.memory_space<vmem>>, vector<512x128xf32>
    tpu.vector_store %arg10[%c0_63, %c896], %32 {strides = array<i32>} : memref<512x1152xf32, #tpu.memory_space<vmem>>, vector<512x128xf32>,
    %c0_64 = arith.constant 0 : index
    %c2_65 = arith.constant 2 : index
    %c2_66 = arith.constant 2 : index
    %c0_67 = arith.constant 0 : index
    %34 = vector.load %arg8[%c0_64, %c2_65, %c2_66, %c0_67] : memref<2x18x18x128xf32, #tpu.memory_space<vmem>>, vector<2x16x16x128xf32>
    %35 = vector.shape_cast %34 : vector<2x16x16x128xf32> to vector<512x128xf32>
    %c0_68 = arith.constant 0 : index
    %c1024 = arith.constant 1024 : index
    %36 = vector.load %arg10[%c0_68, %c1024] : memref<512x1152xf32, #tpu.memory_space<vmem>>, vector<512x128xf32>
    tpu.vector_store %arg10[%c0_68, %c1024], %35 {strides = array<i32>} : memref<512x1152xf32, #tpu.memory_space<vmem>>, vector<512x128xf32>,
    %c0_69 = arith.constant 0 : index
    %c0_70 = arith.constant 0 : index
    %37 = vector.load %arg10[%c0_69, %c0_70] : memref<512x1152xf32, #tpu.memory_space<vmem>>, vector<512x1152xf32>
    %c0_71 = arith.constant 0 : index
    %c0_72 = arith.constant 0 : index
    %38 = vector.load %arg1[%c0_71, %c0_72] : memref<1152x128xf32, #tpu.memory_space<vmem>>, vector<1152x128xf32>
    %cst_73 = arith.constant dense<0.000000e+00> : vector<512x128xf32>
    %39 = tpu.matmul %37, %38, %cst_73 {dimension_numbers = #tpu.dot_dimension_numbers<[1], [0], [0], [1], [0, 0, 1, 1], [], []>} : vector<512x1152xf32>, vector<1152x128xf32>, vector<512x128xf32> -> vector<512x128xf32>
    %c0_74 = arith.constant 0 : index
    %c0_75 = arith.constant 0 : index
    %40 = vector.load %arg2[%c0_74, %c0_75] : memref<1x128xf32, #tpu.memory_space<vmem>>, vector<1x128xf32>
    %c0_76 = arith.constant 0 : index
    %c0_77 = arith.constant 0 : index
    %41 = vector.load %arg3[%c0_76, %c0_77] : memref<1x128xf32, #tpu.memory_space<vmem>>, vector<1x128xf32>
    %cst_78 = arith.constant dense<0.000000e+00> : vector<128xf32>
    %42 = vector.multi_reduction <add>, %39, %cst_78 [0] : vector<512x128xf32> to vector<128xf32>
    %43 = vector.shape_cast %42 : vector<128xf32> to vector<1x128xf32>
    %cst_79 = arith.constant 0.001953125 : f32
    %44 = vector.broadcast %cst_79 : f32 to vector<1x128xf32>
    %45 = arith.mulf %43, %44 : vector<1x128xf32>
    %46 = arith.mulf %39, %39 : vector<512x128xf32>
    %cst_80 = arith.constant dense<0.000000e+00> : vector<128xf32>
    %47 = vector.multi_reduction <add>, %46, %cst_80 [0] : vector<512x128xf32> to vector<128xf32>
    %48 = vector.shape_cast %47 : vector<128xf32> to vector<1x128xf32>
    %cst_81 = arith.constant 0.001953125 : f32
    %49 = vector.broadcast %cst_81 : f32 to vector<1x128xf32>
    %50 = arith.mulf %48, %49 : vector<1x128xf32>
    %51 = arith.mulf %45, %45 : vector<1x128xf32>
    %52 = arith.subf %50, %51 : vector<1x128xf32>
    %cst_82 = arith.constant 0.000000e+00 : f32
    %53 = vector.broadcast %cst_82 : f32 to vector<1x128xf32>
    %54 = arith.maximumf %52, %53 : vector<1x128xf32>
    %cst_83 = arith.constant 9.99999974E-6 : f32
    %55 = vector.broadcast %cst_83 : f32 to vector<1x128xf32>
    %56 = arith.addf %54, %55 : vector<1x128xf32>
    %57 = math.rsqrt %56 : vector<1x128xf32>
    %58 = arith.mulf %40, %57 : vector<1x128xf32>
    %59 = arith.mulf %45, %58 : vector<1x128xf32>
    %60 = arith.subf %41, %59 : vector<1x128xf32>
    %61 = vector.broadcast %58 : vector<1x128xf32> to vector<512x128xf32>
    %62 = arith.mulf %39, %61 : vector<512x128xf32>
    %63 = vector.broadcast %60 : vector<1x128xf32> to vector<512x128xf32>
    %64 = arith.addf %62, %63 : vector<512x128xf32>
    %cst_84 = arith.constant 0.000000e+00 : f32
    %65 = vector.broadcast %cst_84 : f32 to vector<512x128xf32>
    %66 = arith.maximumf %64, %65 : vector<512x128xf32>
    %cst_85 = arith.constant 0.000000e+00 : f32
    %67 = vector.broadcast %cst_85 : f32 to vector<2x2x20x128xf32>
    %c0_86 = arith.constant 0 : index
    %c0_87 = arith.constant 0 : index
    %c0_88 = arith.constant 0 : index
    %c0_89 = arith.constant 0 : index
    %68 = vector.load %arg9[%c0_86, %c0_87, %c0_88, %c0_89] : memref<2x20x20x128xf32, #tpu.memory_space<vmem>>, vector<2x2x20x128xf32>
    tpu.vector_store %arg9[%c0_86, %c0_87, %c0_88, %c0_89], %67 {strides = array<i32>} : memref<2x20x20x128xf32, #tpu.memory_space<vmem>>, vector<2x2x20x128xf32>,
    %cst_90 = arith.constant 0.000000e+00 : f32
    %69 = vector.broadcast %cst_90 : f32 to vector<2x2x20x128xf32>
    %c0_91 = arith.constant 0 : index
    %c18 = arith.constant 18 : index
    %c0_92 = arith.constant 0 : index
    %c0_93 = arith.constant 0 : index
    %70 = vector.load %arg9[%c0_91, %c18, %c0_92, %c0_93] : memref<2x20x20x128xf32, #tpu.memory_space<vmem>>, vector<2x2x20x128xf32>
    tpu.vector_store %arg9[%c0_91, %c18, %c0_92, %c0_93], %69 {strides = array<i32>} : memref<2x20x20x128xf32, #tpu.memory_space<vmem>>, vector<2x2x20x128xf32>,
    %cst_94 = arith.constant 0.000000e+00 : f32
    %71 = vector.broadcast %cst_94 : f32 to vector<2x20x2x128xf32>
    %c0_95 = arith.constant 0 : index
    %c0_96 = arith.constant 0 : index
    %c0_97 = arith.constant 0 : index
    %c0_98 = arith.constant 0 : index
    %72 = vector.load %arg9[%c0_95, %c0_96, %c0_97, %c0_98] : memref<2x20x20x128xf32, #tpu.memory_space<vmem>>, vector<2x20x2x128xf32>
    tpu.vector_store %arg9[%c0_95, %c0_96, %c0_97, %c0_98], %71 {strides = array<i32>} : memref<2x20x20x128xf32, #tpu.memory_space<vmem>>, vector<2x20x2x128xf32>,
    %cst_99 = arith.constant 0.000000e+00 : f32
    %73 = vector.broadcast %cst_99 : f32 to vector<2x20x2x128xf32>
    %c0_100 = arith.constant 0 : index
    %c0_101 = arith.constant 0 : index
    %c18_102 = arith.constant 18 : index
    %c0_103 = arith.constant 0 : index
    %74 = vector.load %arg9[%c0_100, %c0_101, %c18_102, %c0_103] : memref<2x20x20x128xf32, #tpu.memory_space<vmem>>, vector<2x20x2x128xf32>
    tpu.vector_store %arg9[%c0_100, %c0_101, %c18_102, %c0_103], %73 {strides = array<i32>} : memref<2x20x20x128xf32, #tpu.memory_space<vmem>>, vector<2x20x2x128xf32>,
    %75 = vector.shape_cast %66 : vector<512x128xf32> to vector<2x16x16x128xf32>
    %c0_104 = arith.constant 0 : index
    %c2_105 = arith.constant 2 : index
    %c2_106 = arith.constant 2 : index
    %c0_107 = arith.constant 0 : index
    %76 = vector.load %arg9[%c0_104, %c2_105, %c2_106, %c0_107] : memref<2x20x20x128xf32, #tpu.memory_space<vmem>>, vector<2x16x16x128xf32>
    tpu.vector_store %arg9[%c0_104, %c2_105, %c2_106, %c0_107], %75 {strides = array<i32>} : memref<2x20x20x128xf32, #tpu.memory_space<vmem>>, vector<2x16x16x128xf32>,
    %c0_108 = arith.constant 0 : index
    %c0_109 = arith.constant 0 : index
    %c0_110 = arith.constant 0 : index
    %c0_111 = arith.constant 0 : index
    %77 = vector.load %arg9[%c0_108, %c0_109, %c0_110, %c0_111] : memref<2x20x20x128xf32, #tpu.memory_space<vmem>>, vector<2x16x16x128xf32>
    %78 = vector.shape_cast %77 : vector<2x16x16x128xf32> to vector<512x128xf32>
    %c0_112 = arith.constant 0 : index
    %c0_113 = arith.constant 0 : index
    %79 = vector.load %arg10[%c0_112, %c0_113] : memref<512x1152xf32, #tpu.memory_space<vmem>>, vector<512x128xf32>
    tpu.vector_store %arg10[%c0_112, %c0_113], %78 {strides = array<i32>} : memref<512x1152xf32, #tpu.memory_space<vmem>>, vector<512x128xf32>,
    %c0_114 = arith.constant 0 : index
    %c0_115 = arith.constant 0 : index
    %c2_116 = arith.constant 2 : index
    %c0_117 = arith.constant 0 : index
    %80 = vector.load %arg9[%c0_114, %c0_115, %c2_116, %c0_117] : memref<2x20x20x128xf32, #tpu.memory_space<vmem>>, vector<2x16x16x128xf32>
    %81 = vector.shape_cast %80 : vector<2x16x16x128xf32> to vector<512x128xf32>
    %c0_118 = arith.constant 0 : index
    %c128_119 = arith.constant 128 : index
    %82 = vector.load %arg10[%c0_118, %c128_119] : memref<512x1152xf32, #tpu.memory_space<vmem>>, vector<512x128xf32>
    tpu.vector_store %arg10[%c0_118, %c128_119], %81 {strides = array<i32>} : memref<512x1152xf32, #tpu.memory_space<vmem>>, vector<512x128xf32>,
    %c0_120 = arith.constant 0 : index
    %c0_121 = arith.constant 0 : index
    %c4 = arith.constant 4 : index
    %c0_122 = arith.constant 0 : index
    %83 = vector.load %arg9[%c0_120, %c0_121, %c4, %c0_122] : memref<2x20x20x128xf32, #tpu.memory_space<vmem>>, vector<2x16x16x128xf32>
    %84 = vector.shape_cast %83 : vector<2x16x16x128xf32> to vector<512x128xf32>
    %c0_123 = arith.constant 0 : index
    %c256_124 = arith.constant 256 : index
    %85 = vector.load %arg10[%c0_123, %c256_124] : memref<512x1152xf32, #tpu.memory_space<vmem>>, vector<512x128xf32>
    tpu.vector_store %arg10[%c0_123, %c256_124], %84 {strides = array<i32>} : memref<512x1152xf32, #tpu.memory_space<vmem>>, vector<512x128xf32>,
    %c0_125 = arith.constant 0 : index
    %c2_126 = arith.constant 2 : index
    %c0_127 = arith.constant 0 : index
    %c0_128 = arith.constant 0 : index
    %86 = vector.load %arg9[%c0_125, %c2_126, %c0_127, %c0_128] : memref<2x20x20x128xf32, #tpu.memory_space<vmem>>, vector<2x16x16x128xf32>
    %87 = vector.shape_cast %86 : vector<2x16x16x128xf32> to vector<512x128xf32>
    %c0_129 = arith.constant 0 : index
    %c384_130 = arith.constant 384 : index
    %88 = vector.load %arg10[%c0_129, %c384_130] : memref<512x1152xf32, #tpu.memory_space<vmem>>, vector<512x128xf32>
    tpu.vector_store %arg10[%c0_129, %c384_130], %87 {strides = array<i32>} : memref<512x1152xf32, #tpu.memory_space<vmem>>, vector<512x128xf32>,
    %c0_131 = arith.constant 0 : index
    %c2_132 = arith.constant 2 : index
    %c2_133 = arith.constant 2 : index
    %c0_134 = arith.constant 0 : index
    %89 = vector.load %arg9[%c0_131, %c2_132, %c2_133, %c0_134] : memref<2x20x20x128xf32, #tpu.memory_space<vmem>>, vector<2x16x16x128xf32>
    %90 = vector.shape_cast %89 : vector<2x16x16x128xf32> to vector<512x128xf32>
    %c0_135 = arith.constant 0 : index
    %c512_136 = arith.constant 512 : index
    %91 = vector.load %arg10[%c0_135, %c512_136] : memref<512x1152xf32, #tpu.memory_space<vmem>>, vector<512x128xf32>
    tpu.vector_store %arg10[%c0_135, %c512_136], %90 {strides = array<i32>} : memref<512x1152xf32, #tpu.memory_space<vmem>>, vector<512x128xf32>,
    %c0_137 = arith.constant 0 : index
    %c2_138 = arith.constant 2 : index
    %c4_139 = arith.constant 4 : index
    %c0_140 = arith.constant 0 : index
    %92 = vector.load %arg9[%c0_137, %c2_138, %c4_139, %c0_140] : memref<2x20x20x128xf32, #tpu.memory_space<vmem>>, vector<2x16x16x128xf32>
    %93 = vector.shape_cast %92 : vector<2x16x16x128xf32> to vector<512x128xf32>
    %c0_141 = arith.constant 0 : index
    %c640_142 = arith.constant 640 : index
    %94 = vector.load %arg10[%c0_141, %c640_142] : memref<512x1152xf32, #tpu.memory_space<vmem>>, vector<512x128xf32>
    tpu.vector_store %arg10[%c0_141, %c640_142], %93 {strides = array<i32>} : memref<512x1152xf32, #tpu.memory_space<vmem>>, vector<512x128xf32>,
    %c0_143 = arith.constant 0 : index
    %c4_144 = arith.constant 4 : index
    %c0_145 = arith.constant 0 : index
    %c0_146 = arith.constant 0 : index
    %95 = vector.load %arg9[%c0_143, %c4_144, %c0_145, %c0_146] : memref<2x20x20x128xf32, #tpu.memory_space<vmem>>, vector<2x16x16x128xf32>
    %96 = vector.shape_cast %95 : vector<2x16x16x128xf32> to vector<512x128xf32>
    %c0_147 = arith.constant 0 : index
    %c768_148 = arith.constant 768 : index
    %97 = vector.load %arg10[%c0_147, %c768_148] : memref<512x1152xf32, #tpu.memory_space<vmem>>, vector<512x128xf32>
    tpu.vector_store %arg10[%c0_147, %c768_148], %96 {strides = array<i32>} : memref<512x1152xf32, #tpu.memory_space<vmem>>, vector<512x128xf32>,
    %c0_149 = arith.constant 0 : index
    %c4_150 = arith.constant 4 : index
    %c2_151 = arith.constant 2 : index
    %c0_152 = arith.constant 0 : index
    %98 = vector.load %arg9[%c0_149, %c4_150, %c2_151, %c0_152] : memref<2x20x20x128xf32, #tpu.memory_space<vmem>>, vector<2x16x16x128xf32>
    %99 = vector.shape_cast %98 : vector<2x16x16x128xf32> to vector<512x128xf32>
    %c0_153 = arith.constant 0 : index
    %c896_154 = arith.constant 896 : index
    %100 = vector.load %arg10[%c0_153, %c896_154] : memref<512x1152xf32, #tpu.memory_space<vmem>>, vector<512x128xf32>
    tpu.vector_store %arg10[%c0_153, %c896_154], %99 {strides = array<i32>} : memref<512x1152xf32, #tpu.memory_space<vmem>>, vector<512x128xf32>,
    %c0_155 = arith.constant 0 : index
    %c4_156 = arith.constant 4 : index
    %c4_157 = arith.constant 4 : index
    %c0_158 = arith.constant 0 : index
    %101 = vector.load %arg9[%c0_155, %c4_156, %c4_157, %c0_158] : memref<2x20x20x128xf32, #tpu.memory_space<vmem>>, vector<2x16x16x128xf32>
    %102 = vector.shape_cast %101 : vector<2x16x16x128xf32> to vector<512x128xf32>
    %c0_159 = arith.constant 0 : index
    %c1024_160 = arith.constant 1024 : index
    %103 = vector.load %arg10[%c0_159, %c1024_160] : memref<512x1152xf32, #tpu.memory_space<vmem>>, vector<512x128xf32>
    tpu.vector_store %arg10[%c0_159, %c1024_160], %102 {strides = array<i32>} : memref<512x1152xf32, #tpu.memory_space<vmem>>, vector<512x128xf32>,
    %c0_161 = arith.constant 0 : index
    %c0_162 = arith.constant 0 : index
    %104 = vector.load %arg10[%c0_161, %c0_162] : memref<512x1152xf32, #tpu.memory_space<vmem>>, vector<512x1152xf32>
    %c0_163 = arith.constant 0 : index
    %c0_164 = arith.constant 0 : index
    %105 = vector.load %arg4[%c0_163, %c0_164] : memref<1152x128xf32, #tpu.memory_space<vmem>>, vector<1152x128xf32>
    %cst_165 = arith.constant dense<0.000000e+00> : vector<512x128xf32>
    %106 = tpu.matmul %104, %105, %cst_165 {dimension_numbers = #tpu.dot_dimension_numbers<[1], [0], [0], [1], [0, 0, 1, 1], [], []>} : vector<512x1152xf32>, vector<1152x128xf32>, vector<512x128xf32> -> vector<512x128xf32>
    %c0_166 = arith.constant 0 : index
    %c0_167 = arith.constant 0 : index
    %107 = vector.load %arg5[%c0_166, %c0_167] : memref<1x128xf32, #tpu.memory_space<vmem>>, vector<1x128xf32>
    %c0_168 = arith.constant 0 : index
    %c0_169 = arith.constant 0 : index
    %108 = vector.load %arg6[%c0_168, %c0_169] : memref<1x128xf32, #tpu.memory_space<vmem>>, vector<1x128xf32>
    %cst_170 = arith.constant dense<0.000000e+00> : vector<128xf32>
    %109 = vector.multi_reduction <add>, %106, %cst_170 [0] : vector<512x128xf32> to vector<128xf32>
    %110 = vector.shape_cast %109 : vector<128xf32> to vector<1x128xf32>
    %cst_171 = arith.constant 0.001953125 : f32
    %111 = vector.broadcast %cst_171 : f32 to vector<1x128xf32>
    %112 = arith.mulf %110, %111 : vector<1x128xf32>
    %113 = arith.mulf %106, %106 : vector<512x128xf32>
    %cst_172 = arith.constant dense<0.000000e+00> : vector<128xf32>
    %114 = vector.multi_reduction <add>, %113, %cst_172 [0] : vector<512x128xf32> to vector<128xf32>
    %115 = vector.shape_cast %114 : vector<128xf32> to vector<1x128xf32>
    %cst_173 = arith.constant 0.001953125 : f32
    %116 = vector.broadcast %cst_173 : f32 to vector<1x128xf32>
    %117 = arith.mulf %115, %116 : vector<1x128xf32>
    %118 = arith.mulf %112, %112 : vector<1x128xf32>
    %119 = arith.subf %117, %118 : vector<1x128xf32>
    %cst_174 = arith.constant 0.000000e+00 : f32
    %120 = vector.broadcast %cst_174 : f32 to vector<1x128xf32>
    %121 = arith.maximumf %119, %120 : vector<1x128xf32>
    %cst_175 = arith.constant 9.99999974E-6 : f32
    %122 = vector.broadcast %cst_175 : f32 to vector<1x128xf32>
    %123 = arith.addf %121, %122 : vector<1x128xf32>
    %124 = math.rsqrt %123 : vector<1x128xf32>
    %125 = arith.mulf %107, %124 : vector<1x128xf32>
    %126 = arith.mulf %112, %125 : vector<1x128xf32>
    %127 = arith.subf %108, %126 : vector<1x128xf32>
    %128 = vector.broadcast %125 : vector<1x128xf32> to vector<512x128xf32>
    %129 = arith.mulf %106, %128 : vector<512x128xf32>
    %130 = vector.broadcast %127 : vector<1x128xf32> to vector<512x128xf32>
    %131 = arith.addf %129, %130 : vector<512x128xf32>
    %c0_176 = arith.constant 0 : index
    %c0_177 = arith.constant 0 : index
    %c0_178 = arith.constant 0 : index
    %c0_179 = arith.constant 0 : index
    %132 = vector.load %arg0[%c0_176, %c0_177, %c0_178, %c0_179] : memref<2x16x16x128xf32, #tpu.memory_space<vmem>>, vector<2x16x16x128xf32>
    %133 = vector.shape_cast %132 : vector<2x16x16x128xf32> to vector<512x128xf32>
    %134 = arith.addf %131, %133 : vector<512x128xf32>
    %cst_180 = arith.constant 0.000000e+00 : f32
    %135 = vector.broadcast %cst_180 : f32 to vector<512x128xf32>
    %136 = arith.maximumf %134, %135 : vector<512x128xf32>
    %137 = vector.shape_cast %136 : vector<512x128xf32> to vector<2x16x16x128xf32>
    %c0_181 = arith.constant 0 : index
    %c0_182 = arith.constant 0 : index
    %c0_183 = arith.constant 0 : index
    %c0_184 = arith.constant 0 : index
    %138 = vector.load %arg7[%c0_181, %c0_182, %c0_183, %c0_184] : memref<2x16x16x128xf32, #tpu.memory_space<vmem>>, vector<2x16x16x128xf32>
    tpu.vector_store %arg7[%c0_181, %c0_182, %c0_183, %c0_184], %137 {strides = array<i32>} : memref<2x16x16x128xf32, #tpu.memory_space<vmem>>, vector<2x16x16x128xf32>,
    return
  }
}

</mosaic_0001>

<llo_original>
// kernel: tpu_custom_call.1
$region0: #{tpu_custom_call.1}
  #allocation0 [shape = 'u32[]', space=smem, size = 0x4, offset = 0x4, fixed_abs, tag = 'smem constant byte address 0x4 - core index']
  #allocation1 [shape = 'u32[144,128]{1,0:T(1,128)}', space=vmem, size = 0x12000, scoped, tag = 'internal scratch']
  #allocation2 [shape = 'f32[2,18,18,128]{3,2,1,0:T(8,128)}', space=vmem, size = 0x6c000, scoped, tag = 'scratch operand']
  #allocation3 [shape = 'f32[2,20,20,128]{3,2,1,0:T(8,128)}', space=vmem, size = 0x78000, scoped, tag = 'scratch operand']
  #allocation4 [shape = 'f32[512,1152]{1,0:T(8,128)}', space=vmem, size = 0x240000, scoped, tag = 'scratch operand']
  %s0 = inlined_call_operand.hbm [shape: f32[2,16,16,128], index: 0, kind: input, shape index: {}]
  %s1 = inlined_call_operand.hbm [shape: f32[1152,128], index: 1, kind: input, shape index: {}]
  %s2 = inlined_call_operand.vmem [shape: f32[1,128], index: 2, kind: input, shape index: {}]
  %s3 = inlined_call_operand.vmem [shape: f32[1,128], index: 3, kind: input, shape index: {}]
  %s4 = inlined_call_operand.hbm [shape: f32[1152,128], index: 4, kind: input, shape index: {}]
  %s5 = inlined_call_operand.vmem [shape: f32[1,128], index: 5, kind: input, shape index: {}]
  %s6 = inlined_call_operand.vmem [shape: f32[1,128], index: 6, kind: input, shape index: {}]
  %s7 = inlined_call_operand.hbm [shape: f32[2,16,16,128], index: 7, kind: output, shape index: {}]
  %s8 = sld [smem:[#allocation0]]
  $region50: #{tpu_custom_call.1} parent=0
    _
  %s10 = ssub.s32 1, %s8
  %s11 = scalar_select 0, %s10, %s8
  $region1: #{tpu_custom_call.1} parent=0
    #allocation5 [shape = 'u8[262144]{0}', space=vmem, size = 0x40000, scoped, tag = 'input window, operand 0, single buffered']
    #allocation6 [shape = 's32[1]{0}', space=sflag, size = 0x4, scoped, tag = 'scoped memory for tpu_custom_call.1']
    #allocation7 [shape = 's32[1]{0}', space=sflag, size = 0x4, scoped, tag = 'scoped memory for tpu_custom_call.1']
    #allocation8 [shape = 'u8[589824]{0}', space=vmem, size = 0x90000, scoped, tag = 'input window, operand 1, single buffered']
    #allocation9 [shape = 's32[1]{0}', space=sflag, size = 0x4, scoped, tag = 'scoped memory for tpu_custom_call.1']
    #allocation10 [shape = 'u8[589824]{0}', space=vmem, size = 0x90000, scoped, tag = 'input window, operand 4, single buffered']
    #allocation11 [shape = 'u8[262144]{0}', space=vmem, size = 0x40000, scoped, tag = 'output window, operand 0, single buffered']
    %12 = vsyncpa [#allocation6], 0
    %13 = vsyncpa [#allocation9], 0
    %14 = vsyncpa [#allocation7], 0
    // Predicated region
    $region2: #{tpu_custom_call.1} parent=1 // pred_check
      _
    $region3: #{tpu_custom_call.1} parent=1 // pred_check_branch
      %16 = sbr.rel (0) target = $region5
    $region4: #{tpu_custom_call.1} parent=1 // pred_region
      %s18 = ssub.s32 8192, 8192
      %19 = vsyncadd [#allocation6], %s18
      %s20 = sshll.u32 [#allocation5], 4
      %s21 = int_to_ptr.vmem [resolvable:$true] %s20
      %26 = dma.hbm_to_vmem [thread:$0]  %s0, 8192, %s21, [#allocation6], 128, 128, 8
    $region5: #{tpu_custom_call.1} parent=1 // pred_fallthru
      _
    // Predicated region
    $region6: #{tpu_custom_call.1} parent=1 // pred_check
      _
    $region7: #{tpu_custom_call.1} parent=1 // pred_check_branch
      %28 = sbr.rel (0) target = $region9
    $region8: #{tpu_custom_call.1} parent=1 // pred_region
      %s30 = ssub.s32 18432, 18432
      %31 = vsyncadd [#allocation9], %s30
      %s32 = sshll.u32 [#allocation8], 4
      %s33 = int_to_ptr.vmem [resolvable:$true] %s32
      %38 = dma.hbm_to_vmem [thread:$0]  %s1, 18432, %s33, [#allocation9], 128, 128, 8
    $region9: #{tpu_custom_call.1} parent=1 // pred_fallthru
      _
    // Predicated region
    $region10: #{tpu_custom_call.1} parent=1 // pred_check
      _
    $region11: #{tpu_custom_call.1} parent=1 // pred_check_branch
      %40 = sbr.rel (0) target = $region13
    $region12: #{tpu_custom_call.1} parent=1 // pred_region
      _
    $region13: #{tpu_custom_call.1} parent=1 // pred_fallthru
      _
    // Predicated region
    $region14: #{tpu_custom_call.1} parent=1 // pred_check
      _
    $region15: #{tpu_custom_call.1} parent=1 // pred_check_branch
      %42 = sbr.rel (0) target = $region17
    $region16: #{tpu_custom_call.1} parent=1 // pred_region
      _
    $region17: #{tpu_custom_call.1} parent=1 // pred_fallthru
      _
    // Predicated region
    $region18: #{tpu_custom_call.1} parent=1 // pred_check
      _
    $region19: #{tpu_custom_call.1} parent=1 // pred_check_branch
      %44 = sbr.rel (0) target = $region21
    $region20: #{tpu_custom_call.1} parent=1 // pred_region
      %s46 = ssub.s32 18432, 18432
      %47 = vsyncadd [#allocation9], %s46
      %s48 = sshll.u32 [#allocation10], 4
      %s49 = int_to_ptr.vmem [resolvable:$true] %s48
      %54 = dma.hbm_to_vmem [thread:$0]  %s4, 18432, %s49, [#allocation9], 128, 128, 8
    $region21: #{tpu_custom_call.1} parent=1 // pred_fallthru
      _
    // Predicated region
    $region22: #{tpu_custom_call.1} parent=1 // pred_check
      _
    $region23: #{tpu_custom_call.1} parent=1 // pred_check_branch
      %56 = sbr.rel (0) target = $region25
    $region24: #{tpu_custom_call.1} parent=1 // pred_region
      _
    $region25: #{tpu_custom_call.1} parent=1 // pred_fallthru
      _
    // Predicated region
    $region26: #{tpu_custom_call.1} parent=1 // pred_check
      _
    $region27: #{tpu_custom_call.1} parent=1 // pred_check_branch
      %58 = sbr.rel (0) target = $region29
    $region28: #{tpu_custom_call.1} parent=1 // pred_region
      _
    $region29: #{tpu_custom_call.1} parent=1 // pred_fallthru
      _
    // Predicated region
    $region30: #{tpu_custom_call.1} parent=1 // pred_check
      _
    $region31: #{tpu_custom_call.1} parent=1 // pred_check_branch
      %60 = sbr.rel (0) target = $region33
    $region32: #{tpu_custom_call.1} parent=1 // pred_region
      %61 = dma.done [#allocation6], 8192
    $region33: #{tpu_custom_call.1} parent=1 // pred_fallthru
      _
    // Predicated region
    $region34: #{tpu_custom_call.1} parent=1 // pred_check
      _
    $region35: #{tpu_custom_call.1} parent=1 // pred_check_branch
      %63 = sbr.rel (0) target = $region37
    $region36: #{tpu_custom_call.1} parent=1 // pred_region
      %64 = dma.done [#allocation9], 18432
    $region37: #{tpu_custom_call.1} parent=1 // pred_fallthru
      _
    // Predicated region
    $region38: #{tpu_custom_call.1} parent=1 // pred_check
      _
    $region39: #{tpu_custom_call.1} parent=1 // pred_check_branch
      %66 = sbr.rel (0) target = $region41
    $region40: #{tpu_custom_call.1} parent=1 // pred_region
      %67 = dma.done [#allocation9], 18432
    $region41: #{tpu_custom_call.1} parent=1 // pred_fallthru
      _
    %68 = vst [vmem:[#allocation2] sm:$0xff] 0.0
    %69 = vst [vmem:[#allocation2 + $0x8] sm:$0xff] 0.0
    %70 = vst [vmem:[#allocation2 + $0x10] sm:$0x3] 0.0
    %71 = vst [vmem:[#allocation2 + $0x1b0] sm:$0xff] 0.0
    %72 = vst [vmem:[#allocation2 + $0x1b8] sm:$0xff] 0.0
    %73 = vst [vmem:[#allocation2 + $0x1c0] sm:$0x3] 0.0
    %s74 = scalar_lea.vmem [#allocation2], 408
    %75 = vst [vmem:[%s74] sm:$0xff] 0.0
    %76 = vst [vmem:[%s74 + $0x8] sm:$0xff] 0.0
    %77 = vst [vmem:[%s74 + $0x10] sm:$0x3] 0.0
    %78 = vst [vmem:[%s74 + $0x1b0] sm:$0xff] 0.0
    %79 = vst [vmem:[%s74 + $0x1b8] sm:$0xff] 0.0
    %80 = vst [vmem:[%s74 + $0x1c0] sm:$0x3] 0.0
    %81 = vst [vmem:[#allocation2] sm:$0x1] 0.0
    %82 = vst [vmem:[#allocation2 + $0x18] sm:$0x1] 0.0
    %83 = vst [vmem:[#allocation2 + $0x30] sm:$0x1] 0.0
    %84 = vst [vmem:[#allocation2 + $0x48] sm:$0x1] 0.0
    %85 = vst [vmem:[#allocation2 + $0x60] sm:$0x1] 0.0
    %86 = vst [vmem:[#allocation2 + $0x78] sm:$0x1] 0.0
    %87 = vst [vmem:[#allocation2 + $0x90] sm:$0x1] 0.0
    %88 = vst [vmem:[#allocation2 + $0xa8] sm:$0x1] 0.0
    %89 = vst [vmem:[#allocation2 + $0xc0] sm:$0x1] 0.0
    %90 = vst [vmem:[#allocation2 + $0xd8] sm:$0x1] 0.0
    %91 = vst [vmem:[#allocation2 + $0xf0] sm:$0x1] 0.0
    %92 = vst [vmem:[#allocation2 + $0x108] sm:$0x1] 0.0
    %93 = vst [vmem:[#allocation2 + $0x120] sm:$0x1] 0.0
    %94 = vst [vmem:[#allocation2 + $0x138] sm:$0x1] 0.0
    %95 = vst [vmem:[#allocation2 + $0x150] sm:$0x1] 0.0
    %96 = vst [vmem:[#allocation2 + $0x168] sm:$0x1] 0.0
    %97 = vst [vmem:[#allocation2 + $0x180] sm:$0x1] 0.0
    %98 = vst [vmem:[#allocation2 + $0x198] sm:$0x1] 0.0
    %99 = vst [vmem:[#allocation2 + $0x1b0] sm:$0x1] 0.0
    %100 = vst [vmem:[#allocation2 + $0x1c8] sm:$0x1] 0.0
    %101 = vst [vmem:[#allocation2 + $0x1e0] sm:$0x1] 0.0
    %102 = vst [vmem:[#allocation2 + $0x1f8] sm:$0x1] 0.0
    %103 = vst [vmem:[#allocation2 + $0x210] sm:$0x1] 0.0
    %104 = vst [vmem:[#allocation2 + $0x228] sm:$0x1] 0.0
    %105 = vst [vmem:[#allocation2 + $0x240] sm:$0x1] 0.0
    %106 = vst [vmem:[#allocation2 + $0x258] sm:$0x1] 0.0
    %107 = vst [vmem:[#allocation2 + $0x270] sm:$0x1] 0.0
    %108 = vst [vmem:[#allocation2 + $0x288] sm:$0x1] 0.0
    %109 = vst [vmem:[#allocation2 + $0x2a0] sm:$0x1] 0.0
    %110 = vst [vmem:[#allocation2 + $0x2b8] sm:$0x1] 0.0
    %111 = vst [vmem:[#allocation2 + $0x2d0] sm:$0x1] 0.0
    %112 = vst [vmem:[#allocation2 + $0x2e8] sm:$0x1] 0.0
    %113 = vst [vmem:[#allocation2 + $0x300] sm:$0x1] 0.0
    %114 = vst [vmem:[#allocation2 + $0x318] sm:$0x1] 0.0
    %115 = vst [vmem:[#allocation2 + $0x330] sm:$0x1] 0.0
    %116 = vst [vmem:[#allocation2 + $0x348] sm:$0x1] 0.0
    %117 = vst [vmem:[#allocation2 + $0x11] sm:$0x1] 0.0
    %118 = vst [vmem:[#allocation2 + $0x29] sm:$0x1] 0.0
    %119 = vst [vmem:[#allocation2 + $0x41] sm:$0x1] 0.0
    %120 = vst [vmem:[#allocation2 + $0x59] sm:$0x1] 0.0
    %121 = vst [vmem:[#allocation2 + $0x71] sm:$0x1] 0.0
    %122 = vst [vmem:[#allocation2 + $0x89] sm:$0x1] 0.0
    %123 = vst [vmem:[#allocation2 + $0xa1] sm:$0x1] 0.0
    %124 = vst [vmem:[#allocation2 + $0xb9] sm:$0x1] 0.0
    %125 = vst [vmem:[#allocation2 + $0xd1] sm:$0x1] 0.0
    %126 = vst [vmem:[#allocation2 + $0xe9] sm:$0x1] 0.0
    %127 = vst [vmem:[#allocation2 + $0x101] sm:$0x1] 0.0
    %128 = vst [vmem:[#allocation2 + $0x119] sm:$0x1] 0.0
    %129 = vst [vmem:[#allocation2 + $0x131] sm:$0x1] 0.0
    %130 = vst [vmem:[#allocation2 + $0x149] sm:$0x1] 0.0
    %131 = vst [vmem:[#allocation2 + $0x161] sm:$0x1] 0.0
    %132 = vst [vmem:[#allocation2 + $0x179] sm:$0x1] 0.0
    %133 = vst [vmem:[#allocation2 + $0x191] sm:$0x1] 0.0
    %134 = vst [vmem:[#allocation2 + $0x1a9] sm:$0x1] 0.0
    %135 = vst [vmem:[#allocation2 + $0x1c1] sm:$0x1] 0.0
    %136 = vst [vmem:[#allocation2 + $0x1d9] sm:$0x1] 0.0
    %137 = vst [vmem:[#allocation2 + $0x1f1] sm:$0x1] 0.0
    %138 = vst [vmem:[#allocation2 + $0x209] sm:$0x1] 0.0
    %139 = vst [vmem:[#allocation2 + $0x221] sm:$0x1] 0.0
    %140 = vst [vmem:[#allocation2 + $0x239] sm:$0x1] 0.0
    %141 = vst [vmem:[#allocation2 + $0x251] sm:$0x1] 0.0
    %142 = vst [vmem:[#allocation2 + $0x269] sm:$0x1] 0.0
    %143 = vst [vmem:[#allocation2 + $0x281] sm:$0x1] 0.0
    %144 = vst [vmem:[#allocation2 + $0x299] sm:$0x1] 0.0
    %145 = vst [vmem:[#allocation2 + $0x2b1] sm:$0x1] 0.0
    %146 = vst [vmem:[#allocation2 + $0x2c9] sm:$0x1] 0.0
    %147 = vst [vmem:[#allocation2 + $0x2e1] sm:$0x1] 0.0
    %148 = vst [vmem:[#allocation2 + $0x2f9] sm:$0x1] 0.0
    %149 = vst [vmem:[#allocation2 + $0x311] sm:$0x1] 0.0
    %150 = vst [vmem:[#allocation2 + $0x329] sm:$0x1] 0.0
    %151 = vst [vmem:[#allocation2 + $0x341] sm:$0x1] 0.0
    %152 = vst [vmem:[#allocation2 + $0x359] sm:$0x1] 0.0
    %v153 = vld [vmem:[#allocation5] sm:$0xff]
    %v154 = vld [vmem:[#allocation5 + $0x8] sm:$0xff]
    %v155 = vld [vmem:[#allocation5 + $0x10] sm:$0xff]
    %v156 = vld [vmem:[#allocation5 + $0x18] sm:$0xff]
    %v157 = vld [vmem:[#allocation5 + $0x20] sm:$0xff]
    %v158 = vld [vmem:[#allocation5 + $0x28] sm:$0xff]
    %v159 = vld [vmem:[#allocation5 + $0x30] sm:$0xff]
    %v160 = vld [vmem:[#allocation5 + $0x38] sm:$0xff]
    %v161 = vld [vmem:[#allocation5 + $0x40] sm:$0xff]
    %v162 = vld [vmem:[#allocation5 + $0x48] sm:$0xff]
    %v163 = vld [vmem:[#allocation5 + $0x50] sm:$0xff]
    %v164 = vld [vmem:[#allocation5 + $0x58] sm:$0xff]
    %v165 = vld [vmem:[#allocation5 + $0x60] sm:$0xff]
    %v166 = vld [vmem:[#allocation5 + $0x68] sm:$0xff]
    %v167 = vld [vmem:[#allocation5 + $0x70] sm:$0xff]
    %v168 = vld [vmem:[#allocation5 + $0x78] sm:$0xff]
    %v169 = vld [vmem:[#allocation5 + $0x80] sm:$0xff]
    %v170 = vld [vmem:[#allocation5 + $0x88] sm:$0xff]
    %v171 = vld [vmem:[#allocation5 + $0x90] sm:$0xff]
    %v172 = vld [vmem:[#allocation5 + $0x98] sm:$0xff]
    %v173 = vld [vmem:[#allocation5 + $0xa0] sm:$0xff]
    %v174 = vld [vmem:[#allocation5 + $0xa8] sm:$0xff]
    %v175 = vld [vmem:[#allocation5 + $0xb0] sm:$0xff]
    %v176 = vld [vmem:[#allocation5 + $0xb8] sm:$0xff]
    %v177 = vld [vmem:[#allocation5 + $0xc0] sm:$0xff]
    %v178 = vld [vmem:[#allocation5 + $0xc8] sm:$0xff]
    %v179 = vld [vmem:[#allocation5 + $0xd0] sm:$0xff]
    %v180 = vld [vmem:[#allocation5 + $0xd8] sm:$0xff]
    %v181 = vld [vmem:[#allocation5 + $0xe0] sm:$0xff]
    %v182 = vld [vmem:[#allocation5 + $0xe8] sm:$0xff]
    %v183 = vld [vmem:[#allocation5 + $0xf0] sm:$0xff]
    %v184 = vld [vmem:[#allocation5 + $0xf8] sm:$0xff]
    %v185 = vld [vmem:[#allocation5 + $0x100] sm:$0xff]
    %v186 = vld [vmem:[#allocation5 + $0x108] sm:$0xff]
    %v187 = vld [vmem:[#allocation5 + $0x110] sm:$0xff]
    %v188 = vld [vmem:[#allocation5 + $0x118] sm:$0xff]
    %v189 = vld [vmem:[#allocation5 + $0x120] sm:$0xff]
    %v190 = vld [vmem:[#allocation5 + $0x128] sm:$0xff]
    %v191 = vld [vmem:[#allocation5 + $0x130] sm:$0xff]
    %v192 = vld [vmem:[#allocation5 + $0x138] sm:$0xff]
    %v193 = vld [vmem:[#allocation5 + $0x140] sm:$0xff]
    %v194 = vld [vmem:[#allocation5 + $0x148] sm:$0xff]
    %v195 = vld [vmem:[#allocation5 + $0x150] sm:$0xff]
    %v196 = vld [vmem:[#allocation5 + $0x158] sm:$0xff]
    %v197 = vld [vmem:[#allocation5 + $0x160] sm:$0xff]
    %v198 = vld [vmem:[#allocation5 + $0x168] sm:$0xff]
    %v199 = vld [vmem:[#allocation5 + $0x170] sm:$0xff]
    %v200 = vld [vmem:[#allocation5 + $0x178] sm:$0xff]
    %v201 = vld [vmem:[#allocation5 + $0x180] sm:$0xff]
    %v202 = vld [vmem:[#allocation5 + $0x188] sm:$0xff]
    %v203 = vld [vmem:[#allocation5 + $0x190] sm:$0xff]
    %v204 = vld [vmem:[#allocation5 + $0x198] sm:$0xff]
    %v205 = vld [vmem:[#allocation5 + $0x1a0] sm:$0xff]
    %v206 = vld [vmem:[#allocation5 + $0x1a8] sm:$0xff]
    %v207 = vld [vmem:[#allocation5 + $0x1b0] sm:$0xff]
    %v208 = vld [vmem:[#allocation5 + $0x1b8] sm:$0xff]
    %v209 = vld [vmem:[#allocation5 + $0x1c0] sm:$0xff]
    %v210 = vld [vmem:[#allocation5 + $0x1c8] sm:$0xff]
    %v211 = vld [vmem:[#allocation5 + $0x1d0] sm:$0xff]
    %v212 = vld [vmem:[#allocation5 + $0x1d8] sm:$0xff]
    %v213 = vld [vmem:[#allocation5 + $0x1e0] sm:$0xff]
    %v214 = vld [vmem:[#allocation5 + $0x1e8] sm:$0xff]
    %v215 = vld [vmem:[#allocation5 + $0x1f0] sm:$0xff]
    %v216 = vld [vmem:[#allocation5 + $0x1f8] sm:$0xff]
    %s217 = scalar_lea.vmem [#allocation2], 24
    %218 = vst [vmem:[%s217 + $0x1] sm:$0xff] %v153
    %219 = vst [vmem:[%s217 + $0x9] sm:$0xff] %v154
    %220 = vst [vmem:[%s217 + $0x19] sm:$0xff] %v155
    %221 = vst [vmem:[%s217 + $0x21] sm:$0xff] %v156
    %222 = vst [vmem:[%s217 + $0x31] sm:$0xff] %v157
    %223 = vst [vmem:[%s217 + $0x39] sm:$0xff] %v158
    %224 = vst [vmem:[%s217 + $0x49] sm:$0xff] %v159
    %225 = vst [vmem:[%s217 + $0x51] sm:$0xff] %v160
    %226 = vst [vmem:[%s217 + $0x61] sm:$0xff] %v161
    %227 = vst [vmem:[%s217 + $0x69] sm:$0xff] %v162
    %228 = vst [vmem:[%s217 + $0x79] sm:$0xff] %v163
    %229 = vst [vmem:[%s217 + $0x81] sm:$0xff] %v164
    %230 = vst [vmem:[%s217 + $0x91] sm:$0xff] %v165
    %231 = vst [vmem:[%s217 + $0x99] sm:$0xff] %v166
    %232 = vst [vmem:[%s217 + $0xa9] sm:$0xff] %v167
    %233 = vst [vmem:[%s217 + $0xb1] sm:$0xff] %v168
    %234 = vst [vmem:[%s217 + $0xc1] sm:$0xff] %v169
    %235 = vst [vmem:[%s217 + $0xc9] sm:$0xff] %v170
    %236 = vst [vmem:[%s217 + $0xd9] sm:$0xff] %v171
    %237 = vst [vmem:[%s217 + $0xe1] sm:$0xff] %v172
    %238 = vst [vmem:[%s217 + $0xf1] sm:$0xff] %v173
    %239 = vst [vmem:[%s217 + $0xf9] sm:$0xff] %v174
    %240 = vst [vmem:[%s217 + $0x109] sm:$0xff] %v175
    %241 = vst [vmem:[%s217 + $0x111] sm:$0xff] %v176
    %242 = vst [vmem:[%s217 + $0x121] sm:$0xff] %v177
    %243 = vst [vmem:[%s217 + $0x129] sm:$0xff] %v178
    %244 = vst [vmem:[%s217 + $0x139] sm:$0xff] %v179
    %245 = vst [vmem:[%s217 + $0x141] sm:$0xff] %v180
    %246 = vst [vmem:[%s217 + $0x151] sm:$0xff] %v181
    %247 = vst [vmem:[%s217 + $0x159] sm:$0xff] %v182
    %248 = vst [vmem:[%s217 + $0x169] sm:$0xff] %v183
    %249 = vst [vmem:[%s217 + $0x171] sm:$0xff] %v184
    %250 = vst [vmem:[%s217 + $0x1b1] sm:$0xff] %v185
    %251 = vst [vmem:[%s217 + $0x1b9] sm:$0xff] %v186
    %252 = vst [vmem:[%s217 + $0x1c9] sm:$0xff] %v187
    %253 = vst [vmem:[%s217 + $0x1d1] sm:$0xff] %v188
    %254 = vst [vmem:[%s217 + $0x1e1] sm:$0xff] %v189
    %255 = vst [vmem:[%s217 + $0x1e9] sm:$0xff] %v190
    %256 = vst [vmem:[%s217 + $0x1f9] sm:$0xff] %v191
    %257 = vst [vmem:[%s217 + $0x201] sm:$0xff] %v192
    %258 = vst [vmem:[%s217 + $0x211] sm:$0xff] %v193
    %259 = vst [vmem:[%s217 + $0x219] sm:$0xff] %v194
    %260 = vst [vmem:[%s217 + $0x229] sm:$0xff] %v195
    %261 = vst [vmem:[%s217 + $0x231] sm:$0xff] %v196
    %262 = vst [vmem:[%s217 + $0x241] sm:$0xff] %v197
    %263 = vst [vmem:[%s217 + $0x249] sm:$0xff] %v198
    %264 = vst [vmem:[%s217 + $0x259] sm:$0xff] %v199
    %265 = vst [vmem:[%s217 + $0x261] sm:$0xff] %v200
    %266 = vst [vmem:[%s217 + $0x271] sm:$0xff] %v201
    %267 = vst [vmem:[%s217 + $0x279] sm:$0xff] %v202
    %268 = vst [vmem:[%s217 + $0x289] sm:$0xff] %v203
    %269 = vst [vmem:[%s217 + $0x291] sm:$0xff] %v204
    %270 = vst [vmem:[%s217 + $0x2a1] sm:$0xff] %v205
    %271 = vst [vmem:[%s217 + $0x2a9] sm:$0xff] %v206
    %272 = vst [vmem:[%s217 + $0x2b9] sm:$0xff] %v207
    %273 = vst [vmem:[%s217 + $0x2c1] sm:$0xff] %v208
    %274 = vst [vmem:[%s217 + $0x2d1] sm:$0xff] %v209
    %275 = vst [vmem:[%s217 + $0x2d9] sm:$0xff] %v210
    %276 = vst [vmem:[%s217 + $0x2e9] sm:$0xff] %v211
    %277 = vst [vmem:[%s217 + $0x2f1] sm:$0xff] %v212
    %278 = vst [vmem:[%s217 + $0x301] sm:$0xff] %v213
    %279 = vst [vmem:[%s217 + $0x309] sm:$0xff] %v214
    %280 = vst [vmem:[%s217 + $0x319] sm:$0xff] %v215
    %281 = vst [vmem:[%s217 + $0x321] sm:$0xff] %v216
    %v282 = vld [vmem:[#allocation2] sm:$0xff]
    %v283 = vld [vmem:[#allocation2 + $0x8] sm:$0xff]
    %v284 = vld [vmem:[#allocation2 + $0x18] sm:$0xff]
    %v285 = vld [vmem:[#allocation2 + $0x20] sm:$0xff]
    %v286 = vld [vmem:[#allocation2 + $0x30] sm:$0xff]
    %v287 = vld [vmem:[#allocation2 + $0x38] sm:$0xff]
    %v288 = vld [vmem:[#allocation2 + $0x48] sm:$0xff]
    %v289 = vld [vmem:[#allocation2 + $0x50] sm:$0xff]
    %v290 = vld [vmem:[#allocation2 + $0x60] sm:$0xff]
    %v291 = vld [vmem:[#allocation2 + $0x68] sm:$0xff]
    %v292 = vld [vmem:[#allocation2 + $0x78] sm:$0xff]
    %v293 = vld [vmem:[#allocation2 + $0x80] sm:$0xff]
    %v294 = vld [vmem:[#allocation2 + $0x90] sm:$0xff]
    %v295 = vld [vmem:[#allocation2 + $0x98] sm:$0xff]
    %v296 = vld [vmem:[#allocation2 + $0xa8] sm:$0xff]
    %v297 = vld [vmem:[#allocation2 + $0xb0] sm:$0xff]
    %v298 = vld [vmem:[#allocation2 + $0xc0] sm:$0xff]
    %v299 = vld [vmem:[#allocation2 + $0xc8] sm:$0xff]
    %v300 = vld [vmem:[#allocation2 + $0xd8] sm:$0xff]
    %v301 = vld [vmem:[#allocation2 + $0xe0] sm:$0xff]
    %v302 = vld [vmem:[#allocation2 + $0xf0] sm:$0xff]
    %v303 = vld [vmem:[#allocation2 + $0xf8] sm:$0xff]
    %v304 = vld [vmem:[#allocation2 + $0x108] sm:$0xff]
    %v305 = vld [vmem:[#allocation2 + $0x110] sm:$0xff]
    %v306 = vld [vmem:[#allocation2 + $0x120] sm:$0xff]
    %v307 = vld [vmem:[#allocation2 + $0x128] sm:$0xff]
    %v308 = vld [vmem:[#allocation2 + $0x138] sm:$0xff]
    %v309 = vld [vmem:[#allocation2 + $0x140] sm:$0xff]
    %v310 = vld [vmem:[#allocation2 + $0x150] sm:$0xff]
    %v311 = vld [vmem:[#allocation2 + $0x158] sm:$0xff]
    %v312 = vld [vmem:[#allocation2 + $0x168] sm:$0xff]
    %v313 = vld [vmem:[#allocation2 + $0x170] sm:$0xff]
    %v314 = vld [vmem:[#allocation2 + $0x1b0] sm:$0xff]
    %v315 = vld [vmem:[#allocation2 + $0x1b8] sm:$0xff]
    %v316 = vld [vmem:[#allocation2 + $0x1c8] sm:$0xff]
    %v317 = vld [vmem:[#allocation2 + $0x1d0] sm:$0xff]
    %v318 = vld [vmem:[#allocation2 + $0x1e0] sm:$0xff]
    %v319 = vld [vmem:[#allocation2 + $0x1e8] sm:$0xff]
    %v320 = vld [vmem:[#allocation2 + $0x1f8] sm:$0xff]
    %v321 = vld [vmem:[#allocation2 + $0x200] sm:$0xff]
    %v322 = vld [vmem:[#allocation2 + $0x210] sm:$0xff]
    %v323 = vld [vmem:[#allocation2 + $0x218] sm:$0xff]
    %v324 = vld [vmem:[#allocation2 + $0x228] sm:$0xff]
    %v325 = vld [vmem:[#allocation2 + $0x230] sm:$0xff]
    %v326 = vld [vmem:[#allocation2 + $0x240] sm:$0xff]
    %v327 = vld [vmem:[#allocation2 + $0x248] sm:$0xff]
    %v328 = vld [vmem:[#allocation2 + $0x258] sm:$0xff]
    %v329 = vld [vmem:[#allocation2 + $0x260] sm:$0xff]
    %v330 = vld [vmem:[#allocation2 + $0x270] sm:$0xff]
    %v331 = vld [vmem:[#allocation2 + $0x278] sm:$0xff]
    %v332 = vld [vmem:[#allocation2 + $0x288] sm:$0xff]
    %v333 = vld [vmem:[#allocation2 + $0x290] sm:$0xff]
    %v334 = vld [vmem:[#allocation2 + $0x2a0] sm:$0xff]
    %v335 = vld [vmem:[#allocation2 + $0x2a8] sm:$0xff]
    %v336 = vld [vmem:[#allocation2 + $0x2b8] sm:$0xff]
    %v337 = vld [vmem:[#allocation2 + $0x2c0] sm:$0xff]
    %v338 = vld [vmem:[#allocation2 + $0x2d0] sm:$0xff]
    %v339 = vld [vmem:[#allocation2 + $0x2d8] sm:$0xff]
    %v340 = vld [vmem:[#allocation2 + $0x2e8] sm:$0xff]
    %v341 = vld [vmem:[#allocation2 + $0x2f0] sm:$0xff]
    %v342 = vld [vmem:[#allocation2 + $0x300] sm:$0xff]
    %v343 = vld [vmem:[#allocation2 + $0x308] sm:$0xff]
    %v344 = vld [vmem:[#allocation2 + $0x318] sm:$0xff]
    %v345 = vld [vmem:[#allocation2 + $0x320] sm:$0xff]
    %346 = vst [vmem:[#allocation4] sm:$0xff] %v282
    %347 = vst [vmem:[#allocation4 + $0x48] sm:$0xff] %v283
    %348 = vst [vmem:[#allocation4 + $0x90] sm:$0xff] %v284
    %349 = vst [vmem:[#allocation4 + $0xd8] sm:$0xff] %v285
    %350 = vst [vmem:[#allocation4 + $0x120] sm:$0xff] %v286
    %351 = vst [vmem:[#allocation4 + $0x168] sm:$0xff] %v287
    %352 = vst [vmem:[#allocation4 + $0x1b0] sm:$0xff] %v288
    %353 = vst [vmem:[#allocation4 + $0x1f8] sm:$0xff] %v289
    %354 = vst [vmem:[#allocation4 + $0x240] sm:$0xff] %v290
    %355 = vst [vmem:[#allocation4 + $0x288] sm:$0xff] %v291
    %356 = vst [vmem:[#allocation4 + $0x2d0] sm:$0xff] %v292
    %357 = vst [vmem:[#allocation4 + $0x318] sm:$0xff] %v293
    %358 = vst [vmem:[#allocation4 + $0x360] sm:$0xff] %v294
    %359 = vst [vmem:[#allocation4 + $0x3a8] sm:$0xff] %v295
    %360 = vst [vmem:[#allocation4 + $0x3f0] sm:$0xff] %v296
    %361 = vst [vmem:[#allocation4 + $0x438] sm:$0xff] %v297
    %362 = vst [vmem:[#allocation4 + $0x480] sm:$0xff] %v298
    %363 = vst [vmem:[#allocation4 + $0x4c8] sm:$0xff] %v299
    %364 = vst [vmem:[#allocation4 + $0x510] sm:$0xff] %v300
    %365 = vst [vmem:[#allocation4 + $0x558] sm:$0xff] %v301
    %366 = vst [vmem:[#allocation4 + $0x5a0] sm:$0xff] %v302
    %367 = vst [vmem:[#allocation4 + $0x5e8] sm:$0xff] %v303
    %368 = vst [vmem:[#allocation4 + $0x630] sm:$0xff] %v304
    %369 = vst [vmem:[#allocation4 + $0x678] sm:$0xff] %v305
    %370 = vst [vmem:[#allocation4 + $0x6c0] sm:$0xff] %v306
    %371 = vst [vmem:[#allocation4 + $0x708] sm:$0xff] %v307
    %372 = vst [vmem:[#allocation4 + $0x750] sm:$0xff] %v308
    %373 = vst [vmem:[#allocation4 + $0x798] sm:$0xff] %v309
    %374 = vst [vmem:[#allocation4 + $0x7e0] sm:$0xff] %v310
    %375 = vst [vmem:[#allocation4 + $0x828] sm:$0xff] %v311
    %376 = vst [vmem:[#allocation4 + $0x870] sm:$0xff] %v312
    %377 = vst [vmem:[#allocation4 + $0x8b8] sm:$0xff] %v313
    %378 = vst [vmem:[#allocation4 + $0x900] sm:$0xff] %v314
    %379 = vst [vmem:[#allocation4 + $0x948] sm:$0xff] %v315
    %380 = vst [vmem:[#allocation4 + $0x990] sm:$0xff] %v316
    %381 = vst [vmem:[#allocation4 + $0x9d8] sm:$0xff] %v317
    %382 = vst [vmem:[#allocation4 + $0xa20] sm:$0xff] %v318
    %383 = vst [vmem:[#allocation4 + $0xa68] sm:$0xff] %v319
    %384 = vst [vmem:[#allocation4 + $0xab0] sm:$0xff] %v320
    %385 = vst [vmem:[#allocation4 + $0xaf8] sm:$0xff] %v321
    %386 = vst [vmem:[#allocation4 + $0xb40] sm:$0xff] %v322
    %387 = vst [vmem:[#allocation4 + $0xb88] sm:$0xff] %v323
    %388 = vst [vmem:[#allocation4 + $0xbd0] sm:$0xff] %v324
    %389 = vst [vmem:[#allocation4 + $0xc18] sm:$0xff] %v325
    %390 = vst [vmem:[#allocation4 + $0xc60] sm:$0xff] %v326
    %391 = vst [vmem:[#allocation4 + $0xca8] sm:$0xff] %v327
    %392 = vst [vmem:[#allocation4 + $0xcf0] sm:$0xff] %v328
    %393 = vst [vmem:[#allocation4 + $0xd38] sm:$0xff] %v329
    %394 = vst [vmem:[#allocation4 + $0xd80] sm:$0xff] %v330
    %395 = vst [vmem:[#allocation4 + $0xdc8] sm:$0xff] %v331
    %396 = vst [vmem:[#allocation4 + $0xe10] sm:$0xff] %v332
    %397 = vst [vmem:[#allocation4 + $0xe58] sm:$0xff] %v333
    %398 = vst [vmem:[#allocation4 + $0xea0] sm:$0xff] %v334
    %399 = vst [vmem:[#allocation4 + $0xee8] sm:$0xff] %v335
    %400 = vst [vmem:[#allocation4 + $0xf30] sm:$0xff] %v336
    %401 = vst [vmem:[#allocation4 + $0xf78] sm:$0xff] %v337
    %402 = vst [vmem:[#allocation4 + $0xfc0] sm:$0xff] %v338
    %403 = vst [vmem:[#allocation4 + $0x1008] sm:$0xff] %v339
    %404 = vst [vmem:[#allocation4 + $0x1050] sm:$0xff] %v340
    %405 = vst [vmem:[#allocation4 + $0x1098] sm:$0xff] %v341
    %406 = vst [vmem:[#allocation4 + $0x10e0] sm:$0xff] %v342
    %407 = vst [vmem:[#allocation4 + $0x1128] sm:$0xff] %v343
    %408 = vst [vmem:[#allocation4 + $0x1170] sm:$0xff] %v344
    %409 = vst [vmem:[#allocation4 + $0x11b8] sm:$0xff] %v345
    %v410 = vld [vmem:[#allocation2 + $0x1] sm:$0xff]
    %v411 = vld [vmem:[#allocation2 + $0x9] sm:$0xff]
    %v412 = vld [vmem:[#allocation2 + $0x19] sm:$0xff]
    %v413 = vld [vmem:[#allocation2 + $0x21] sm:$0xff]
    %v414 = vld [vmem:[#allocation2 + $0x31] sm:$0xff]
    %v415 = vld [vmem:[#allocation2 + $0x39] sm:$0xff]
    %v416 = vld [vmem:[#allocation2 + $0x49] sm:$0xff]
    %v417 = vld [vmem:[#allocation2 + $0x51] sm:$0xff]
    %v418 = vld [vmem:[#allocation2 + $0x61] sm:$0xff]
    %v419 = vld [vmem:[#allocation2 + $0x69] sm:$0xff]
    %v420 = vld [vmem:[#allocation2 + $0x79] sm:$0xff]
    %v421 = vld [vmem:[#allocation2 + $0x81] sm:$0xff]
    %v422 = vld [vmem:[#allocation2 + $0x91] sm:$0xff]
    %v423 = vld [vmem:[#allocation2 + $0x99] sm:$0xff]
    %v424 = vld [vmem:[#allocation2 + $0xa9] sm:$0xff]
    %v425 = vld [vmem:[#allocation2 + $0xb1] sm:$0xff]
    %v426 = vld [vmem:[#allocation2 + $0xc1] sm:$0xff]
    %v427 = vld [vmem:[#allocation2 + $0xc9] sm:$0xff]
    %v428 = vld [vmem:[#allocation2 + $0xd9] sm:$0xff]
    %v429 = vld [vmem:[#allocation2 + $0xe1] sm:$0xff]
    %v430 = vld [vmem:[#allocation2 + $0xf1] sm:$0xff]
    %v431 = vld [vmem:[#allocation2 + $0xf9] sm:$0xff]
    %v432 = vld [vmem:[#allocation2 + $0x109] sm:$0xff]
    %v433 = vld [vmem:[#allocation2 + $0x111] sm:$0xff]
    %v434 = vld [vmem:[#allocation2 + $0x121] sm:$0xff]
    %v435 = vld [vmem:[#allocation2 + $0x129] sm:$0xff]
    %v436 = vld [vmem:[#allocation2 + $0x139] sm:$0xff]
    %v437 = vld [vmem:[#allocation2 + $0x141] sm:$0xff]
    %v438 = vld [vmem:[#allocation2 + $0x151] sm:$0xff]
    %v439 = vld [vmem:[#allocation2 + $0x159] sm:$0xff]
    %v440 = vld [vmem:[#allocation2 + $0x169] sm:$0xff]
    %v441 = vld [vmem:[#allocation2 + $0x171] sm:$0xff]
    %v442 = vld [vmem:[#allocation2 + $0x1b1] sm:$0xff]
    %v443 = vld [vmem:[#allocation2 + $0x1b9] sm:$0xff]
    %v444 = vld [vmem:[#allocation2 + $0x1c9] sm:$0xff]
    %v445 = vld [vmem:[#allocation2 + $0x1d1] sm:$0xff]
    %v446 = vld [vmem:[#allocation2 + $0x1e1] sm:$0xff]
    %v447 = vld [vmem:[#allocation2 + $0x1e9] sm:$0xff]
    %v448 = vld [vmem:[#allocation2 + $0x1f9] sm:$0xff]
    %v449 = vld [vmem:[#allocation2 + $0x201] sm:$0xff]
    %v450 = vld [vmem:[#allocation2 + $0x211] sm:$0xff]
    %v451 = vld [vmem:[#allocation2 + $0x219] sm:$0xff]
    %v452 = vld [vmem:[#allocation2 + $0x229] sm:$0xff]
    %v453 = vld [vmem:[#allocation2 + $0x231] sm:$0xff]
    %v454 = vld [vmem:[#allocation2 + $0x241] sm:$0xff]
    %v455 = vld [vmem:[#allocation2 + $0x249] sm:$0xff]
    %v456 = vld [vmem:[#allocation2 + $0x259] sm:$0xff]
    %v457 = vld [vmem:[#allocation2 + $0x261] sm:$0xff]
    %v458 = vld [vmem:[#allocation2 + $0x271] sm:$0xff]
    %v459 = vld [vmem:[#allocation2 + $0x279] sm:$0xff]
    %v460 = vld [vmem:[#allocation2 + $0x289] sm:$0xff]
    %v461 = vld [vmem:[#allocation2 + $0x291] sm:$0xff]
    %v462 = vld [vmem:[#allocation2 + $0x2a1] sm:$0xff]
    %v463 = vld [vmem:[#allocation2 + $0x2a9] sm:$0xff]
    %v464 = vld [vmem:[#allocation2 + $0x2b9] sm:$0xff]
    %v465 = vld [vmem:[#allocation2 + $0x2c1] sm:$0xff]
    %v466 = vld [vmem:[#allocation2 + $0x2d1] sm:$0xff]
    %v467 = vld [vmem:[#allocation2 + $0x2d9] sm:$0xff]
    %v468 = vld [vmem:[#allocation2 + $0x2e9] sm:$0xff]
    %v469 = vld [vmem:[#allocation2 + $0x2f1] sm:$0xff]
    %v470 = vld [vmem:[#allocation2 + $0x301] sm:$0xff]
    %v471 = vld [vmem:[#allocation2 + $0x309] sm:$0xff]
    %v472 = vld [vmem:[#allocation2 + $0x319] sm:$0xff]
    %v473 = vld [vmem:[#allocation2 + $0x321] sm:$0xff]
    %474 = vst [vmem:[#allocation4 + $0x8] sm:$0xff] %v410
    %475 = vst [vmem:[#allocation4 + $0x50] sm:$0xff] %v411
    %476 = vst [vmem:[#allocation4 + $0x98] sm:$0xff] %v412
    %477 = vst [vmem:[#allocation4 + $0xe0] sm:$0xff] %v413
    %478 = vst [vmem:[#allocation4 + $0x128] sm:$0xff] %v414
    %479 = vst [vmem:[#allocation4 + $0x170] sm:$0xff] %v415
    %480 = vst [vmem:[#allocation4 + $0x1b8] sm:$0xff] %v416
    %481 = vst [vmem:[#allocation4 + $0x200] sm:$0xff] %v417
    %482 = vst [vmem:[#allocation4 + $0x248] sm:$0xff] %v418
    %483 = vst [vmem:[#allocation4 + $0x290] sm:$0xff] %v419
    %484 = vst [vmem:[#allocation4 + $0x2d8] sm:$0xff] %v420
    %485 = vst [vmem:[#allocation4 + $0x320] sm:$0xff] %v421
    %486 = vst [vmem:[#allocation4 + $0x368] sm:$0xff] %v422
    %487 = vst [vmem:[#allocation4 + $0x3b0] sm:$0xff] %v423
    %488 = vst [vmem:[#allocation4 + $0x3f8] sm:$0xff] %v424
    %489 = vst [vmem:[#allocation4 + $0x440] sm:$0xff] %v425
    %490 = vst [vmem:[#allocation4 + $0x488] sm:$0xff] %v426
    %491 = vst [vmem:[#allocation4 + $0x4d0] sm:$0xff] %v427
    %492 = vst [vmem:[#allocation4 + $0x518] sm:$0xff] %v428
    %493 = vst [vmem:[#allocation4 + $0x560] sm:$0xff] %v429
    %494 = vst [vmem:[#allocation4 + $0x5a8] sm:$0xff] %v430
    %495 = vst [vmem:[#allocation4 + $0x5f0] sm:$0xff] %v431
    %496 = vst [vmem:[#allocation4 + $0x638] sm:$0xff] %v432
    %497 = vst [vmem:[#allocation4 + $0x680] sm:$0xff] %v433
    %498 = vst [vmem:[#allocation4 + $0x6c8] sm:$0xff] %v434
    %499 = vst [vmem:[#allocation4 + $0x710] sm:$0xff] %v435
    %500 = vst [vmem:[#allocation4 + $0x758] sm:$0xff] %v436
    %501 = vst [vmem:[#allocation4 + $0x7a0] sm:$0xff] %v437
    %502 = vst [vmem:[#allocation4 + $0x7e8] sm:$0xff] %v438
    %503 = vst [vmem:[#allocation4 + $0x830] sm:$0xff] %v439
    %504 = vst [vmem:[#allocation4 + $0x878] sm:$0xff] %v440
    %505 = vst [vmem:[#allocation4 + $0x8c0] sm:$0xff] %v441
    %506 = vst [vmem:[#allocation4 + $0x908] sm:$0xff] %v442
    %507 = vst [vmem:[#allocation4 + $0x950] sm:$0xff] %v443
    %508 = vst [vmem:[#allocation4 + $0x998] sm:$0xff] %v444
    %509 = vst [vmem:[#allocation4 + $0x9e0] sm:$0xff] %v445
    %510 = vst [vmem:[#allocation4 + $0xa28] sm:$0xff] %v446
    %511 = vst [vmem:[#allocation4 + $0xa70] sm:$0xff] %v447
    %512 = vst [vmem:[#allocation4 + $0xab8] sm:$0xff] %v448
    %513 = vst [vmem:[#allocation4 + $0xb00] sm:$0xff] %v449
    %514 = vst [vmem:[#allocation4 + $0xb48] sm:$0xff] %v450
    %515 = vst [vmem:[#allocation4 + $0xb90] sm:$0xff] %v451
    %516 = vst [vmem:[#allocation4 + $0xbd8] sm:$0xff] %v452
    %517 = vst [vmem:[#allocation4 + $0xc20] sm:$0xff] %v453
    %518 = vst [vmem:[#allocation4 + $0xc68] sm:$0xff] %v454
    %519 = vst [vmem:[#allocation4 + $0xcb0] sm:$0xff] %v455
    %520 = vst [vmem:[#allocation4 + $0xcf8] sm:$0xff] %v456
    %521 = vst [vmem:[#allocation4 + $0xd40] sm:$0xff] %v457
    %522 = vst [vmem:[#allocation4 + $0xd88] sm:$0xff] %v458
    %523 = vst [vmem:[#allocation4 + $0xdd0] sm:$0xff] %v459
    %524 = vst [vmem:[#allocation4 + $0xe18] sm:$0xff] %v460
    %525 = vst [vmem:[#allocation4 + $0xe60] sm:$0xff] %v461
    %526 = vst [vmem:[#allocation4 + $0xea8] sm:$0xff] %v462
    %527 = vst [vmem:[#allocation4 + $0xef0] sm:$0xff] %v463
    %528 = vst [vmem:[#allocation4 + $0xf38] sm:$0xff] %v464
    %529 = vst [vmem:[#allocation4 + $0xf80] sm:$0xff] %v465
    %530 = vst [vmem:[#allocation4 + $0xfc8] sm:$0xff] %v466
    %531 = vst [vmem:[#allocation4 + $0x1010] sm:$0xff] %v467
    %532 = vst [vmem:[#allocation4 + $0x1058] sm:$0xff] %v468
    %533 = vst [vmem:[#allocation4 + $0x10a0] sm:$0xff] %v469
    %534 = vst [vmem:[#allocation4 + $0x10e8] sm:$0xff] %v470
    %535 = vst [vmem:[#allocation4 + $0x1130] sm:$0xff] %v471
    %536 = vst [vmem:[#allocation4 + $0x1178] sm:$0xff] %v472
    %537 = vst [vmem:[#allocation4 + $0x11c0] sm:$0xff] %v473
    %v538 = vld [vmem:[#allocation2 + $0x2] sm:$0xff]
    %v539 = vld [vmem:[#allocation2 + $0xa] sm:$0xff]
    %v540 = vld [vmem:[#allocation2 + $0x1a] sm:$0xff]
    %v541 = vld [vmem:[#allocation2 + $0x22] sm:$0xff]
    %v542 = vld [vmem:[#allocation2 + $0x32] sm:$0xff]
    %v543 = vld [vmem:[#allocation2 + $0x3a] sm:$0xff]
    %v544 = vld [vmem:[#allocation2 + $0x4a] sm:$0xff]
    %v545 = vld [vmem:[#allocation2 + $0x52] sm:$0xff]
    %v546 = vld [vmem:[#allocation2 + $0x62] sm:$0xff]
    %v547 = vld [vmem:[#allocation2 + $0x6a] sm:$0xff]
    %v548 = vld [vmem:[#allocation2 + $0x7a] sm:$0xff]
    %v549 = vld [vmem:[#allocation2 + $0x82] sm:$0xff]
    %v550 = vld [vmem:[#allocation2 + $0x92] sm:$0xff]
    %v551 = vld [vmem:[#allocation2 + $0x9a] sm:$0xff]
    %v552 = vld [vmem:[#allocation2 + $0xaa] sm:$0xff]
    %v553 = vld [vmem:[#allocation2 + $0xb2] sm:$0xff]
    %v554 = vld [vmem:[#allocation2 + $0xc2] sm:$0xff]
    %v555 = vld [vmem:[#allocation2 + $0xca] sm:$0xff]
    %v556 = vld [vmem:[#allocation2 + $0xda] sm:$0xff]
    %v557 = vld [vmem:[#allocation2 + $0xe2] sm:$0xff]
    %v558 = vld [vmem:[#allocation2 + $0xf2] sm:$0xff]
    %v559 = vld [vmem:[#allocation2 + $0xfa] sm:$0xff]
    %v560 = vld [vmem:[#allocation2 + $0x10a] sm:$0xff]
    %v561 = vld [vmem:[#allocation2 + $0x112] sm:$0xff]
    %v562 = vld [vmem:[#allocation2 + $0x122] sm:$0xff]
    %v563 = vld [vmem:[#allocation2 + $0x12a] sm:$0xff]
    %v564 = vld [vmem:[#allocation2 + $0x13a] sm:$0xff]
    %v565 = vld [vmem:[#allocation2 + $0x142] sm:$0xff]
    %v566 = vld [vmem:[#allocation2 + $0x152] sm:$0xff]
    %v567 = vld [vmem:[#allocation2 + $0x15a] sm:$0xff]
    %v568 = vld [vmem:[#allocation2 + $0x16a] sm:$0xff]
    %v569 = vld [vmem:[#allocation2 + $0x172] sm:$0xff]
    %v570 = vld [vmem:[#allocation2 + $0x1b2] sm:$0xff]
    %v571 = vld [vmem:[#allocation2 + $0x1ba] sm:$0xff]
    %v572 = vld [vmem:[#allocation2 + $0x1ca] sm:$0xff]
    %v573 = vld [vmem:[#allocation2 + $0x1d2] sm:$0xff]
    %v574 = vld [vmem:[#allocation2 + $0x1e2] sm:$0xff]
    %v575 = vld [vmem:[#allocation2 + $0x1ea] sm:$0xff]
    %v576 = vld [vmem:[#allocation2 + $0x1fa] sm:$0xff]
    %v577 = vld [vmem:[#allocation2 + $0x202] sm:$0xff]
    %v578 = vld [vmem:[#allocation2 + $0x212] sm:$0xff]
    %v579 = vld [vmem:[#allocation2 + $0x21a] sm:$0xff]
    %v580 = vld [vmem:[#allocation2 + $0x22a] sm:$0xff]
    %v581 = vld [vmem:[#allocation2 + $0x232] sm:$0xff]
    %v582 = vld [vmem:[#allocation2 + $0x242] sm:$0xff]
    %v583 = vld [vmem:[#allocation2 + $0x24a] sm:$0xff]
    %v584 = vld [vmem:[#allocation2 + $0x25a] sm:$0xff]
    %v585 = vld [vmem:[#allocation2 + $0x262] sm:$0xff]
    %v586 = vld [vmem:[#allocation2 + $0x272] sm:$0xff]
    %v587 = vld [vmem:[#allocation2 + $0x27a] sm:$0xff]
    %v588 = vld [vmem:[#allocation2 + $0x28a] sm:$0xff]
    %v589 = vld [vmem:[#allocation2 + $0x292] sm:$0xff]
    %v590 = vld [vmem:[#allocation2 + $0x2a2] sm:$0xff]
    %v591 = vld [vmem:[#allocation2 + $0x2aa] sm:$0xff]
    %v592 = vld [vmem:[#allocation2 + $0x2ba] sm:$0xff]
    %v593 = vld [vmem:[#allocation2 + $0x2c2] sm:$0xff]
    %v594 = vld [vmem:[#allocation2 + $0x2d2] sm:$0xff]
    %v595 = vld [vmem:[#allocation2 + $0x2da] sm:$0xff]
    %v596 = vld [vmem:[#allocation2 + $0x2ea] sm:$0xff]
    %v597 = vld [vmem:[#allocation2 + $0x2f2] sm:$0xff]
    %v598 = vld [vmem:[#allocation2 + $0x302] sm:$0xff]
    %v599 = vld [vmem:[#allocation2 + $0x30a] sm:$0xff]
    %v600 = vld [vmem:[#allocation2 + $0x31a] sm:$0xff]
    %v601 = vld [vmem:[#allocation2 + $0x322] sm:$0xff]
    %602 = vst [vmem:[#allocation4 + $0x10] sm:$0xff] %v538
    %603 = vst [vmem:[#allocation4 + $0x58] sm:$0xff] %v539
    %604 = vst [vmem:[#allocation4 + $0xa0] sm:$0xff] %v540
    %605 = vst [vmem:[#allocation4 + $0xe8] sm:$0xff] %v541
    %606 = vst [vmem:[#allocation4 + $0x130] sm:$0xff] %v542
    %607 = vst [vmem:[#allocation4 + $0x178] sm:$0xff] %v543
    %608 = vst [vmem:[#allocation4 + $0x1c0] sm:$0xff] %v544
    %609 = vst [vmem:[#allocation4 + $0x208] sm:$0xff] %v545
    %610 = vst [vmem:[#allocation4 + $0x250] sm:$0xff] %v546
    %611 = vst [vmem:[#allocation4 + $0x298] sm:$0xff] %v547
    %612 = vst [vmem:[#allocation4 + $0x2e0] sm:$0xff] %v548
    %613 = vst [vmem:[#allocation4 + $0x328] sm:$0xff] %v549
    %614 = vst [vmem:[#allocation4 + $0x370] sm:$0xff] %v550
    %615 = vst [vmem:[#allocation4 + $0x3b8] sm:$0xff] %v551
    %616 = vst [vmem:[#allocation4 + $0x400] sm:$0xff] %v552
    %617 = vst [vmem:[#allocation4 + $0x448] sm:$0xff] %v553
    %618 = vst [vmem:[#allocation4 + $0x490] sm:$0xff] %v554
    %619 = vst [vmem:[#allocation4 + $0x4d8] sm:$0xff] %v555
    %620 = vst [vmem:[#allocation4 + $0x520] sm:$0xff] %v556
    %621 = vst [vmem:[#allocation4 + $0x568] sm:$0xff] %v557
    %622 = vst [vmem:[#allocation4 + $0x5b0] sm:$0xff] %v558
    %623 = vst [vmem:[#allocation4 + $0x5f8] sm:$0xff] %v559
    %624 = vst [vmem:[#allocation4 + $0x640] sm:$0xff] %v560
    %625 = vst [vmem:[#allocation4 + $0x688] sm:$0xff] %v561
    %626 = vst [vmem:[#allocation4 + $0x6d0] sm:$0xff] %v562
    %627 = vst [vmem:[#allocation4 + $0x718] sm:$0xff] %v563
    %628 = vst [vmem:[#allocation4 + $0x760] sm:$0xff] %v564
    %629 = vst [vmem:[#allocation4 + $0x7a8] sm:$0xff] %v565
    %630 = vst [vmem:[#allocation4 + $0x7f0] sm:$0xff] %v566
    %631 = vst [vmem:[#allocation4 + $0x838] sm:$0xff] %v567
    %632 = vst [vmem:[#allocation4 + $0x880] sm:$0xff] %v568
    %633 = vst [vmem:[#allocation4 + $0x8c8] sm:$0xff] %v569
    %634 = vst [vmem:[#allocation4 + $0x910] sm:$0xff] %v570
    %635 = vst [vmem:[#allocation4 + $0x958] sm:$0xff] %v571
    %636 = vst [vmem:[#allocation4 + $0x9a0] sm:$0xff] %v572
    %637 = vst [vmem:[#allocation4 + $0x9e8] sm:$0xff] %v573
    %638 = vst [vmem:[#allocation4 + $0xa30] sm:$0xff] %v574
    %639 = vst [vmem:[#allocation4 + $0xa78] sm:$0xff] %v575
    %640 = vst [vmem:[#allocation4 + $0xac0] sm:$0xff] %v576
    %641 = vst [vmem:[#allocation4 + $0xb08] sm:$0xff] %v577
    %642 = vst [vmem:[#allocation4 + $0xb50] sm:$0xff] %v578
    %643 = vst [vmem:[#allocation4 + $0xb98] sm:$0xff] %v579
    %644 = vst [vmem:[#allocation4 + $0xbe0] sm:$0xff] %v580
    %645 = vst [vmem:[#allocation4 + $0xc28] sm:$0xff] %v581
    %646 = vst [vmem:[#allocation4 + $0xc70] sm:$0xff] %v582
    %647 = vst [vmem:[#allocation4 + $0xcb8] sm:$0xff] %v583
    %648 = vst [vmem:[#allocation4 + $0xd00] sm:$0xff] %v584
    %649 = vst [vmem:[#allocation4 + $0xd48] sm:$0xff] %v585
    %650 = vst [vmem:[#allocation4 + $0xd90] sm:$0xff] %v586
    %651 = vst [vmem:[#allocation4 + $0xdd8] sm:$0xff] %v587
    %652 = vst [vmem:[#allocation4 + $0xe20] sm:$0xff] %v588
    %653 = vst [vmem:[#allocation4 + $0xe68] sm:$0xff] %v589
    %654 = vst [vmem:[#allocation4 + $0xeb0] sm:$0xff] %v590
    %655 = vst [vmem:[#allocation4 + $0xef8] sm:$0xff] %v591
    %656 = vst [vmem:[#allocation4 + $0xf40] sm:$0xff] %v592
    %657 = vst [vmem:[#allocation4 + $0xf88] sm:$0xff] %v593
    %658 = vst [vmem:[#allocation4 + $0xfd0] sm:$0xff] %v594
    %659 = vst [vmem:[#allocation4 + $0x1018] sm:$0xff] %v595
    %660 = vst [vmem:[#allocation4 + $0x1060] sm:$0xff] %v596
    %661 = vst [vmem:[#allocation4 + $0x10a8] sm:$0xff] %v597
    %662 = vst [vmem:[#allocation4 + $0x10f0] sm:$0xff] %v598
    %663 = vst [vmem:[#allocation4 + $0x1138] sm:$0xff] %v599
    %664 = vst [vmem:[#allocation4 + $0x1180] sm:$0xff] %v600
    %665 = vst [vmem:[#allocation4 + $0x11c8] sm:$0xff] %v601
    %v666 = vld [vmem:[%s217] sm:$0xff]
    %v667 = vld [vmem:[%s217 + $0x8] sm:$0xff]
    %v668 = vld [vmem:[%s217 + $0x18] sm:$0xff]
    %v669 = vld [vmem:[%s217 + $0x20] sm:$0xff]
    %v670 = vld [vmem:[%s217 + $0x30] sm:$0xff]
    %v671 = vld [vmem:[%s217 + $0x38] sm:$0xff]
    %v672 = vld [vmem:[%s217 + $0x48] sm:$0xff]
    %v673 = vld [vmem:[%s217 + $0x50] sm:$0xff]
    %v674 = vld [vmem:[%s217 + $0x60] sm:$0xff]
    %v675 = vld [vmem:[%s217 + $0x68] sm:$0xff]
    %v676 = vld [vmem:[%s217 + $0x78] sm:$0xff]
    %v677 = vld [vmem:[%s217 + $0x80] sm:$0xff]
    %v678 = vld [vmem:[%s217 + $0x90] sm:$0xff]
    %v679 = vld [vmem:[%s217 + $0x98] sm:$0xff]
    %v680 = vld [vmem:[%s217 + $0xa8] sm:$0xff]
    %v681 = vld [vmem:[%s217 + $0xb0] sm:$0xff]
    %v682 = vld [vmem:[%s217 + $0xc0] sm:$0xff]
    %v683 = vld [vmem:[%s217 + $0xc8] sm:$0xff]
    %v684 = vld [vmem:[%s217 + $0xd8] sm:$0xff]
    %v685 = vld [vmem:[%s217 + $0xe0] sm:$0xff]
    %v686 = vld [vmem:[%s217 + $0xf0] sm:$0xff]
    %v687 = vld [vmem:[%s217 + $0xf8] sm:$0xff]
    %v688 = vld [vmem:[%s217 + $0x108] sm:$0xff]
    %v689 = vld [vmem:[%s217 + $0x110] sm:$0xff]
    %v690 = vld [vmem:[%s217 + $0x120] sm:$0xff]
    %v691 = vld [vmem:[%s217 + $0x128] sm:$0xff]
    %v692 = vld [vmem:[%s217 + $0x138] sm:$0xff]
    %v693 = vld [vmem:[%s217 + $0x140] sm:$0xff]
    %v694 = vld [vmem:[%s217 + $0x150] sm:$0xff]
    %v695 = vld [vmem:[%s217 + $0x158] sm:$0xff]
    %v696 = vld [vmem:[%s217 + $0x168] sm:$0xff]
    %v697 = vld [vmem:[%s217 + $0x170] sm:$0xff]
    %v698 = vld [vmem:[%s217 + $0x1b0] sm:$0xff]
    %v699 = vld [vmem:[%s217 + $0x1b8] sm:$0xff]
    %v700 = vld [vmem:[%s217 + $0x1c8] sm:$0xff]
    %v701 = vld [vmem:[%s217 + $0x1d0] sm:$0xff]
    %v702 = vld [vmem:[%s217 + $0x1e0] sm:$0xff]
    %v703 = vld [vmem:[%s217 + $0x1e8] sm:$0xff]
    %v704 = vld [vmem:[%s217 + $0x1f8] sm:$0xff]
    %v705 = vld [vmem:[%s217 + $0x200] sm:$0xff]
    %v706 = vld [vmem:[%s217 + $0x210] sm:$0xff]
    %v707 = vld [vmem:[%s217 + $0x218] sm:$0xff]
    %v708 = vld [vmem:[%s217 + $0x228] sm:$0xff]
    %v709 = vld [vmem:[%s217 + $0x230] sm:$0xff]
    %v710 = vld [vmem:[%s217 + $0x240] sm:$0xff]
    %v711 = vld [vmem:[%s217 + $0x248] sm:$0xff]
    %v712 = vld [vmem:[%s217 + $0x258] sm:$0xff]
    %v713 = vld [vmem:[%s217 + $0x260] sm:$0xff]
    %v714 = vld [vmem:[%s217 + $0x270] sm:$0xff]
    %v715 = vld [vmem:[%s217 + $0x278] sm:$0xff]
    %v716 = vld [vmem:[%s217 + $0x288] sm:$0xff]
    %v717 = vld [vmem:[%s217 + $0x290] sm:$0xff]
    %v718 = vld [vmem:[%s217 + $0x2a0] sm:$0xff]
    %v719 = vld [vmem:[%s217 + $0x2a8] sm:$0xff]
    %v720 = vld [vmem:[%s217 + $0x2b8] sm:$0xff]
    %v721 = vld [vmem:[%s217 + $0x2c0] sm:$0xff]
    %v722 = vld [vmem:[%s217 + $0x2d0] sm:$0xff]
    %v723 = vld [vmem:[%s217 + $0x2d8] sm:$0xff]
    %v724 = vld [vmem:[%s217 + $0x2e8] sm:$0xff]
    %v725 = vld [vmem:[%s217 + $0x2f0] sm:$0xff]
    %v726 = vld [vmem:[%s217 + $0x300] sm:$0xff]
    %v727 = vld [vmem:[%s217 + $0x308] sm:$0xff]
    %v728 = vld [vmem:[%s217 + $0x318] sm:$0xff]
    %v729 = vld [vmem:[%s217 + $0x320] sm:$0xff]
    %730 = vst [vmem:[#allocation4 + $0x18] sm:$0xff] %v666
    %731 = vst [vmem:[#allocation4 + $0x60] sm:$0xff] %v667
    %732 = vst [vmem:[#allocation4 + $0xa8] sm:$0xff] %v668
    %733 = vst [vmem:[#allocation4 + $0xf0] sm:$0xff] %v669
    %734 = vst [vmem:[#allocation4 + $0x138] sm:$0xff] %v670
    %735 = vst [vmem:[#allocation4 + $0x180] sm:$0xff] %v671
    %736 = vst [vmem:[#allocation4 + $0x1c8] sm:$0xff] %v672
    %737 = vst [vmem:[#allocation4 + $0x210] sm:$0xff] %v673
    %738 = vst [vmem:[#allocation4 + $0x258] sm:$0xff] %v674
    %739 = vst [vmem:[#allocation4 + $0x2a0] sm:$0xff] %v675
    %740 = vst [vmem:[#allocation4 + $0x2e8] sm:$0xff] %v676
    %741 = vst [vmem:[#allocation4 + $0x330] sm:$0xff] %v677
    %742 = vst [vmem:[#allocation4 + $0x378] sm:$0xff] %v678
    %743 = vst [vmem:[#allocation4 + $0x3c0] sm:$0xff] %v679
    %744 = vst [vmem:[#allocation4 + $0x408] sm:$0xff] %v680
    %745 = vst [vmem:[#allocation4 + $0x450] sm:$0xff] %v681
    %746 = vst [vmem:[#allocation4 + $0x498] sm:$0xff] %v682
    %747 = vst [vmem:[#allocation4 + $0x4e0] sm:$0xff] %v683
    %748 = vst [vmem:[#allocation4 + $0x528] sm:$0xff] %v684
    %749 = vst [vmem:[#allocation4 + $0x570] sm:$0xff] %v685
    %750 = vst [vmem:[#allocation4 + $0x5b8] sm:$0xff] %v686
    %751 = vst [vmem:[#allocation4 + $0x600] sm:$0xff] %v687
    %752 = vst [vmem:[#allocation4 + $0x648] sm:$0xff] %v688
    %753 = vst [vmem:[#allocation4 + $0x690] sm:$0xff] %v689
    %754 = vst [vmem:[#allocation4 + $0x6d8] sm:$0xff] %v690
    %755 = vst [vmem:[#allocation4 + $0x720] sm:$0xff] %v691
    %756 = vst [vmem:[#allocation4 + $0x768] sm:$0xff] %v692
    %757 = vst [vmem:[#allocation4 + $0x7b0] sm:$0xff] %v693
    %758 = vst [vmem:[#allocation4 + $0x7f8] sm:$0xff] %v694
    %759 = vst [vmem:[#allocation4 + $0x840] sm:$0xff] %v695
    %760 = vst [vmem:[#allocation4 + $0x888] sm:$0xff] %v696
    %761 = vst [vmem:[#allocation4 + $0x8d0] sm:$0xff] %v697
    %762 = vst [vmem:[#allocation4 + $0x918] sm:$0xff] %v698
    %763 = vst [vmem:[#allocation4 + $0x960] sm:$0xff] %v699
    %764 = vst [vmem:[#allocation4 + $0x9a8] sm:$0xff] %v700
    %765 = vst [vmem:[#allocation4 + $0x9f0] sm:$0xff] %v701
    %766 = vst [vmem:[#allocation4 + $0xa38] sm:$0xff] %v702
    %767 = vst [vmem:[#allocation4 + $0xa80] sm:$0xff] %v703
    %768 = vst [vmem:[#allocation4 + $0xac8] sm:$0xff] %v704
    %769 = vst [vmem:[#allocation4 + $0xb10] sm:$0xff] %v705
    %770 = vst [vmem:[#allocation4 + $0xb58] sm:$0xff] %v706
    %771 = vst [vmem:[#allocation4 + $0xba0] sm:$0xff] %v707
    %772 = vst [vmem:[#allocation4 + $0xbe8] sm:$0xff] %v708
    %773 = vst [vmem:[#allocation4 + $0xc30] sm:$0xff] %v709
    %774 = vst [vmem:[#allocation4 + $0xc78] sm:$0xff] %v710
    %775 = vst [vmem:[#allocation4 + $0xcc0] sm:$0xff] %v711
    %776 = vst [vmem:[#allocation4 + $0xd08] sm:$0xff] %v712
    %777 = vst [vmem:[#allocation4 + $0xd50] sm:$0xff] %v713
    %778 = vst [vmem:[#allocation4 + $0xd98] sm:$0xff] %v714
    %779 = vst [vmem:[#allocation4 + $0xde0] sm:$0xff] %v715
    %780 = vst [vmem:[#allocation4 + $0xe28] sm:$0xff] %v716
    %781 = vst [vmem:[#allocation4 + $0xe70] sm:$0xff] %v717
    %782 = vst [vmem:[#allocation4 + $0xeb8] sm:$0xff] %v718
    %783 = vst [vmem:[#allocation4 + $0xf00] sm:$0xff] %v719
    %784 = vst [vmem:[#allocation4 + $0xf48] sm:$0xff] %v720
    %785 = vst [vmem:[#allocation4 + $0xf90] sm:$0xff] %v721
    %786 = vst [vmem:[#allocation4 + $0xfd8] sm:$0xff] %v722
    %787 = vst [vmem:[#allocation4 + $0x1020] sm:$0xff] %v723
    %788 = vst [vmem:[#allocation4 + $0x1068] sm:$0xff] %v724
    %789 = vst [vmem:[#allocation4 + $0x10b0] sm:$0xff] %v725
    %790 = vst [vmem:[#allocation4 + $0x10f8] sm:$0xff] %v726
    %791 = vst [vmem:[#allocation4 + $0x1140] sm:$0xff] %v727
    %792 = vst [vmem:[#allocation4 + $0x1188] sm:$0xff] %v728
    %793 = vst [vmem:[#allocation4 + $0x11d0] sm:$0xff] %v729
    %v794 = vld [vmem:[%s217 + $0x1] sm:$0xff]
    %v795 = vld [vmem:[%s217 + $0x9] sm:$0xff]
    %v796 = vld [vmem:[%s217 + $0x19] sm:$0xff]
    %v797 = vld [vmem:[%s217 + $0x21] sm:$0xff]
    %v798 = vld [vmem:[%s217 + $0x31] sm:$0xff]
    %v799 = vld [vmem:[%s217 + $0x39] sm:$0xff]
    %v800 = vld [vmem:[%s217 + $0x49] sm:$0xff]
    %v801 = vld [vmem:[%s217 + $0x51] sm:$0xff]
    %v802 = vld [vmem:[%s217 + $0x61] sm:$0xff]
    %v803 = vld [vmem:[%s217 + $0x69] sm:$0xff]
    %v804 = vld [vmem:[%s217 + $0x79] sm:$0xff]
    %v805 = vld [vmem:[%s217 + $0x81] sm:$0xff]
    %v806 = vld [vmem:[%s217 + $0x91] sm:$0xff]
    %v807 = vld [vmem:[%s217 + $0x99] sm:$0xff]
    %v808 = vld [vmem:[%s217 + $0xa9] sm:$0xff]
    %v809 = vld [vmem:[%s217 + $0xb1] sm:$0xff]
    %v810 = vld [vmem:[%s217 + $0xc1] sm:$0xff]
    %v811 = vld [vmem:[%s217 + $0xc9] sm:$0xff]
    %v812 = vld [vmem:[%s217 + $0xd9] sm:$0xff]
    %v813 = vld [vmem:[%s217 + $0xe1] sm:$0xff]
    %v814 = vld [vmem:[%s217 + $0xf1] sm:$0xff]
    %v815 = vld [vmem:[%s217 + $0xf9] sm:$0xff]
    %v816 = vld [vmem:[%s217 + $0x109] sm:$0xff]
    %v817 = vld [vmem:[%s217 + $0x111] sm:$0xff]
    %v818 = vld [vmem:[%s217 + $0x121] sm:$0xff]
    %v819 = vld [vmem:[%s217 + $0x129] sm:$0xff]
    %v820 = vld [vmem:[%s217 + $0x139] sm:$0xff]
    %v821 = vld [vmem:[%s217 + $0x141] sm:$0xff]
    %v822 = vld [vmem:[%s217 + $0x151] sm:$0xff]
    %v823 = vld [vmem:[%s217 + $0x159] sm:$0xff]
    %v824 = vld [vmem:[%s217 + $0x169] sm:$0xff]
    %v825 = vld [vmem:[%s217 + $0x171] sm:$0xff]
    %v826 = vld [vmem:[%s217 + $0x1b1] sm:$0xff]
    %v827 = vld [vmem:[%s217 + $0x1b9] sm:$0xff]
    %v828 = vld [vmem:[%s217 + $0x1c9] sm:$0xff]
    %v829 = vld [vmem:[%s217 + $0x1d1] sm:$0xff]
    %v830 = vld [vmem:[%s217 + $0x1e1] sm:$0xff]
    %v831 = vld [vmem:[%s217 + $0x1e9] sm:$0xff]
    %v832 = vld [vmem:[%s217 + $0x1f9] sm:$0xff]
    %v833 = vld [vmem:[%s217 + $0x201] sm:$0xff]
    %v834 = vld [vmem:[%s217 + $0x211] sm:$0xff]
    %v835 = vld [vmem:[%s217 + $0x219] sm:$0xff]
    %v836 = vld [vmem:[%s217 + $0x229] sm:$0xff]
    %v837 = vld [vmem:[%s217 + $0x231] sm:$0xff]
    %v838 = vld [vmem:[%s217 + $0x241] sm:$0xff]
    %v839 = vld [vmem:[%s217 + $0x249] sm:$0xff]
    %v840 = vld [vmem:[%s217 + $0x259] sm:$0xff]
    %v841 = vld [vmem:[%s217 + $0x261] sm:$0xff]
    %v842 = vld [vmem:[%s217 + $0x271] sm:$0xff]
    %v843 = vld [vmem:[%s217 + $0x279] sm:$0xff]
    %v844 = vld [vmem:[%s217 + $0x289] sm:$0xff]
    %v845 = vld [vmem:[%s217 + $0x291] sm:$0xff]
    %v846 = vld [vmem:[%s217 + $0x2a1] sm:$0xff]
    %v847 = vld [vmem:[%s217 + $0x2a9] sm:$0xff]
    %v848 = vld [vmem:[%s217 + $0x2b9] sm:$0xff]
    %v849 = vld [vmem:[%s217 + $0x2c1] sm:$0xff]
    %v850 = vld [vmem:[%s217 + $0x2d1] sm:$0xff]
    %v851 = vld [vmem:[%s217 + $0x2d9] sm:$0xff]
    %v852 = vld [vmem:[%s217 + $0x2e9] sm:$0xff]
    %v853 = vld [vmem:[%s217 + $0x2f1] sm:$0xff]
    %v854 = vld [vmem:[%s217 + $0x301] sm:$0xff]
    %v855 = vld [vmem:[%s217 + $0x309] sm:$0xff]
    %v856 = vld [vmem:[%s217 + $0x319] sm:$0xff]
    %v857 = vld [vmem:[%s217 + $0x321] sm:$0xff]
    %858 = vst [vmem:[#allocation4 + $0x20] sm:$0xff] %v794
    %859 = vst [vmem:[#allocation4 + $0x68] sm:$0xff] %v795
    %860 = vst [vmem:[#allocation4 + $0xb0] sm:$0xff] %v796
    %861 = vst [vmem:[#allocation4 + $0xf8] sm:$0xff] %v797
    %862 = vst [vmem:[#allocation4 + $0x140] sm:$0xff] %v798
    %863 = vst [vmem:[#allocation4 + $0x188] sm:$0xff] %v799
    %864 = vst [vmem:[#allocation4 + $0x1d0] sm:$0xff] %v800
    %865 = vst [vmem:[#allocation4 + $0x218] sm:$0xff] %v801
    %866 = vst [vmem:[#allocation4 + $0x260] sm:$0xff] %v802
    %867 = vst [vmem:[#allocation4 + $0x2a8] sm:$0xff] %v803
    %868 = vst [vmem:[#allocation4 + $0x2f0] sm:$0xff] %v804
    %869 = vst [vmem:[#allocation4 + $0x338] sm:$0xff] %v805
    %870 = vst [vmem:[#allocation4 + $0x380] sm:$0xff] %v806
    %871 = vst [vmem:[#allocation4 + $0x3c8] sm:$0xff] %v807
    %872 = vst [vmem:[#allocation4 + $0x410] sm:$0xff] %v808
    %873 = vst [vmem:[#allocation4 + $0x458] sm:$0xff] %v809
    %874 = vst [vmem:[#allocation4 + $0x4a0] sm:$0xff] %v810
    %875 = vst [vmem:[#allocation4 + $0x4e8] sm:$0xff] %v811
    %876 = vst [vmem:[#allocation4 + $0x530] sm:$0xff] %v812
    %877 = vst [vmem:[#allocation4 + $0x578] sm:$0xff] %v813
    %878 = vst [vmem:[#allocation4 + $0x5c0] sm:$0xff] %v814
    %879 = vst [vmem:[#allocation4 + $0x608] sm:$0xff] %v815
    %880 = vst [vmem:[#allocation4 + $0x650] sm:$0xff] %v816
    %881 = vst [vmem:[#allocation4 + $0x698] sm:$0xff] %v817
    %882 = vst [vmem:[#allocation4 + $0x6e0] sm:$0xff] %v818
    %883 = vst [vmem:[#allocation4 + $0x728] sm:$0xff] %v819
    %884 = vst [vmem:[#allocation4 + $0x770] sm:$0xff] %v820
    %885 = vst [vmem:[#allocation4 + $0x7b8] sm:$0xff] %v821
    %886 = vst [vmem:[#allocation4 + $0x800] sm:$0xff] %v822
    %887 = vst [vmem:[#allocation4 + $0x848] sm:$0xff] %v823
    %888 = vst [vmem:[#allocation4 + $0x890] sm:$0xff] %v824
    %889 = vst [vmem:[#allocation4 + $0x8d8] sm:$0xff] %v825
    %890 = vst [vmem:[#allocation4 + $0x920] sm:$0xff] %v826
    %891 = vst [vmem:[#allocation4 + $0x968] sm:$0xff] %v827
    %892 = vst [vmem:[#allocation4 + $0x9b0] sm:$0xff] %v828
    %893 = vst [vmem:[#allocation4 + $0x9f8] sm:$0xff] %v829
    %894 = vst [vmem:[#allocation4 + $0xa40] sm:$0xff] %v830
    %895 = vst [vmem:[#allocation4 + $0xa88] sm:$0xff] %v831
    %896 = vst [vmem:[#allocation4 + $0xad0] sm:$0xff] %v832
    %897 = vst [vmem:[#allocation4 + $0xb18] sm:$0xff] %v833
    %898 = vst [vmem:[#allocation4 + $0xb60] sm:$0xff] %v834
    %899 = vst [vmem:[#allocation4 + $0xba8] sm:$0xff] %v835
    %900 = vst [vmem:[#allocation4 + $0xbf0] sm:$0xff] %v836
    %901 = vst [vmem:[#allocation4 + $0xc38] sm:$0xff] %v837
    %902 = vst [vmem:[#allocation4 + $0xc80] sm:$0xff] %v838
    %903 = vst [vmem:[#allocation4 + $0xcc8] sm:$0xff] %v839
    %904 = vst [vmem:[#allocation4 + $0xd10] sm:$0xff] %v840
    %905 = vst [vmem:[#allocation4 + $0xd58] sm:$0xff] %v841
    %906 = vst [vmem:[#allocation4 + $0xda0] sm:$0xff] %v842
    %907 = vst [vmem:[#allocation4 + $0xde8] sm:$0xff] %v843
    %908 = vst [vmem:[#allocation4 + $0xe30] sm:$0xff] %v844
    %909 = vst [vmem:[#allocation4 + $0xe78] sm:$0xff] %v845
    %910 = vst [vmem:[#allocation4 + $0xec0] sm:$0xff] %v846
    %911 = vst [vmem:[#allocation4 + $0xf08] sm:$0xff] %v847
    %912 = vst [vmem:[#allocation4 + $0xf50] sm:$0xff] %v848
    %913 = vst [vmem:[#allocation4 + $0xf98] sm:$0xff] %v849
    %914 = vst [vmem:[#allocation4 + $0xfe0] sm:$0xff] %v850
    %915 = vst [vmem:[#allocation4 + $0x1028] sm:$0xff] %v851
    %916 = vst [vmem:[#allocation4 + $0x1070] sm:$0xff] %v852
    %917 = vst [vmem:[#allocation4 + $0x10b8] sm:$0xff] %v853
    %918 = vst [vmem:[#allocation4 + $0x1100] sm:$0xff] %v854
    %919 = vst [vmem:[#allocation4 + $0x1148] sm:$0xff] %v855
    %920 = vst [vmem:[#allocation4 + $0x1190] sm:$0xff] %v856
    %921 = vst [vmem:[#allocation4 + $0x11d8] sm:$0xff] %v857
    %v922 = vld [vmem:[%s217 + $0x2] sm:$0xff]
    %v923 = vld [vmem:[%s217 + $0xa] sm:$0xff]
    %v924 = vld [vmem:[%s217 + $0x1a] sm:$0xff]
    %v925 = vld [vmem:[%s217 + $0x22] sm:$0xff]
    %v926 = vld [vmem:[%s217 + $0x32] sm:$0xff]
    %v927 = vld [vmem:[%s217 + $0x3a] sm:$0xff]
    %v928 = vld [vmem:[%s217 + $0x4a] sm:$0xff]
    %v929 = vld [vmem:[%s217 + $0x52] sm:$0xff]
    %v930 = vld [vmem:[%s217 + $0x62] sm:$0xff]
    %v931 = vld [vmem:[%s217 + $0x6a] sm:$0xff]
    %v932 = vld [vmem:[%s217 + $0x7a] sm:$0xff]
    %v933 = vld [vmem:[%s217 + $0x82] sm:$0xff]
    %v934 = vld [vmem:[%s217 + $0x92] sm:$0xff]
    %v935 = vld [vmem:[%s217 + $0x9a] sm:$0xff]
    %v936 = vld [vmem:[%s217 + $0xaa] sm:$0xff]
    %v937 = vld [vmem:[%s217 + $0xb2] sm:$0xff]
    %v938 = vld [vmem:[%s217 + $0xc2] sm:$0xff]
    %v939 = vld [vmem:[%s217 + $0xca] sm:$0xff]
    %v940 = vld [vmem:[%s217 + $0xda] sm:$0xff]
    %v941 = vld [vmem:[%s217 + $0xe2] sm:$0xff]
    %v942 = vld [vmem:[%s217 + $0xf2] sm:$0xff]
    %v943 = vld [vmem:[%s217 + $0xfa] sm:$0xff]
    %v944 = vld [vmem:[%s217 + $0x10a] sm:$0xff]
    %v945 = vld [vmem:[%s217 + $0x112] sm:$0xff]
    %v946 = vld [vmem:[%s217 + $0x122] sm:$0xff]
    %v947 = vld [vmem:[%s217 + $0x12a] sm:$0xff]
    %v948 = vld [vmem:[%s217 + $0x13a] sm:$0xff]
    %v949 = vld [vmem:[%s217 + $0x142] sm:$0xff]
    %v950 = vld [vmem:[%s217 + $0x152] sm:$0xff]
    %v951 = vld [vmem:[%s217 + $0x15a] sm:$0xff]
    %v952 = vld [vmem:[%s217 + $0x16a] sm:$0xff]
    %v953 = vld [vmem:[%s217 + $0x172] sm:$0xff]
    %v954 = vld [vmem:[%s217 + $0x1b2] sm:$0xff]
    %v955 = vld [vmem:[%s217 + $0x1ba] sm:$0xff]
    %v956 = vld [vmem:[%s217 + $0x1ca] sm:$0xff]
    %v957 = vld [vmem:[%s217 + $0x1d2] sm:$0xff]
    %v958 = vld [vmem:[%s217 + $0x1e2] sm:$0xff]
    %v959 = vld [vmem:[%s217 + $0x1ea] sm:$0xff]
    %v960 = vld [vmem:[%s217 + $0x1fa] sm:$0xff]
    %v961 = vld [vmem:[%s217 + $0x202] sm:$0xff]
    %v962 = vld [vmem:[%s217 + $0x212] sm:$0xff]
    %v963 = vld [vmem:[%s217 + $0x21a] sm:$0xff]
    %v964 = vld [vmem:[%s217 + $0x22a] sm:$0xff]
    %v965 = vld [vmem:[%s217 + $0x232] sm:$0xff]
    %v966 = vld [vmem:[%s217 + $0x242] sm:$0xff]
    %v967 = vld [vmem:[%s217 + $0x24a] sm:$0xff]
    %v968 = vld [vmem:[%s217 + $0x25a] sm:$0xff]
    %v969 = vld [vmem:[%s217 + $0x262] sm:$0xff]
    %v970 = vld [vmem:[%s217 + $0x272] sm:$0xff]
    %v971 = vld [vmem:[%s217 + $0x27a] sm:$0xff]
    %v972 = vld [vmem:[%s217 + $0x28a] sm:$0xff]
    %v973 = vld [vmem:[%s217 + $0x292] sm:$0xff]
    %v974 = vld [vmem:[%s217 + $0x2a2] sm:$0xff]
    %v975 = vld [vmem:[%s217 + $0x2aa] sm:$0xff]
    %v976 = vld [vmem:[%s217 + $0x2ba] sm:$0xff]
    %v977 = vld [vmem:[%s217 + $0x2c2] sm:$0xff]
    %v978 = vld [vmem:[%s217 + $0x2d2] sm:$0xff]
    %v979 = vld [vmem:[%s217 + $0x2da] sm:$0xff]
    %v980 = vld [vmem:[%s217 + $0x2ea] sm:$0xff]
    %v981 = vld [vmem:[%s217 + $0x2f2] sm:$0xff]
    %v982 = vld [vmem:[%s217 + $0x302] sm:$0xff]
    %v983 = vld [vmem:[%s217 + $0x30a] sm:$0xff]
    %v984 = vld [vmem:[%s217 + $0x31a] sm:$0xff]
    %v985 = vld [vmem:[%s217 + $0x322] sm:$0xff]
    %986 = vst [vmem:[#allocation4 + $0x28] sm:$0xff] %v922
    %987 = vst [vmem:[#allocation4 + $0x70] sm:$0xff] %v923
    %988 = vst [vmem:[#allocation4 + $0xb8] sm:$0xff] %v924
    %989 = vst [vmem:[#allocation4 + $0x100] sm:$0xff] %v925
    %990 = vst [vmem:[#allocation4 + $0x148] sm:$0xff] %v926
    %991 = vst [vmem:[#allocation4 + $0x190] sm:$0xff] %v927
    %992 = vst [vmem:[#allocation4 + $0x1d8] sm:$0xff] %v928
    %993 = vst [vmem:[#allocation4 + $0x220] sm:$0xff] %v929
    %994 = vst [vmem:[#allocation4 + $0x268] sm:$0xff] %v930
    %995 = vst [vmem:[#allocation4 + $0x2b0] sm:$0xff] %v931
    %996 = vst [vmem:[#allocation4 + $0x2f8] sm:$0xff] %v932
    %997 = vst [vmem:[#allocation4 + $0x340] sm:$0xff] %v933
    %998 = vst [vmem:[#allocation4 + $0x388] sm:$0xff] %v934
    %999 = vst [vmem:[#allocation4 + $0x3d0] sm:$0xff] %v935
    %1000 = vst [vmem:[#allocation4 + $0x418] sm:$0xff] %v936
    %1001 = vst [vmem:[#allocation4 + $0x460] sm:$0xff] %v937
    %1002 = vst [vmem:[#allocation4 + $0x4a8] sm:$0xff] %v938
    %1003 = vst [vmem:[#allocation4 + $0x4f0] sm:$0xff] %v939
    %1004 = vst [vmem:[#allocation4 + $0x538] sm:$0xff] %v940
    %1005 = vst [vmem:[#allocation4 + $0x580] sm:$0xff] %v941
    %1006 = vst [vmem:[#allocation4 + $0x5c8] sm:$0xff] %v942
    %1007 = vst [vmem:[#allocation4 + $0x610] sm:$0xff] %v943
    %1008 = vst [vmem:[#allocation4 + $0x658] sm:$0xff] %v944
    %1009 = vst [vmem:[#allocation4 + $0x6a0] sm:$0xff] %v945
    %1010 = vst [vmem:[#allocation4 + $0x6e8] sm:$0xff] %v946
    %1011 = vst [vmem:[#allocation4 + $0x730] sm:$0xff] %v947
    %1012 = vst [vmem:[#allocation4 + $0x778] sm:$0xff] %v948
    %1013 = vst [vmem:[#allocation4 + $0x7c0] sm:$0xff] %v949
    %1014 = vst [vmem:[#allocation4 + $0x808] sm:$0xff] %v950
    %1015 = vst [vmem:[#allocation4 + $0x850] sm:$0xff] %v951
    %1016 = vst [vmem:[#allocation4 + $0x898] sm:$0xff] %v952
    %1017 = vst [vmem:[#allocation4 + $0x8e0] sm:$0xff] %v953
    %1018 = vst [vmem:[#allocation4 + $0x928] sm:$0xff] %v954
    %1019 = vst [vmem:[#allocation4 + $0x970] sm:$0xff] %v955
    %1020 = vst [vmem:[#allocation4 + $0x9b8] sm:$0xff] %v956
    %1021 = vst [vmem:[#allocation4 + $0xa00] sm:$0xff] %v957
    %1022 = vst [vmem:[#allocation4 + $0xa48] sm:$0xff] %v958
    %1023 = vst [vmem:[#allocation4 + $0xa90] sm:$0xff] %v959
    %1024 = vst [vmem:[#allocation4 + $0xad8] sm:$0xff] %v960
    %1025 = vst [vmem:[#allocation4 + $0xb20] sm:$0xff] %v961
    %1026 = vst [vmem:[#allocation4 + $0xb68] sm:$0xff] %v962
    %1027 = vst [vmem:[#allocation4 + $0xbb0] sm:$0xff] %v963
    %1028 = vst [vmem:[#allocation4 + $0xbf8] sm:$0xff] %v964
    %1029 = vst [vmem:[#allocation4 + $0xc40] sm:$0xff] %v965
    %1030 = vst [vmem:[#allocation4 + $0xc88] sm:$0xff] %v966
    %1031 = vst [vmem:[#allocation4 + $0xcd0] sm:$0xff] %v967
    %1032 = vst [vmem:[#allocation4 + $0xd18] sm:$0xff] %v968
    %1033 = vst [vmem:[#allocation4 + $0xd60] sm:$0xff] %v969
    %1034 = vst [vmem:[#allocation4 + $0xda8] sm:$0xff] %v970
    %1035 = vst [vmem:[#allocation4 + $0xdf0] sm:$0xff] %v971
    %1036 = vst [vmem:[#allocation4 + $0xe38] sm:$0xff] %v972
    %1037 = vst [vmem:[#allocation4 + $0xe80] sm:$0xff] %v973
    %1038 = vst [vmem:[#allocation4 + $0xec8] sm:$0xff] %v974
    %1039 = vst [vmem:[#allocation4 + $0xf10] sm:$0xff] %v975
    %1040 = vst [vmem:[#allocation4 + $0xf58] sm:$0xff] %v976
    %1041 = vst [vmem:[#allocation4 + $0xfa0] sm:$0xff] %v977
    %1042 = vst [vmem:[#allocation4 + $0xfe8] sm:$0xff] %v978
    %1043 = vst [vmem:[#allocation4 + $0x1030] sm:$0xff] %v979
    %1044 = vst [vmem:[#allocation4 + $0x1078] sm:$0xff] %v980
    %1045 = vst [vmem:[#allocation4 + $0x10c0] sm:$0xff] %v981
    %1046 = vst [vmem:[#allocation4 + $0x1108] sm:$0xff] %v982
    %1047 = vst [vmem:[#allocation4 + $0x1150] sm:$0xff] %v983
    %1048 = vst [vmem:[#allocation4 + $0x1198] sm:$0xff] %v984
    %1049 = vst [vmem:[#allocation4 + $0x11e0] sm:$0xff] %v985
    %s1050 = scalar_lea.vmem [#allocation2], 48
    %v1051 = vld [vmem:[%s1050] sm:$0xff]
    %v1052 = vld [vmem:[%s1050 + $0x8] sm:$0xff]
    %v1053 = vld [vmem:[%s1050 + $0x18] sm:$0xff]
    %v1054 = vld [vmem:[%s1050 + $0x20] sm:$0xff]
    %v1055 = vld [vmem:[%s1050 + $0x30] sm:$0xff]
    %v1056 = vld [vmem:[%s1050 + $0x38] sm:$0xff]
    %v1057 = vld [vmem:[%s1050 + $0x48] sm:$0xff]
    %v1058 = vld [vmem:[%s1050 + $0x50] sm:$0xff]
    %v1059 = vld [vmem:[%s1050 + $0x60] sm:$0xff]
    %v1060 = vld [vmem:[%s1050 + $0x68] sm:$0xff]
    %v1061 = vld [vmem:[%s1050 + $0x78] sm:$0xff]
    %v1062 = vld [vmem:[%s1050 + $0x80] sm:$0xff]
    %v1063 = vld [vmem:[%s1050 + $0x90] sm:$0xff]
    %v1064 = vld [vmem:[%s1050 + $0x98] sm:$0xff]
    %v1065 = vld [vmem:[%s1050 + $0xa8] sm:$0xff]
    %v1066 = vld [vmem:[%s1050 + $0xb0] sm:$0xff]
    %v1067 = vld [vmem:[%s1050 + $0xc0] sm:$0xff]
    %v1068 = vld [vmem:[%s1050 + $0xc8] sm:$0xff]
    %v1069 = vld [vmem:[%s1050 + $0xd8] sm:$0xff]
    %v1070 = vld [vmem:[%s1050 + $0xe0] sm:$0xff]
    %v1071 = vld [vmem:[%s1050 + $0xf0] sm:$0xff]
    %v1072 = vld [vmem:[%s1050 + $0xf8] sm:$0xff]
    %v1073 = vld [vmem:[%s1050 + $0x108] sm:$0xff]
    %v1074 = vld [vmem:[%s1050 + $0x110] sm:$0xff]
    %v1075 = vld [vmem:[%s1050 + $0x120] sm:$0xff]
    %v1076 = vld [vmem:[%s1050 + $0x128] sm:$0xff]
    %v1077 = vld [vmem:[%s1050 + $0x138] sm:$0xff]
    %v1078 = vld [vmem:[%s1050 + $0x140] sm:$0xff]
    %v1079 = vld [vmem:[%s1050 + $0x150] sm:$0xff]
    %v1080 = vld [vmem:[%s1050 + $0x158] sm:$0xff]
    %v1081 = vld [vmem:[%s1050 + $0x168] sm:$0xff]
    %v1082 = vld [vmem:[%s1050 + $0x170] sm:$0xff]
    %v1083 = vld [vmem:[%s1050 + $0x1b0] sm:$0xff]
    %v1084 = vld [vmem:[%s1050 + $0x1b8] sm:$0xff]
    %v1085 = vld [vmem:[%s1050 + $0x1c8] sm:$0xff]
    %v1086 = vld [vmem:[%s1050 + $0x1d0] sm:$0xff]
    %v1087 = vld [vmem:[%s1050 + $0x1e0] sm:$0xff]
    %v1088 = vld [vmem:[%s1050 + $0x1e8] sm:$0xff]
    %v1089 = vld [vmem:[%s1050 + $0x1f8] sm:$0xff]
    %v1090 = vld [vmem:[%s1050 + $0x200] sm:$0xff]
    %v1091 = vld [vmem:[%s1050 + $0x210] sm:$0xff]
    %v1092 = vld [vmem:[%s1050 + $0x218] sm:$0xff]
    %v1093 = vld [vmem:[%s1050 + $0x228] sm:$0xff]
    %v1094 = vld [vmem:[%s1050 + $0x230] sm:$0xff]
    %v1095 = vld [vmem:[%s1050 + $0x240] sm:$0xff]
    %v1096 = vld [vmem:[%s1050 + $0x248] sm:$0xff]
    %v1097 = vld [vmem:[%s1050 + $0x258] sm:$0xff]
    %v1098 = vld [vmem:[%s1050 + $0x260] sm:$0xff]
    %v1099 = vld [vmem:[%s1050 + $0x270] sm:$0xff]
    %v1100 = vld [vmem:[%s1050 + $0x278] sm:$0xff]
    %v1101 = vld [vmem:[%s1050 + $0x288] sm:$0xff]
    %v1102 = vld [vmem:[%s1050 + $0x290] sm:$0xff]
    %v1103 = vld [vmem:[%s1050 + $0x2a0] sm:$0xff]
    %v1104 = vld [vmem:[%s1050 + $0x2a8] sm:$0xff]
    %v1105 = vld [vmem:[%s1050 + $0x2b8] sm:$0xff]
    %v1106 = vld [vmem:[%s1050 + $0x2c0] sm:$0xff]
    %v1107 = vld [vmem:[%s1050 + $0x2d0] sm:$0xff]
    %v1108 = vld [vmem:[%s1050 + $0x2d8] sm:$0xff]
    %v1109 = vld [vmem:[%s1050 + $0x2e8] sm:$0xff]
    %v1110 = vld [vmem:[%s1050 + $0x2f0] sm:$0xff]
    %v1111 = vld [vmem:[%s1050 + $0x300] sm:$0xff]
    %v1112 = vld [vmem:[%s1050 + $0x308] sm:$0xff]
    %v1113 = vld [vmem:[%s1050 + $0x318] sm:$0xff]
    %v1114 = vld [vmem:[%s1050 + $0x320] sm:$0xff]
    %1115 = vst [vmem:[#allocation4 + $0x30] sm:$0xff] %v1051
    %1116 = vst [vmem:[#allocation4 + $0x78] sm:$0xff] %v1052
    %1117 = vst [vmem:[#allocation4 + $0xc0] sm:$0xff] %v1053
    %1118 = vst [vmem:[#allocation4 + $0x108] sm:$0xff] %v1054
    %1119 = vst [vmem:[#allocation4 + $0x150] sm:$0xff] %v1055
    %1120 = vst [vmem:[#allocation4 + $0x198] sm:$0xff] %v1056
    %1121 = vst [vmem:[#allocation4 + $0x1e0] sm:$0xff] %v1057
    %1122 = vst [vmem:[#allocation4 + $0x228] sm:$0xff] %v1058
    %1123 = vst [vmem:[#allocation4 + $0x270] sm:$0xff] %v1059
    %1124 = vst [vmem:[#allocation4 + $0x2b8] sm:$0xff] %v1060
    %1125 = vst [vmem:[#allocation4 + $0x300] sm:$0xff] %v1061
    %1126 = vst [vmem:[#allocation4 + $0x348] sm:$0xff] %v1062
    %1127 = vst [vmem:[#allocation4 + $0x390] sm:$0xff] %v1063
    %1128 = vst [vmem:[#allocation4 + $0x3d8] sm:$0xff] %v1064
    %1129 = vst [vmem:[#allocation4 + $0x420] sm:$0xff] %v1065
    %1130 = vst [vmem:[#allocation4 + $0x468] sm:$0xff] %v1066
    %1131 = vst [vmem:[#allocation4 + $0x4b0] sm:$0xff] %v1067
    %1132 = vst [vmem:[#allocation4 + $0x4f8] sm:$0xff] %v1068
    %1133 = vst [vmem:[#allocation4 + $0x540] sm:$0xff] %v1069
    %1134 = vst [vmem:[#allocation4 + $0x588] sm:$0xff] %v1070
    %1135 = vst [vmem:[#allocation4 + $0x5d0] sm:$0xff] %v1071
    %1136 = vst [vmem:[#allocation4 + $0x618] sm:$0xff] %v1072
    %1137 = vst [vmem:[#allocation4 + $0x660] sm:$0xff] %v1073
    %1138 = vst [vmem:[#allocation4 + $0x6a8] sm:$0xff] %v1074
    %1139 = vst [vmem:[#allocation4 + $0x6f0] sm:$0xff] %v1075
    %1140 = vst [vmem:[#allocation4 + $0x738] sm:$0xff] %v1076
    %1141 = vst [vmem:[#allocation4 + $0x780] sm:$0xff] %v1077
    %1142 = vst [vmem:[#allocation4 + $0x7c8] sm:$0xff] %v1078
    %1143 = vst [vmem:[#allocation4 + $0x810] sm:$0xff] %v1079
    %1144 = vst [vmem:[#allocation4 + $0x858] sm:$0xff] %v1080
    %1145 = vst [vmem:[#allocation4 + $0x8a0] sm:$0xff] %v1081
    %1146 = vst [vmem:[#allocation4 + $0x8e8] sm:$0xff] %v1082
    %1147 = vst [vmem:[#allocation4 + $0x930] sm:$0xff] %v1083
    %1148 = vst [vmem:[#allocation4 + $0x978] sm:$0xff] %v1084
    %1149 = vst [vmem:[#allocation4 + $0x9c0] sm:$0xff] %v1085
    %1150 = vst [vmem:[#allocation4 + $0xa08] sm:$0xff] %v1086
    %1151 = vst [vmem:[#allocation4 + $0xa50] sm:$0xff] %v1087
    %1152 = vst [vmem:[#allocation4 + $0xa98] sm:$0xff] %v1088
    %1153 = vst [vmem:[#allocation4 + $0xae0] sm:$0xff] %v1089
    %1154 = vst [vmem:[#allocation4 + $0xb28] sm:$0xff] %v1090
    %1155 = vst [vmem:[#allocation4 + $0xb70] sm:$0xff] %v1091
    %1156 = vst [vmem:[#allocation4 + $0xbb8] sm:$0xff] %v1092
    %1157 = vst [vmem:[#allocation4 + $0xc00] sm:$0xff] %v1093
    %1158 = vst [vmem:[#allocation4 + $0xc48] sm:$0xff] %v1094
    %1159 = vst [vmem:[#allocation4 + $0xc90] sm:$0xff] %v1095
    %1160 = vst [vmem:[#allocation4 + $0xcd8] sm:$0xff] %v1096
    %1161 = vst [vmem:[#allocation4 + $0xd20] sm:$0xff] %v1097
    %1162 = vst [vmem:[#allocation4 + $0xd68] sm:$0xff] %v1098
    %1163 = vst [vmem:[#allocation4 + $0xdb0] sm:$0xff] %v1099
    %1164 = vst [vmem:[#allocation4 + $0xdf8] sm:$0xff] %v1100
    %1165 = vst [vmem:[#allocation4 + $0xe40] sm:$0xff] %v1101
    %1166 = vst [vmem:[#allocation4 + $0xe88] sm:$0xff] %v1102
    %1167 = vst [vmem:[#allocation4 + $0xed0] sm:$0xff] %v1103
    %1168 = vst [vmem:[#allocation4 + $0xf18] sm:$0xff] %v1104
    %1169 = vst [vmem:[#allocation4 + $0xf60] sm:$0xff] %v1105
    %1170 = vst [vmem:[#allocation4 + $0xfa8] sm:$0xff] %v1106
    %1171 = vst [vmem:[#allocation4 + $0xff0] sm:$0xff] %v1107
    %1172 = vst [vmem:[#allocation4 + $0x1038] sm:$0xff] %v1108
    %1173 = vst [vmem:[#allocation4 + $0x1080] sm:$0xff] %v1109
    %1174 = vst [vmem:[#allocation4 + $0x10c8] sm:$0xff] %v1110
    %1175 = vst [vmem:[#allocation4 + $0x1110] sm:$0xff] %v1111
    %1176 = vst [vmem:[#allocation4 + $0x1158] sm:$0xff] %v1112
    %1177 = vst [vmem:[#allocation4 + $0x11a0] sm:$0xff] %v1113
    %1178 = vst [vmem:[#allocation4 + $0x11e8] sm:$0xff] %v1114
    %v1179 = vld [vmem:[%s1050 + $0x1] sm:$0xff]
    %v1180 = vld [vmem:[%s1050 + $0x9] sm:$0xff]
    %v1181 = vld [vmem:[%s1050 + $0x19] sm:$0xff]
    %v1182 = vld [vmem:[%s1050 + $0x21] sm:$0xff]
    %v1183 = vld [vmem:[%s1050 + $0x31] sm:$0xff]
    %v1184 = vld [vmem:[%s1050 + $0x39] sm:$0xff]
    %v1185 = vld [vmem:[%s1050 + $0x49] sm:$0xff]
    %v1186 = vld [vmem:[%s1050 + $0x51] sm:$0xff]
    %v1187 = vld [vmem:[%s1050 + $0x61] sm:$0xff]
    %v1188 = vld [vmem:[%s1050 + $0x69] sm:$0xff]
    %v1189 = vld [vmem:[%s1050 + $0x79] sm:$0xff]
    %v1190 = vld [vmem:[%s1050 + $0x81] sm:$0xff]
    %v1191 = vld [vmem:[%s1050 + $0x91] sm:$0xff]
    %v1192 = vld [vmem:[%s1050 + $0x99] sm:$0xff]
    %v1193 = vld [vmem:[%s1050 + $0xa9] sm:$0xff]
    %v1194 = vld [vmem:[%s1050 + $0xb1] sm:$0xff]
    %v1195 = vld [vmem:[%s1050 + $0xc1] sm:$0xff]
    %v1196 = vld [vmem:[%s1050 + $0xc9] sm:$0xff]
    %v1197 = vld [vmem:[%s1050 + $0xd9] sm:$0xff]
    %v1198 = vld [vmem:[%s1050 + $0xe1] sm:$0xff]
    %v1199 = vld [vmem:[%s1050 + $0xf1] sm:$0xff]
    %v1200 = vld [vmem:[%s1050 + $0xf9] sm:$0xff]
    %v1201 = vld [vmem:[%s1050 + $0x109] sm:$0xff]
    %v1202 = vld [vmem:[%s1050 + $0x111] sm:$0xff]
    %v1203 = vld [vmem:[%s1050 + $0x121] sm:$0xff]
    %v1204 = vld [vmem:[%s1050 + $0x129] sm:$0xff]
    %v1205 = vld [vmem:[%s1050 + $0x139] sm:$0xff]
    %v1206 = vld [vmem:[%s1050 + $0x141] sm:$0xff]
    %v1207 = vld [vmem:[%s1050 + $0x151] sm:$0xff]
    %v1208 = vld [vmem:[%s1050 + $0x159] sm:$0xff]
    %v1209 = vld [vmem:[%s1050 + $0x169] sm:$0xff]
    %v1210 = vld [vmem:[%s1050 + $0x171] sm:$0xff]
    %v1211 = vld [vmem:[%s1050 + $0x1b1] sm:$0xff]
    %v1212 = vld [vmem:[%s1050 + $0x1b9] sm:$0xff]
    %v1213 = vld [vmem:[%s1050 + $0x1c9] sm:$0xff]
    %v1214 = vld [vmem:[%s1050 + $0x1d1] sm:$0xff]
    %v1215 = vld [vmem:[%s1050 + $0x1e1] sm:$0xff]
    %v1216 = vld [vmem:[%s1050 + $0x1e9] sm:$0xff]
    %v1217 = vld [vmem:[%s1050 + $0x1f9] sm:$0xff]
    %v1218 = vld [vmem:[%s1050 + $0x201] sm:$0xff]
    %v1219 = vld [vmem:[%s1050 + $0x211] sm:$0xff]
    %v1220 = vld [vmem:[%s1050 + $0x219] sm:$0xff]
    %v1221 = vld [vmem:[%s1050 + $0x229] sm:$0xff]
    %v1222 = vld [vmem:[%s1050 + $0x231] sm:$0xff]
    %v1223 = vld [vmem:[%s1050 + $0x241] sm:$0xff]
    %v1224 = vld [vmem:[%s1050 + $0x249] sm:$0xff]
    %v1225 = vld [vmem:[%s1050 + $0x259] sm:$0xff]
    %v1226 = vld [vmem:[%s1050 + $0x261] sm:$0xff]
    %v1227 = vld [vmem:[%s1050 + $0x271] sm:$0xff]
    %v1228 = vld [vmem:[%s1050 + $0x279] sm:$0xff]
    %v1229 = vld [vmem:[%s1050 + $0x289] sm:$0xff]
    %v1230 = vld [vmem:[%s1050 + $0x291] sm:$0xff]
    %v1231 = vld [vmem:[%s1050 + $0x2a1] sm:$0xff]
    %v1232 = vld [vmem:[%s1050 + $0x2a9] sm:$0xff]
    %v1233 = vld [vmem:[%s1050 + $0x2b9] sm:$0xff]
    %v1234 = vld [vmem:[%s1050 + $0x2c1] sm:$0xff]
    %v1235 = vld [vmem:[%s1050 + $0x2d1] sm:$0xff]
    %v1236 = vld [vmem:[%s1050 + $0x2d9] sm:$0xff]
    %v1237 = vld [vmem:[%s1050 + $0x2e9] sm:$0xff]
    %v1238 = vld [vmem:[%s1050 + $0x2f1] sm:$0xff]
    %v1239 = vld [vmem:[%s1050 + $0x301] sm:$0xff]
    %v1240 = vld [vmem:[%s1050 + $0x309] sm:$0xff]
    %v1241 = vld [vmem:[%s1050 + $0x319] sm:$0xff]
    %v1242 = vld [vmem:[%s1050 + $0x321] sm:$0xff]
    %1243 = vst [vmem:[#allocation4 + $0x38] sm:$0xff] %v1179
    %1244 = vst [vmem:[#allocation4 + $0x80] sm:$0xff] %v1180
    %1245 = vst [vmem:[#allocation4 + $0xc8] sm:$0xff] %v1181
    %1246 = vst [vmem:[#allocation4 + $0x110] sm:$0xff] %v1182
    %1247 = vst [vmem:[#allocation4 + $0x158] sm:$0xff] %v1183
    %1248 = vst [vmem:[#allocation4 + $0x1a0] sm:$0xff] %v1184
    %1249 = vst [vmem:[#allocation4 + $0x1e8] sm:$0xff] %v1185
    %1250 = vst [vmem:[#allocation4 + $0x230] sm:$0xff] %v1186
    %1251 = vst [vmem:[#allocation4 + $0x278] sm:$0xff] %v1187
    %1252 = vst [vmem:[#allocation4 + $0x2c0] sm:$0xff] %v1188
    %1253 = vst [vmem:[#allocation4 + $0x308] sm:$0xff] %v1189
    %1254 = vst [vmem:[#allocation4 + $0x350] sm:$0xff] %v1190
    %1255 = vst [vmem:[#allocation4 + $0x398] sm:$0xff] %v1191
    %1256 = vst [vmem:[#allocation4 + $0x3e0] sm:$0xff] %v1192
    %1257 = vst [vmem:[#allocation4 + $0x428] sm:$0xff] %v1193
    %1258 = vst [vmem:[#allocation4 + $0x470] sm:$0xff] %v1194
    %1259 = vst [vmem:[#allocation4 + $0x4b8] sm:$0xff] %v1195
    %1260 = vst [vmem:[#allocation4 + $0x500] sm:$0xff] %v1196
    %1261 = vst [vmem:[#allocation4 + $0x548] sm:$0xff] %v1197
    %1262 = vst [vmem:[#allocation4 + $0x590] sm:$0xff] %v1198
    %1263 = vst [vmem:[#allocation4 + $0x5d8] sm:$0xff] %v1199
    %1264 = vst [vmem:[#allocation4 + $0x620] sm:$0xff] %v1200
    %1265 = vst [vmem:[#allocation4 + $0x668] sm:$0xff] %v1201
    %1266 = vst [vmem:[#allocation4 + $0x6b0] sm:$0xff] %v1202
    %1267 = vst [vmem:[#allocation4 + $0x6f8] sm:$0xff] %v1203
    %1268 = vst [vmem:[#allocation4 + $0x740] sm:$0xff] %v1204
    %1269 = vst [vmem:[#allocation4 + $0x788] sm:$0xff] %v1205
    %1270 = vst [vmem:[#allocation4 + $0x7d0] sm:$0xff] %v1206
    %1271 = vst [vmem:[#allocation4 + $0x818] sm:$0xff] %v1207
    %1272 = vst [vmem:[#allocation4 + $0x860] sm:$0xff] %v1208
    %1273 = vst [vmem:[#allocation4 + $0x8a8] sm:$0xff] %v1209
    %1274 = vst [vmem:[#allocation4 + $0x8f0] sm:$0xff] %v1210
    %1275 = vst [vmem:[#allocation4 + $0x938] sm:$0xff] %v1211
    %1276 = vst [vmem:[#allocation4 + $0x980] sm:$0xff] %v1212
    %1277 = vst [vmem:[#allocation4 + $0x9c8] sm:$0xff] %v1213
    %1278 = vst [vmem:[#allocation4 + $0xa10] sm:$0xff] %v1214
    %1279 = vst [vmem:[#allocation4 + $0xa58] sm:$0xff] %v1215
    %1280 = vst [vmem:[#allocation4 + $0xaa0] sm:$0xff] %v1216
    %1281 = vst [vmem:[#allocation4 + $0xae8] sm:$0xff] %v1217
    %1282 = vst [vmem:[#allocation4 + $0xb30] sm:$0xff] %v1218
    %1283 = vst [vmem:[#allocation4 + $0xb78] sm:$0xff] %v1219
    %1284 = vst [vmem:[#allocation4 + $0xbc0] sm:$0xff] %v1220
    %1285 = vst [vmem:[#allocation4 + $0xc08] sm:$0xff] %v1221
    %1286 = vst [vmem:[#allocation4 + $0xc50] sm:$0xff] %v1222
    %1287 = vst [vmem:[#allocation4 + $0xc98] sm:$0xff] %v1223
    %1288 = vst [vmem:[#allocation4 + $0xce0] sm:$0xff] %v1224
    %1289 = vst [vmem:[#allocation4 + $0xd28] sm:$0xff] %v1225
    %1290 = vst [vmem:[#allocation4 + $0xd70] sm:$0xff] %v1226
    %1291 = vst [vmem:[#allocation4 + $0xdb8] sm:$0xff] %v1227
    %1292 = vst [vmem:[#allocation4 + $0xe00] sm:$0xff] %v1228
    %1293 = vst [vmem:[#allocation4 + $0xe48] sm:$0xff] %v1229
    %1294 = vst [vmem:[#allocation4 + $0xe90] sm:$0xff] %v1230
    %1295 = vst [vmem:[#allocation4 + $0xed8] sm:$0xff] %v1231
    %1296 = vst [vmem:[#allocation4 + $0xf20] sm:$0xff] %v1232
    %1297 = vst [vmem:[#allocation4 + $0xf68] sm:$0xff] %v1233
    %1298 = vst [vmem:[#allocation4 + $0xfb0] sm:$0xff] %v1234
    %1299 = vst [vmem:[#allocation4 + $0xff8] sm:$0xff] %v1235
    %1300 = vst [vmem:[#allocation4 + $0x1040] sm:$0xff] %v1236
    %1301 = vst [vmem:[#allocation4 + $0x1088] sm:$0xff] %v1237
    %1302 = vst [vmem:[#allocation4 + $0x10d0] sm:$0xff] %v1238
    %1303 = vst [vmem:[#allocation4 + $0x1118] sm:$0xff] %v1239
    %1304 = vst [vmem:[#allocation4 + $0x1160] sm:$0xff] %v1240
    %1305 = vst [vmem:[#allocation4 + $0x11a8] sm:$0xff] %v1241
    %1306 = vst [vmem:[#allocation4 + $0x11f0] sm:$0xff] %v1242
    %v1307 = vld [vmem:[%s1050 + $0x2] sm:$0xff]
    %v1308 = vld [vmem:[%s1050 + $0xa] sm:$0xff]
    %v1309 = vld [vmem:[%s1050 + $0x1a] sm:$0xff]
    %v1310 = vld [vmem:[%s1050 + $0x22] sm:$0xff]
    %v1311 = vld [vmem:[%s1050 + $0x32] sm:$0xff]
    %v1312 = vld [vmem:[%s1050 + $0x3a] sm:$0xff]
    %v1313 = vld [vmem:[%s1050 + $0x4a] sm:$0xff]
    %v1314 = vld [vmem:[%s1050 + $0x52] sm:$0xff]
    %v1315 = vld [vmem:[%s1050 + $0x62] sm:$0xff]
    %v1316 = vld [vmem:[%s1050 + $0x6a] sm:$0xff]
    %v1317 = vld [vmem:[%s1050 + $0x7a] sm:$0xff]
    %v1318 = vld [vmem:[%s1050 + $0x82] sm:$0xff]
    %v1319 = vld [vmem:[%s1050 + $0x92] sm:$0xff]
    %v1320 = vld [vmem:[%s1050 + $0x9a] sm:$0xff]
    %v1321 = vld [vmem:[%s1050 + $0xaa] sm:$0xff]
    %v1322 = vld [vmem:[%s1050 + $0xb2] sm:$0xff]
    %v1323 = vld [vmem:[%s1050 + $0xc2] sm:$0xff]
    %v1324 = vld [vmem:[%s1050 + $0xca] sm:$0xff]
    %v1325 = vld [vmem:[%s1050 + $0xda] sm:$0xff]
    %v1326 = vld [vmem:[%s1050 + $0xe2] sm:$0xff]
    %v1327 = vld [vmem:[%s1050 + $0xf2] sm:$0xff]
    %v1328 = vld [vmem:[%s1050 + $0xfa] sm:$0xff]
    %v1329 = vld [vmem:[%s1050 + $0x10a] sm:$0xff]
    %v1330 = vld [vmem:[%s1050 + $0x112] sm:$0xff]
    %v1331 = vld [vmem:[%s1050 + $0x122] sm:$0xff]
    %v1332 = vld [vmem:[%s1050 + $0x12a] sm:$0xff]
    %v1333 = vld [vmem:[%s1050 + $0x13a] sm:$0xff]
    %v1334 = vld [vmem:[%s1050 + $0x142] sm:$0xff]
    %v1335 = vld [vmem:[%s1050 + $0x152] sm:$0xff]
    %v1336 = vld [vmem:[%s1050 + $0x15a] sm:$0xff]
    %v1337 = vld [vmem:[%s1050 + $0x16a] sm:$0xff]
    %v1338 = vld [vmem:[%s1050 + $0x172] sm:$0xff]
    %v1339 = vld [vmem:[%s1050 + $0x1b2] sm:$0xff]
    %v1340 = vld [vmem:[%s1050 + $0x1ba] sm:$0xff]
    %v1341 = vld [vmem:[%s1050 + $0x1ca] sm:$0xff]
    %v1342 = vld [vmem:[%s1050 + $0x1d2] sm:$0xff]
    %v1343 = vld [vmem:[%s1050 + $0x1e2] sm:$0xff]
    %v1344 = vld [vmem:[%s1050 + $0x1ea] sm:$0xff]
    %v1345 = vld [vmem:[%s1050 + $0x1fa] sm:$0xff]
    %v1346 = vld [vmem:[%s1050 + $0x202] sm:$0xff]
    %v1347 = vld [vmem:[%s1050 + $0x212] sm:$0xff]
    %v1348 = vld [vmem:[%s1050 + $0x21a] sm:$0xff]
    %v1349 = vld [vmem:[%s1050 + $0x22a] sm:$0xff]
    %v1350 = vld [vmem:[%s1050 + $0x232] sm:$0xff]
    %v1351 = vld [vmem:[%s1050 + $0x242] sm:$0xff]
    %v1352 = vld [vmem:[%s1050 + $0x24a] sm:$0xff]
    %v1353 = vld [vmem:[%s1050 + $0x25a] sm:$0xff]
    %v1354 = vld [vmem:[%s1050 + $0x262] sm:$0xff]
    %v1355 = vld [vmem:[%s1050 + $0x272] sm:$0xff]
    %v1356 = vld [vmem:[%s1050 + $0x27a] sm:$0xff]
    %v1357 = vld [vmem:[%s1050 + $0x28a] sm:$0xff]
    %v1358 = vld [vmem:[%s1050 + $0x292] sm:$0xff]
    %v1359 = vld [vmem:[%s1050 + $0x2a2] sm:$0xff]
    %v1360 = vld [vmem:[%s1050 + $0x2aa] sm:$0xff]
    %v1361 = vld [vmem:[%s1050 + $0x2ba] sm:$0xff]
    %v1362 = vld [vmem:[%s1050 + $0x2c2] sm:$0xff]
    %v1363 = vld [vmem:[%s1050 + $0x2d2] sm:$0xff]
    %v1364 = vld [vmem:[%s1050 + $0x2da] sm:$0xff]
    %v1365 = vld [vmem:[%s1050 + $0x2ea] sm:$0xff]
    %v1366 = vld [vmem:[%s1050 + $0x2f2] sm:$0xff]
    %v1367 = vld [vmem:[%s1050 + $0x302] sm:$0xff]
    %v1368 = vld [vmem:[%s1050 + $0x30a] sm:$0xff]
    %v1369 = vld [vmem:[%s1050 + $0x31a] sm:$0xff]
    %v1370 = vld [vmem:[%s1050 + $0x322] sm:$0xff]
    %1371 = vst [vmem:[#allocation4 + $0x40] sm:$0xff] %v1307
    %1372 = vst [vmem:[#allocation4 + $0x88] sm:$0xff] %v1308
    %1373 = vst [vmem:[#allocation4 + $0xd0] sm:$0xff] %v1309
    %1374 = vst [vmem:[#allocation4 + $0x118] sm:$0xff] %v1310
    %1375 = vst [vmem:[#allocation4 + $0x160] sm:$0xff] %v1311
    %1376 = vst [vmem:[#allocation4 + $0x1a8] sm:$0xff] %v1312
    %1377 = vst [vmem:[#allocation4 + $0x1f0] sm:$0xff] %v1313
    %1378 = vst [vmem:[#allocation4 + $0x238] sm:$0xff] %v1314
    %1379 = vst [vmem:[#allocation4 + $0x280] sm:$0xff] %v1315
    %1380 = vst [vmem:[#allocation4 + $0x2c8] sm:$0xff] %v1316
    %1381 = vst [vmem:[#allocation4 + $0x310] sm:$0xff] %v1317
    %1382 = vst [vmem:[#allocation4 + $0x358] sm:$0xff] %v1318
    %1383 = vst [vmem:[#allocation4 + $0x3a0] sm:$0xff] %v1319
    %1384 = vst [vmem:[#allocation4 + $0x3e8] sm:$0xff] %v1320
    %1385 = vst [vmem:[#allocation4 + $0x430] sm:$0xff] %v1321
    %1386 = vst [vmem:[#allocation4 + $0x478] sm:$0xff] %v1322
    %1387 = vst [vmem:[#allocation4 + $0x4c0] sm:$0xff] %v1323
    %1388 = vst [vmem:[#allocation4 + $0x508] sm:$0xff] %v1324
    %1389 = vst [vmem:[#allocation4 + $0x550] sm:$0xff] %v1325
    %1390 = vst [vmem:[#allocation4 + $0x598] sm:$0xff] %v1326
    %1391 = vst [vmem:[#allocation4 + $0x5e0] sm:$0xff] %v1327
    %1392 = vst [vmem:[#allocation4 + $0x628] sm:$0xff] %v1328
    %1393 = vst [vmem:[#allocation4 + $0x670] sm:$0xff] %v1329
    %1394 = vst [vmem:[#allocation4 + $0x6b8] sm:$0xff] %v1330
    %1395 = vst [vmem:[#allocation4 + $0x700] sm:$0xff] %v1331
    %1396 = vst [vmem:[#allocation4 + $0x748] sm:$0xff] %v1332
    %1397 = vst [vmem:[#allocation4 + $0x790] sm:$0xff] %v1333
    %1398 = vst [vmem:[#allocation4 + $0x7d8] sm:$0xff] %v1334
    %1399 = vst [vmem:[#allocation4 + $0x820] sm:$0xff] %v1335
    %1400 = vst [vmem:[#allocation4 + $0x868] sm:$0xff] %v1336
    %1401 = vst [vmem:[#allocation4 + $0x8b0] sm:$0xff] %v1337
    %1402 = vst [vmem:[#allocation4 + $0x8f8] sm:$0xff] %v1338
    %1403 = vst [vmem:[#allocation4 + $0x940] sm:$0xff] %v1339
    %1404 = vst [vmem:[#allocation4 + $0x988] sm:$0xff] %v1340
    %1405 = vst [vmem:[#allocation4 + $0x9d0] sm:$0xff] %v1341
    %1406 = vst [vmem:[#allocation4 + $0xa18] sm:$0xff] %v1342
    %1407 = vst [vmem:[#allocation4 + $0xa60] sm:$0xff] %v1343
    %1408 = vst [vmem:[#allocation4 + $0xaa8] sm:$0xff] %v1344
    %1409 = vst [vmem:[#allocation4 + $0xaf0] sm:$0xff] %v1345
    %1410 = vst [vmem:[#allocation4 + $0xb38] sm:$0xff] %v1346
    %1411 = vst [vmem:[#allocation4 + $0xb80] sm:$0xff] %v1347
    %1412 = vst [vmem:[#allocation4 + $0xbc8] sm:$0xff] %v1348
    %1413 = vst [vmem:[#allocation4 + $0xc10] sm:$0xff] %v1349
    %1414 = vst [vmem:[#allocation4 + $0xc58] sm:$0xff] %v1350
    %1415 = vst [vmem:[#allocation4 + $0xca0] sm:$0xff] %v1351
    %1416 = vst [vmem:[#allocation4 + $0xce8] sm:$0xff] %v1352
    %1417 = vst [vmem:[#allocation4 + $0xd30] sm:$0xff] %v1353
    %1418 = vst [vmem:[#allocation4 + $0xd78] sm:$0xff] %v1354
    %1419 = vst [vmem:[#allocation4 + $0xdc0] sm:$0xff] %v1355
    %1420 = vst [vmem:[#allocation4 + $0xe08] sm:$0xff] %v1356
    %1421 = vst [vmem:[#allocation4 + $0xe50] sm:$0xff] %v1357
    %1422 = vst [vmem:[#allocation4 + $0xe98] sm:$0xff] %v1358
    %1423 = vst [vmem:[#allocation4 + $0xee0] sm:$0xff] %v1359
    %1424 = vst [vmem:[#allocation4 + $0xf28] sm:$0xff] %v1360
    %1425 = vst [vmem:[#allocation4 + $0xf70] sm:$0xff] %v1361
    %1426 = vst [vmem:[#allocation4 + $0xfb8] sm:$0xff] %v1362
    %1427 = vst [vmem:[#allocation4 + $0x1000] sm:$0xff] %v1363
    %1428 = vst [vmem:[#allocation4 + $0x1048] sm:$0xff] %v1364
    %1429 = vst [vmem:[#allocation4 + $0x1090] sm:$0xff] %v1365
    %1430 = vst [vmem:[#allocation4 + $0x10d8] sm:$0xff] %v1366
    %1431 = vst [vmem:[#allocation4 + $0x1120] sm:$0xff] %v1367
    %1432 = vst [vmem:[#allocation4 + $0x1168] sm:$0xff] %v1368
    %1433 = vst [vmem:[#allocation4 + $0x11b0] sm:$0xff] %v1369
    %1434 = vst [vmem:[#allocation4 + $0x11f8] sm:$0xff] %v1370
    %v1435 = vld [vmem:[#allocation4] sm:$0xff]
    %v1436 = vld [vmem:[#allocation4 + $0x8] sm:$0xff]
    %v1437 = vld [vmem:[#allocation4 + $0x10] sm:$0xff]
    %v1438 = vld [vmem:[#allocation4 + $0x18] sm:$0xff]
    %v1439 = vld [vmem:[#allocation4 + $0x20] sm:$0xff]
    %v1440 = vld [vmem:[#allocation4 + $0x28] sm:$0xff]
    %v1441 = vld [vmem:[#allocation4 + $0x30] sm:$0xff]
    %v1442 = vld [vmem:[#allocation4 + $0x38] sm:$0xff]
    %v1443 = vld [vmem:[#allocation4 + $0x40] sm:$0xff]
    %v1444 = vld [vmem:[#allocation4 + $0x48] sm:$0xff]
    %v1445 = vld [vmem:[#allocation4 + $0x50] sm:$0xff]
    %v1446 = vld [vmem:[#allocation4 + $0x58] sm:$0xff]
    %v1447 = vld [vmem:[#allocation4 + $0x60] sm:$0xff]
    %v1448 = vld [vmem:[#allocation4 + $0x68] sm:$0xff]
    %v1449 = vld [vmem:[#allocation4 + $0x70] sm:$0xff]
    %v1450 = vld [vmem:[#allocation4 + $0x78] sm:$0xff]
    %v1451 = vld [vmem:[#allocation4 + $0x80] sm:$0xff]
    %v1452 = vld [vmem:[#allocation4 + $0x88] sm:$0xff]
    %v1453 = vld [vmem:[#allocation4 + $0x90] sm:$0xff]
    %v1454 = vld [vmem:[#allocation4 + $0x98] sm:$0xff]
    %v1455 = vld [vmem:[#allocation4 + $0xa0] sm:$0xff]
    %v1456 = vld [vmem:[#allocation4 + $0xa8] sm:$0xff]
    %v1457 = vld [vmem:[#allocation4 + $0xb0] sm:$0xff]
    %v1458 = vld [vmem:[#allocation4 + $0xb8] sm:$0xff]
    %v1459 = vld [vmem:[#allocation4 + $0xc0] sm:$0xff]
    %v1460 = vld [vmem:[#allocation4 + $0xc8] sm:$0xff]
    %v1461 = vld [vmem:[#allocation4 + $0xd0] sm:$0xff]
    %v1462 = vld [vmem:[#allocation4 + $0xd8] sm:$0xff]
    %v1463 = vld [vmem:[#allocation4 + $0xe0] sm:$0xff]
    %v1464 = vld [vmem:[#allocation4 + $0xe8] sm:$0xff]
    %v1465 = vld [vmem:[#allocation4 + $0xf0] sm:$0xff]
    %v1466 = vld [vmem:[#allocation4 + $0xf8] sm:$0xff]
    %v1467 = vld [vmem:[#allocation4 + $0x100] sm:$0xff]
    %v1468 = vld [vmem:[#allocation4 + $0x108] sm:$0xff]
    %v1469 = vld [vmem:[#allocation4 + $0x110] sm:$0xff]
    %v1470 = vld [vmem:[#allocation4 + $0x118] sm:$0xff]
    %v1471 = vld [vmem:[#allocation4 + $0x120] sm:$0xff]
    %v1472 = vld [vmem:[#allocation4 + $0x128] sm:$0xff]
    %v1473 = vld [vmem:[#allocation4 + $0x130] sm:$0xff]
    %v1474 = vld [vmem:[#allocation4 + $0x138] sm:$0xff]
    %v1475 = vld [vmem:[#allocation4 + $0x140] sm:$0xff]
    %v1476 = vld [vmem:[#allocation4 + $0x148] sm:$0xff]
    %v1477 = vld [vmem:[#allocation4 + $0x150] sm:$0xff]
    %v1478 = vld [vmem:[#allocation4 + $0x158] sm:$0xff]
    %v1479 = vld [vmem:[#allocation4 + $0x160] sm:$0xff]
    %v1480 = vld [vmem:[#allocation4 + $0x168] sm:$0xff]
    %v1481 = vld [vmem:[#allocation4 + $0x170] sm:$0xff]
    %v1482 = vld [vmem:[#allocation4 + $0x178] sm:$0xff]
    %v1483 = vld [vmem:[#allocation4 + $0x180] sm:$0xff]
    %v1484 = vld [vmem:[#allocation4 + $0x188] sm:$0xff]
    %v1485 = vld [vmem:[#allocation4 + $0x190] sm:$0xff]
    %v1486 = vld [vmem:[#allocation4 + $0x198] sm:$0xff]
    %v1487 = vld [vmem:[#allocation4 + $0x1a0] sm:$0xff]
    %v1488 = vld [vmem:[#allocation4 + $0x1a8] sm:$0xff]
    %v1489 = vld [vmem:[#allocation4 + $0x1b0] sm:$0xff]
    %v1490 = vld [vmem:[#allocation4 + $0x1b8] sm:$0xff]
    %v1491 = vld [vmem:[#allocation4 + $0x1c0] sm:$0xff]
    %v1492 = vld [vmem:[#allocation4 + $0x1c8] sm:$0xff]
    %v1493 = vld [vmem:[#allocation4 + $0x1d0] sm:$0xff]
    %v1494 = vld [vmem:[#allocation4 + $0x1d8] sm:$0xff]
    %v1495 = vld [vmem:[#allocation4 + $0x1e0] sm:$0xff]
    %v1496 = vld [vmem:[#allocation4 + $0x1e8] sm:$0xff]
    %v1497 = vld [vmem:[#allocation4 + $0x1f0] sm:$0xff]
    %v1498 = vld [vmem:[#allocation4 + $0x1f8] sm:$0xff]
    %v1499 = vld [vmem:[#allocation4 + $0x200] sm:$0xff]
    %v1500 = vld [vmem:[#allocation4 + $0x208] sm:$0xff]
    %v1501 = vld [vmem:[#allocation4 + $0x210] sm:$0xff]
    %v1502 = vld [vmem:[#allocation4 + $0x218] sm:$0xff]
    %v1503 = vld [vmem:[#allocation4 + $0x220] sm:$0xff]
    %v1504 = vld [vmem:[#allocation4 + $0x228] sm:$0xff]
    %v1505 = vld [vmem:[#allocation4 + $0x230] sm:$0xff]
    %v1506 = vld [vmem:[#allocation4 + $0x238] sm:$0xff]
    %v1507 = vld [vmem:[#allocation4 + $0x240] sm:$0xff]
    %v1508 = vld [vmem:[#allocation4 + $0x248] sm:$0xff]
    %v1509 = vld [vmem:[#allocation4 + $0x250] sm:$0xff]
    %v1510 = vld [vmem:[#allocation4 + $0x258] sm:$0xff]
    %v1511 = vld [vmem:[#allocation4 + $0x260] sm:$0xff]
    %v1512 = vld [vmem:[#allocation4 + $0x268] sm:$0xff]
    %v1513 = vld [vmem:[#allocation4 + $0x270] sm:$0xff]
    %v1514 = vld [vmem:[#allocation4 + $0x278] sm:$0xff]
    %v1515 = vld [vmem:[#allocation4 + $0x280] sm:$0xff]
    %v1516 = vld [vmem:[#allocation4 + $0x288] sm:$0xff]
    %v1517 = vld [vmem:[#allocation4 + $0x290] sm:$0xff]
    %v1518 = vld [vmem:[#allocation4 + $0x298] sm:$0xff]
    %v1519 = vld [vmem:[#allocation4 + $0x2a0] sm:$0xff]
    %v1520 = vld [vmem:[#allocation4 + $0x2a8] sm:$0xff]
    %v1521 = vld [vmem:[#allocation4 + $0x2b0] sm:$0xff]
    %v1522 = vld [vmem:[#allocation4 + $0x2b8] sm:$0xff]
    %v1523 = vld [vmem:[#allocation4 + $0x2c0] sm:$0xff]
    %v1524 = vld [vmem:[#allocation4 + $0x2c8] sm:$0xff]
    %v1525 = vld [vmem:[#allocation4 + $0x2d0] sm:$0xff]
    %v1526 = vld [vmem:[#allocation4 + $0x2d8] sm:$0xff]
    %v1527 = vld [vmem:[#allocation4 + $0x2e0] sm:$0xff]
    %v1528 = vld [vmem:[#allocation4 + $0x2e8] sm:$0xff]
    %v1529 = vld [vmem:[#allocation4 + $0x2f0] sm:$0xff]
    %v1530 = vld [vmem:[#allocation4 + $0x2f8] sm:$0xff]
    %v1531 = vld [vmem:[#allocation4 + $0x300] sm:$0xff]
    %v1532 = vld [vmem:[#allocation4 + $0x308] sm:$0xff]
    %v1533 = vld [vmem:[#allocation4 + $0x310] sm:$0xff]
    %v1534 = vld [vmem:[#allocation4 + $0x318] sm:$0xff]
    %v1535 = vld [vmem:[#allocation4 + $0x320] sm:$0xff]
    %v1536 = vld [vmem:[#allocation4 + $0x328] sm:$0xff]
    %v1537 = vld [vmem:[#allocation4 + $0x330] sm:$0xff]
    %v1538 = vld [vmem:[#allocation4 + $0x338] sm:$0xff]
    %v1539 = vld [vmem:[#allocation4 + $0x340] sm:$0xff]
    %v1540 = vld [vmem:[#allocation4 + $0x348] sm:$0xff]
    %v1541 = vld [vmem:[#allocation4 + $0x350] sm:$0xff]
    %v1542 = vld [vmem:[#allocation4 + $0x358] sm:$0xff]
    %v1543 = vld [vmem:[#allocation4 + $0x360] sm:$0xff]
    %v1544 = vld [vmem:[#allocation4 + $0x368] sm:$0xff]
    %v1545 = vld [vmem:[#allocation4 + $0x370] sm:$0xff]
    %v1546 = vld [vmem:[#allocation4 + $0x378] sm:$0xff]
    %v1547 = vld [vmem:[#allocation4 + $0x380] sm:$0xff]
    %v1548 = vld [vmem:[#allocation4 + $0x388] sm:$0xff]
    %v1549 = vld [vmem:[#allocation4 + $0x390] sm:$0xff]
    %v1550 = vld [vmem:[#allocation4 + $0x398] sm:$0xff]
    %v1551 = vld [vmem:[#allocation4 + $0x3a0] sm:$0xff]
    %v1552 = vld [vmem:[#allocation4 + $0x3a8] sm:$0xff]
    %v1553 = vld [vmem:[#allocation4 + $0x3b0] sm:$0xff]
    %v1554 = vld [vmem:[#allocation4 + $0x3b8] sm:$0xff]
    %v1555 = vld [vmem:[#allocation4 + $0x3c0] sm:$0xff]
    %v1556 = vld [vmem:[#allocation4 + $0x3c8] sm:$0xff]
    %v1557 = vld [vmem:[#allocation4 + $0x3d0] sm:$0xff]
    %v1558 = vld [vmem:[#allocation4 + $0x3d8] sm:$0xff]
    %v1559 = vld [vmem:[#allocation4 + $0x3e0] sm:$0xff]
    %v1560 = vld [vmem:[#allocation4 + $0x3e8] sm:$0xff]
    %v1561 = vld [vmem:[#allocation4 + $0x3f0] sm:$0xff]
    %v1562 = vld [vmem:[#allocation4 + $0x3f8] sm:$0xff]
    %v1563 = vld [vmem:[#allocation4 + $0x400] sm:$0xff]
    %v1564 = vld [vmem:[#allocation4 + $0x408] sm:$0xff]
    %v1565 = vld [vmem:[#allocation4 + $0x410] sm:$0xff]
    %v1566 = vld [vmem:[#allocation4 + $0x418] sm:$0xff]
    %v1567 = vld [vmem:[#allocation4 + $0x420] sm:$0xff]
    %v1568 = vld [vmem:[#allocation4 + $0x428] sm:$0xff]
    %v1569 = vld [vmem:[#allocation4 + $0x430] sm:$0xff]
    %v1570 = vld [vmem:[#allocation4 + $0x438] sm:$0xff]
    %v1571 = vld [vmem:[#allocation4 + $0x440] sm:$0xff]
    %v1572 = vld [vmem:[#allocation4 + $0x448] sm:$0xff]
    %v1573 = vld [vmem:[#allocation4 + $0x450] sm:$0xff]
    %v1574 = vld [vmem:[#allocation4 + $0x458] sm:$0xff]
    %v1575 = vld [vmem:[#allocation4 + $0x460] sm:$0xff]
    %v1576 = vld [vmem:[#allocation4 + $0x468] sm:$0xff]
    %v1577 = vld [vmem:[#allocation4 + $0x470] sm:$0xff]
    %v1578 = vld [vmem:[#allocation4 + $0x478] sm:$0xff]
    %v1579 = vld [vmem:[#allocation4 + $0x480] sm:$0xff]
    %v1580 = vld [vmem:[#allocation4 + $0x488] sm:$0xff]
    %v1581 = vld [vmem:[#allocation4 + $0x490] sm:$0xff]
    %v1582 = vld [vmem:[#allocation4 + $0x498] sm:$0xff]
    %v1583 = vld [vmem:[#allocation4 + $0x4a0] sm:$0xff]
    %v1584 = vld [vmem:[#allocation4 + $0x4a8] sm:$0xff]
    %v1585 = vld [vmem:[#allocation4 + $0x4b0] sm:$0xff]
    %v1586 = vld [vmem:[#allocation4 + $0x4b8] sm:$0xff]
    %v1587 = vld [vmem:[#allocation4 + $0x4c0] sm:$0xff]
    %v1588 = vld [vmem:[#allocation4 + $0x4c8] sm:$0xff]
    %v1589 = vld [vmem:[#allocation4 + $0x4d0] sm:$0xff]
    %v1590 = vld [vmem:[#allocation4 + $0x4d8] sm:$0xff]
    %v1591 = vld [vmem:[#allocation4 + $0x4e0] sm:$0xff]
    %v1592 = vld [vmem:[#allocation4 + $0x4e8] sm:$0xff]
    %v1593 = vld [vmem:[#allocation4 + $0x4f0] sm:$0xff]
    %v1594 = vld [vmem:[#allocation4 + $0x4f8] sm:$0xff]
    %v1595 = vld [vmem:[#allocation4 + $0x500] sm:$0xff]
    %v1596 = vld [vmem:[#allocation4 + $0x508] sm:$0xff]
    %v1597 = vld [vmem:[#allocation4 + $0x510] sm:$0xff]
    %v1598 = vld [vmem:[#allocation4 + $0x518] sm:$0xff]
    %v1599 = vld [vmem:[#allocation4 + $0x520] sm:$0xff]
    %v1600 = vld [vmem:[#allocation4 + $0x528] sm:$0xff]
    %v1601 = vld [vmem:[#allocation4 + $0x530] sm:$0xff]
    %v1602 = vld [vmem:[#allocation4 + $0x538] sm:$0xff]
    %v1603 = vld [vmem:[#allocation4 + $0x540] sm:$0xff]
    %v1604 = vld [vmem:[#allocation4 + $0x548] sm:$0xff]
    %v1605 = vld [vmem:[#allocation4 + $0x550] sm:$0xff]
    %v1606 = vld [vmem:[#allocation4 + $0x558] sm:$0xff]
    %v1607 = vld [vmem:[#allocation4 + $0x560] sm:$0xff]
    %v1608 = vld [vmem:[#allocation4 + $0x568] sm:$0xff]
    %v1609 = vld [vmem:[#allocation4 + $0x570] sm:$0xff]
    %v1610 = vld [vmem:[#allocation4 + $0x578] sm:$0xff]
    %v1611 = vld [vmem:[#allocation4 + $0x580] sm:$0xff]
    %v1612 = vld [vmem:[#allocation4 + $0x588] sm:$0xff]
    %v1613 = vld [vmem:[#allocation4 + $0x590] sm:$0xff]
    %v1614 = vld [vmem:[#allocation4 + $0x598] sm:$0xff]
    %v1615 = vld [vmem:[#allocation4 + $0x5a0] sm:$0xff]
    %v1616 = vld [vmem:[#allocation4 + $0x5a8] sm:$0xff]
    %v1617 = vld [vmem:[#allocation4 + $0x5b0] sm:$0xff]
    %v1618 = vld [vmem:[#allocation4 + $0x5b8] sm:$0xff]
    %v1619 = vld [vmem:[#allocation4 + $0x5c0] sm:$0xff]
    %v1620 = vld [vmem:[#allocation4 + $0x5c8] sm:$0xff]
    %v1621 = vld [vmem:[#allocation4 + $0x5d0] sm:$0xff]
    %v1622 = vld [vmem:[#allocation4 + $0x5d8] sm:$0xff]
    %v1623 = vld [vmem:[#allocation4 + $0x5e0] sm:$0xff]
    %v1624 = vld [vmem:[#allocation4 + $0x5e8] sm:$0xff]
    %v1625 = vld [vmem:[#allocation4 + $0x5f0] sm:$0xff]
    %v1626 = vld [vmem:[#allocation4 + $0x5f8] sm:$0xff]
    %v1627 = vld [vmem:[#allocation4 + $0x600] sm:$0xff]
    %v1628 = vld [vmem:[#allocation4 + $0x608] sm:$0xff]
    %v1629 = vld [vmem:[#allocation4 + $0x610] sm:$0xff]
    %v1630 = vld [vmem:[#allocation4 + $0x618] sm:$0xff]
    %v1631 = vld [vmem:[#allocation4 + $0x620] sm:$0xff]
    %v1632 = vld [vmem:[#allocation4 + $0x628] sm:$0xff]
    %v1633 = vld [vmem:[#allocation4 + $0x630] sm:$0xff]
    %v1634 = vld [vmem:[#allocation4 + $0x638] sm:$0xff]
    %v1635 = vld [vmem:[#allocation4 + $0x640] sm:$0xff]
    %v1636 = vld [vmem:[#allocation4 + $0x648] sm:$0xff]
    %v1637 = vld [vmem:[#allocation4 + $0x650] sm:$0xff]
    %v1638 = vld [vmem:[#allocation4 + $0x658] sm:$0xff]
    %v1639 = vld [vmem:[#allocation4 + $0x660] sm:$0xff]
    %v1640 = vld [vmem:[#allocation4 + $0x668] sm:$0xff]
    %v1641 = vld [vmem:[#allocation4 + $0x670] sm:$0xff]
    %v1642 = vld [vmem:[#allocation4 + $0x678] sm:$0xff]
    %v1643 = vld [vmem:[#allocation4 + $0x680] sm:$0xff]
    %v1644 = vld [vmem:[#allocation4 + $0x688] sm:$0xff]
    %v1645 = vld [vmem:[#allocation4 + $0x690] sm:$0xff]
    %v1646 = vld [vmem:[#allocation4 + $0x698] sm:$0xff]
    %v1647 = vld [vmem:[#allocation4 + $0x6a0] sm:$0xff]
    %v1648 = vld [vmem:[#allocation4 + $0x6a8] sm:$0xff]
    %v1649 = vld [vmem:[#allocation4 + $0x6b0] sm:$0xff]
    %v1650 = vld [vmem:[#allocation4 + $0x6b8] sm:$0xff]
    %v1651 = vld [vmem:[#allocation4 + $0x6c0] sm:$0xff]
    %v1652 = vld [vmem:[#allocation4 + $0x6c8] sm:$0xff]
    %v1653 = vld [vmem:[#allocation4 + $0x6d0] sm:$0xff]
    %v1654 = vld [vmem:[#allocation4 + $0x6d8] sm:$0xff]
    %v1655 = vld [vmem:[#allocation4 + $0x6e0] sm:$0xff]
    %v1656 = vld [vmem:[#allocation4 + $0x6e8] sm:$0xff]
    %v1657 = vld [vmem:[#allocation4 + $0x6f0] sm:$0xff]
    %v1658 = vld [vmem:[#allocation4 + $0x6f8] sm:$0xff]
    %v1659 = vld [vmem:[#allocation4 + $0x700] sm:$0xff]
    %v1660 = vld [vmem:[#allocation4 + $0x708] sm:$0xff]
    %v1661 = vld [vmem:[#allocation4 + $0x710] sm:$0xff]
    %v1662 = vld [vmem:[#allocation4 + $0x718] sm:$0xff]
    %v1663 = vld [vmem:[#allocation4 + $0x720] sm:$0xff]
    %v1664 = vld [vmem:[#allocation4 + $0x728] sm:$0xff]
    %v1665 = vld [vmem:[#allocation4 + $0x730] sm:$0xff]
    %v1666 = vld [vmem:[#allocation4 + $0x738] sm:$0xff]
    %v1667 = vld [vmem:[#allocation4 + $0x740] sm:$0xff]
    %v1668 = vld [vmem:[#allocation4 + $0x748] sm:$0xff]
    %v1669 = vld [vmem:[#allocation4 + $0x750] sm:$0xff]
    %v1670 = vld [vmem:[#allocation4 + $0x758] sm:$0xff]
    %v1671 = vld [vmem:[#allocation4 + $0x760] sm:$0xff]
    %v1672 = vld [vmem:[#allocation4 + $0x768] sm:$0xff]
    %v1673 = vld [vmem:[#allocation4 + $0x770] sm:$0xff]
    %v1674 = vld [vmem:[#allocation4 + $0x778] sm:$0xff]
    %v1675 = vld [vmem:[#allocation4 + $0x780] sm:$0xff]
    %v1676 = vld [vmem:[#allocation4 + $0x788] sm:$0xff]
    %v1677 = vld [vmem:[#allocation4 + $0x790] sm:$0xff]
    %v1678 = vld [vmem:[#allocation4 + $0x798] sm:$0xff]
    %v1679 = vld [vmem:[#allocation4 + $0x7a0] sm:$0xff]
    %v1680 = vld [vmem:[#allocation4 + $0x7a8] sm:$0xff]
    %v1681 = vld [vmem:[#allocation4 + $0x7b0] sm:$0xff]
    %v1682 = vld [vmem:[#allocation4 + $0x7b8] sm:$0xff]
    %v1683 = vld [vmem:[#allocation4 + $0x7c0] sm:$0xff]
    %v1684 = vld [vmem:[#allocation4 + $0x7c8] sm:$0xff]
    %v1685 = vld [vmem:[#allocation4 + $0x7d0] sm:$0xff]
    %v1686 = vld [vmem:[#allocation4 + $0x7d8] sm:$0xff]
    %v1687 = vld [vmem:[#allocation4 + $0x7e0] sm:$0xff]
    %v1688 = vld [vmem:[#allocation4 + $0x7e8] sm:$0xff]
    %v1689 = vld [vmem:[#allocation4 + $0x7f0] sm:$0xff]
    %v1690 = vld [vmem:[#allocation4 + $0x7f8] sm:$0xff]
    %v1691 = vld [vmem:[#allocation4 + $0x800] sm:$0xff]
    %v1692 = vld [vmem:[#allocation4 + $0x808] sm:$0xff]
    %v1693 = vld [vmem:[#allocation4 + $0x810] sm:$0xff]
    %v1694 = vld [vmem:[#allocation4 + $0x818] sm:$0xff]
    %v1695 = vld [vmem:[#allocation4 + $0x820] sm:$0xff]
    %v1696 = vld [vmem:[#allocation4 + $0x828] sm:$0xff]
    %v1697 = vld [vmem:[#allocation4 + $0x830] sm:$0xff]
    %v1698 = vld [vmem:[#allocation4 + $0x838] sm:$0xff]
    %v1699 = vld [vmem:[#allocation4 + $0x840] sm:$0xff]
    %v1700 = vld [vmem:[#allocation4 + $0x848] sm:$0xff]
    %v1701 = vld [vmem:[#allocation4 + $0x850] sm:$0xff]
    %v1702 = vld [vmem:[#allocation4 + $0x858] sm:$0xff]
    %v1703 = vld [vmem:[#allocation4 + $0x860] sm:$0xff]
    %v1704 = vld [vmem:[#allocation4 + $0x868] sm:$0xff]
    %v1705 = vld [vmem:[#allocation4 + $0x870] sm:$0xff]
    %v1706 = vld [vmem:[#allocation4 + $0x878] sm:$0xff]
    %v1707 = vld [vmem:[#allocation4 + $0x880] sm:$0xff]
    %v1708 = vld [vmem:[#allocation4 + $0x888] sm:$0xff]
    %v1709 = vld [vmem:[#allocation4 + $0x890] sm:$0xff]
    %v1710 = vld [vmem:[#allocation4 + $0x898] sm:$0xff]
    %v1711 = vld [vmem:[#allocation4 + $0x8a0] sm:$0xff]
    %v1712 = vld [vmem:[#allocation4 + $0x8a8] sm:$0xff]
    %v1713 = vld [vmem:[#allocation4 + $0x8b0] sm:$0xff]
    %v1714 = vld [vmem:[#allocation4 + $0x8b8] sm:$0xff]
    %v1715 = vld [vmem:[#allocation4 + $0x8c0] sm:$0xff]
    %v1716 = vld [vmem:[#allocation4 + $0x8c8] sm:$0xff]
    %v1717 = vld [vmem:[#allocation4 + $0x8d0] sm:$0xff]
    %v1718 = vld [vmem:[#allocation4 + $0x8d8] sm:$0xff]
    %v1719 = vld [vmem:[#allocation4 + $0x8e0] sm:$0xff]
    %v1720 = vld [vmem:[#allocation4 + $0x8e8] sm:$0xff]
    %v1721 = vld [vmem:[#allocation4 + $0x8f0] sm:$0xff]
    %v1722 = vld [vmem:[#allocation4 + $0x8f8] sm:$0xff]
    %v1723 = vld [vmem:[#allocation4 + $0x900] sm:$0xff]
    %v1724 = vld [vmem:[#allocation4 + $0x908] sm:$0xff]
    %v1725 = vld [vmem:[#allocation4 + $0x910] sm:$0xff]
    %v1726 = vld [vmem:[#allocation4 + $0x918] sm:$0xff]
    %v1727 = vld [vmem:[#allocation4 + $0x920] sm:$0xff]
    %v1728 = vld [vmem:[#allocation4 + $0x928] sm:$0xff]
    %v1729 = vld [vmem:[#allocation4 + $0x930] sm:$0xff]
    %v1730 = vld [vmem:[#allocation4 + $0x938] sm:$0xff]
    %v1731 = vld [vmem:[#allocation4 + $0x940] sm:$0xff]
    %v1732 = vld [vmem:[#allocation4 + $0x948] sm:$0xff]
    %v1733 = vld [vmem:[#allocation4 + $0x950] sm:$0xff]
    %v1734 = vld [vmem:[#allocation4 + $0x958] sm:$0xff]
    %v1735 = vld [vmem:[#allocation4 + $0x960] sm:$0xff]
    %v1736 = vld [vmem:[#allocation4 + $0x968] sm:$0xff]
    %v1737 = vld [vmem:[#allocation4 + $0x970] sm:$0xff]
    %v1738 = vld [vmem:[#allocation4 + $0x978] sm:$0xff]
    %v1739 = vld [vmem:[#allocation4 + $0x980] sm:$0xff]
    %v1740 = vld [vmem:[#allocation4 + $0x988] sm:$0xff]
    %v1741 = vld [vmem:[#allocation4 + $0x990] sm:$0xff]
    %v1742 = vld [vmem:[#allocation4 + $0x998] sm:$0xff]
    %v1743 = vld [vmem:[#allocation4 + $0x9a0] sm:$0xff]
    %v1744 = vld [vmem:[#allocation4 + $0x9a8] sm:$0xff]
    %v1745 = vld [vmem:[#allocation4 + $0x9b0] sm:$0xff]
    %v1746 = vld [vmem:[#allocation4 + $0x9b8] sm:$0xff]
    %v1747 = vld [vmem:[#allocation4 + $0x9c0] sm:$0xff]
    %v1748 = vld [vmem:[#allocation4 + $0x9c8] sm:$0xff]
    %v1749 = vld [vmem:[#allocation4 + $0x9d0] sm:$0xff]
    %v1750 = vld [vmem:[#allocation4 + $0x9d8] sm:$0xff]
    %v1751 = vld [vmem:[#allocation4 + $0x9e0] sm:$0xff]
    %v1752 = vld [vmem:[#allocation4 + $0x9e8] sm:$0xff]
    %v1753 = vld [vmem:[#allocation4 + $0x9f0] sm:$0xff]
    %v1754 = vld [vmem:[#allocation4 + $0x9f8] sm:$0xff]
    %v1755 = vld [vmem:[#allocation4 + $0xa00] sm:$0xff]
    %v1756 = vld [vmem:[#allocation4 + $0xa08] sm:$0xff]
    %v1757 = vld [vmem:[#allocation4 + $0xa10] sm:$0xff]
    %v1758 = vld [vmem:[#allocation4 + $0xa18] sm:$0xff]
    %v1759 = vld [vmem:[#allocation4 + $0xa20] sm:$0xff]
    %v1760 = vld [vmem:[#allocation4 + $0xa28] sm:$0xff]
    %v1761 = vld [vmem:[#allocation4 + $0xa30] sm:$0xff]
    %v1762 = vld [vmem:[#allocation4 + $0xa38] sm:$0xff]
    %v1763 = vld [vmem:[#allocation4 + $0xa40] sm:$0xff]
    %v1764 = vld [vmem:[#allocation4 + $0xa48] sm:$0xff]
    %v1765 = vld [vmem:[#allocation4 + $0xa50] sm:$0xff]
    %v1766 = vld [vmem:[#allocation4 + $0xa58] sm:$0xff]
    %v1767 = vld [vmem:[#allocation4 + $0xa60] sm:$0xff]
    %v1768 = vld [vmem:[#allocation4 + $0xa68] sm:$0xff]
    %v1769 = vld [vmem:[#allocation4 + $0xa70] sm:$0xff]
    %v1770 = vld [vmem:[#allocation4 + $0xa78] sm:$0xff]
    %v1771 = vld [vmem:[#allocation4 + $0xa80] sm:$0xff]
    %v1772 = vld [vmem:[#allocation4 + $0xa88] sm:$0xff]
    %v1773 = vld [vmem:[#allocation4 + $0xa90] sm:$0xff]
    %v1774 = vld [vmem:[#allocation4 + $0xa98] sm:$0xff]
    %v1775 = vld [vmem:[#allocation4 + $0xaa0] sm:$0xff]
    %v1776 = vld [vmem:[#allocation4 + $0xaa8] sm:$0xff]
    %v1777 = vld [vmem:[#allocation4 + $0xab0] sm:$0xff]
    %v1778 = vld [vmem:[#allocation4 + $0xab8] sm:$0xff]
    %v1779 = vld [vmem:[#allocation4 + $0xac0] sm:$0xff]
    %v1780 = vld [vmem:[#allocation4 + $0xac8] sm:$0xff]
    %v1781 = vld [vmem:[#allocation4 + $0xad0] sm:$0xff]
    %v1782 = vld [vmem:[#allocation4 + $0xad8] sm:$0xff]
    %v1783 = vld [vmem:[#allocation4 + $0xae0] sm:$0xff]
    %v1784 = vld [vmem:[#allocation4 + $0xae8] sm:$0xff]
    %v1785 = vld [vmem:[#allocation4 + $0xaf0] sm:$0xff]
    %v1786 = vld [vmem:[#allocation4 + $0xaf8] sm:$0xff]
    %v1787 = vld [vmem:[#allocation4 + $0xb00] sm:$0xff]
    %v1788 = vld [vmem:[#allocation4 + $0xb08] sm:$0xff]
    %v1789 = vld [vmem:[#allocation4 + $0xb10] sm:$0xff]
    %v1790 = vld [vmem:[#allocation4 + $0xb18] sm:$0xff]
    %v1791 = vld [vmem:[#allocation4 + $0xb20] sm:$0xff]
    %v1792 = vld [vmem:[#allocation4 + $0xb28] sm:$0xff]
    %v1793 = vld [vmem:[#allocation4 + $0xb30] sm:$0xff]
    %v1794 = vld [vmem:[#allocation4 + $0xb38] sm:$0xff]
    %v1795 = vld [vmem:[#allocation4 + $0xb40] sm:$0xff]
    %v1796 = vld [vmem:[#allocation4 + $0xb48] sm:$0xff]
    %v1797 = vld [vmem:[#allocation4 + $0xb50] sm:$0xff]
    %v1798 = vld [vmem:[#allocation4 + $0xb58] sm:$0xff]
    %v1799 = vld [vmem:[#allocation4 + $0xb60] sm:$0xff]
    %v1800 = vld [vmem:[#allocation4 + $0xb68] sm:$0xff]
    %v1801 = vld [vmem:[#allocation4 + $0xb70] sm:$0xff]
    %v1802 = vld [vmem:[#allocation4 + $0xb78] sm:$0xff]
    %v1803 = vld [vmem:[#allocation4 + $0xb80] sm:$0xff]
    %v1804 = vld [vmem:[#allocation4 + $0xb88] sm:$0xff]
    %v1805 = vld [vmem:[#allocation4 + $0xb90] sm:$0xff]
    %v1806 = vld [vmem:[#allocation4 + $0xb98] sm:$0xff]
    %v1807 = vld [vmem:[#allocation4 + $0xba0] sm:$0xff]
    %v1808 = vld [vmem:[#allocation4 + $0xba8] sm:$0xff]
    %v1809 = vld [vmem:[#allocation4 + $0xbb0] sm:$0xff]
    %v1810 = vld [vmem:[#allocation4 + $0xbb8] sm:$0xff]
    %v1811 = vld [vmem:[#allocation4 + $0xbc0] sm:$0xff]
    %v1812 = vld [vmem:[#allocation4 + $0xbc8] sm:$0xff]
    %v1813 = vld [vmem:[#allocation4 + $0xbd0] sm:$0xff]
    %v1814 = vld [vmem:[#allocation4 + $0xbd8] sm:$0xff]
    %v1815 = vld [vmem:[#allocation4 + $0xbe0] sm:$0xff]
    %v1816 = vld [vmem:[#allocation4 + $0xbe8] sm:$0xff]
    %v1817 = vld [vmem:[#allocation4 + $0xbf0] sm:$0xff]
    %v1818 = vld [vmem:[#allocation4 + $0xbf8] sm:$0xff]
    %v1819 = vld [vmem:[#allocation4 + $0xc00] sm:$0xff]
    %v1820 = vld [vmem:[#allocation4 + $0xc08] sm:$0xff]
    %v1821 = vld [vmem:[#allocation4 + $0xc10] sm:$0xff]
    %v1822 = vld [vmem:[#allocation4 + $0xc18] sm:$0xff]
    %v1823 = vld [vmem:[#allocation4 + $0xc20] sm:$0xff]
    %v1824 = vld [vmem:[#allocation4 + $0xc28] sm:$0xff]
    %v1825 = vld [vmem:[#allocation4 + $0xc30] sm:$0xff]
    %v1826 = vld [vmem:[#allocation4 + $0xc38] sm:$0xff]
    %v1827 = vld [vmem:[#allocation4 + $0xc40] sm:$0xff]
    %v1828 = vld [vmem:[#allocation4 + $0xc48] sm:$0xff]
    %v1829 = vld [vmem:[#allocation4 + $0xc50] sm:$0xff]
    %v1830 = vld [vmem:[#allocation4 + $0xc58] sm:$0xff]
    %v1831 = vld [vmem:[#allocation4 + $0xc60] sm:$0xff]
    %v1832 = vld [vmem:[#allocation4 + $0xc68] sm:$0xff]
    %v1833 = vld [vmem:[#allocation4 + $0xc70] sm:$0xff]
    %v1834 = vld [vmem:[#allocation4 + $0xc78] sm:$0xff]
    %v1835 = vld [vmem:[#allocation4 + $0xc80] sm:$0xff]
    %v1836 = vld [vmem:[#allocation4 + $0xc88] sm:$0xff]
    %v1837 = vld [vmem:[#allocation4 + $0xc90] sm:$0xff]
    %v1838 = vld [vmem:[#allocation4 + $0xc98] sm:$0xff]
    %v1839 = vld [vmem:[#allocation4 + $0xca0] sm:$0xff]
    %v1840 = vld [vmem:[#allocation4 + $0xca8] sm:$0xff]
    %v1841 = vld [vmem:[#allocation4 + $0xcb0] sm:$0xff]
    %v1842 = vld [vmem:[#allocation4 + $0xcb8] sm:$0xff]
    %v1843 = vld [vmem:[#allocation4 + $0xcc0] sm:$0xff]
    %v1844 = vld [vmem:[#allocation4 + $0xcc8] sm:$0xff]
    %v1845 = vld [vmem:[#allocation4 + $0xcd0] sm:$0xff]
    %v1846 = vld [vmem:[#allocation4 + $0xcd8] sm:$0xff]
    %v1847 = vld [vmem:[#allocation4 + $0xce0] sm:$0xff]
    %v1848 = vld [vmem:[#allocation4 + $0xce8] sm:$0xff]
    %v1849 = vld [vmem:[#allocation4 + $0xcf0] sm:$0xff]
    %v1850 = vld [vmem:[#allocation4 + $0xcf8] sm:$0xff]
    %v1851 = vld [vmem:[#allocation4 + $0xd00] sm:$0xff]
    %v1852 = vld [vmem:[#allocation4 + $0xd08] sm:$0xff]
    %v1853 = vld [vmem:[#allocation4 + $0xd10] sm:$0xff]
    %v1854 = vld [vmem:[#allocation4 + $0xd18] sm:$0xff]
    %v1855 = vld [vmem:[#allocation4 + $0xd20] sm:$0xff]
    %v1856 = vld [vmem:[#allocation4 + $0xd28] sm:$0xff]
    %v1857 = vld [vmem:[#allocation4 + $0xd30] sm:$0xff]
    %v1858 = vld [vmem:[#allocation4 + $0xd38] sm:$0xff]
    %v1859 = vld [vmem:[#allocation4 + $0xd40] sm:$0xff]
    %v1860 = vld [vmem:[#allocation4 + $0xd48] sm:$0xff]
    %v1861 = vld [vmem:[#allocation4 + $0xd50] sm:$0xff]
    %v1862 = vld [vmem:[#allocation4 + $0xd58] sm:$0xff]
    %v1863 = vld [vmem:[#allocation4 + $0xd60] sm:$0xff]
    %v1864 = vld [vmem:[#allocation4 + $0xd68] sm:$0xff]
    %v1865 = vld [vmem:[#allocation4 + $0xd70] sm:$0xff]
    %v1866 = vld [vmem:[#allocation4 + $0xd78] sm:$0xff]
    %v1867 = vld [vmem:[#allocation4 + $0xd80] sm:$0xff]
    %v1868 = vld [vmem:[#allocation4 + $0xd88] sm:$0xff]
    %v1869 = vld [vmem:[#allocation4 + $0xd90] sm:$0xff]
    %v1870 = vld [vmem:[#allocation4 + $0xd98] sm:$0xff]
    %v1871 = vld [vmem:[#allocation4 + $0xda0] sm:$0xff]
    %v1872 = vld [vmem:[#allocation4 + $0xda8] sm:$0xff]
    %v1873 = vld [vmem:[#allocation4 + $0xdb0] sm:$0xff]
    %v1874 = vld [vmem:[#allocation4 + $0xdb8] sm:$0xff]
    %v1875 = vld [vmem:[#allocation4 + $0xdc0] sm:$0xff]
    %v1876 = vld [vmem:[#allocation4 + $0xdc8] sm:$0xff]
    %v1877 = vld [vmem:[#allocation4 + $0xdd0] sm:$0xff]
    %v1878 = vld [vmem:[#allocation4 + $0xdd8] sm:$0xff]
    %v1879 = vld [vmem:[#allocation4 + $0xde0] sm:$0xff]
    %v1880 = vld [vmem:[#allocation4 + $0xde8] sm:$0xff]
    %v1881 = vld [vmem:[#allocation4 + $0xdf0] sm:$0xff]
    %v1882 = vld [vmem:[#allocation4 + $0xdf8] sm:$0xff]
    %v1883 = vld [vmem:[#allocation4 + $0xe00] sm:$0xff]
    %v1884 = vld [vmem:[#allocation4 + $0xe08] sm:$0xff]
    %v1885 = vld [vmem:[#allocation4 + $0xe10] sm:$0xff]
    %v1886 = vld [vmem:[#allocation4 + $0xe18] sm:$0xff]
    %v1887 = vld [vmem:[#allocation4 + $0xe20] sm:$0xff]
    %v1888 = vld [vmem:[#allocation4 + $0xe28] sm:$0xff]
    %v1889 = vld [vmem:[#allocation4 + $0xe30] sm:$0xff]
    %v1890 = vld [vmem:[#allocation4 + $0xe38] sm:$0xff]
    %v1891 = vld [vmem:[#allocation4 + $0xe40] sm:$0xff]
    %v1892 = vld [vmem:[#allocation4 + $0xe48] sm:$0xff]
    %v1893 = vld [vmem:[#allocation4 + $0xe50] sm:$0xff]
    %v1894 = vld [vmem:[#allocation4 + $0xe58] sm:$0xff]
    %v1895 = vld [vmem:[#allocation4 + $0xe60] sm:$0xff]
    %v1896 = vld [vmem:[#allocation4 + $0xe68] sm:$0xff]
    %v1897 = vld [vmem:[#allocation4 + $0xe70] sm:$0xff]
    %v1898 = vld [vmem:[#allocation4 + $0xe78] sm:$0xff]
    %v1899 = vld [vmem:[#allocation4 + $0xe80] sm:$0xff]
    %v1900 = vld [vmem:[#allocation4 + $0xe88] sm:$0xff]
    %v1901 = vld [vmem:[#allocation4 + $0xe90] sm:$0xff]
    %v1902 = vld [vmem:[#allocation4 + $0xe98] sm:$0xff]
    %v1903 = vld [vmem:[#allocation4 + $0xea0] sm:$0xff]
    %v1904 = vld [vmem:[#allocation4 + $0xea8] sm:$0xff]
    %v1905 = vld [vmem:[#allocation4 + $0xeb0] sm:$0xff]
    %v1906 = vld [vmem:[#allocation4 + $0xeb8] sm:$0xff]
    %v1907 = vld [vmem:[#allocation4 + $0xec0] sm:$0xff]
    %v1908 = vld [vmem:[#allocation4 + $0xec8] sm:$0xff]
    %v1909 = vld [vmem:[#allocation4 + $0xed0] sm:$0xff]
    %v1910 = vld [vmem:[#allocation4 + $0xed8] sm:$0xff]
    %v1911 = vld [vmem:[#allocation4 + $0xee0] sm:$0xff]
    %v1912 = vld [vmem:[#allocation4 + $0xee8] sm:$0xff]
    %v1913 = vld [vmem:[#allocation4 + $0xef0] sm:$0xff]
    %v1914 = vld [vmem:[#allocation4 + $0xef8] sm:$0xff]
    %v1915 = vld [vmem:[#allocation4 + $0xf00] sm:$0xff]
    %v1916 = vld [vmem:[#allocation4 + $0xf08] sm:$0xff]
    %v1917 = vld [vmem:[#allocation4 + $0xf10] sm:$0xff]
    %v1918 = vld [vmem:[#allocation4 + $0xf18] sm:$0xff]
    %v1919 = vld [vmem:[#allocation4 + $0xf20] sm:$0xff]
    %v1920 = vld [vmem:[#allocation4 + $0xf28] sm:$0xff]
    %v1921 = vld [vmem:[#allocation4 + $0xf30] sm:$0xff]
    %v1922 = vld [vmem:[#allocation4 + $0xf38] sm:$0xff]
    %v1923 = vld [vmem:[#allocation4 + $0xf40] sm:$0xff]
    %v1924 = vld [vmem:[#allocation4 + $0xf48] sm:$0xff]
    %v1925 = vld [vmem:[#allocation4 + $0xf50] sm:$0xff]
    %v1926 = vld [vmem:[#allocation4 + $0xf58] sm:$0xff]
    %v1927 = vld [vmem:[#allocation4 + $0xf60] sm:$0xff]
    %v1928 = vld [vmem:[#allocation4 + $0xf68] sm:$0xff]
    %v1929 = vld [vmem:[#allocation4 + $0xf70] sm:$0xff]
    %v1930 = vld [vmem:[#allocation4 + $0xf78] sm:$0xff]
    %v1931 = vld [vmem:[#allocation4 + $0xf80] sm:$0xff]
    %v1932 = vld [vmem:[#allocation4 + $0xf88] sm:$0xff]
    %v1933 = vld [vmem:[#allocation4 + $0xf90] sm:$0xff]
    %v1934 = vld [vmem:[#allocation4 + $0xf98] sm:$0xff]
    %v1935 = vld [vmem:[#allocation4 + $0xfa0] sm:$0xff]
    %v1936 = vld [vmem:[#allocation4 + $0xfa8] sm:$0xff]
    %v1937 = vld [vmem:[#allocation4 + $0xfb0] sm:$0xff]
    %v1938 = vld [vmem:[#allocation4 + $0xfb8] sm:$0xff]
    %v1939 = vld [vmem:[#allocation4 + $0xfc0] sm:$0xff]
    %v1940 = vld [vmem:[#allocation4 + $0xfc8] sm:$0xff]
    %v1941 = vld [vmem:[#allocation4 + $0xfd0] sm:$0xff]
    %v1942 = vld [vmem:[#allocation4 + $0xfd8] sm:$0xff]
    %v1943 = vld [vmem:[#allocation4 + $0xfe0] sm:$0xff]
    %v1944 = vld [vmem:[#allocation4 + $0xfe8] sm:$0xff]
    %v1945 = vld [vmem:[#allocation4 + $0xff0] sm:$0xff]
    %v1946 = vld [vmem:[#allocation4 + $0xff8] sm:$0xff]
    %v1947 = vld [vmem:[#allocation4 + $0x1000] sm:$0xff]
    %v1948 = vld [vmem:[#allocation4 + $0x1008] sm:$0xff]
    %v1949 = vld [vmem:[#allocation4 + $0x1010] sm:$0xff]
    %v1950 = vld [vmem:[#allocation4 + $0x1018] sm:$0xff]
    %v1951 = vld [vmem:[#allocation4 + $0x1020] sm:$0xff]
    %v1952 = vld [vmem:[#allocation4 + $0x1028] sm:$0xff]
    %v1953 = vld [vmem:[#allocation4 + $0x1030] sm:$0xff]
    %v1954 = vld [vmem:[#allocation4 + $0x1038] sm:$0xff]
    %v1955 = vld [vmem:[#allocation4 + $0x1040] sm:$0xff]
    %v1956 = vld [vmem:[#allocation4 + $0x1048] sm:$0xff]
    %v1957 = vld [vmem:[#allocation4 + $0x1050] sm:$0xff]
    %v1958 = vld [vmem:[#allocation4 + $0x1058] sm:$0xff]
    %v1959 = vld [vmem:[#allocation4 + $0x1060] sm:$0xff]
    %v1960 = vld [vmem:[#allocation4 + $0x1068] sm:$0xff]
    %v1961 = vld [vmem:[#allocation4 + $0x1070] sm:$0xff]
    %v1962 = vld [vmem:[#allocation4 + $0x1078] sm:$0xff]
    %v1963 = vld [vmem:[#allocation4 + $0x1080] sm:$0xff]
    %v1964 = vld [vmem:[#allocation4 + $0x1088] sm:$0xff]
    %v1965 = vld [vmem:[#allocation4 + $0x1090] sm:$0xff]
    %v1966 = vld [vmem:[#allocation4 + $0x1098] sm:$0xff]
    %v1967 = vld [vmem:[#allocation4 + $0x10a0] sm:$0xff]
    %v1968 = vld [vmem:[#allocation4 + $0x10a8] sm:$0xff]
    %v1969 = vld [vmem:[#allocation4 + $0x10b0] sm:$0xff]
    %v1970 = vld [vmem:[#allocation4 + $0x10b8] sm:$0xff]
    %v1971 = vld [vmem:[#allocation4 + $0x10c0] sm:$0xff]
    %v1972 = vld [vmem:[#allocation4 + $0x10c8] sm:$0xff]
    %v1973 = vld [vmem:[#allocation4 + $0x10d0] sm:$0xff]
    %v1974 = vld [vmem:[#allocation4 + $0x10d8] sm:$0xff]
    %v1975 = vld [vmem:[#allocation4 + $0x10e0] sm:$0xff]
    %v1976 = vld [vmem:[#allocation4 + $0x10e8] sm:$0xff]
    %v1977 = vld [vmem:[#allocation4 + $0x10f0] sm:$0xff]
    %v1978 = vld [vmem:[#allocation4 + $0x10f8] sm:$0xff]
    %v1979 = vld [vmem:[#allocation4 + $0x1100] sm:$0xff]
    %v1980 = vld [vmem:[#allocation4 + $0x1108] sm:$0xff]
    %v1981 = vld [vmem:[#allocation4 + $0x1110] sm:$0xff]
    %v1982 = vld [vmem:[#allocation4 + $0x1118] sm:$0xff]
    %v1983 = vld [vmem:[#allocation4 + $0x1120] sm:$0xff]
    %v1984 = vld [vmem:[#allocation4 + $0x1128] sm:$0xff]
    %v1985 = vld [vmem:[#allocation4 + $0x1130] sm:$0xff]
    %v1986 = vld [vmem:[#allocation4 + $0x1138] sm:$0xff]
    %v1987 = vld [vmem:[#allocation4 + $0x1140] sm:$0xff]
    %v1988 = vld [vmem:[#allocation4 + $0x1148] sm:$0xff]
    %v1989 = vld [vmem:[#allocation4 + $0x1150] sm:$0xff]
    %v1990 = vld [vmem:[#allocation4 + $0x1158] sm:$0xff]
    %v1991 = vld [vmem:[#allocation4 + $0x1160] sm:$0xff]
    %v1992 = vld [vmem:[#allocation4 + $0x1168] sm:$0xff]
    %v1993 = vld [vmem:[#allocation4 + $0x1170] sm:$0xff]
    %v1994 = vld [vmem:[#allocation4 + $0x1178] sm:$0xff]
    %v1995 = vld [vmem:[#allocation4 + $0x1180] sm:$0xff]
    %v1996 = vld [vmem:[#allocation4 + $0x1188] sm:$0xff]
    %v1997 = vld [vmem:[#allocation4 + $0x1190] sm:$0xff]
    %v1998 = vld [vmem:[#allocation4 + $0x1198] sm:$0xff]
    %v1999 = vld [vmem:[#allocation4 + $0x11a0] sm:$0xff]
    %v2000 = vld [vmem:[#allocation4 + $0x11a8] sm:$0xff]
    %v2001 = vld [vmem:[#allocation4 + $0x11b0] sm:$0xff]
    %v2002 = vld [vmem:[#allocation4 + $0x11b8] sm:$0xff]
    %v2003 = vld [vmem:[#allocation4 + $0x11c0] sm:$0xff]
    %v2004 = vld [vmem:[#allocation4 + $0x11c8] sm:$0xff]
    %v2005 = vld [vmem:[#allocation4 + $0x11d0] sm:$0xff]
    %v2006 = vld [vmem:[#allocation4 + $0x11d8] sm:$0xff]
    %v2007 = vld [vmem:[#allocation4 + $0x11e0] sm:$0xff]
    %v2008 = vld [vmem:[#allocation4 + $0x11e8] sm:$0xff]
    %v2009 = vld [vmem:[#allocation4 + $0x11f0] sm:$0xff]
    %v2010 = vld [vmem:[#allocation4 + $0x11f8] sm:$0xff]
    %v2011 = vld [vmem:[#allocation8] sm:$0xff]
    %v2012 = vld [vmem:[#allocation8 + $0x8] sm:$0xff]
    %v2013 = vld [vmem:[#allocation8 + $0x10] sm:$0xff]
    %v2014 = vld [vmem:[#allocation8 + $0x18] sm:$0xff]
    %v2015 = vld [vmem:[#allocation8 + $0x20] sm:$0xff]
    %v2016 = vld [vmem:[#allocation8 + $0x28] sm:$0xff]
    %v2017 = vld [vmem:[#allocation8 + $0x30] sm:$0xff]
    %v2018 = vld [vmem:[#allocation8 + $0x38] sm:$0xff]
    %v2019 = vld [vmem:[#allocation8 + $0x40] sm:$0xff]
    %v2020 = vld [vmem:[#allocation8 + $0x48] sm:$0xff]
    %v2021 = vld [vmem:[#allocation8 + $0x50] sm:$0xff]
    %v2022 = vld [vmem:[#allocation8 + $0x58] sm:$0xff]
    %v2023 = vld [vmem:[#allocation8 + $0x60] sm:$0xff]
    %v2024 = vld [vmem:[#allocation8 + $0x68] sm:$0xff]
    %v2025 = vld [vmem:[#allocation8 + $0x70] sm:$0xff]
    %v2026 = vld [vmem:[#allocation8 + $0x78] sm:$0xff]
    %v2027 = vld [vmem:[#allocation8 + $0x80] sm:$0xff]
    %v2028 = vld [vmem:[#allocation8 + $0x88] sm:$0xff]
    %v2029 = vld [vmem:[#allocation8 + $0x90] sm:$0xff]
    %v2030 = vld [vmem:[#allocation8 + $0x98] sm:$0xff]
    %v2031 = vld [vmem:[#allocation8 + $0xa0] sm:$0xff]
    %v2032 = vld [vmem:[#allocation8 + $0xa8] sm:$0xff]
    %v2033 = vld [vmem:[#allocation8 + $0xb0] sm:$0xff]
    %v2034 = vld [vmem:[#allocation8 + $0xb8] sm:$0xff]
    %v2035 = vld [vmem:[#allocation8 + $0xc0] sm:$0xff]
    %v2036 = vld [vmem:[#allocation8 + $0xc8] sm:$0xff]
    %v2037 = vld [vmem:[#allocation8 + $0xd0] sm:$0xff]
    %v2038 = vld [vmem:[#allocation8 + $0xd8] sm:$0xff]
    %v2039 = vld [vmem:[#allocation8 + $0xe0] sm:$0xff]
    %v2040 = vld [vmem:[#allocation8 + $0xe8] sm:$0xff]
    %v2041 = vld [vmem:[#allocation8 + $0xf0] sm:$0xff]
    %v2042 = vld [vmem:[#allocation8 + $0xf8] sm:$0xff]
    %v2043 = vld [vmem:[#allocation8 + $0x100] sm:$0xff]
    %v2044 = vld [vmem:[#allocation8 + $0x108] sm:$0xff]
    %v2045 = vld [vmem:[#allocation8 + $0x110] sm:$0xff]
    %v2046 = vld [vmem:[#allocation8 + $0x118] sm:$0xff]
    %v2047 = vld [vmem:[#allocation8 + $0x120] sm:$0xff]
    %v2048 = vld [vmem:[#allocation8 + $0x128] sm:$0xff]
    %v2049 = vld [vmem:[#allocation8 + $0x130] sm:$0xff]
    %v2050 = vld [vmem:[#allocation8 + $0x138] sm:$0xff]
    %v2051 = vld [vmem:[#allocation8 + $0x140] sm:$0xff]
    %v2052 = vld [vmem:[#allocation8 + $0x148] sm:$0xff]
    %v2053 = vld [vmem:[#allocation8 + $0x150] sm:$0xff]
    %v2054 = vld [vmem:[#allocation8 + $0x158] sm:$0xff]
    %v2055 = vld [vmem:[#allocation8 + $0x160] sm:$0xff]
    %v2056 = vld [vmem:[#allocation8 + $0x168] sm:$0xff]
    %v2057 = vld [vmem:[#allocation8 + $0x170] sm:$0xff]
    %v2058 = vld [vmem:[#allocation8 + $0x178] sm:$0xff]
    %v2059 = vld [vmem:[#allocation8 + $0x180] sm:$0xff]
    %v2060 = vld [vmem:[#allocation8 + $0x188] sm:$0xff]
    %v2061 = vld [vmem:[#allocation8 + $0x190] sm:$0xff]
    %v2062 = vld [vmem:[#allocation8 + $0x198] sm:$0xff]
    %v2063 = vld [vmem:[#allocation8 + $0x1a0] sm:$0xff]
    %v2064 = vld [vmem:[#allocation8 + $0x1a8] sm:$0xff]
    %v2065 = vld [vmem:[#allocation8 + $0x1b0] sm:$0xff]
    %v2066 = vld [vmem:[#allocation8 + $0x1b8] sm:$0xff]
    %v2067 = vld [vmem:[#allocation8 + $0x1c0] sm:$0xff]
    %v2068 = vld [vmem:[#allocation8 + $0x1c8] sm:$0xff]
    %v2069 = vld [vmem:[#allocation8 + $0x1d0] sm:$0xff]
    %v2070 = vld [vmem:[#allocation8 + $0x1d8] sm:$0xff]
    %v2071 = vld [vmem:[#allocation8 + $0x1e0] sm:$0xff]
    %v2072 = vld [vmem:[#allocation8 + $0x1e8] sm:$0xff]
    %v2073 = vld [vmem:[#allocation8 + $0x1f0] sm:$0xff]
    %v2074 = vld [vmem:[#allocation8 + $0x1f8] sm:$0xff]
    %v2075 = vld [vmem:[#allocation8 + $0x200] sm:$0xff]
    %v2076 = vld [vmem:[#allocation8 + $0x208] sm:$0xff]
    %v2077 = vld [vmem:[#allocation8 + $0x210] sm:$0xff]
    %v2078 = vld [vmem:[#allocation8 + $0x218] sm:$0xff]
    %v2079 = vld [vmem:[#allocation8 + $0x220] sm:$0xff]
    %v2080 = vld [vmem:[#allocation8 + $0x228] sm:$0xff]
    %v2081 = vld [vmem:[#allocation8 + $0x230] sm:$0xff]
    %v2082 = vld [vmem:[#allocation8 + $0x238] sm:$0xff]
    %v2083 = vld [vmem:[#allocation8 + $0x240] sm:$0xff]
    %v2084 = vld [vmem:[#allocation8 + $0x248] sm:$0xff]
    %v2085 = vld [vmem:[#allocation8 + $0x250] sm:$0xff]
    %v2086 = vld [vmem:[#allocation8 + $0x258] sm:$0xff]
    %v2087 = vld [vmem:[#allocation8 + $0x260] sm:$0xff]
    %v2088 = vld [vmem:[#allocation8 + $0x268] sm:$0xff]
    %v2089 = vld [vmem:[#allocation8 + $0x270] sm:$0xff]
    %v2090 = vld [vmem:[#allocation8 + $0x278] sm:$0xff]
    %v2091 = vld [vmem:[#allocation8 + $0x280] sm:$0xff]
    %v2092 = vld [vmem:[#allocation8 + $0x288] sm:$0xff]
    %v2093 = vld [vmem:[#allocation8 + $0x290] sm:$0xff]
    %v2094 = vld [vmem:[#allocation8 + $0x298] sm:$0xff]
    %v2095 = vld [vmem:[#allocation8 + $0x2a0] sm:$0xff]
    %v2096 = vld [vmem:[#allocation8 + $0x2a8] sm:$0xff]
    %v2097 = vld [vmem:[#allocation8 + $0x2b0] sm:$0xff]
    %v2098 = vld [vmem:[#allocation8 + $0x2b8] sm:$0xff]
    %v2099 = vld [vmem:[#allocation8 + $0x2c0] sm:$0xff]
    %v2100 = vld [vmem:[#allocation8 + $0x2c8] sm:$0xff]
    %v2101 = vld [vmem:[#allocation8 + $0x2d0] sm:$0xff]
    %v2102 = vld [vmem:[#allocation8 + $0x2d8] sm:$0xff]
    %v2103 = vld [vmem:[#allocation8 + $0x2e0] sm:$0xff]
    %v2104 = vld [vmem:[#allocation8 + $0x2e8] sm:$0xff]
    %v2105 = vld [vmem:[#allocation8 + $0x2f0] sm:$0xff]
    %v2106 = vld [vmem:[#allocation8 + $0x2f8] sm:$0xff]
    %v2107 = vld [vmem:[#allocation8 + $0x300] sm:$0xff]
    %v2108 = vld [vmem:[#allocation8 + $0x308] sm:$0xff]
    %v2109 = vld [vmem:[#allocation8 + $0x310] sm:$0xff]
    %v2110 = vld [vmem:[#allocation8 + $0x318] sm:$0xff]
    %v2111 = vld [vmem:[#allocation8 + $0x320] sm:$0xff]
    %v2112 = vld [vmem:[#allocation8 + $0x328] sm:$0xff]
    %v2113 = vld [vmem:[#allocation8 + $0x330] sm:$0xff]
    %v2114 = vld [vmem:[#allocation8 + $0x338] sm:$0xff]
    %v2115 = vld [vmem:[#allocation8 + $0x340] sm:$0xff]
    %v2116 = vld [vmem:[#allocation8 + $0x348] sm:$0xff]
    %v2117 = vld [vmem:[#allocation8 + $0x350] sm:$0xff]
    %v2118 = vld [vmem:[#allocation8 + $0x358] sm:$0xff]
    %v2119 = vld [vmem:[#allocation8 + $0x360] sm:$0xff]
    %v2120 = vld [vmem:[#allocation8 + $0x368] sm:$0xff]
    %v2121 = vld [vmem:[#allocation8 + $0x370] sm:$0xff]
    %v2122 = vld [vmem:[#allocation8 + $0x378] sm:$0xff]
    %v2123 = vld [vmem:[#allocation8 + $0x380] sm:$0xff]
    %v2124 = vld [vmem:[#allocation8 + $0x388] sm:$0xff]
    %v2125 = vld [vmem:[#allocation8 + $0x390] sm:$0xff]
    %v2126 = vld [vmem:[#allocation8 + $0x398] sm:$0xff]
    %v2127 = vld [vmem:[#allocation8 + $0x3a0] sm:$0xff]
    %v2128 = vld [vmem:[#allocation8 + $0x3a8] sm:$0xff]
    %v2129 = vld [vmem:[#allocation8 + $0x3b0] sm:$0xff]
    %v2130 = vld [vmem:[#allocation8 + $0x3b8] sm:$0xff]
    %v2131 = vld [vmem:[#allocation8 + $0x3c0] sm:$0xff]
    %v2132 = vld [vmem:[#allocation8 + $0x3c8] sm:$0xff]
    %v2133 = vld [vmem:[#allocation8 + $0x3d0] sm:$0xff]
    %v2134 = vld [vmem:[#allocation8 + $0x3d8] sm:$0xff]
    %v2135 = vld [vmem:[#allocation8 + $0x3e0] sm:$0xff]
    %v2136 = vld [vmem:[#allocation8 + $0x3e8] sm:$0xff]
    %v2137 = vld [vmem:[#allocation8 + $0x3f0] sm:$0xff]
    %v2138 = vld [vmem:[#allocation8 + $0x3f8] sm:$0xff]
    %v2139 = vld [vmem:[#allocation8 + $0x400] sm:$0xff]
    %v2140 = vld [vmem:[#allocation8 + $0x408] sm:$0xff]
    %v2141 = vld [vmem:[#allocation8 + $0x410] sm:$0xff]
    %v2142 = vld [vmem:[#allocation8 + $0x418] sm:$0xff]
    %v2143 = vld [vmem:[#allocation8 + $0x420] sm:$0xff]
    %v2144 = vld [vmem:[#allocation8 + $0x428] sm:$0xff]
    %v2145 = vld [vmem:[#allocation8 + $0x430] sm:$0xff]
    %v2146 = vld [vmem:[#allocation8 + $0x438] sm:$0xff]
    %v2147 = vld [vmem:[#allocation8 + $0x440] sm:$0xff]
    %v2148 = vld [vmem:[#allocation8 + $0x448] sm:$0xff]
    %v2149 = vld [vmem:[#allocation8 + $0x450] sm:$0xff]
    %v2150 = vld [vmem:[#allocation8 + $0x458] sm:$0xff]
    %v2151 = vld [vmem:[#allocation8 + $0x460] sm:$0xff]
    %v2152 = vld [vmem:[#allocation8 + $0x468] sm:$0xff]
    %v2153 = vld [vmem:[#allocation8 + $0x470] sm:$0xff]
    %v2154 = vld [vmem:[#allocation8 + $0x478] sm:$0xff]
    %2155 = vmatprep.subr.mxu0 0.0
    %2156 = vmatpush1.msra.mxu0 %v2026
    %2157 = vmatprep.subr.mxu0 0.0
    %2158 = vmatpush1.msra.mxu0 %v2025
    %2159 = vmatprep.subr.mxu0 0.0
    %2160 = vmatpush1.msra.mxu0 %v2024
    %2161 = vmatprep.subr.mxu0 0.0
    %2162 = vmatpush1.msra.mxu0 %v2023
    %2163 = vmatprep.subr.mxu0 0.0
    %2164 = vmatpush1.msra.mxu0 %v2022
    %2165 = vmatprep.subr.mxu0 0.0
    %2166 = vmatpush1.msra.mxu0 %v2021
    %2167 = vmatprep.subr.mxu0 0.0
    %2168 = vmatpush1.msra.mxu0 %v2020
    %2169 = vmatprep.subr.mxu0 0.0
    %2170 = vmatpush1.msra.mxu0 %v2019
    %2171 = vmatprep.subr.mxu0 0.0
    %2172 = vmatpush1.msra.mxu0 %v2018
    %2173 = vmatprep.subr.mxu0 0.0
    %2174 = vmatpush1.msra.mxu0 %v2017
    %2175 = vmatprep.subr.mxu0 0.0
    %2176 = vmatpush1.msra.mxu0 %v2016
    %2177 = vmatprep.subr.mxu0 0.0
    %2178 = vmatpush1.msra.mxu0 %v2015
    %2179 = vmatprep.subr.mxu0 0.0
    %2180 = vmatpush1.msra.mxu0 %v2014
    %2181 = vmatprep.subr.mxu0 0.0
    %2182 = vmatpush1.msra.mxu0 %v2013
    %2183 = vmatprep.subr.mxu0 0.0
    %2184 = vmatpush1.msra.mxu0 %v2012
    %2185 = vmatprep.subr.mxu0 0.0
    %2186 = vmatpush1.msra.mxu0 %v2011
    %2187 = vmatprep.subr.mxu0 0.0
    %2188 = vmatpush2.msra.mxu0 %v2042
    %2189 = vmatprep.subr.mxu0 0.0
    %2190 = vmatpush2.msra.mxu0 %v2041
    %2191 = vmatprep.subr.mxu0 0.0
    %2192 = vmatpush2.msra.mxu0 %v2040
    %2193 = vmatprep.subr.mxu0 0.0
    %2194 = vmatpush2.msra.mxu0 %v2039
    %2195 = vmatprep.subr.mxu0 0.0
    %2196 = vmatpush2.msra.mxu0 %v2038
    %2197 = vmatprep.subr.mxu0 0.0
    %2198 = vmatpush2.msra.mxu0 %v2037
    %2199 = vmatprep.subr.mxu0 0.0
    %2200 = vmatpush2.msra.mxu0 %v2036
    %2201 = vmatprep.subr.mxu0 0.0
    %2202 = vmatpush2.msra.mxu0 %v2035
    %2203 = vmatprep.subr.mxu0 0.0
    %2204 = vmatpush2.msra.mxu0 %v2034
    %2205 = vmatprep.subr.mxu0 0.0
    %2206 = vmatpush2.msra.mxu0 %v2033
    %2207 = vmatprep.subr.mxu0 0.0
    %2208 = vmatpush2.msra.mxu0 %v2032
    %2209 = vmatprep.subr.mxu0 0.0
    %2210 = vmatpush2.msra.mxu0 %v2031
    %2211 = vmatprep.subr.mxu0 0.0
    %2212 = vmatpush2.msra.mxu0 %v2030
    %2213 = vmatprep.subr.mxu0 0.0
    %2214 = vmatpush2.msra.mxu0 %v2029
    %2215 = vmatprep.subr.mxu0 0.0
    %2216 = vmatpush2.msra.mxu0 %v2028
    %2217 = vmatprep.subr.mxu0 0.0
    %2218 = vmatpush2.msra.mxu0 %v2027
    %2219 = vmatprep.mubr.f32.mxu0 %v1436
    %2220 = vmatmul.mubr.f32.gmra.mxu0 %v1435
    %v2221 = vpop.f32.mrf.mxu0
    %v2222 = vadd.f32 0.0, %v2221
    %v2223 = vpop.f32.mrf.mxu0
    %2224 = vmatprep.mubr.f32.mxu0 %v1445
    %2225 = vmatmul.mubr.f32.gmra.mxu0 %v1444
    %v2226 = vpop.f32.mrf.mxu0
    %v2227 = vadd.f32 0.0, %v2226
    %v2228 = vpop.f32.mrf.mxu0
    %2229 = vmatprep.mubr.f32.mxu0 %v1454
    %2230 = vmatmul.mubr.f32.gmra.mxu0 %v1453
    %v2231 = vpop.f32.mrf.mxu0
    %v2232 = vadd.f32 0.0, %v2231
    %v2233 = vpop.f32.mrf.mxu0
    %2234 = vmatprep.mubr.f32.mxu0 %v1463
    %2235 = vmatmul.mubr.f32.gmra.mxu0 %v1462
    %v2236 = vpop.f32.mrf.mxu0
    %v2237 = vadd.f32 0.0, %v2236
    %v2238 = vpop.f32.mrf.mxu0
    %2239 = vmatprep.mubr.f32.mxu0 %v1472
    %2240 = vmatmul.mubr.f32.gmra.mxu0 %v1471
    %v2241 = vpop.f32.mrf.mxu0
    %v2242 = vadd.f32 0.0, %v2241
    %v2243 = vpop.f32.mrf.mxu0
    %2244 = vmatprep.mubr.f32.mxu0 %v1481
    %2245 = vmatmul.mubr.f32.gmra.mxu0 %v1480
    %v2246 = vpop.f32.mrf.mxu0
    %v2247 = vadd.f32 0.0, %v2246
    %v2248 = vpop.f32.mrf.mxu0
    %2249 = vmatprep.mubr.f32.mxu0 %v1490
    %2250 = vmatmul.mubr.f32.gmra.mxu0 %v1489
    %v2251 = vpop.f32.mrf.mxu0
    %v2252 = vadd.f32 0.0, %v2251
    %v2253 = vpop.f32.mrf.mxu0
    %2254 = vmatprep.mubr.f32.mxu0 %v1499
    %2255 = vmatmul.mubr.f32.gmra.mxu0 %v1498
    %v2256 = vpop.f32.mrf.mxu0
    %v2257 = vadd.f32 0.0, %v2256
    %v2258 = vpop.f32.mrf.mxu0
    %2259 = vmatprep.mubr.f32.mxu0 %v1508
    %2260 = vmatmul.mubr.f32.gmra.mxu0 %v1507
    %v2261 = vpop.f32.mrf.mxu0
    %v2262 = vadd.f32 0.0, %v2261
    %v2263 = vpop.f32.mrf.mxu0
    %2264 = vmatprep.mubr.f32.mxu0 %v1517
    %2265 = vmatmul.mubr.f32.gmra.mxu0 %v1516
    %v2266 = vpop.f32.mrf.mxu0
    %v2267 = vadd.f32 0.0, %v2266
    %v2268 = vpop.f32.mrf.mxu0
    %2269 = vmatprep.mubr.f32.mxu0 %v1526
    %2270 = vmatmul.mubr.f32.gmra.mxu0 %v1525
    %v2271 = vpop.f32.mrf.mxu0
    %v2272 = vadd.f32 0.0, %v2271
    %v2273 = vpop.f32.mrf.mxu0
    %2274 = vmatprep.mubr.f32.mxu0 %v1535
    %2275 = vmatmul.mubr.f32.gmra.mxu0 %v1534
    %v2276 = vpop.f32.mrf.mxu0
    %v2277 = vadd.f32 0.0, %v2276
    %v2278 = vpop.f32.mrf.mxu0
    %2279 = vmatprep.mubr.f32.mxu0 %v1544
    %2280 = vmatmul.mubr.f32.gmra.mxu0 %v1543
    %v2281 = vpop.f32.mrf.mxu0
    %v2282 = vadd.f32 0.0, %v2281
    %v2283 = vpop.f32.mrf.mxu0
    %2284 = vmatprep.mubr.f32.mxu0 %v1553
    %2285 = vmatmul.mubr.f32.gmra.mxu0 %v1552
    %v2286 = vpop.f32.mrf.mxu0
    %v2287 = vadd.f32 0.0, %v2286
    %v2288 = vpop.f32.mrf.mxu0
    %2289 = vmatprep.mubr.f32.mxu0 %v1562
    %2290 = vmatmul.mubr.f32.gmra.mxu0 %v1561
    %v2291 = vpop.f32.mrf.mxu0
    %v2292 = vadd.f32 0.0, %v2291
    %v2293 = vpop.f32.mrf.mxu0
    %2294 = vmatprep.mubr.f32.mxu0 %v1571
    %2295 = vmatmul.mubr.f32.gmra.mxu0 %v1570
    %v2296 = vpop.f32.mrf.mxu0
    %v2297 = vadd.f32 0.0, %v2296
    %v2298 = vpop.f32.mrf.mxu0
    %2299 = vmatprep.mubr.f32.mxu0 %v1580
    %2300 = vmatmul.mubr.f32.gmra.mxu0 %v1579
    %v2301 = vpop.f32.mrf.mxu0
    %v2302 = vadd.f32 0.0, %v2301
    %v2303 = vpop.f32.mrf.mxu0
    %2304 = vmatprep.mubr.f32.mxu0 %v1589
    %2305 = vmatmul.mubr.f32.gmra.mxu0 %v1588
    %v2306 = vpop.f32.mrf.mxu0
    %v2307 = vadd.f32 0.0, %v2306
    %v2308 = vpop.f32.mrf.mxu0
    %2309 = vmatprep.mubr.f32.mxu0 %v1598
    %2310 = vmatmul.mubr.f32.gmra.mxu0 %v1597
    %v2311 = vpop.f32.mrf.mxu0
    %v2312 = vadd.f32 0.0, %v2311
    %v2313 = vpop.f32.mrf.mxu0
    %2314 = vmatprep.mubr.f32.mxu0 %v1607
    %2315 = vmatmul.mubr.f32.gmra.mxu0 %v1606
    %v2316 = vpop.f32.mrf.mxu0
    %v2317 = vadd.f32 0.0, %v2316
    %v2318 = vpop.f32.mrf.mxu0
    %2319 = vmatprep.mubr.f32.mxu0 %v1616
    %2320 = vmatmul.mubr.f32.gmra.mxu0 %v1615
    %v2321 = vpop.f32.mrf.mxu0
    %v2322 = vadd.f32 0.0, %v2321
    %v2323 = vpop.f32.mrf.mxu0
    %2324 = vmatprep.mubr.f32.mxu0 %v1625
    %2325 = vmatmul.mubr.f32.gmra.mxu0 %v1624
    %v2326 = vpop.f32.mrf.mxu0
    %v2327 = vadd.f32 0.0, %v2326
    %v2328 = vpop.f32.mrf.mxu0
    %2329 = vmatprep.mubr.f32.mxu0 %v1634
    %2330 = vmatmul.mubr.f32.gmra.mxu0 %v1633
    %v2331 = vpop.f32.mrf.mxu0
    %v2332 = vadd.f32 0.0, %v2331
    %v2333 = vpop.f32.mrf.mxu0
    %2334 = vmatprep.mubr.f32.mxu0 %v1643
    %2335 = vmatmul.mubr.f32.gmra.mxu0 %v1642
    %v2336 = vpop.f32.mrf.mxu0
    %v2337 = vadd.f32 0.0, %v2336
    %v2338 = vpop.f32.mrf.mxu0
    %2339 = vmatprep.mubr.f32.mxu0 %v1652
    %2340 = vmatmul.mubr.f32.gmra.mxu0 %v1651
    %v2341 = vpop.f32.mrf.mxu0
    %v2342 = vadd.f32 0.0, %v2341
    %v2343 = vpop.f32.mrf.mxu0
    %2344 = vmatprep.mubr.f32.mxu0 %v1661
    %2345 = vmatmul.mubr.f32.gmra.mxu0 %v1660
    %v2346 = vpop.f32.mrf.mxu0
    %v2347 = vadd.f32 0.0, %v2346
    %v2348 = vpop.f32.mrf.mxu0
    %2349 = vmatprep.mubr.f32.mxu0 %v1670
    %2350 = vmatmul.mubr.f32.gmra.mxu0 %v1669
    %v2351 = vpop.f32.mrf.mxu0
    %v2352 = vadd.f32 0.0, %v2351
    %v2353 = vpop.f32.mrf.mxu0
    %2354 = vmatprep.mubr.f32.mxu0 %v1679
    %2355 = vmatmul.mubr.f32.gmra.mxu0 %v1678
    %v2356 = vpop.f32.mrf.mxu0
    %v2357 = vadd.f32 0.0, %v2356
    %v2358 = vpop.f32.mrf.mxu0
    %2359 = vmatprep.mubr.f32.mxu0 %v1688
    %2360 = vmatmul.mubr.f32.gmra.mxu0 %v1687
    %v2361 = vpop.f32.mrf.mxu0
    %v2362 = vadd.f32 0.0, %v2361
    %v2363 = vpop.f32.mrf.mxu0
    %2364 = vmatprep.mubr.f32.mxu0 %v1697
    %2365 = vmatmul.mubr.f32.gmra.mxu0 %v1696
    %v2366 = vpop.f32.mrf.mxu0
    %v2367 = vadd.f32 0.0, %v2366
    %v2368 = vpop.f32.mrf.mxu0
    %2369 = vmatprep.mubr.f32.mxu0 %v1706
    %2370 = vmatmul.mubr.f32.gmra.mxu0 %v1705
    %v2371 = vpop.f32.mrf.mxu0
    %v2372 = vadd.f32 0.0, %v2371
    %v2373 = vpop.f32.mrf.mxu0
    %2374 = vmatprep.mubr.f32.mxu0 %v1715
    %2375 = vmatmul.mubr.f32.gmra.mxu0 %v1714
    %v2376 = vpop.f32.mrf.mxu0
    %v2377 = vadd.f32 0.0, %v2376
    %v2378 = vpop.f32.mrf.mxu0
    %2379 = vmatprep.mubr.f32.mxu0 %v1724
    %2380 = vmatmul.mubr.f32.gmra.mxu0 %v1723
    %v2381 = vpop.f32.mrf.mxu0
    %v2382 = vadd.f32 0.0, %v2381
    %v2383 = vpop.f32.mrf.mxu0
    %2384 = vmatprep.mubr.f32.mxu0 %v1733
    %2385 = vmatmul.mubr.f32.gmra.mxu0 %v1732
    %v2386 = vpop.f32.mrf.mxu0
    %v2387 = vadd.f32 0.0, %v2386
    %v2388 = vpop.f32.mrf.mxu0
    %2389 = vmatprep.mubr.f32.mxu0 %v1742
    %2390 = vmatmul.mubr.f32.gmra.mxu0 %v1741
    %v2391 = vpop.f32.mrf.mxu0
    %v2392 = vadd.f32 0.0, %v2391
    %v2393 = vpop.f32.mrf.mxu0
    %2394 = vmatprep.mubr.f32.mxu0 %v1751
    %2395 = vmatmul.mubr.f32.gmra.mxu0 %v1750
    %v2396 = vpop.f32.mrf.mxu0
    %v2397 = vadd.f32 0.0, %v2396
    %v2398 = vpop.f32.mrf.mxu0
    %2399 = vmatprep.mubr.f32.mxu0 %v1760
    %2400 = vmatmul.mubr.f32.gmra.mxu0 %v1759
    %v2401 = vpop.f32.mrf.mxu0
    %v2402 = vadd.f32 0.0, %v2401
    %v2403 = vpop.f32.mrf.mxu0
    %2404 = vmatprep.mubr.f32.mxu0 %v1769
    %2405 = vmatmul.mubr.f32.gmra.mxu0 %v1768
    %v2406 = vpop.f32.mrf.mxu0
    %v2407 = vadd.f32 0.0, %v2406
    %v2408 = vpop.f32.mrf.mxu0
    %2409 = vmatprep.mubr.f32.mxu0 %v1778
    %2410 = vmatmul.mubr.f32.gmra.mxu0 %v1777
    %v2411 = vpop.f32.mrf.mxu0
    %v2412 = vadd.f32 0.0, %v2411
    %v2413 = vpop.f32.mrf.mxu0
    %2414 = vmatprep.mubr.f32.mxu0 %v1787
    %2415 = vmatmul.mubr.f32.gmra.mxu0 %v1786
    %v2416 = vpop.f32.mrf.mxu0
    %v2417 = vadd.f32 0.0, %v2416
    %v2418 = vpop.f32.mrf.mxu0
    %2419 = vmatprep.mubr.f32.mxu0 %v1796
    %2420 = vmatmul.mubr.f32.gmra.mxu0 %v1795
    %v2421 = vpop.f32.mrf.mxu0
    %v2422 = vadd.f32 0.0, %v2421
    %v2423 = vpop.f32.mrf.mxu0
    %2424 = vmatprep.mubr.f32.mxu0 %v1805
    %2425 = vmatmul.mubr.f32.gmra.mxu0 %v1804
    %v2426 = vpop.f32.mrf.mxu0
    %v2427 = vadd.f32 0.0, %v2426
    %v2428 = vpop.f32.mrf.mxu0
    %2429 = vmatprep.mubr.f32.mxu0 %v1814
    %2430 = vmatmul.mubr.f32.gmra.mxu0 %v1813
    %v2431 = vpop.f32.mrf.mxu0
    %v2432 = vadd.f32 0.0, %v2431
    %v2433 = vpop.f32.mrf.mxu0
    %2434 = vmatprep.mubr.f32.mxu0 %v1823
    %2435 = vmatmul.mubr.f32.gmra.mxu0 %v1822
    %v2436 = vpop.f32.mrf.mxu0
    %v2437 = vadd.f32 0.0, %v2436
    %v2438 = vpop.f32.mrf.mxu0
    %2439 = vmatprep.mubr.f32.mxu0 %v1832
    %2440 = vmatmul.mubr.f32.gmra.mxu0 %v1831
    %v2441 = vpop.f32.mrf.mxu0
    %v2442 = vadd.f32 0.0, %v2441
    %v2443 = vpop.f32.mrf.mxu0
    %2444 = vmatprep.mubr.f32.mxu0 %v1841
    %2445 = vmatmul.mubr.f32.gmra.mxu0 %v1840
    %v2446 = vpop.f32.mrf.mxu0
    %v2447 = vadd.f32 0.0, %v2446
    %v2448 = vpop.f32.mrf.mxu0
    %2449 = vmatprep.mubr.f32.mxu0 %v1850
    %2450 = vmatmul.mubr.f32.gmra.mxu0 %v1849
    %v2451 = vpop.f32.mrf.mxu0
    %v2452 = vadd.f32 0.0, %v2451
    %v2453 = vpop.f32.mrf.mxu0
    %2454 = vmatprep.mubr.f32.mxu0 %v1859
    %2455 = vmatmul.mubr.f32.gmra.mxu0 %v1858
    %v2456 = vpop.f32.mrf.mxu0
    %v2457 = vadd.f32 0.0, %v2456
    %v2458 = vpop.f32.mrf.mxu0
    %2459 = vmatprep.mubr.f32.mxu0 %v1868
    %2460 = vmatmul.mubr.f32.gmra.mxu0 %v1867
    %v2461 = vpop.f32.mrf.mxu0
    %v2462 = vadd.f32 0.0, %v2461
    %v2463 = vpop.f32.mrf.mxu0
    %2464 = vmatprep.mubr.f32.mxu0 %v1877
    %2465 = vmatmul.mubr.f32.gmra.mxu0 %v1876
    %v2466 = vpop.f32.mrf.mxu0
    %v2467 = vadd.f32 0.0, %v2466
    %v2468 = vpop.f32.mrf.mxu0
    %2469 = vmatprep.mubr.f32.mxu0 %v1886
    %2470 = vmatmul.mubr.f32.gmra.mxu0 %v1885
    %v2471 = vpop.f32.mrf.mxu0
    %v2472 = vadd.f32 0.0, %v2471
    %v2473 = vpop.f32.mrf.mxu0
    %2474 = vmatprep.mubr.f32.mxu0 %v1895
    %2475 = vmatmul.mubr.f32.gmra.mxu0 %v1894
    %v2476 = vpop.f32.mrf.mxu0
    %v2477 = vadd.f32 0.0, %v2476
    %v2478 = vpop.f32.mrf.mxu0
    %2479 = vmatprep.mubr.f32.mxu0 %v1904
    %2480 = vmatmul.mubr.f32.gmra.mxu0 %v1903
    %v2481 = vpop.f32.mrf.mxu0
    %v2482 = vadd.f32 0.0, %v2481
    %v2483 = vpop.f32.mrf.mxu0
    %2484 = vmatprep.mubr.f32.mxu0 %v1913
    %2485 = vmatmul.mubr.f32.gmra.mxu0 %v1912
    %v2486 = vpop.f32.mrf.mxu0
    %v2487 = vadd.f32 0.0, %v2486
    %v2488 = vpop.f32.mrf.mxu0
    %2489 = vmatprep.mubr.f32.mxu0 %v1922
    %2490 = vmatmul.mubr.f32.gmra.mxu0 %v1921
    %v2491 = vpop.f32.mrf.mxu0
    %v2492 = vadd.f32 0.0, %v2491
    %v2493 = vpop.f32.mrf.mxu0
    %2494 = vmatprep.mubr.f32.mxu0 %v1931
    %2495 = vmatmul.mubr.f32.gmra.mxu0 %v1930
    %v2496 = vpop.f32.mrf.mxu0
    %v2497 = vadd.f32 0.0, %v2496
    %v2498 = vpop.f32.mrf.mxu0
    %2499 = vmatprep.mubr.f32.mxu0 %v1940
    %2500 = vmatmul.mubr.f32.gmra.mxu0 %v1939
    %v2501 = vpop.f32.mrf.mxu0
    %v2502 = vadd.f32 0.0, %v2501
    %v2503 = vpop.f32.mrf.mxu0
    %2504 = vmatprep.mubr.f32.mxu0 %v1949
    %2505 = vmatmul.mubr.f32.gmra.mxu0 %v1948
    %v2506 = vpop.f32.mrf.mxu0
    %v2507 = vadd.f32 0.0, %v2506
    %v2508 = vpop.f32.mrf.mxu0
    %2509 = vmatprep.mubr.f32.mxu0 %v1958
    %2510 = vmatmul.mubr.f32.gmra.mxu0 %v1957
    %v2511 = vpop.f32.mrf.mxu0
    %v2512 = vadd.f32 0.0, %v2511
    %v2513 = vpop.f32.mrf.mxu0
    %2514 = vmatprep.mubr.f32.mxu0 %v1967
    %2515 = vmatmul.mubr.f32.gmra.mxu0 %v1966
    %v2516 = vpop.f32.mrf.mxu0
    %v2517 = vadd.f32 0.0, %v2516
    %v2518 = vpop.f32.mrf.mxu0
    %2519 = vmatprep.mubr.f32.mxu0 %v1976
    %2520 = vmatmul.mubr.f32.gmra.mxu0 %v1975
    %v2521 = vpop.f32.mrf.mxu0
    %v2522 = vadd.f32 0.0, %v2521
    %v2523 = vpop.f32.mrf.mxu0
    %2524 = vmatprep.mubr.f32.mxu0 %v1985
    %2525 = vmatmul.mubr.f32.gmra.mxu0 %v1984
    %v2526 = vpop.f32.mrf.mxu0
    %v2527 = vadd.f32 0.0, %v2526
    %v2528 = vpop.f32.mrf.mxu0
    %2529 = vmatprep.mubr.f32.mxu0 %v1994
    %2530 = vmatmul.mubr.f32.gmra.mxu0 %v1993
    %v2531 = vpop.f32.mrf.mxu0
    %v2532 = vadd.f32 0.0, %v2531
    %v2533 = vpop.f32.mrf.mxu0
    %2534 = vmatprep.mubr.f32.mxu0 %v2003
    %2535 = vmatmul.mubr.f32.gmra.mxu0 %v2002
    %v2536 = vpop.f32.mrf.mxu0
    %v2537 = vadd.f32 0.0, %v2536
    %v2538 = vpop.f32.mrf.mxu0
    %2539 = vdwg.mxu0
    %2540 = vmatprep.subr.mxu0 0.0
    %2541 = vmatpush1.msra.mxu0 %v2058
    %2542 = vmatprep.subr.mxu0 0.0
    %2543 = vmatpush1.msra.mxu0 %v2057
    %2544 = vmatprep.subr.mxu0 0.0
    %2545 = vmatpush1.msra.mxu0 %v2056
    %2546 = vmatprep.subr.mxu0 0.0
    %2547 = vmatpush1.msra.mxu0 %v2055
    %2548 = vmatprep.subr.mxu0 0.0
    %2549 = vmatpush1.msra.mxu0 %v2054
    %2550 = vmatprep.subr.mxu0 0.0
    %2551 = vmatpush1.msra.mxu0 %v2053
    %2552 = vmatprep.subr.mxu0 0.0
    %2553 = vmatpush1.msra.mxu0 %v2052
    %2554 = vmatprep.subr.mxu0 0.0
    %2555 = vmatpush1.msra.mxu0 %v2051
    %2556 = vmatprep.subr.mxu0 0.0
    %2557 = vmatpush1.msra.mxu0 %v2050
    %2558 = vmatprep.subr.mxu0 0.0
    %2559 = vmatpush1.msra.mxu0 %v2049
    %2560 = vmatprep.subr.mxu0 0.0
    %2561 = vmatpush1.msra.mxu0 %v2048
    %2562 = vmatprep.subr.mxu0 0.0
    %2563 = vmatpush1.msra.mxu0 %v2047
    %2564 = vmatprep.subr.mxu0 0.0
    %2565 = vmatpush1.msra.mxu0 %v2046
    %2566 = vmatprep.subr.mxu0 0.0
    %2567 = vmatpush1.msra.mxu0 %v2045
    %2568 = vmatprep.subr.mxu0 0.0
    %2569 = vmatpush1.msra.mxu0 %v2044
    %2570 = vmatprep.subr.mxu0 0.0
    %2571 = vmatpush1.msra.mxu0 %v2043
    %2572 = vmatprep.subr.mxu0 0.0
    %2573 = vmatpush2.msra.mxu0 %v2074
    %2574 = vmatprep.subr.mxu0 0.0
    %2575 = vmatpush2.msra.mxu0 %v2073
    %2576 = vmatprep.subr.mxu0 0.0
    %2577 = vmatpush2.msra.mxu0 %v2072
    %2578 = vmatprep.subr.mxu0 0.0
    %2579 = vmatpush2.msra.mxu0 %v2071
    %2580 = vmatprep.subr.mxu0 0.0
    %2581 = vmatpush2.msra.mxu0 %v2070
    %2582 = vmatprep.subr.mxu0 0.0
    %2583 = vmatpush2.msra.mxu0 %v2069
    %2584 = vmatprep.subr.mxu0 0.0
    %2585 = vmatpush2.msra.mxu0 %v2068
    %2586 = vmatprep.subr.mxu0 0.0
    %2587 = vmatpush2.msra.mxu0 %v2067
    %2588 = vmatprep.subr.mxu0 0.0
    %2589 = vmatpush2.msra.mxu0 %v2066
    %2590 = vmatprep.subr.mxu0 0.0
    %2591 = vmatpush2.msra.mxu0 %v2065
    %2592 = vmatprep.subr.mxu0 0.0
    %2593 = vmatpush2.msra.mxu0 %v2064
    %2594 = vmatprep.subr.mxu0 0.0
    %2595 = vmatpush2.msra.mxu0 %v2063
    %2596 = vmatprep.subr.mxu0 0.0
    %2597 = vmatpush2.msra.mxu0 %v2062
    %2598 = vmatprep.subr.mxu0 0.0
    %2599 = vmatpush2.msra.mxu0 %v2061
    %2600 = vmatprep.subr.mxu0 0.0
    %2601 = vmatpush2.msra.mxu0 %v2060
    %2602 = vmatprep.subr.mxu0 0.0
    %2603 = vmatpush2.msra.mxu0 %v2059
    %2604 = vmatprep.mubr.f32.mxu0 %v1438
    %2605 = vmatmul.mubr.f32.gmra.mxu0 %v1437
    %v2606 = vpop.f32.mrf.mxu0
    %v2607 = vadd.f32 %v2222, %v2606
    %v2608 = vpop.f32.mrf.mxu0
    %2609 = vmatprep.mubr.f32.mxu0 %v1447
    %2610 = vmatmul.mubr.f32.gmra.mxu0 %v1446
    %v2611 = vpop.f32.mrf.mxu0
    %v2612 = vadd.f32 %v2227, %v2611
    %v2613 = vpop.f32.mrf.mxu0
    %2614 = vmatprep.mubr.f32.mxu0 %v1456
    %2615 = vmatmul.mubr.f32.gmra.mxu0 %v1455
    %v2616 = vpop.f32.mrf.mxu0
    %v2617 = vadd.f32 %v2232, %v2616
    %v2618 = vpop.f32.mrf.mxu0
    %2619 = vmatprep.mubr.f32.mxu0 %v1465
    %2620 = vmatmul.mubr.f32.gmra.mxu0 %v1464
    %v2621 = vpop.f32.mrf.mxu0
    %v2622 = vadd.f32 %v2237, %v2621
    %v2623 = vpop.f32.mrf.mxu0
    %2624 = vmatprep.mubr.f32.mxu0 %v1474
    %2625 = vmatmul.mubr.f32.gmra.mxu0 %v1473
    %v2626 = vpop.f32.mrf.mxu0
    %v2627 = vadd.f32 %v2242, %v2626
    %v2628 = vpop.f32.mrf.mxu0
    %2629 = vmatprep.mubr.f32.mxu0 %v1483
    %2630 = vmatmul.mubr.f32.gmra.mxu0 %v1482
    %v2631 = vpop.f32.mrf.mxu0
    %v2632 = vadd.f32 %v2247, %v2631
    %v2633 = vpop.f32.mrf.mxu0
    %2634 = vmatprep.mubr.f32.mxu0 %v1492
    %2635 = vmatmul.mubr.f32.gmra.mxu0 %v1491
    %v2636 = vpop.f32.mrf.mxu0
    %v2637 = vadd.f32 %v2252, %v2636
    %v2638 = vpop.f32.mrf.mxu0
    %2639 = vmatprep.mubr.f32.mxu0 %v1501
    %2640 = vmatmul.mubr.f32.gmra.mxu0 %v1500
    %v2641 = vpop.f32.mrf.mxu0
    %v2642 = vadd.f32 %v2257, %v2641
    %v2643 = vpop.f32.mrf.mxu0
    %2644 = vmatprep.mubr.f32.mxu0 %v1510
    %2645 = vmatmul.mubr.f32.gmra.mxu0 %v1509
    %v2646 = vpop.f32.mrf.mxu0
    %v2647 = vadd.f32 %v2262, %v2646
    %v2648 = vpop.f32.mrf.mxu0
    %2649 = vmatprep.mubr.f32.mxu0 %v1519
    %2650 = vmatmul.mubr.f32.gmra.mxu0 %v1518
    %v2651 = vpop.f32.mrf.mxu0
    %v2652 = vadd.f32 %v2267, %v2651
    %v2653 = vpop.f32.mrf.mxu0
    %2654 = vmatprep.mubr.f32.mxu0 %v1528
    %2655 = vmatmul.mubr.f32.gmra.mxu0 %v1527
    %v2656 = vpop.f32.mrf.mxu0
    %v2657 = vadd.f32 %v2272, %v2656
    %v2658 = vpop.f32.mrf.mxu0
    %2659 = vmatprep.mubr.f32.mxu0 %v1537
    %2660 = vmatmul.mubr.f32.gmra.mxu0 %v1536
    %v2661 = vpop.f32.mrf.mxu0
    %v2662 = vadd.f32 %v2277, %v2661
    %v2663 = vpop.f32.mrf.mxu0
    %2664 = vmatprep.mubr.f32.mxu0 %v1546
    %2665 = vmatmul.mubr.f32.gmra.mxu0 %v1545
    %v2666 = vpop.f32.mrf.mxu0
    %v2667 = vadd.f32 %v2282, %v2666
    %v2668 = vpop.f32.mrf.mxu0
    %2669 = vmatprep.mubr.f32.mxu0 %v1555
    %2670 = vmatmul.mubr.f32.gmra.mxu0 %v1554
    %v2671 = vpop.f32.mrf.mxu0
    %v2672 = vadd.f32 %v2287, %v2671
    %v2673 = vpop.f32.mrf.mxu0
    %2674 = vmatprep.mubr.f32.mxu0 %v1564
    %2675 = vmatmul.mubr.f32.gmra.mxu0 %v1563
    %v2676 = vpop.f32.mrf.mxu0
    %v2677 = vadd.f32 %v2292, %v2676
    %v2678 = vpop.f32.mrf.mxu0
    %2679 = vmatprep.mubr.f32.mxu0 %v1573
    %2680 = vmatmul.mubr.f32.gmra.mxu0 %v1572
    %v2681 = vpop.f32.mrf.mxu0
    %v2682 = vadd.f32 %v2297, %v2681
    %v2683 = vpop.f32.mrf.mxu0
    %2684 = vmatprep.mubr.f32.mxu0 %v1582
    %2685 = vmatmul.mubr.f32.gmra.mxu0 %v1581
    %v2686 = vpop.f32.mrf.mxu0
    %v2687 = vadd.f32 %v2302, %v2686
    %v2688 = vpop.f32.mrf.mxu0
    %2689 = vmatprep.mubr.f32.mxu0 %v1591
    %2690 = vmatmul.mubr.f32.gmra.mxu0 %v1590
    %v2691 = vpop.f32.mrf.mxu0
    %v2692 = vadd.f32 %v2307, %v2691
    %v2693 = vpop.f32.mrf.mxu0
    %2694 = vmatprep.mubr.f32.mxu0 %v1600
    %2695 = vmatmul.mubr.f32.gmra.mxu0 %v1599
    %v2696 = vpop.f32.mrf.mxu0
    %v2697 = vadd.f32 %v2312, %v2696
    %v2698 = vpop.f32.mrf.mxu0
    %2699 = vmatprep.mubr.f32.mxu0 %v1609
    %2700 = vmatmul.mubr.f32.gmra.mxu0 %v1608
    %v2701 = vpop.f32.mrf.mxu0
    %v2702 = vadd.f32 %v2317, %v2701
    %v2703 = vpop.f32.mrf.mxu0
    %2704 = vmatprep.mubr.f32.mxu0 %v1618
    %2705 = vmatmul.mubr.f32.gmra.mxu0 %v1617
    %v2706 = vpop.f32.mrf.mxu0
    %v2707 = vadd.f32 %v2322, %v2706
    %v2708 = vpop.f32.mrf.mxu0
    %2709 = vmatprep.mubr.f32.mxu0 %v1627
    %2710 = vmatmul.mubr.f32.gmra.mxu0 %v1626
    %v2711 = vpop.f32.mrf.mxu0
    %v2712 = vadd.f32 %v2327, %v2711
    %v2713 = vpop.f32.mrf.mxu0
    %2714 = vmatprep.mubr.f32.mxu0 %v1636
    %2715 = vmatmul.mubr.f32.gmra.mxu0 %v1635
    %v2716 = vpop.f32.mrf.mxu0
    %v2717 = vadd.f32 %v2332, %v2716
    %v2718 = vpop.f32.mrf.mxu0
    %2719 = vmatprep.mubr.f32.mxu0 %v1645
    %2720 = vmatmul.mubr.f32.gmra.mxu0 %v1644
    %v2721 = vpop.f32.mrf.mxu0
    %v2722 = vadd.f32 %v2337, %v2721
    %v2723 = vpop.f32.mrf.mxu0
    %2724 = vmatprep.mubr.f32.mxu0 %v1654
    %2725 = vmatmul.mubr.f32.gmra.mxu0 %v1653
    %v2726 = vpop.f32.mrf.mxu0
    %v2727 = vadd.f32 %v2342, %v2726
    %v2728 = vpop.f32.mrf.mxu0
    %2729 = vmatprep.mubr.f32.mxu0 %v1663
    %2730 = vmatmul.mubr.f32.gmra.mxu0 %v1662
    %v2731 = vpop.f32.mrf.mxu0
    %v2732 = vadd.f32 %v2347, %v2731
    %v2733 = vpop.f32.mrf.mxu0
    %2734 = vmatprep.mubr.f32.mxu0 %v1672
    %2735 = vmatmul.mubr.f32.gmra.mxu0 %v1671
    %v2736 = vpop.f32.mrf.mxu0
    %v2737 = vadd.f32 %v2352, %v2736
    %v2738 = vpop.f32.mrf.mxu0
    %2739 = vmatprep.mubr.f32.mxu0 %v1681
    %2740 = vmatmul.mubr.f32.gmra.mxu0 %v1680
    %v2741 = vpop.f32.mrf.mxu0
    %v2742 = vadd.f32 %v2357, %v2741
    %v2743 = vpop.f32.mrf.mxu0
    %2744 = vmatprep.mubr.f32.mxu0 %v1690
    %2745 = vmatmul.mubr.f32.gmra.mxu0 %v1689
    %v2746 = vpop.f32.mrf.mxu0
    %v2747 = vadd.f32 %v2362, %v2746
    %v2748 = vpop.f32.mrf.mxu0
    %2749 = vmatprep.mubr.f32.mxu0 %v1699
    %2750 = vmatmul.mubr.f32.gmra.mxu0 %v1698
    %v2751 = vpop.f32.mrf.mxu0
    %v2752 = vadd.f32 %v2367, %v2751
    %v2753 = vpop.f32.mrf.mxu0
    %2754 = vmatprep.mubr.f32.mxu0 %v1708
    %2755 = vmatmul.mubr.f32.gmra.mxu0 %v1707
    %v2756 = vpop.f32.mrf.mxu0
    %v2757 = vadd.f32 %v2372, %v2756
    %v2758 = vpop.f32.mrf.mxu0
    %2759 = vmatprep.mubr.f32.mxu0 %v1717
    %2760 = vmatmul.mubr.f32.gmra.mxu0 %v1716
    %v2761 = vpop.f32.mrf.mxu0
    %v2762 = vadd.f32 %v2377, %v2761
    %v2763 = vpop.f32.mrf.mxu0
    %2764 = vmatprep.mubr.f32.mxu0 %v1726
    %2765 = vmatmul.mubr.f32.gmra.mxu0 %v1725
    %v2766 = vpop.f32.mrf.mxu0
    %v2767 = vadd.f32 %v2382, %v2766
    %v2768 = vpop.f32.mrf.mxu0
    %2769 = vmatprep.mubr.f32.mxu0 %v1735
    %2770 = vmatmul.mubr.f32.gmra.mxu0 %v1734
    %v2771 = vpop.f32.mrf.mxu0
    %v2772 = vadd.f32 %v2387, %v2771
    %v2773 = vpop.f32.mrf.mxu0
    %2774 = vmatprep.mubr.f32.mxu0 %v1744
    %2775 = vmatmul.mubr.f32.gmra.mxu0 %v1743
    %v2776 = vpop.f32.mrf.mxu0
    %v2777 = vadd.f32 %v2392, %v2776
    %v2778 = vpop.f32.mrf.mxu0
    %2779 = vmatprep.mubr.f32.mxu0 %v1753
    %2780 = vmatmul.mubr.f32.gmra.mxu0 %v1752
    %v2781 = vpop.f32.mrf.mxu0
    %v2782 = vadd.f32 %v2397, %v2781
    %v2783 = vpop.f32.mrf.mxu0
    %2784 = vmatprep.mubr.f32.mxu0 %v1762
    %2785 = vmatmul.mubr.f32.gmra.mxu0 %v1761
    %v2786 = vpop.f32.mrf.mxu0
    %v2787 = vadd.f32 %v2402, %v2786
    %v2788 = vpop.f32.mrf.mxu0
    %2789 = vmatprep.mubr.f32.mxu0 %v1771
    %2790 = vmatmul.mubr.f32.gmra.mxu0 %v1770
    %v2791 = vpop.f32.mrf.mxu0
    %v2792 = vadd.f32 %v2407, %v2791
    %v2793 = vpop.f32.mrf.mxu0
    %2794 = vmatprep.mubr.f32.mxu0 %v1780
    %2795 = vmatmul.mubr.f32.gmra.mxu0 %v1779
    %v2796 = vpop.f32.mrf.mxu0
    %v2797 = vadd.f32 %v2412, %v2796
    %v2798 = vpop.f32.mrf.mxu0
    %2799 = vmatprep.mubr.f32.mxu0 %v1789
    %2800 = vmatmul.mubr.f32.gmra.mxu0 %v1788
    %v2801 = vpop.f32.mrf.mxu0
    %v2802 = vadd.f32 %v2417, %v2801
    %v2803 = vpop.f32.mrf.mxu0
    %2804 = vmatprep.mubr.f32.mxu0 %v1798
    %2805 = vmatmul.mubr.f32.gmra.mxu0 %v1797
    %v2806 = vpop.f32.mrf.mxu0
    %v2807 = vadd.f32 %v2422, %v2806
    %v2808 = vpop.f32.mrf.mxu0
    %2809 = vmatprep.mubr.f32.mxu0 %v1807
    %2810 = vmatmul.mubr.f32.gmra.mxu0 %v1806
    %v2811 = vpop.f32.mrf.mxu0
    %v2812 = vadd.f32 %v2427, %v2811
    %v2813 = vpop.f32.mrf.mxu0
    %2814 = vmatprep.mubr.f32.mxu0 %v1816
    %2815 = vmatmul.mubr.f32.gmra.mxu0 %v1815
    %v2816 = vpop.f32.mrf.mxu0
    %v2817 = vadd.f32 %v2432, %v2816
    %v2818 = vpop.f32.mrf.mxu0
    %2819 = vmatprep.mubr.f32.mxu0 %v1825
    %2820 = vmatmul.mubr.f32.gmra.mxu0 %v1824
    %v2821 = vpop.f32.mrf.mxu0
    %v2822 = vadd.f32 %v2437, %v2821
    %v2823 = vpop.f32.mrf.mxu0
    %2824 = vmatprep.mubr.f32.mxu0 %v1834
    %2825 = vmatmul.mubr.f32.gmra.mxu0 %v1833
    %v2826 = vpop.f32.mrf.mxu0
    %v2827 = vadd.f32 %v2442, %v2826
    %v2828 = vpop.f32.mrf.mxu0
    %2829 = vmatprep.mubr.f32.mxu0 %v1843
    %2830 = vmatmul.mubr.f32.gmra.mxu0 %v1842
    %v2831 = vpop.f32.mrf.mxu0
    %v2832 = vadd.f32 %v2447, %v2831
    %v2833 = vpop.f32.mrf.mxu0
    %2834 = vmatprep.mubr.f32.mxu0 %v1852
    %2835 = vmatmul.mubr.f32.gmra.mxu0 %v1851
    %v2836 = vpop.f32.mrf.mxu0
    %v2837 = vadd.f32 %v2452, %v2836
    %v2838 = vpop.f32.mrf.mxu0
    %2839 = vmatprep.mubr.f32.mxu0 %v1861
    %2840 = vmatmul.mubr.f32.gmra.mxu0 %v1860
    %v2841 = vpop.f32.mrf.mxu0
    %v2842 = vadd.f32 %v2457, %v2841
    %v2843 = vpop.f32.mrf.mxu0
    %2844 = vmatprep.mubr.f32.mxu0 %v1870
    %2845 = vmatmul.mubr.f32.gmra.mxu0 %v1869
    %v2846 = vpop.f32.mrf.mxu0
    %v2847 = vadd.f32 %v2462, %v2846
    %v2848 = vpop.f32.mrf.mxu0
    %2849 = vmatprep.mubr.f32.mxu0 %v1879
    %2850 = vmatmul.mubr.f32.gmra.mxu0 %v1878
    %v2851 = vpop.f32.mrf.mxu0
    %v2852 = vadd.f32 %v2467, %v2851
    %v2853 = vpop.f32.mrf.mxu0
    %2854 = vmatprep.mubr.f32.mxu0 %v1888
    %2855 = vmatmul.mubr.f32.gmra.mxu0 %v1887
    %v2856 = vpop.f32.mrf.mxu0
    %v2857 = vadd.f32 %v2472, %v2856
    %v2858 = vpop.f32.mrf.mxu0
    %2859 = vmatprep.mubr.f32.mxu0 %v1897
    %2860 = vmatmul.mubr.f32.gmra.mxu0 %v1896
    %v2861 = vpop.f32.mrf.mxu0
    %v2862 = vadd.f32 %v2477, %v2861
    %v2863 = vpop.f32.mrf.mxu0
    %2864 = vmatprep.mubr.f32.mxu0 %v1906
    %2865 = vmatmul.mubr.f32.gmra.mxu0 %v1905
    %v2866 = vpop.f32.mrf.mxu0
    %v2867 = vadd.f32 %v2482, %v2866
    %v2868 = vpop.f32.mrf.mxu0
    %2869 = vmatprep.mubr.f32.mxu0 %v1915
    %2870 = vmatmul.mubr.f32.gmra.mxu0 %v1914
    %v2871 = vpop.f32.mrf.mxu0
    %v2872 = vadd.f32 %v2487, %v2871
    %v2873 = vpop.f32.mrf.mxu0
    %2874 = vmatprep.mubr.f32.mxu0 %v1924
    %2875 = vmatmul.mubr.f32.gmra.mxu0 %v1923
    %v2876 = vpop.f32.mrf.mxu0
    %v2877 = vadd.f32 %v2492, %v2876
    %v2878 = vpop.f32.mrf.mxu0
    %2879 = vmatprep.mubr.f32.mxu0 %v1933
    %2880 = vmatmul.mubr.f32.gmra.mxu0 %v1932
    %v2881 = vpop.f32.mrf.mxu0
    %v2882 = vadd.f32 %v2497, %v2881
    %v2883 = vpop.f32.mrf.mxu0
    %2884 = vmatprep.mubr.f32.mxu0 %v1942
    %2885 = vmatmul.mubr.f32.gmra.mxu0 %v1941
    %v2886 = vpop.f32.mrf.mxu0
    %v2887 = vadd.f32 %v2502, %v2886
    %v2888 = vpop.f32.mrf.mxu0
    %2889 = vmatprep.mubr.f32.mxu0 %v1951
    %2890 = vmatmul.mubr.f32.gmra.mxu0 %v1950
    %v2891 = vpop.f32.mrf.mxu0
    %v2892 = vadd.f32 %v2507, %v2891
    %v2893 = vpop.f32.mrf.mxu0
    %2894 = vmatprep.mubr.f32.mxu0 %v1960
    %2895 = vmatmul.mubr.f32.gmra.mxu0 %v1959
    %v2896 = vpop.f32.mrf.mxu0
    %v2897 = vadd.f32 %v2512, %v2896
    %v2898 = vpop.f32.mrf.mxu0
    %2899 = vmatprep.mubr.f32.mxu0 %v1969
    %2900 = vmatmul.mubr.f32.gmra.mxu0 %v1968
    %v2901 = vpop.f32.mrf.mxu0
    %v2902 = vadd.f32 %v2517, %v2901
    %v2903 = vpop.f32.mrf.mxu0
    %2904 = vmatprep.mubr.f32.mxu0 %v1978
    %2905 = vmatmul.mubr.f32.gmra.mxu0 %v1977
    %v2906 = vpop.f32.mrf.mxu0
    %v2907 = vadd.f32 %v2522, %v2906
    %v2908 = vpop.f32.mrf.mxu0
    %2909 = vmatprep.mubr.f32.mxu0 %v1987
    %2910 = vmatmul.mubr.f32.gmra.mxu0 %v1986
    %v2911 = vpop.f32.mrf.mxu0
    %v2912 = vadd.f32 %v2527, %v2911
    %v2913 = vpop.f32.mrf.mxu0
    %2914 = vmatprep.mubr.f32.mxu0 %v1996
    %2915 = vmatmul.mubr.f32.gmra.mxu0 %v1995
    %v2916 = vpop.f32.mrf.mxu0
    %v2917 = vadd.f32 %v2532, %v2916
    %v2918 = vpop.f32.mrf.mxu0
    %2919 = vmatprep.mubr.f32.mxu0 %v2005
    %2920 = vmatmul.mubr.f32.gmra.mxu0 %v2004
    %v2921 = vpop.f32.mrf.mxu0
    %v2922 = vadd.f32 %v2537, %v2921
    %v2923 = vpop.f32.mrf.mxu0
    %2924 = vdwg.mxu0
    %2925 = vmatprep.subr.mxu0 0.0
    %2926 = vmatpush1.msra.mxu0 %v2090
    %2927 = vmatprep.subr.mxu0 0.0
    %2928 = vmatpush1.msra.mxu0 %v2089
    %2929 = vmatprep.subr.mxu0 0.0
    %2930 = vmatpush1.msra.mxu0 %v2088
    %2931 = vmatprep.subr.mxu0 0.0
    %2932 = vmatpush1.msra.mxu0 %v2087
    %2933 = vmatprep.subr.mxu0 0.0
    %2934 = vmatpush1.msra.mxu0 %v2086
    %2935 = vmatprep.subr.mxu0 0.0
    %2936 = vmatpush1.msra.mxu0 %v2085
    %2937 = vmatprep.subr.mxu0 0.0
    %2938 = vmatpush1.msra.mxu0 %v2084
    %2939 = vmatprep.subr.mxu0 0.0
    %2940 = vmatpush1.msra.mxu0 %v2083
    %2941 = vmatprep.subr.mxu0 0.0
    %2942 = vmatpush1.msra.mxu0 %v2082
    %2943 = vmatprep.subr.mxu0 0.0
    %2944 = vmatpush1.msra.mxu0 %v2081
    %2945 = vmatprep.subr.mxu0 0.0
    %2946 = vmatpush1.msra.mxu0 %v2080
    %2947 = vmatprep.subr.mxu0 0.0
    %2948 = vmatpush1.msra.mxu0 %v2079
    %2949 = vmatprep.subr.mxu0 0.0
    %2950 = vmatpush1.msra.mxu0 %v2078
    %2951 = vmatprep.subr.mxu0 0.0
    %2952 = vmatpush1.msra.mxu0 %v2077
    %2953 = vmatprep.subr.mxu0 0.0
    %2954 = vmatpush1.msra.mxu0 %v2076
    %2955 = vmatprep.subr.mxu0 0.0
    %2956 = vmatpush1.msra.mxu0 %v2075
    %2957 = vmatprep.subr.mxu0 0.0
    %2958 = vmatpush2.msra.mxu0 %v2106
    %2959 = vmatprep.subr.mxu0 0.0
    %2960 = vmatpush2.msra.mxu0 %v2105
    %2961 = vmatprep.subr.mxu0 0.0
    %2962 = vmatpush2.msra.mxu0 %v2104
    %2963 = vmatprep.subr.mxu0 0.0
    %2964 = vmatpush2.msra.mxu0 %v2103
    %2965 = vmatprep.subr.mxu0 0.0
    %2966 = vmatpush2.msra.mxu0 %v2102
    %2967 = vmatprep.subr.mxu0 0.0
    %2968 = vmatpush2.msra.mxu0 %v2101
    %2969 = vmatprep.subr.mxu0 0.0
    %2970 = vmatpush2.msra.mxu0 %v2100
    %2971 = vmatprep.subr.mxu0 0.0
    %2972 = vmatpush2.msra.mxu0 %v2099
    %2973 = vmatprep.subr.mxu0 0.0
    %2974 = vmatpush2.msra.mxu0 %v2098
    %2975 = vmatprep.subr.mxu0 0.0
    %2976 = vmatpush2.msra.mxu0 %v2097
    %2977 = vmatprep.subr.mxu0 0.0
    %2978 = vmatpush2.msra.mxu0 %v2096
    %2979 = vmatprep.subr.mxu0 0.0
    %2980 = vmatpush2.msra.mxu0 %v2095
    %2981 = vmatprep.subr.mxu0 0.0
    %2982 = vmatpush2.msra.mxu0 %v2094
    %2983 = vmatprep.subr.mxu0 0.0
    %2984 = vmatpush2.msra.mxu0 %v2093
    %2985 = vmatprep.subr.mxu0 0.0
    %2986 = vmatpush2.msra.mxu0 %v2092
    %2987 = vmatprep.subr.mxu0 0.0
    %2988 = vmatpush2.msra.mxu0 %v2091
    %2989 = vmatprep.mubr.f32.mxu0 %v1440
    %2990 = vmatmul.mubr.f32.gmra.mxu0 %v1439
    %v2991 = vpop.f32.mrf.mxu0
    %v2992 = vadd.f32 %v2607, %v2991
    %v2993 = vpop.f32.mrf.mxu0
    %2994 = vmatprep.mubr.f32.mxu0 %v1449
    %2995 = vmatmul.mubr.f32.gmra.mxu0 %v1448
    %v2996 = vpop.f32.mrf.mxu0
    %v2997 = vadd.f32 %v2612, %v2996
    %v2998 = vpop.f32.mrf.mxu0
    %2999 = vmatprep.mubr.f32.mxu0 %v1458
    %3000 = vmatmul.mubr.f32.gmra.mxu0 %v1457
    %v3001 = vpop.f32.mrf.mxu0
    %v3002 = vadd.f32 %v2617, %v3001
    %v3003 = vpop.f32.mrf.mxu0
    %3004 = vmatprep.mubr.f32.mxu0 %v1467
    %3005 = vmatmul.mubr.f32.gmra.mxu0 %v1466
    %v3006 = vpop.f32.mrf.mxu0
    %v3007 = vadd.f32 %v2622, %v3006
    %v3008 = vpop.f32.mrf.mxu0
    %3009 = vmatprep.mubr.f32.mxu0 %v1476
    %3010 = vmatmul.mubr.f32.gmra.mxu0 %v1475
    %v3011 = vpop.f32.mrf.mxu0
    %v3012 = vadd.f32 %v2627, %v3011
    %v3013 = vpop.f32.mrf.mxu0
    %3014 = vmatprep.mubr.f32.mxu0 %v1485
    %3015 = vmatmul.mubr.f32.gmra.mxu0 %v1484
    %v3016 = vpop.f32.mrf.mxu0
    %v3017 = vadd.f32 %v2632, %v3016
    %v3018 = vpop.f32.mrf.mxu0
    %3019 = vmatprep.mubr.f32.mxu0 %v1494
    %3020 = vmatmul.mubr.f32.gmra.mxu0 %v1493
    %v3021 = vpop.f32.mrf.mxu0
    %v3022 = vadd.f32 %v2637, %v3021
    %v3023 = vpop.f32.mrf.mxu0
    %3024 = vmatprep.mubr.f32.mxu0 %v1503
    %3025 = vmatmul.mubr.f32.gmra.mxu0 %v1502
    %v3026 = vpop.f32.mrf.mxu0
    %v3027 = vadd.f32 %v2642, %v3026
    %v3028 = vpop.f32.mrf.mxu0
    %3029 = vmatprep.mubr.f32.mxu0 %v1512
    %3030 = vmatmul.mubr.f32.gmra.mxu0 %v1511
    %v3031 = vpop.f32.mrf.mxu0
    %v3032 = vadd.f32 %v2647, %v3031
    %v3033 = vpop.f32.mrf.mxu0
    %3034 = vmatprep.mubr.f32.mxu0 %v1521
    %3035 = vmatmul.mubr.f32.gmra.mxu0 %v1520
    %v3036 = vpop.f32.mrf.mxu0
    %v3037 = vadd.f32 %v2652, %v3036
    %v3038 = vpop.f32.mrf.mxu0
    %3039 = vmatprep.mubr.f32.mxu0 %v1530
    %3040 = vmatmul.mubr.f32.gmra.mxu0 %v1529
    %v3041 = vpop.f32.mrf.mxu0
    %v3042 = vadd.f32 %v2657, %v3041
    %v3043 = vpop.f32.mrf.mxu0
    %3044 = vmatprep.mubr.f32.mxu0 %v1539
    %3045 = vmatmul.mubr.f32.gmra.mxu0 %v1538
    %v3046 = vpop.f32.mrf.mxu0
    %v3047 = vadd.f32 %v2662, %v3046
    %v3048 = vpop.f32.mrf.mxu0
    %3049 = vmatprep.mubr.f32.mxu0 %v1548
    %3050 = vmatmul.mubr.f32.gmra.mxu0 %v1547
    %v3051 = vpop.f32.mrf.mxu0
    %v3052 = vadd.f32 %v2667, %v3051
    %v3053 = vpop.f32.mrf.mxu0
    %3054 = vmatprep.mubr.f32.mxu0 %v1557
    %3055 = vmatmul.mubr.f32.gmra.mxu0 %v1556
    %v3056 = vpop.f32.mrf.mxu0
    %v3057 = vadd.f32 %v2672, %v3056
    %v3058 = vpop.f32.mrf.mxu0
    %3059 = vmatprep.mubr.f32.mxu0 %v1566
    %3060 = vmatmul.mubr.f32.gmra.mxu0 %v1565
    %v3061 = vpop.f32.mrf.mxu0
    %v3062 = vadd.f32 %v2677, %v3061
    %v3063 = vpop.f32.mrf.mxu0
    %3064 = vmatprep.mubr.f32.mxu0 %v1575
    %3065 = vmatmul.mubr.f32.gmra.mxu0 %v1574
    %v3066 = vpop.f32.mrf.mxu0
    %v3067 = vadd.f32 %v2682, %v3066
    %v3068 = vpop.f32.mrf.mxu0
    %3069 = vmatprep.mubr.f32.mxu0 %v1584
    %3070 = vmatmul.mubr.f32.gmra.mxu0 %v1583
    %v3071 = vpop.f32.mrf.mxu0
    %v3072 = vadd.f32 %v2687, %v3071
    %v3073 = vpop.f32.mrf.mxu0
    %3074 = vmatprep.mubr.f32.mxu0 %v1593
    %3075 = vmatmul.mubr.f32.gmra.mxu0 %v1592
    %v3076 = vpop.f32.mrf.mxu0
    %v3077 = vadd.f32 %v2692, %v3076
    %v3078 = vpop.f32.mrf.mxu0
    %3079 = vmatprep.mubr.f32.mxu0 %v1602
    %3080 = vmatmul.mubr.f32.gmra.mxu0 %v1601
    %v3081 = vpop.f32.mrf.mxu0
    %v3082 = vadd.f32 %v2697, %v3081
    %v3083 = vpop.f32.mrf.mxu0
    %3084 = vmatprep.mubr.f32.mxu0 %v1611
    %3085 = vmatmul.mubr.f32.gmra.mxu0 %v1610
    %v3086 = vpop.f32.mrf.mxu0
    %v3087 = vadd.f32 %v2702, %v3086
    %v3088 = vpop.f32.mrf.mxu0
    %3089 = vmatprep.mubr.f32.mxu0 %v1620
    %3090 = vmatmul.mubr.f32.gmra.mxu0 %v1619
    %v3091 = vpop.f32.mrf.mxu0
    %v3092 = vadd.f32 %v2707, %v3091
    %v3093 = vpop.f32.mrf.mxu0
    %3094 = vmatprep.mubr.f32.mxu0 %v1629
    %3095 = vmatmul.mubr.f32.gmra.mxu0 %v1628
    %v3096 = vpop.f32.mrf.mxu0
    %v3097 = vadd.f32 %v2712, %v3096
    %v3098 = vpop.f32.mrf.mxu0
    %3099 = vmatprep.mubr.f32.mxu0 %v1638
    %3100 = vmatmul.mubr.f32.gmra.mxu0 %v1637
    %v3101 = vpop.f32.mrf.mxu0
    %v3102 = vadd.f32 %v2717, %v3101
    %v3103 = vpop.f32.mrf.mxu0
    %3104 = vmatprep.mubr.f32.mxu0 %v1647
    %3105 = vmatmul.mubr.f32.gmra.mxu0 %v1646
    %v3106 = vpop.f32.mrf.mxu0
    %v3107 = vadd.f32 %v2722, %v3106
    %v3108 = vpop.f32.mrf.mxu0
    %3109 = vmatprep.mubr.f32.mxu0 %v1656
    %3110 = vmatmul.mubr.f32.gmra.mxu0 %v1655
    %v3111 = vpop.f32.mrf.mxu0
    %v3112 = vadd.f32 %v2727, %v3111
    %v3113 = vpop.f32.mrf.mxu0
    %3114 = vmatprep.mubr.f32.mxu0 %v1665
    %3115 = vmatmul.mubr.f32.gmra.mxu0 %v1664
    %v3116 = vpop.f32.mrf.mxu0
    %v3117 = vadd.f32 %v2732, %v3116
    %v3118 = vpop.f32.mrf.mxu0
    %3119 = vmatprep.mubr.f32.mxu0 %v1674
    %3120 = vmatmul.mubr.f32.gmra.mxu0 %v1673
    %v3121 = vpop.f32.mrf.mxu0
    %v3122 = vadd.f32 %v2737, %v3121
    %v3123 = vpop.f32.mrf.mxu0
    %3124 = vmatprep.mubr.f32.mxu0 %v1683
    %3125 = vmatmul.mubr.f32.gmra.mxu0 %v1682
    %v3126 = vpop.f32.mrf.mxu0
    %v3127 = vadd.f32 %v2742, %v3126
    %v3128 = vpop.f32.mrf.mxu0
    %3129 = vmatprep.mubr.f32.mxu0 %v1692
    %3130 = vmatmul.mubr.f32.gmra.mxu0 %v1691
    %v3131 = vpop.f32.mrf.mxu0
    %v3132 = vadd.f32 %v2747, %v3131
    %v3133 = vpop.f32.mrf.mxu0
    %3134 = vmatprep.mubr.f32.mxu0 %v1701
    %3135 = vmatmul.mubr.f32.gmra.mxu0 %v1700
    %v3136 = vpop.f32.mrf.mxu0
    %v3137 = vadd.f32 %v2752, %v3136
    %v3138 = vpop.f32.mrf.mxu0
    %3139 = vmatprep.mubr.f32.mxu0 %v1710
    %3140 = vmatmul.mubr.f32.gmra.mxu0 %v1709
    %v3141 = vpop.f32.mrf.mxu0
    %v3142 = vadd.f32 %v2757, %v3141
    %v3143 = vpop.f32.mrf.mxu0
    %3144 = vmatprep.mubr.f32.mxu0 %v1719
    %3145 = vmatmul.mubr.f32.gmra.mxu0 %v1718
    %v3146 = vpop.f32.mrf.mxu0
    %v3147 = vadd.f32 %v2762, %v3146
    %v3148 = vpop.f32.mrf.mxu0
    %3149 = vmatprep.mubr.f32.mxu0 %v1728
    %3150 = vmatmul.mubr.f32.gmra.mxu0 %v1727
    %v3151 = vpop.f32.mrf.mxu0
    %v3152 = vadd.f32 %v2767, %v3151
    %v3153 = vpop.f32.mrf.mxu0
    %3154 = vmatprep.mubr.f32.mxu0 %v1737
    %3155 = vmatmul.mubr.f32.gmra.mxu0 %v1736
    %v3156 = vpop.f32.mrf.mxu0
    %v3157 = vadd.f32 %v2772, %v3156
    %v3158 = vpop.f32.mrf.mxu0
    %3159 = vmatprep.mubr.f32.mxu0 %v1746
    %3160 = vmatmul.mubr.f32.gmra.mxu0 %v1745
    %v3161 = vpop.f32.mrf.mxu0
    %v3162 = vadd.f32 %v2777, %v3161
    %v3163 = vpop.f32.mrf.mxu0
    %3164 = vmatprep.mubr.f32.mxu0 %v1755
    %3165 = vmatmul.mubr.f32.gmra.mxu0 %v1754
    %v3166 = vpop.f32.mrf.mxu0
    %v3167 = vadd.f32 %v2782, %v3166
    %v3168 = vpop.f32.mrf.mxu0
    %3169 = vmatprep.mubr.f32.mxu0 %v1764
    %3170 = vmatmul.mubr.f32.gmra.mxu0 %v1763
    %v3171 = vpop.f32.mrf.mxu0
    %v3172 = vadd.f32 %v2787, %v3171
    %v3173 = vpop.f32.mrf.mxu0
    %3174 = vmatprep.mubr.f32.mxu0 %v1773
    %3175 = vmatmul.mubr.f32.gmra.mxu0 %v1772
    %v3176 = vpop.f32.mrf.mxu0
    %v3177 = vadd.f32 %v2792, %v3176
    %v3178 = vpop.f32.mrf.mxu0
    %3179 = vmatprep.mubr.f32.mxu0 %v1782
    %3180 = vmatmul.mubr.f32.gmra.mxu0 %v1781
    %v3181 = vpop.f32.mrf.mxu0
    %v3182 = vadd.f32 %v2797, %v3181
    %v3183 = vpop.f32.mrf.mxu0
    %3184 = vmatprep.mubr.f32.mxu0 %v1791
    %3185 = vmatmul.mubr.f32.gmra.mxu0 %v1790
    %v3186 = vpop.f32.mrf.mxu0
    %v3187 = vadd.f32 %v2802, %v3186
    %v3188 = vpop.f32.mrf.mxu0
    %3189 = vmatprep.mubr.f32.mxu0 %v1800
    %3190 = vmatmul.mubr.f32.gmra.mxu0 %v1799
    %v3191 = vpop.f32.mrf.mxu0
    %v3192 = vadd.f32 %v2807, %v3191
    %v3193 = vpop.f32.mrf.mxu0
    %3194 = vmatprep.mubr.f32.mxu0 %v1809
    %3195 = vmatmul.mubr.f32.gmra.mxu0 %v1808
    %v3196 = vpop.f32.mrf.mxu0
    %v3197 = vadd.f32 %v2812, %v3196
    %v3198 = vpop.f32.mrf.mxu0
    %3199 = vmatprep.mubr.f32.mxu0 %v1818
    %3200 = vmatmul.mubr.f32.gmra.mxu0 %v1817
    %v3201 = vpop.f32.mrf.mxu0
    %v3202 = vadd.f32 %v2817, %v3201
    %v3203 = vpop.f32.mrf.mxu0
    %3204 = vmatprep.mubr.f32.mxu0 %v1827
    %3205 = vmatmul.mubr.f32.gmra.mxu0 %v1826
    %v3206 = vpop.f32.mrf.mxu0
    %v3207 = vadd.f32 %v2822, %v3206
    %v3208 = vpop.f32.mrf.mxu0
    %3209 = vmatprep.mubr.f32.mxu0 %v1836
    %3210 = vmatmul.mubr.f32.gmra.mxu0 %v1835
    %v3211 = vpop.f32.mrf.mxu0
    %v3212 = vadd.f32 %v2827, %v3211
    %v3213 = vpop.f32.mrf.mxu0
    %3214 = vmatprep.mubr.f32.mxu0 %v1845
    %3215 = vmatmul.mubr.f32.gmra.mxu0 %v1844
    %v3216 = vpop.f32.mrf.mxu0
    %v3217 = vadd.f32 %v2832, %v3216
    %v3218 = vpop.f32.mrf.mxu0
    %3219 = vmatprep.mubr.f32.mxu0 %v1854
    %3220 = vmatmul.mubr.f32.gmra.mxu0 %v1853
    %v3221 = vpop.f32.mrf.mxu0
    %v3222 = vadd.f32 %v2837, %v3221
    %v3223 = vpop.f32.mrf.mxu0
    %3224 = vmatprep.mubr.f32.mxu0 %v1863
    %3225 = vmatmul.mubr.f32.gmra.mxu0 %v1862
    %v3226 = vpop.f32.mrf.mxu0
    %v3227 = vadd.f32 %v2842, %v3226
    %v3228 = vpop.f32.mrf.mxu0
    %3229 = vmatprep.mubr.f32.mxu0 %v1872
    %3230 = vmatmul.mubr.f32.gmra.mxu0 %v1871
    %v3231 = vpop.f32.mrf.mxu0
    %v3232 = vadd.f32 %v2847, %v3231
    %v3233 = vpop.f32.mrf.mxu0
    %3234 = vmatprep.mubr.f32.mxu0 %v1881
    %3235 = vmatmul.mubr.f32.gmra.mxu0 %v1880
    %v3236 = vpop.f32.mrf.mxu0
    %v3237 = vadd.f32 %v2852, %v3236
    %v3238 = vpop.f32.mrf.mxu0
    %3239 = vmatprep.mubr.f32.mxu0 %v1890
    %3240 = vmatmul.mubr.f32.gmra.mxu0 %v1889
    %v3241 = vpop.f32.mrf.mxu0
    %v3242 = vadd.f32 %v2857, %v3241
    %v3243 = vpop.f32.mrf.mxu0
    %3244 = vmatprep.mubr.f32.mxu0 %v1899
    %3245 = vmatmul.mubr.f32.gmra.mxu0 %v1898
    %v3246 = vpop.f32.mrf.mxu0
    %v3247 = vadd.f32 %v2862, %v3246
    %v3248 = vpop.f32.mrf.mxu0
    %3249 = vmatprep.mubr.f32.mxu0 %v1908
    %3250 = vmatmul.mubr.f32.gmra.mxu0 %v1907
    %v3251 = vpop.f32.mrf.mxu0
    %v3252 = vadd.f32 %v2867, %v3251
    %v3253 = vpop.f32.mrf.mxu0
    %3254 = vmatprep.mubr.f32.mxu0 %v1917
    %3255 = vmatmul.mubr.f32.gmra.mxu0 %v1916
    %v3256 = vpop.f32.mrf.mxu0
    %v3257 = vadd.f32 %v2872, %v3256
    %v3258 = vpop.f32.mrf.mxu0
    %3259 = vmatprep.mubr.f32.mxu0 %v1926
    %3260 = vmatmul.mubr.f32.gmra.mxu0 %v1925
    %v3261 = vpop.f32.mrf.mxu0
    %v3262 = vadd.f32 %v2877, %v3261
    %v3263 = vpop.f32.mrf.mxu0
    %3264 = vmatprep.mubr.f32.mxu0 %v1935
    %3265 = vmatmul.mubr.f32.gmra.mxu0 %v1934
    %v3266 = vpop.f32.mrf.mxu0
    %v3267 = vadd.f32 %v2882, %v3266
    %v3268 = vpop.f32.mrf.mxu0
    %3269 = vmatprep.mubr.f32.mxu0 %v1944
    %3270 = vmatmul.mubr.f32.gmra.mxu0 %v1943
    %v3271 = vpop.f32.mrf.mxu0
    %v3272 = vadd.f32 %v2887, %v3271
    %v3273 = vpop.f32.mrf.mxu0
    %3274 = vmatprep.mubr.f32.mxu0 %v1953
    %3275 = vmatmul.mubr.f32.gmra.mxu0 %v1952
    %v3276 = vpop.f32.mrf.mxu0
    %v3277 = vadd.f32 %v2892, %v3276
    %v3278 = vpop.f32.mrf.mxu0
    %3279 = vmatprep.mubr.f32.mxu0 %v1962
    %3280 = vmatmul.mubr.f32.gmra.mxu0 %v1961
    %v3281 = vpop.f32.mrf.mxu0
    %v3282 = vadd.f32 %v2897, %v3281
    %v3283 = vpop.f32.mrf.mxu0
    %3284 = vmatprep.mubr.f32.mxu0 %v1971
    %3285 = vmatmul.mubr.f32.gmra.mxu0 %v1970
    %v3286 = vpop.f32.mrf.mxu0
    %v3287 = vadd.f32 %v2902, %v3286
    %v3288 = vpop.f32.mrf.mxu0
    %3289 = vmatprep.mubr.f32.mxu0 %v1980
    %3290 = vmatmul.mubr.f32.gmra.mxu0 %v1979
    %v3291 = vpop.f32.mrf.mxu0
    %v3292 = vadd.f32 %v2907, %v3291
    %v3293 = vpop.f32.mrf.mxu0
    %3294 = vmatprep.mubr.f32.mxu0 %v1989
    %3295 = vmatmul.mubr.f32.gmra.mxu0 %v1988
    %v3296 = vpop.f32.mrf.mxu0
    %v3297 = vadd.f32 %v2912, %v3296
    %v3298 = vpop.f32.mrf.mxu0
    %3299 = vmatprep.mubr.f32.mxu0 %v1998
    %3300 = vmatmul.mubr.f32.gmra.mxu0 %v1997
    %v3301 = vpop.f32.mrf.mxu0
    %v3302 = vadd.f32 %v2917, %v3301
    %v3303 = vpop.f32.mrf.mxu0
    %3304 = vmatprep.mubr.f32.mxu0 %v2007
    %3305 = vmatmul.mubr.f32.gmra.mxu0 %v2006
    %v3306 = vpop.f32.mrf.mxu0
    %v3307 = vadd.f32 %v2922, %v3306
    %v3308 = vpop.f32.mrf.mxu0
    %3309 = vdwg.mxu0
    %3310 = vmatprep.subr.mxu0 0.0
    %3311 = vmatpush1.msra.mxu0 %v2122
    %3312 = vmatprep.subr.mxu0 0.0
    %3313 = vmatpush1.msra.mxu0 %v2121
    %3314 = vmatprep.subr.mxu0 0.0
    %3315 = vmatpush1.msra.mxu0 %v2120
    %3316 = vmatprep.subr.mxu0 0.0
    %3317 = vmatpush1.msra.mxu0 %v2119
    %3318 = vmatprep.subr.mxu0 0.0
    %3319 = vmatpush1.msra.mxu0 %v2118
    %3320 = vmatprep.subr.mxu0 0.0
    %3321 = vmatpush1.msra.mxu0 %v2117
    %3322 = vmatprep.subr.mxu0 0.0
    %3323 = vmatpush1.msra.mxu0 %v2116
    %3324 = vmatprep.subr.mxu0 0.0
    %3325 = vmatpush1.msra.mxu0 %v2115
    %3326 = vmatprep.subr.mxu0 0.0
    %3327 = vmatpush1.msra.mxu0 %v2114
    %3328 = vmatprep.subr.mxu0 0.0
    %3329 = vmatpush1.msra.mxu0 %v2113
    %3330 = vmatprep.subr.mxu0 0.0
    %3331 = vmatpush1.msra.mxu0 %v2112
    %3332 = vmatprep.subr.mxu0 0.0
    %3333 = vmatpush1.msra.mxu0 %v2111
    %3334 = vmatprep.subr.mxu0 0.0
    %3335 = vmatpush1.msra.mxu0 %v2110
    %3336 = vmatprep.subr.mxu0 0.0
    %3337 = vmatpush1.msra.mxu0 %v2109
    %3338 = vmatprep.subr.mxu0 0.0
    %3339 = vmatpush1.msra.mxu0 %v2108
    %3340 = vmatprep.subr.mxu0 0.0
    %3341 = vmatpush1.msra.mxu0 %v2107
    %3342 = vmatprep.subr.mxu0 0.0
    %3343 = vmatpush2.msra.mxu0 %v2138
    %3344 = vmatprep.subr.mxu0 0.0
    %3345 = vmatpush2.msra.mxu0 %v2137
    %3346 = vmatprep.subr.mxu0 0.0
    %3347 = vmatpush2.msra.mxu0 %v2136
    %3348 = vmatprep.subr.mxu0 0.0
    %3349 = vmatpush2.msra.mxu0 %v2135
    %3350 = vmatprep.subr.mxu0 0.0
    %3351 = vmatpush2.msra.mxu0 %v2134
    %3352 = vmatprep.subr.mxu0 0.0
    %3353 = vmatpush2.msra.mxu0 %v2133
    %3354 = vmatprep.subr.mxu0 0.0
    %3355 = vmatpush2.msra.mxu0 %v2132
    %3356 = vmatprep.subr.mxu0 0.0
    %3357 = vmatpush2.msra.mxu0 %v2131
    %3358 = vmatprep.subr.mxu0 0.0
    %3359 = vmatpush2.msra.mxu0 %v2130
    %3360 = vmatprep.subr.mxu0 0.0
    %3361 = vmatpush2.msra.mxu0 %v2129
    %3362 = vmatprep.subr.mxu0 0.0
    %3363 = vmatpush2.msra.mxu0 %v2128
    %3364 = vmatprep.subr.mxu0 0.0
    %3365 = vmatpush2.msra.mxu0 %v2127
    %3366 = vmatprep.subr.mxu0 0.0
    %3367 = vmatpush2.msra.mxu0 %v2126
    %3368 = vmatprep.subr.mxu0 0.0
    %3369 = vmatpush2.msra.mxu0 %v2125
    %3370 = vmatprep.subr.mxu0 0.0
    %3371 = vmatpush2.msra.mxu0 %v2124
    %3372 = vmatprep.subr.mxu0 0.0
    %3373 = vmatpush2.msra.mxu0 %v2123
    %3374 = vmatprep.mubr.f32.mxu0 %v1442
    %3375 = vmatmul.mubr.f32.gmra.mxu0 %v1441
    %v3376 = vpop.f32.mrf.mxu0
    %v3377 = vadd.f32 %v2992, %v3376
    %v3378 = vpop.f32.mrf.mxu0
    %3379 = vmatprep.mubr.f32.mxu0 %v1451
    %3380 = vmatmul.mubr.f32.gmra.mxu0 %v1450
    %v3381 = vpop.f32.mrf.mxu0
    %v3382 = vadd.f32 %v2997, %v3381
    %v3383 = vpop.f32.mrf.mxu0
    %3384 = vmatprep.mubr.f32.mxu0 %v1460
    %3385 = vmatmul.mubr.f32.gmra.mxu0 %v1459
    %v3386 = vpop.f32.mrf.mxu0
    %v3387 = vadd.f32 %v3002, %v3386
    %v3388 = vpop.f32.mrf.mxu0
    %3389 = vmatprep.mubr.f32.mxu0 %v1469
    %3390 = vmatmul.mubr.f32.gmra.mxu0 %v1468
    %v3391 = vpop.f32.mrf.mxu0
    %v3392 = vadd.f32 %v3007, %v3391
    %v3393 = vpop.f32.mrf.mxu0
    %3394 = vmatprep.mubr.f32.mxu0 %v1478
    %3395 = vmatmul.mubr.f32.gmra.mxu0 %v1477
    %v3396 = vpop.f32.mrf.mxu0
    %v3397 = vadd.f32 %v3012, %v3396
    %v3398 = vpop.f32.mrf.mxu0
    %3399 = vmatprep.mubr.f32.mxu0 %v1487
    %3400 = vmatmul.mubr.f32.gmra.mxu0 %v1486
    %v3401 = vpop.f32.mrf.mxu0
    %v3402 = vadd.f32 %v3017, %v3401
    %v3403 = vpop.f32.mrf.mxu0
    %3404 = vmatprep.mubr.f32.mxu0 %v1496
    %3405 = vmatmul.mubr.f32.gmra.mxu0 %v1495
    %v3406 = vpop.f32.mrf.mxu0
    %v3407 = vadd.f32 %v3022, %v3406
    %v3408 = vpop.f32.mrf.mxu0
    %3409 = vmatprep.mubr.f32.mxu0 %v1505
    %3410 = vmatmul.mubr.f32.gmra.mxu0 %v1504
    %v3411 = vpop.f32.mrf.mxu0
    %v3412 = vadd.f32 %v3027, %v3411
    %v3413 = vpop.f32.mrf.mxu0
    %3414 = vmatprep.mubr.f32.mxu0 %v1514
    %3415 = vmatmul.mubr.f32.gmra.mxu0 %v1513
    %v3416 = vpop.f32.mrf.mxu0
    %v3417 = vadd.f32 %v3032, %v3416
    %v3418 = vpop.f32.mrf.mxu0
    %3419 = vmatprep.mubr.f32.mxu0 %v1523
    %3420 = vmatmul.mubr.f32.gmra.mxu0 %v1522
    %v3421 = vpop.f32.mrf.mxu0
    %v3422 = vadd.f32 %v3037, %v3421
    %v3423 = vpop.f32.mrf.mxu0
    %3424 = vmatprep.mubr.f32.mxu0 %v1532
    %3425 = vmatmul.mubr.f32.gmra.mxu0 %v1531
    %v3426 = vpop.f32.mrf.mxu0
    %v3427 = vadd.f32 %v3042, %v3426
    %v3428 = vpop.f32.mrf.mxu0
    %3429 = vmatprep.mubr.f32.mxu0 %v1541
    %3430 = vmatmul.mubr.f32.gmra.mxu0 %v1540
    %v3431 = vpop.f32.mrf.mxu0
    %v3432 = vadd.f32 %v3047, %v3431
    %v3433 = vpop.f32.mrf.mxu0
    %3434 = vmatprep.mubr.f32.mxu0 %v1550
    %3435 = vmatmul.mubr.f32.gmra.mxu0 %v1549
    %v3436 = vpop.f32.mrf.mxu0
    %v3437 = vadd.f32 %v3052, %v3436
    %v3438 = vpop.f32.mrf.mxu0
    %3439 = vmatprep.mubr.f32.mxu0 %v1559
    %3440 = vmatmul.mubr.f32.gmra.mxu0 %v1558
    %v3441 = vpop.f32.mrf.mxu0
    %v3442 = vadd.f32 %v3057, %v3441
    %v3443 = vpop.f32.mrf.mxu0
    %3444 = vmatprep.mubr.f32.mxu0 %v1568
    %3445 = vmatmul.mubr.f32.gmra.mxu0 %v1567
    %v3446 = vpop.f32.mrf.mxu0
    %v3447 = vadd.f32 %v3062, %v3446
    %v3448 = vpop.f32.mrf.mxu0
    %3449 = vmatprep.mubr.f32.mxu0 %v1577
    %3450 = vmatmul.mubr.f32.gmra.mxu0 %v1576
    %v3451 = vpop.f32.mrf.mxu0
    %v3452 = vadd.f32 %v3067, %v3451
    %v3453 = vpop.f32.mrf.mxu0
    %3454 = vmatprep.mubr.f32.mxu0 %v1586
    %3455 = vmatmul.mubr.f32.gmra.mxu0 %v1585
    %v3456 = vpop.f32.mrf.mxu0
    %v3457 = vadd.f32 %v3072, %v3456
    %v3458 = vpop.f32.mrf.mxu0
    %3459 = vmatprep.mubr.f32.mxu0 %v1595
    %3460 = vmatmul.mubr.f32.gmra.mxu0 %v1594
    %v3461 = vpop.f32.mrf.mxu0
    %v3462 = vadd.f32 %v3077, %v3461
    %v3463 = vpop.f32.mrf.mxu0
    %3464 = vmatprep.mubr.f32.mxu0 %v1604
    %3465 = vmatmul.mubr.f32.gmra.mxu0 %v1603
    %v3466 = vpop.f32.mrf.mxu0
    %v3467 = vadd.f32 %v3082, %v3466
    %v3468 = vpop.f32.mrf.mxu0
    %3469 = vmatprep.mubr.f32.mxu0 %v1613
    %3470 = vmatmul.mubr.f32.gmra.mxu0 %v1612
    %v3471 = vpop.f32.mrf.mxu0
    %v3472 = vadd.f32 %v3087, %v3471
    %v3473 = vpop.f32.mrf.mxu0
    %3474 = vmatprep.mubr.f32.mxu0 %v1622
    %3475 = vmatmul.mubr.f32.gmra.mxu0 %v1621
    %v3476 = vpop.f32.mrf.mxu0
    %v3477 = vadd.f32 %v3092, %v3476
    %v3478 = vpop.f32.mrf.mxu0
    %3479 = vmatprep.mubr.f32.mxu0 %v1631
    %3480 = vmatmul.mubr.f32.gmra.mxu0 %v1630
    %v3481 = vpop.f32.mrf.mxu0
    %v3482 = vadd.f32 %v3097, %v3481
    %v3483 = vpop.f32.mrf.mxu0
    %3484 = vmatprep.mubr.f32.mxu0 %v1640
    %3485 = vmatmul.mubr.f32.gmra.mxu0 %v1639
    %v3486 = vpop.f32.mrf.mxu0
    %v3487 = vadd.f32 %v3102, %v3486
    %v3488 = vpop.f32.mrf.mxu0
    %3489 = vmatprep.mubr.f32.mxu0 %v1649
    %3490 = vmatmul.mubr.f32.gmra.mxu0 %v1648
    %v3491 = vpop.f32.mrf.mxu0
    %v3492 = vadd.f32 %v3107, %v3491
    %v3493 = vpop.f32.mrf.mxu0
    %3494 = vmatprep.mubr.f32.mxu0 %v1658
    %3495 = vmatmul.mubr.f32.gmra.mxu0 %v1657
    %v3496 = vpop.f32.mrf.mxu0
    %v3497 = vadd.f32 %v3112, %v3496
    %v3498 = vpop.f32.mrf.mxu0
    %3499 = vmatprep.mubr.f32.mxu0 %v1667
    %3500 = vmatmul.mubr.f32.gmra.mxu0 %v1666
    %v3501 = vpop.f32.mrf.mxu0
    %v3502 = vadd.f32 %v3117, %v3501
    %v3503 = vpop.f32.mrf.mxu0
    %3504 = vmatprep.mubr.f32.mxu0 %v1676
    %3505 = vmatmul.mubr.f32.gmra.mxu0 %v1675
    %v3506 = vpop.f32.mrf.mxu0
    %v3507 = vadd.f32 %v3122, %v3506
    %v3508 = vpop.f32.mrf.mxu0
    %3509 = vmatprep.mubr.f32.mxu0 %v1685
    %3510 = vmatmul.mubr.f32.gmra.mxu0 %v1684
    %v3511 = vpop.f32.mrf.mxu0
    %v3512 = vadd.f32 %v3127, %v3511
    %v3513 = vpop.f32.mrf.mxu0
    %3514 = vmatprep.mubr.f32.mxu0 %v1694
    %3515 = vmatmul.mubr.f32.gmra.mxu0 %v1693
    %v3516 = vpop.f32.mrf.mxu0
    %v3517 = vadd.f32 %v3132, %v3516
    %v3518 = vpop.f32.mrf.mxu0
    %3519 = vmatprep.mubr.f32.mxu0 %v1703
    %3520 = vmatmul.mubr.f32.gmra.mxu0 %v1702
    %v3521 = vpop.f32.mrf.mxu0
    %v3522 = vadd.f32 %v3137, %v3521
    %v3523 = vpop.f32.mrf.mxu0
    %3524 = vmatprep.mubr.f32.mxu0 %v1712
    %3525 = vmatmul.mubr.f32.gmra.mxu0 %v1711
    %v3526 = vpop.f32.mrf.mxu0
    %v3527 = vadd.f32 %v3142, %v3526
    %v3528 = vpop.f32.mrf.mxu0
    %3529 = vmatprep.mubr.f32.mxu0 %v1721
    %3530 = vmatmul.mubr.f32.gmra.mxu0 %v1720
    %v3531 = vpop.f32.mrf.mxu0
    %v3532 = vadd.f32 %v3147, %v3531
    %v3533 = vpop.f32.mrf.mxu0
    %3534 = vmatprep.mubr.f32.mxu0 %v1730
    %3535 = vmatmul.mubr.f32.gmra.mxu0 %v1729
    %v3536 = vpop.f32.mrf.mxu0
    %v3537 = vadd.f32 %v3152, %v3536
    %v3538 = vpop.f32.mrf.mxu0
    %3539 = vmatprep.mubr.f32.mxu0 %v1739
    %3540 = vmatmul.mubr.f32.gmra.mxu0 %v1738
    %v3541 = vpop.f32.mrf.mxu0
    %v3542 = vadd.f32 %v3157, %v3541
    %v3543 = vpop.f32.mrf.mxu0
    %3544 = vmatprep.mubr.f32.mxu0 %v1748
    %3545 = vmatmul.mubr.f32.gmra.mxu0 %v1747
    %v3546 = vpop.f32.mrf.mxu0
    %v3547 = vadd.f32 %v3162, %v3546
    %v3548 = vpop.f32.mrf.mxu0
    %3549 = vmatprep.mubr.f32.mxu0 %v1757
    %3550 = vmatmul.mubr.f32.gmra.mxu0 %v1756
    %v3551 = vpop.f32.mrf.mxu0
    %v3552 = vadd.f32 %v3167, %v3551
    %v3553 = vpop.f32.mrf.mxu0
    %3554 = vmatprep.mubr.f32.mxu0 %v1766
    %3555 = vmatmul.mubr.f32.gmra.mxu0 %v1765
    %v3556 = vpop.f32.mrf.mxu0
    %v3557 = vadd.f32 %v3172, %v3556
    %v3558 = vpop.f32.mrf.mxu0
    %3559 = vmatprep.mubr.f32.mxu0 %v1775
    %3560 = vmatmul.mubr.f32.gmra.mxu0 %v1774
    %v3561 = vpop.f32.mrf.mxu0
    %v3562 = vadd.f32 %v3177, %v3561
    %v3563 = vpop.f32.mrf.mxu0
    %3564 = vmatprep.mubr.f32.mxu0 %v1784
    %3565 = vmatmul.mubr.f32.gmra.mxu0 %v1783
    %v3566 = vpop.f32.mrf.mxu0
    %v3567 = vadd.f32 %v3182, %v3566
    %v3568 = vpop.f32.mrf.mxu0
    %3569 = vmatprep.mubr.f32.mxu0 %v1793
    %3570 = vmatmul.mubr.f32.gmra.mxu0 %v1792
    %v3571 = vpop.f32.mrf.mxu0
    %v3572 = vadd.f32 %v3187, %v3571
    %v3573 = vpop.f32.mrf.mxu0
    %3574 = vmatprep.mubr.f32.mxu0 %v1802
    %3575 = vmatmul.mubr.f32.gmra.mxu0 %v1801
    %v3576 = vpop.f32.mrf.mxu0
    %v3577 = vadd.f32 %v3192, %v3576
    %v3578 = vpop.f32.mrf.mxu0
    %3579 = vmatprep.mubr.f32.mxu0 %v1811
    %3580 = vmatmul.mubr.f32.gmra.mxu0 %v1810
    %v3581 = vpop.f32.mrf.mxu0
    %v3582 = vadd.f32 %v3197, %v3581
    %v3583 = vpop.f32.mrf.mxu0
    %3584 = vmatprep.mubr.f32.mxu0 %v1820
    %3585 = vmatmul.mubr.f32.gmra.mxu0 %v1819
    %v3586 = vpop.f32.mrf.mxu0
    %v3587 = vadd.f32 %v3202, %v3586
    %v3588 = vpop.f32.mrf.mxu0
    %3589 = vmatprep.mubr.f32.mxu0 %v1829
    %3590 = vmatmul.mubr.f32.gmra.mxu0 %v1828
    %v3591 = vpop.f32.mrf.mxu0
    %v3592 = vadd.f32 %v3207, %v3591
    %v3593 = vpop.f32.mrf.mxu0
    %3594 = vmatprep.mubr.f32.mxu0 %v1838
    %3595 = vmatmul.mubr.f32.gmra.mxu0 %v1837
    %v3596 = vpop.f32.mrf.mxu0
    %v3597 = vadd.f32 %v3212, %v3596
    %v3598 = vpop.f32.mrf.mxu0
    %3599 = vmatprep.mubr.f32.mxu0 %v1847
    %3600 = vmatmul.mubr.f32.gmra.mxu0 %v1846
    %v3601 = vpop.f32.mrf.mxu0
    %v3602 = vadd.f32 %v3217, %v3601
    %v3603 = vpop.f32.mrf.mxu0
    %3604 = vmatprep.mubr.f32.mxu0 %v1856
    %3605 = vmatmul.mubr.f32.gmra.mxu0 %v1855
    %v3606 = vpop.f32.mrf.mxu0
    %v3607 = vadd.f32 %v3222, %v3606
    %v3608 = vpop.f32.mrf.mxu0
    %3609 = vmatprep.mubr.f32.mxu0 %v1865
    %3610 = vmatmul.mubr.f32.gmra.mxu0 %v1864
    %v3611 = vpop.f32.mrf.mxu0
    %v3612 = vadd.f32 %v3227, %v3611
    %v3613 = vpop.f32.mrf.mxu0
    %3614 = vmatprep.mubr.f32.mxu0 %v1874
    %3615 = vmatmul.mubr.f32.gmra.mxu0 %v1873
    %v3616 = vpop.f32.mrf.mxu0
    %v3617 = vadd.f32 %v3232, %v3616
    %v3618 = vpop.f32.mrf.mxu0
    %3619 = vmatprep.mubr.f32.mxu0 %v1883
    %3620 = vmatmul.mubr.f32.gmra.mxu0 %v1882
    %v3621 = vpop.f32.mrf.mxu0
    %v3622 = vadd.f32 %v3237, %v3621
    %v3623 = vpop.f32.mrf.mxu0
    %3624 = vmatprep.mubr.f32.mxu0 %v1892
    %3625 = vmatmul.mubr.f32.gmra.mxu0 %v1891
    %v3626 = vpop.f32.mrf.mxu0
    %v3627 = vadd.f32 %v3242, %v3626
    %v3628 = vpop.f32.mrf.mxu0
    %3629 = vmatprep.mubr.f32.mxu0 %v1901
    %3630 = vmatmul.mubr.f32.gmra.mxu0 %v1900
    %v3631 = vpop.f32.mrf.mxu0
    %v3632 = vadd.f32 %v3247, %v3631
    %v3633 = vpop.f32.mrf.mxu0
    %3634 = vmatprep.mubr.f32.mxu0 %v1910
    %3635 = vmatmul.mubr.f32.gmra.mxu0 %v1909
    %v3636 = vpop.f32.mrf.mxu0
    %v3637 = vadd.f32 %v3252, %v3636
    %v3638 = vpop.f32.mrf.mxu0
    %3639 = vmatprep.mubr.f32.mxu0 %v1919
    %3640 = vmatmul.mubr.f32.gmra.mxu0 %v1918
    %v3641 = vpop.f32.mrf.mxu0
    %v3642 = vadd.f32 %v3257, %v3641
    %v3643 = vpop.f32.mrf.mxu0
    %3644 = vmatprep.mubr.f32.mxu0 %v1928
    %3645 = vmatmul.mubr.f32.gmra.mxu0 %v1927
    %v3646 = vpop.f32.mrf.mxu0
    %v3647 = vadd.f32 %v3262, %v3646
    %v3648 = vpop.f32.mrf.mxu0
    %3649 = vmatprep.mubr.f32.mxu0 %v1937
    %3650 = vmatmul.mubr.f32.gmra.mxu0 %v1936
    %v3651 = vpop.f32.mrf.mxu0
    %v3652 = vadd.f32 %v3267, %v3651
    %v3653 = vpop.f32.mrf.mxu0
    %3654 = vmatprep.mubr.f32.mxu0 %v1946
    %3655 = vmatmul.mubr.f32.gmra.mxu0 %v1945
    %v3656 = vpop.f32.mrf.mxu0
    %v3657 = vadd.f32 %v3272, %v3656
    %v3658 = vpop.f32.mrf.mxu0
    %3659 = vmatprep.mubr.f32.mxu0 %v1955
    %3660 = vmatmul.mubr.f32.gmra.mxu0 %v1954
    %v3661 = vpop.f32.mrf.mxu0
    %v3662 = vadd.f32 %v3277, %v3661
    %v3663 = vpop.f32.mrf.mxu0
    %3664 = vmatprep.mubr.f32.mxu0 %v1964
    %3665 = vmatmul.mubr.f32.gmra.mxu0 %v1963
    %v3666 = vpop.f32.mrf.mxu0
    %v3667 = vadd.f32 %v3282, %v3666
    %v3668 = vpop.f32.mrf.mxu0
    %3669 = vmatprep.mubr.f32.mxu0 %v1973
    %3670 = vmatmul.mubr.f32.gmra.mxu0 %v1972
    %v3671 = vpop.f32.mrf.mxu0
    %v3672 = vadd.f32 %v3287, %v3671
    %v3673 = vpop.f32.mrf.mxu0
    %3674 = vmatprep.mubr.f32.mxu0 %v1982
    %3675 = vmatmul.mubr.f32.gmra.mxu0 %v1981
    %v3676 = vpop.f32.mrf.mxu0
    %v3677 = vadd.f32 %v3292, %v3676
    %v3678 = vpop.f32.mrf.mxu0
    %3679 = vmatprep.mubr.f32.mxu0 %v1991
    %3680 = vmatmul.mubr.f32.gmra.mxu0 %v1990
    %v3681 = vpop.f32.mrf.mxu0
    %v3682 = vadd.f32 %v3297, %v3681
    %v3683 = vpop.f32.mrf.mxu0
    %3684 = vmatprep.mubr.f32.mxu0 %v2000
    %3685 = vmatmul.mubr.f32.gmra.mxu0 %v1999
    %v3686 = vpop.f32.mrf.mxu0
    %v3687 = vadd.f32 %v3302, %v3686
    %v3688 = vpop.f32.mrf.mxu0
    %3689 = vmatprep.mubr.f32.mxu0 %v2009
    %3690 = vmatmul.mubr.f32.gmra.mxu0 %v2008
    %v3691 = vpop.f32.mrf.mxu0
    %v3692 = vadd.f32 %v3307, %v3691
    %v3693 = vpop.f32.mrf.mxu0
    %3694 = vdwg.mxu0
    %3695 = vmatprep.subr.mxu0 0.0
    %3696 = vmatpush1.msra.mxu0 %v2154
    %3697 = vmatprep.subr.mxu0 0.0
    %3698 = vmatpush1.msra.mxu0 %v2153
    %3699 = vmatprep.subr.mxu0 0.0
    %3700 = vmatpush1.msra.mxu0 %v2152
    %3701 = vmatprep.subr.mxu0 0.0
    %3702 = vmatpush1.msra.mxu0 %v2151
    %3703 = vmatprep.subr.mxu0 0.0
    %3704 = vmatpush1.msra.mxu0 %v2150
    %3705 = vmatprep.subr.mxu0 0.0
    %3706 = vmatpush1.msra.mxu0 %v2149
    %3707 = vmatprep.subr.mxu0 0.0
    %3708 = vmatpush1.msra.mxu0 %v2148
    %3709 = vmatprep.subr.mxu0 0.0
    %3710 = vmatpush1.msra.mxu0 %v2147
    %3711 = vmatprep.subr.mxu0 0.0
    %3712 = vmatpush1.msra.mxu0 %v2146
    %3713 = vmatprep.subr.mxu0 0.0
    %3714 = vmatpush1.msra.mxu0 %v2145
    %3715 = vmatprep.subr.mxu0 0.0
    %3716 = vmatpush1.msra.mxu0 %v2144
    %3717 = vmatprep.subr.mxu0 0.0
    %3718 = vmatpush1.msra.mxu0 %v2143
    %3719 = vmatprep.subr.mxu0 0.0
    %3720 = vmatpush1.msra.mxu0 %v2142
    %3721 = vmatprep.subr.mxu0 0.0
    %3722 = vmatpush1.msra.mxu0 %v2141
    %3723 = vmatprep.subr.mxu0 0.0
    %3724 = vmatpush1.msra.mxu0 %v2140
    %3725 = vmatprep.subr.mxu0 0.0
    %3726 = vmatpush1.msra.mxu0 %v2139
    %3727 = vmatprep.subr.mxu0 0.0
    %3728 = vmatpush2.msra.mxu0 0.0
    %3729 = vmatprep.subr.mxu0 0.0
    %3730 = vmatpush2.msra.mxu0 0.0
    %3731 = vmatprep.subr.mxu0 0.0
    %3732 = vmatpush2.msra.mxu0 0.0
    %3733 = vmatprep.subr.mxu0 0.0
    %3734 = vmatpush2.msra.mxu0 0.0
    %3735 = vmatprep.subr.mxu0 0.0
    %3736 = vmatpush2.msra.mxu0 0.0
    %3737 = vmatprep.subr.mxu0 0.0
    %3738 = vmatpush2.msra.mxu0 0.0
    %3739 = vmatprep.subr.mxu0 0.0
    %3740 = vmatpush2.msra.mxu0 0.0
    %3741 = vmatprep.subr.mxu0 0.0
    %3742 = vmatpush2.msra.mxu0 0.0
    %3743 = vmatprep.subr.mxu0 0.0
    %3744 = vmatpush2.msra.mxu0 0.0
    %3745 = vmatprep.subr.mxu0 0.0
    %3746 = vmatpush2.msra.mxu0 0.0
    %3747 = vmatprep.subr.mxu0 0.0
    %3748 = vmatpush2.msra.mxu0 0.0
    %3749 = vmatprep.subr.mxu0 0.0
    %3750 = vmatpush2.msra.mxu0 0.0
    %3751 = vmatprep.subr.mxu0 0.0
    %3752 = vmatpush2.msra.mxu0 0.0
    %3753 = vmatprep.subr.mxu0 0.0
    %3754 = vmatpush2.msra.mxu0 0.0
    %3755 = vmatprep.subr.mxu0 0.0
    %3756 = vmatpush2.msra.mxu0 0.0
    %3757 = vmatprep.subr.mxu0 0.0
    %3758 = vmatpush2.msra.mxu0 0.0
    %3759 = vmatprep.mubr.f32.mxu0 0.0
    %3760 = vmatmul.mubr.f32.gmra.mxu0 %v1443
    %v3761 = vpop.f32.mrf.mxu0
    %v3762 = vadd.f32 %v3377, %v3761
    %v3763 = vpop.f32.mrf.mxu0
    %3764 = vmatprep.mubr.f32.mxu0 0.0
    %3765 = vmatmul.mubr.f32.gmra.mxu0 %v1452
    %v3766 = vpop.f32.mrf.mxu0
    %v3767 = vadd.f32 %v3382, %v3766
    %v3768 = vpop.f32.mrf.mxu0
    %3769 = vmatprep.mubr.f32.mxu0 0.0
    %3770 = vmatmul.mubr.f32.gmra.mxu0 %v1461
    %v3771 = vpop.f32.mrf.mxu0
    %v3772 = vadd.f32 %v3387, %v3771
    %v3773 = vpop.f32.mrf.mxu0
    %3774 = vmatprep.mubr.f32.mxu0 0.0
    %3775 = vmatmul.mubr.f32.gmra.mxu0 %v1470
    %v3776 = vpop.f32.mrf.mxu0
    %v3777 = vadd.f32 %v3392, %v3776
    %v3778 = vpop.f32.mrf.mxu0
    %3779 = vmatprep.mubr.f32.mxu0 0.0
    %3780 = vmatmul.mubr.f32.gmra.mxu0 %v1479
    %v3781 = vpop.f32.mrf.mxu0
    %v3782 = vadd.f32 %v3397, %v3781
    %v3783 = vpop.f32.mrf.mxu0
    %3784 = vmatprep.mubr.f32.mxu0 0.0
    %3785 = vmatmul.mubr.f32.gmra.mxu0 %v1488
    %v3786 = vpop.f32.mrf.mxu0
    %v3787 = vadd.f32 %v3402, %v3786
    %v3788 = vpop.f32.mrf.mxu0
    %3789 = vmatprep.mubr.f32.mxu0 0.0
    %3790 = vmatmul.mubr.f32.gmra.mxu0 %v1497
    %v3791 = vpop.f32.mrf.mxu0
    %v3792 = vadd.f32 %v3407, %v3791
    %v3793 = vpop.f32.mrf.mxu0
    %3794 = vmatprep.mubr.f32.mxu0 0.0
    %3795 = vmatmul.mubr.f32.gmra.mxu0 %v1506
    %v3796 = vpop.f32.mrf.mxu0
    %v3797 = vadd.f32 %v3412, %v3796
    %v3798 = vpop.f32.mrf.mxu0
    %3799 = vmatprep.mubr.f32.mxu0 0.0
    %3800 = vmatmul.mubr.f32.gmra.mxu0 %v1515
    %v3801 = vpop.f32.mrf.mxu0
    %v3802 = vadd.f32 %v3417, %v3801
    %v3803 = vpop.f32.mrf.mxu0
    %3804 = vmatprep.mubr.f32.mxu0 0.0
    %3805 = vmatmul.mubr.f32.gmra.mxu0 %v1524
    %v3806 = vpop.f32.mrf.mxu0
    %v3807 = vadd.f32 %v3422, %v3806
    %v3808 = vpop.f32.mrf.mxu0
    %3809 = vmatprep.mubr.f32.mxu0 0.0
    %3810 = vmatmul.mubr.f32.gmra.mxu0 %v1533
    %v3811 = vpop.f32.mrf.mxu0
    %v3812 = vadd.f32 %v3427, %v3811
    %v3813 = vpop.f32.mrf.mxu0
    %3814 = vmatprep.mubr.f32.mxu0 0.0
    %3815 = vmatmul.mubr.f32.gmra.mxu0 %v1542
    %v3816 = vpop.f32.mrf.mxu0
    %v3817 = vadd.f32 %v3432, %v3816
    %v3818 = vpop.f32.mrf.mxu0
    %3819 = vmatprep.mubr.f32.mxu0 0.0
    %3820 = vmatmul.mubr.f32.gmra.mxu0 %v1551
    %v3821 = vpop.f32.mrf.mxu0
    %v3822 = vadd.f32 %v3437, %v3821
    %v3823 = vpop.f32.mrf.mxu0
    %3824 = vmatprep.mubr.f32.mxu0 0.0
    %3825 = vmatmul.mubr.f32.gmra.mxu0 %v1560
    %v3826 = vpop.f32.mrf.mxu0
    %v3827 = vadd.f32 %v3442, %v3826
    %v3828 = vpop.f32.mrf.mxu0
    %3829 = vmatprep.mubr.f32.mxu0 0.0
    %3830 = vmatmul.mubr.f32.gmra.mxu0 %v1569
    %v3831 = vpop.f32.mrf.mxu0
    %v3832 = vadd.f32 %v3447, %v3831
    %v3833 = vpop.f32.mrf.mxu0
    %3834 = vmatprep.mubr.f32.mxu0 0.0
    %3835 = vmatmul.mubr.f32.gmra.mxu0 %v1578
    %v3836 = vpop.f32.mrf.mxu0
    %v3837 = vadd.f32 %v3452, %v3836
    %v3838 = vpop.f32.mrf.mxu0
    %3839 = vmatprep.mubr.f32.mxu0 0.0
    %3840 = vmatmul.mubr.f32.gmra.mxu0 %v1587
    %v3841 = vpop.f32.mrf.mxu0
    %v3842 = vadd.f32 %v3457, %v3841
    %v3843 = vpop.f32.mrf.mxu0
    %3844 = vmatprep.mubr.f32.mxu0 0.0
    %3845 = vmatmul.mubr.f32.gmra.mxu0 %v1596
    %v3846 = vpop.f32.mrf.mxu0
    %v3847 = vadd.f32 %v3462, %v3846
    %v3848 = vpop.f32.mrf.mxu0
    %3849 = vmatprep.mubr.f32.mxu0 0.0
    %3850 = vmatmul.mubr.f32.gmra.mxu0 %v1605
    %v3851 = vpop.f32.mrf.mxu0
    %v3852 = vadd.f32 %v3467, %v3851
    %v3853 = vpop.f32.mrf.mxu0
    %3854 = vmatprep.mubr.f32.mxu0 0.0
    %3855 = vmatmul.mubr.f32.gmra.mxu0 %v1614
    %v3856 = vpop.f32.mrf.mxu0
    %v3857 = vadd.f32 %v3472, %v3856
    %v3858 = vpop.f32.mrf.mxu0
    %3859 = vmatprep.mubr.f32.mxu0 0.0
    %3860 = vmatmul.mubr.f32.gmra.mxu0 %v1623
    %v3861 = vpop.f32.mrf.mxu0
    %v3862 = vadd.f32 %v3477, %v3861
    %v3863 = vpop.f32.mrf.mxu0
    %3864 = vmatprep.mubr.f32.mxu0 0.0
    %3865 = vmatmul.mubr.f32.gmra.mxu0 %v1632
    %v3866 = vpop.f32.mrf.mxu0
    %v3867 = vadd.f32 %v3482, %v3866
    %v3868 = vpop.f32.mrf.mxu0
    %3869 = vmatprep.mubr.f32.mxu0 0.0
    %3870 = vmatmul.mubr.f32.gmra.mxu0 %v1641
    %v3871 = vpop.f32.mrf.mxu0
    %v3872 = vadd.f32 %v3487, %v3871
    %v3873 = vpop.f32.mrf.mxu0
    %3874 = vmatprep.mubr.f32.mxu0 0.0
    %3875 = vmatmul.mubr.f32.gmra.mxu0 %v1650
    %v3876 = vpop.f32.mrf.mxu0
    %v3877 = vadd.f32 %v3492, %v3876
    %v3878 = vpop.f32.mrf.mxu0
    %3879 = vmatprep.mubr.f32.mxu0 0.0
    %3880 = vmatmul.mubr.f32.gmra.mxu0 %v1659
    %v3881 = vpop.f32.mrf.mxu0
    %v3882 = vadd.f32 %v3497, %v3881
    %v3883 = vpop.f32.mrf.mxu0
    %3884 = vmatprep.mubr.f32.mxu0 0.0
    %3885 = vmatmul.mubr.f32.gmra.mxu0 %v1668
    %v3886 = vpop.f32.mrf.mxu0
    %v3887 = vadd.f32 %v3502, %v3886
    %v3888 = vpop.f32.mrf.mxu0
    %3889 = vmatprep.mubr.f32.mxu0 0.0
    %3890 = vmatmul.mubr.f32.gmra.mxu0 %v1677
    %v3891 = vpop.f32.mrf.mxu0
    %v3892 = vadd.f32 %v3507, %v3891
    %v3893 = vpop.f32.mrf.mxu0
    %3894 = vmatprep.mubr.f32.mxu0 0.0
    %3895 = vmatmul.mubr.f32.gmra.mxu0 %v1686
    %v3896 = vpop.f32.mrf.mxu0
    %v3897 = vadd.f32 %v3512, %v3896
    %v3898 = vpop.f32.mrf.mxu0
    %3899 = vmatprep.mubr.f32.mxu0 0.0
    %3900 = vmatmul.mubr.f32.gmra.mxu0 %v1695
    %v3901 = vpop.f32.mrf.mxu0
    %v3902 = vadd.f32 %v3517, %v3901
    %v3903 = vpop.f32.mrf.mxu0
    %3904 = vmatprep.mubr.f32.mxu0 0.0
    %3905 = vmatmul.mubr.f32.gmra.mxu0 %v1704
    %v3906 = vpop.f32.mrf.mxu0
    %v3907 = vadd.f32 %v3522, %v3906
    %v3908 = vpop.f32.mrf.mxu0
    %3909 = vmatprep.mubr.f32.mxu0 0.0
    %3910 = vmatmul.mubr.f32.gmra.mxu0 %v1713
    %v3911 = vpop.f32.mrf.mxu0
    %v3912 = vadd.f32 %v3527, %v3911
    %v3913 = vpop.f32.mrf.mxu0
    %3914 = vmatprep.mubr.f32.mxu0 0.0
    %3915 = vmatmul.mubr.f32.gmra.mxu0 %v1722
    %v3916 = vpop.f32.mrf.mxu0
    %v3917 = vadd.f32 %v3532, %v3916
    %v3918 = vpop.f32.mrf.mxu0
    %3919 = vmatprep.mubr.f32.mxu0 0.0
    %3920 = vmatmul.mubr.f32.gmra.mxu0 %v1731
    %v3921 = vpop.f32.mrf.mxu0
    %v3922 = vadd.f32 %v3537, %v3921
    %v3923 = vpop.f32.mrf.mxu0
    %3924 = vmatprep.mubr.f32.mxu0 0.0
    %3925 = vmatmul.mubr.f32.gmra.mxu0 %v1740
    %v3926 = vpop.f32.mrf.mxu0
    %v3927 = vadd.f32 %v3542, %v3926
    %v3928 = vpop.f32.mrf.mxu0
    %3929 = vmatprep.mubr.f32.mxu0 0.0
    %3930 = vmatmul.mubr.f32.gmra.mxu0 %v1749
    %v3931 = vpop.f32.mrf.mxu0
    %v3932 = vadd.f32 %v3547, %v3931
    %v3933 = vpop.f32.mrf.mxu0
    %3934 = vmatprep.mubr.f32.mxu0 0.0
    %3935 = vmatmul.mubr.f32.gmra.mxu0 %v1758
    %v3936 = vpop.f32.mrf.mxu0
    %v3937 = vadd.f32 %v3552, %v3936
    %v3938 = vpop.f32.mrf.mxu0
    %3939 = vmatprep.mubr.f32.mxu0 0.0
    %3940 = vmatmul.mubr.f32.gmra.mxu0 %v1767
    %v3941 = vpop.f32.mrf.mxu0
    %v3942 = vadd.f32 %v3557, %v3941
    %v3943 = vpop.f32.mrf.mxu0
    %3944 = vmatprep.mubr.f32.mxu0 0.0
    %3945 = vmatmul.mubr.f32.gmra.mxu0 %v1776
    %v3946 = vpop.f32.mrf.mxu0
    %v3947 = vadd.f32 %v3562, %v3946
    %v3948 = vpop.f32.mrf.mxu0
    %3949 = vmatprep.mubr.f32.mxu0 0.0
    %3950 = vmatmul.mubr.f32.gmra.mxu0 %v1785
    %v3951 = vpop.f32.mrf.mxu0
    %v3952 = vadd.f32 %v3567, %v3951
    %v3953 = vpop.f32.mrf.mxu0
    %3954 = vmatprep.mubr.f32.mxu0 0.0
    %3955 = vmatmul.mubr.f32.gmra.mxu0 %v1794
    %v3956 = vpop.f32.mrf.mxu0
    %v3957 = vadd.f32 %v3572, %v3956
    %v3958 = vpop.f32.mrf.mxu0
    %3959 = vmatprep.mubr.f32.mxu0 0.0
    %3960 = vmatmul.mubr.f32.gmra.mxu0 %v1803
    %v3961 = vpop.f32.mrf.mxu0
    %v3962 = vadd.f32 %v3577, %v3961
    %v3963 = vpop.f32.mrf.mxu0
    %3964 = vmatprep.mubr.f32.mxu0 0.0
    %3965 = vmatmul.mubr.f32.gmra.mxu0 %v1812
    %v3966 = vpop.f32.mrf.mxu0
    %v3967 = vadd.f32 %v3582, %v3966
    %v3968 = vpop.f32.mrf.mxu0
    %3969 = vmatprep.mubr.f32.mxu0 0.0
    %3970 = vmatmul.mubr.f32.gmra.mxu0 %v1821
    %v3971 = vpop.f32.mrf.mxu0
    %v3972 = vadd.f32 %v3587, %v3971
    %v3973 = vpop.f32.mrf.mxu0
    %3974 = vmatprep.mubr.f32.mxu0 0.0
    %3975 = vmatmul.mubr.f32.gmra.mxu0 %v1830
    %v3976 = vpop.f32.mrf.mxu0
    %v3977 = vadd.f32 %v3592, %v3976
    %v3978 = vpop.f32.mrf.mxu0
    %3979 = vmatprep.mubr.f32.mxu0 0.0
    %3980 = vmatmul.mubr.f32.gmra.mxu0 %v1839
    %v3981 = vpop.f32.mrf.mxu0
    %v3982 = vadd.f32 %v3597, %v3981
    %v3983 = vpop.f32.mrf.mxu0
    %3984 = vmatprep.mubr.f32.mxu0 0.0
    %3985 = vmatmul.mubr.f32.gmra.mxu0 %v1848
    %v3986 = vpop.f32.mrf.mxu0
    %v3987 = vadd.f32 %v3602, %v3986
    %v3988 = vpop.f32.mrf.mxu0
    %3989 = vmatprep.mubr.f32.mxu0 0.0
    %3990 = vmatmul.mubr.f32.gmra.mxu0 %v1857
    %v3991 = vpop.f32.mrf.mxu0
    %v3992 = vadd.f32 %v3607, %v3991
    %v3993 = vpop.f32.mrf.mxu0
    %3994 = vmatprep.mubr.f32.mxu0 0.0
    %3995 = vmatmul.mubr.f32.gmra.mxu0 %v1866
    %v3996 = vpop.f32.mrf.mxu0
    %v3997 = vadd.f32 %v3612, %v3996
    %v3998 = vpop.f32.mrf.mxu0
    %3999 = vmatprep.mubr.f32.mxu0 0.0
    %4000 = vmatmul.mubr.f32.gmra.mxu0 %v1875
    %v4001 = vpop.f32.mrf.mxu0
    %v4002 = vadd.f32 %v3617, %v4001
    %v4003 = vpop.f32.mrf.mxu0
    %4004 = vmatprep.mubr.f32.mxu0 0.0
    %4005 = vmatmul.mubr.f32.gmra.mxu0 %v1884
    %v4006 = vpop.f32.mrf.mxu0
    %v4007 = vadd.f32 %v3622, %v4006
    %v4008 = vpop.f32.mrf.mxu0
    %4009 = vmatprep.mubr.f32.mxu0 0.0
    %4010 = vmatmul.mubr.f32.gmra.mxu0 %v1893
    %v4011 = vpop.f32.mrf.mxu0
    %v4012 = vadd.f32 %v3627, %v4011
    %v4013 = vpop.f32.mrf.mxu0
    %4014 = vmatprep.mubr.f32.mxu0 0.0
    %4015 = vmatmul.mubr.f32.gmra.mxu0 %v1902
    %v4016 = vpop.f32.mrf.mxu0
    %v4017 = vadd.f32 %v3632, %v4016
    %v4018 = vpop.f32.mrf.mxu0
    %4019 = vmatprep.mubr.f32.mxu0 0.0
    %4020 = vmatmul.mubr.f32.gmra.mxu0 %v1911
    %v4021 = vpop.f32.mrf.mxu0
    %v4022 = vadd.f32 %v3637, %v4021
    %v4023 = vpop.f32.mrf.mxu0
    %4024 = vmatprep.mubr.f32.mxu0 0.0
    %4025 = vmatmul.mubr.f32.gmra.mxu0 %v1920
    %v4026 = vpop.f32.mrf.mxu0
    %v4027 = vadd.f32 %v3642, %v4026
    %v4028 = vpop.f32.mrf.mxu0
    %4029 = vmatprep.mubr.f32.mxu0 0.0
    %4030 = vmatmul.mubr.f32.gmra.mxu0 %v1929
    %v4031 = vpop.f32.mrf.mxu0
    %v4032 = vadd.f32 %v3647, %v4031
    %v4033 = vpop.f32.mrf.mxu0
    %4034 = vmatprep.mubr.f32.mxu0 0.0
    %4035 = vmatmul.mubr.f32.gmra.mxu0 %v1938
    %v4036 = vpop.f32.mrf.mxu0
    %v4037 = vadd.f32 %v3652, %v4036
    %v4038 = vpop.f32.mrf.mxu0
    %4039 = vmatprep.mubr.f32.mxu0 0.0
    %4040 = vmatmul.mubr.f32.gmra.mxu0 %v1947
    %v4041 = vpop.f32.mrf.mxu0
    %v4042 = vadd.f32 %v3657, %v4041
    %v4043 = vpop.f32.mrf.mxu0
    %4044 = vmatprep.mubr.f32.mxu0 0.0
    %4045 = vmatmul.mubr.f32.gmra.mxu0 %v1956
    %v4046 = vpop.f32.mrf.mxu0
    %v4047 = vadd.f32 %v3662, %v4046
    %v4048 = vpop.f32.mrf.mxu0
    %4049 = vmatprep.mubr.f32.mxu0 0.0
    %4050 = vmatmul.mubr.f32.gmra.mxu0 %v1965
    %v4051 = vpop.f32.mrf.mxu0
    %v4052 = vadd.f32 %v3667, %v4051
    %v4053 = vpop.f32.mrf.mxu0
    %4054 = vmatprep.mubr.f32.mxu0 0.0
    %4055 = vmatmul.mubr.f32.gmra.mxu0 %v1974
    %v4056 = vpop.f32.mrf.mxu0
    %v4057 = vadd.f32 %v3672, %v4056
    %v4058 = vpop.f32.mrf.mxu0
    %4059 = vmatprep.mubr.f32.mxu0 0.0
    %4060 = vmatmul.mubr.f32.gmra.mxu0 %v1983
    %v4061 = vpop.f32.mrf.mxu0
    %v4062 = vadd.f32 %v3677, %v4061
    %v4063 = vpop.f32.mrf.mxu0
    %4064 = vmatprep.mubr.f32.mxu0 0.0
    %4065 = vmatmul.mubr.f32.gmra.mxu0 %v1992
    %v4066 = vpop.f32.mrf.mxu0
    %v4067 = vadd.f32 %v3682, %v4066
    %v4068 = vpop.f32.mrf.mxu0
    %4069 = vmatprep.mubr.f32.mxu0 0.0
    %4070 = vmatmul.mubr.f32.gmra.mxu0 %v2001
    %v4071 = vpop.f32.mrf.mxu0
    %v4072 = vadd.f32 %v3687, %v4071
    %v4073 = vpop.f32.mrf.mxu0
    %4074 = vmatprep.mubr.f32.mxu0 0.0
    %4075 = vmatmul.mubr.f32.gmra.mxu0 %v2010
    %v4076 = vpop.f32.mrf.mxu0
    %v4077 = vadd.f32 %v3692, %v4076
    %v4078 = vpop.f32.mrf.mxu0
    %4079 = vdwg.mxu0
    %v4080 = vld [vmem:[%s2] sm:$0x1]
    %v4081 = vld [vmem:[%s3] sm:$0x1]
    %v4082 = vadd.f32 %v3762, %v3767
    %v4083 = vadd.f32 %v4082, %v3772
    %v4084 = vadd.f32 %v4083, %v3777
    %v4085 = vadd.f32 %v4084, %v3782
    %v4086 = vadd.f32 %v4085, %v3787
    %v4087 = vadd.f32 %v4086, %v3792
    %v4088 = vadd.f32 %v4087, %v3797
    %v4089 = vadd.f32 %v4088, %v3802
    %v4090 = vadd.f32 %v4089, %v3807
    %v4091 = vadd.f32 %v4090, %v3812
    %v4092 = vadd.f32 %v4091, %v3817
    %v4093 = vadd.f32 %v4092, %v3822
    %v4094 = vadd.f32 %v4093, %v3827
    %v4095 = vadd.f32 %v4094, %v3832
    %v4096 = vadd.f32 %v4095, %v3837
    %v4097 = vadd.f32 %v4096, %v3842
    %v4098 = vadd.f32 %v4097, %v3847
    %v4099 = vadd.f32 %v4098, %v3852
    %v4100 = vadd.f32 %v4099, %v3857
    %v4101 = vadd.f32 %v4100, %v3862
    %v4102 = vadd.f32 %v4101, %v3867
    %v4103 = vadd.f32 %v4102, %v3872
    %v4104 = vadd.f32 %v4103, %v3877
    %v4105 = vadd.f32 %v4104, %v3882
    %v4106 = vadd.f32 %v4105, %v3887
    %v4107 = vadd.f32 %v4106, %v3892
    %v4108 = vadd.f32 %v4107, %v3897
    %v4109 = vadd.f32 %v4108, %v3902
    %v4110 = vadd.f32 %v4109, %v3907
    %v4111 = vadd.f32 %v4110, %v3912
    %v4112 = vadd.f32 %v4111, %v3917
    %v4113 = vadd.f32 %v4112, %v3922
    %v4114 = vadd.f32 %v4113, %v3927
    %v4115 = vadd.f32 %v4114, %v3932
    %v4116 = vadd.f32 %v4115, %v3937
    %v4117 = vadd.f32 %v4116, %v3942
    %v4118 = vadd.f32 %v4117, %v3947
    %v4119 = vadd.f32 %v4118, %v3952
    %v4120 = vadd.f32 %v4119, %v3957
    %v4121 = vadd.f32 %v4120, %v3962
    %v4122 = vadd.f32 %v4121, %v3967
    %v4123 = vadd.f32 %v4122, %v3972
    %v4124 = vadd.f32 %v4123, %v3977
    %v4125 = vadd.f32 %v4124, %v3982
    %v4126 = vadd.f32 %v4125, %v3987
    %v4127 = vadd.f32 %v4126, %v3992
    %v4128 = vadd.f32 %v4127, %v3997
    %v4129 = vadd.f32 %v4128, %v4002
    %v4130 = vadd.f32 %v4129, %v4007
    %v4131 = vadd.f32 %v4130, %v4012
    %v4132 = vadd.f32 %v4131, %v4017
    %v4133 = vadd.f32 %v4132, %v4022
    %v4134 = vadd.f32 %v4133, %v4027
    %v4135 = vadd.f32 %v4134, %v4032
    %v4136 = vadd.f32 %v4135, %v4037
    %v4137 = vadd.f32 %v4136, %v4042
    %v4138 = vadd.f32 %v4137, %v4047
    %v4139 = vadd.f32 %v4138, %v4052
    %v4140 = vadd.f32 %v4139, %v4057
    %v4141 = vadd.f32 %v4140, %v4062
    %v4142 = vadd.f32 %v4141, %v4067
    %v4143 = vadd.f32 %v4142, %v4072
    %v4144 = vadd.f32 %v4143, %v4077
    %v4145 = vrot.slane %v4144, 4
    %v4146 = vadd.f32 %v4144, %v4145
    %v4147 = vrot.slane %v4146, 2
    %v4148 = vadd.f32 %v4146, %v4147
    %v4149 = vrot.slane %v4148, 1
    %v4150 = vadd.f32 %v4148, %v4149
    %v4151 = vmul.f32 %v4150, 0.001953125
    %v4152 = vmul.f32 %v3762, %v3762
    %v4153 = vmul.f32 %v3767, %v3767
    %v4154 = vmul.f32 %v3772, %v3772
    %v4155 = vmul.f32 %v3777, %v3777
    %v4156 = vmul.f32 %v3782, %v3782
    %v4157 = vmul.f32 %v3787, %v3787
    %v4158 = vmul.f32 %v3792, %v3792
    %v4159 = vmul.f32 %v3797, %v3797
    %v4160 = vmul.f32 %v3802, %v3802
    %v4161 = vmul.f32 %v3807, %v3807
    %v4162 = vmul.f32 %v3812, %v3812
    %v4163 = vmul.f32 %v3817, %v3817
    %v4164 = vmul.f32 %v3822, %v3822
    %v4165 = vmul.f32 %v3827, %v3827
    %v4166 = vmul.f32 %v3832, %v3832
    %v4167 = vmul.f32 %v3837, %v3837
    %v4168 = vmul.f32 %v3842, %v3842
    %v4169 = vmul.f32 %v3847, %v3847
    %v4170 = vmul.f32 %v3852, %v3852
    %v4171 = vmul.f32 %v3857, %v3857
    %v4172 = vmul.f32 %v3862, %v3862
    %v4173 = vmul.f32 %v3867, %v3867
    %v4174 = vmul.f32 %v3872, %v3872
    %v4175 = vmul.f32 %v3877, %v3877
    %v4176 = vmul.f32 %v3882, %v3882
    %v4177 = vmul.f32 %v3887, %v3887
    %v4178 = vmul.f32 %v3892, %v3892
    %v4179 = vmul.f32 %v3897, %v3897
    %v4180 = vmul.f32 %v3902, %v3902
    %v4181 = vmul.f32 %v3907, %v3907
    %v4182 = vmul.f32 %v3912, %v3912
    %v4183 = vmul.f32 %v3917, %v3917
    %v4184 = vmul.f32 %v3922, %v3922
    %v4185 = vmul.f32 %v3927, %v3927
    %v4186 = vmul.f32 %v3932, %v3932
    %v4187 = vmul.f32 %v3937, %v3937
    %v4188 = vmul.f32 %v3942, %v3942
    %v4189 = vmul.f32 %v3947, %v3947
    %v4190 = vmul.f32 %v3952, %v3952
    %v4191 = vmul.f32 %v3957, %v3957
    %v4192 = vmul.f32 %v3962, %v3962
    %v4193 = vmul.f32 %v3967, %v3967
    %v4194 = vmul.f32 %v3972, %v3972
    %v4195 = vmul.f32 %v3977, %v3977
    %v4196 = vmul.f32 %v3982, %v3982
    %v4197 = vmul.f32 %v3987, %v3987
    %v4198 = vmul.f32 %v3992, %v3992
    %v4199 = vmul.f32 %v3997, %v3997
    %v4200 = vmul.f32 %v4002, %v4002
    %v4201 = vmul.f32 %v4007, %v4007
    %v4202 = vmul.f32 %v4012, %v4012
    %v4203 = vmul.f32 %v4017, %v4017
    %v4204 = vmul.f32 %v4022, %v4022
    %v4205 = vmul.f32 %v4027, %v4027
    %v4206 = vmul.f32 %v4032, %v4032
    %v4207 = vmul.f32 %v4037, %v4037
    %v4208 = vmul.f32 %v4042, %v4042
    %v4209 = vmul.f32 %v4047, %v4047
    %v4210 = vmul.f32 %v4052, %v4052
    %v4211 = vmul.f32 %v4057, %v4057
    %v4212 = vmul.f32 %v4062, %v4062
    %v4213 = vmul.f32 %v4067, %v4067
    %v4214 = vmul.f32 %v4072, %v4072
    %v4215 = vmul.f32 %v4077, %v4077
    %v4216 = vadd.f32 %v4152, %v4153
    %v4217 = vadd.f32 %v4216, %v4154
    %v4218 = vadd.f32 %v4217, %v4155
    %v4219 = vadd.f32 %v4218, %v4156
    %v4220 = vadd.f32 %v4219, %v4157
    %v4221 = vadd.f32 %v4220, %v4158
    %v4222 = vadd.f32 %v4221, %v4159
    %v4223 = vadd.f32 %v4222, %v4160
    %v4224 = vadd.f32 %v4223, %v4161
    %v4225 = vadd.f32 %v4224, %v4162
    %v4226 = vadd.f32 %v4225, %v4163
    %v4227 = vadd.f32 %v4226, %v4164
    %v4228 = vadd.f32 %v4227, %v4165
    %v4229 = vadd.f32 %v4228, %v4166
    %v4230 = vadd.f32 %v4229, %v4167
    %v4231 = vadd.f32 %v4230, %v4168
    %v4232 = vadd.f32 %v4231, %v4169
    %v4233 = vadd.f32 %v4232, %v4170
    %v4234 = vadd.f32 %v4233, %v4171
    %v4235 = vadd.f32 %v4234, %v4172
    %v4236 = vadd.f32 %v4235, %v4173
    %v4237 = vadd.f32 %v4236, %v4174
    %v4238 = vadd.f32 %v4237, %v4175
    %v4239 = vadd.f32 %v4238, %v4176
    %v4240 = vadd.f32 %v4239, %v4177
    %v4241 = vadd.f32 %v4240, %v4178
    %v4242 = vadd.f32 %v4241, %v4179
    %v4243 = vadd.f32 %v4242, %v4180
    %v4244 = vadd.f32 %v4243, %v4181
    %v4245 = vadd.f32 %v4244, %v4182
    %v4246 = vadd.f32 %v4245, %v4183
    %v4247 = vadd.f32 %v4246, %v4184
    %v4248 = vadd.f32 %v4247, %v4185
    %v4249 = vadd.f32 %v4248, %v4186
    %v4250 = vadd.f32 %v4249, %v4187
    %v4251 = vadd.f32 %v4250, %v4188
    %v4252 = vadd.f32 %v4251, %v4189
    %v4253 = vadd.f32 %v4252, %v4190
    %v4254 = vadd.f32 %v4253, %v4191
    %v4255 = vadd.f32 %v4254, %v4192
    %v4256 = vadd.f32 %v4255, %v4193
    %v4257 = vadd.f32 %v4256, %v4194
    %v4258 = vadd.f32 %v4257, %v4195
    %v4259 = vadd.f32 %v4258, %v4196
    %v4260 = vadd.f32 %v4259, %v4197
    %v4261 = vadd.f32 %v4260, %v4198
    %v4262 = vadd.f32 %v4261, %v4199
    %v4263 = vadd.f32 %v4262, %v4200
    %v4264 = vadd.f32 %v4263, %v4201
    %v4265 = vadd.f32 %v4264, %v4202
    %v4266 = vadd.f32 %v4265, %v4203
    %v4267 = vadd.f32 %v4266, %v4204
    %v4268 = vadd.f32 %v4267, %v4205
    %v4269 = vadd.f32 %v4268, %v4206
    %v4270 = vadd.f32 %v4269, %v4207
    %v4271 = vadd.f32 %v4270, %v4208
    %v4272 = vadd.f32 %v4271, %v4209
    %v4273 = vadd.f32 %v4272, %v4210
    %v4274 = vadd.f32 %v4273, %v4211
    %v4275 = vadd.f32 %v4274, %v4212
    %v4276 = vadd.f32 %v4275, %v4213
    %v4277 = vadd.f32 %v4276, %v4214
    %v4278 = vadd.f32 %v4277, %v4215
    %v4279 = vrot.slane %v4278, 4
    %v4280 = vadd.f32 %v4278, %v4279
    %v4281 = vrot.slane %v4280, 2
    %v4282 = vadd.f32 %v4280, %v4281
    %v4283 = vrot.slane %v4282, 1
    %v4284 = vadd.f32 %v4282, %v4283
    %v4285 = vmul.f32 %v4284, 0.001953125
    %v4286 = vmul.f32 %v4151, %v4151
    %v4287 = vsub.f32 %v4285, %v4286
    %v4288 = vmax.f32 %v4287, 0.0
    %v4289 = vadd.f32 %v4288, 1e-05
    %v4290 = vrsqrt.pop %v4289
    %v4291 = vmul.f32 %v4080, %v4290
    %v4292 = vmul.f32 %v4151, %v4291
    %v4293 = vsub.f32 %v4081, %v4292
    %v4295 = vlaneseq
    %v4296 = vshrl.u32 %v4295, 7
    %v4297 = vsub.s32 0, %v4296
    %v4298 = vrot.slane %v4291, %v4297
    %v4300 = vmul.f32 %v3762, %v4298
    %v4301 = vmul.f32 %v3767, %v4298
    %v4302 = vmul.f32 %v3772, %v4298
    %v4303 = vmul.f32 %v3777, %v4298
    %v4304 = vmul.f32 %v3782, %v4298
    %v4305 = vmul.f32 %v3787, %v4298
    %v4306 = vmul.f32 %v3792, %v4298
    %v4307 = vmul.f32 %v3797, %v4298
    %v4308 = vmul.f32 %v3802, %v4298
    %v4309 = vmul.f32 %v3807, %v4298
    %v4310 = vmul.f32 %v3812, %v4298
    %v4311 = vmul.f32 %v3817, %v4298
    %v4312 = vmul.f32 %v3822, %v4298
    %v4313 = vmul.f32 %v3827, %v4298
    %v4314 = vmul.f32 %v3832, %v4298
    %v4315 = vmul.f32 %v3837, %v4298
    %v4316 = vmul.f32 %v3842, %v4298
    %v4317 = vmul.f32 %v3847, %v4298
    %v4318 = vmul.f32 %v3852, %v4298
    %v4319 = vmul.f32 %v3857, %v4298
    %v4320 = vmul.f32 %v3862, %v4298
    %v4321 = vmul.f32 %v3867, %v4298
    %v4322 = vmul.f32 %v3872, %v4298
    %v4323 = vmul.f32 %v3877, %v4298
    %v4324 = vmul.f32 %v3882, %v4298
    %v4325 = vmul.f32 %v3887, %v4298
    %v4326 = vmul.f32 %v3892, %v4298
    %v4327 = vmul.f32 %v3897, %v4298
    %v4328 = vmul.f32 %v3902, %v4298
    %v4329 = vmul.f32 %v3907, %v4298
    %v4330 = vmul.f32 %v3912, %v4298
    %v4331 = vmul.f32 %v3917, %v4298
    %v4332 = vmul.f32 %v3922, %v4298
    %v4333 = vmul.f32 %v3927, %v4298
    %v4334 = vmul.f32 %v3932, %v4298
    %v4335 = vmul.f32 %v3937, %v4298
    %v4336 = vmul.f32 %v3942, %v4298
    %v4337 = vmul.f32 %v3947, %v4298
    %v4338 = vmul.f32 %v3952, %v4298
    %v4339 = vmul.f32 %v3957, %v4298
    %v4340 = vmul.f32 %v3962, %v4298
    %v4341 = vmul.f32 %v3967, %v4298
    %v4342 = vmul.f32 %v3972, %v4298
    %v4343 = vmul.f32 %v3977, %v4298
    %v4344 = vmul.f32 %v3982, %v4298
    %v4345 = vmul.f32 %v3987, %v4298
    %v4346 = vmul.f32 %v3992, %v4298
    %v4347 = vmul.f32 %v3997, %v4298
    %v4348 = vmul.f32 %v4002, %v4298
    %v4349 = vmul.f32 %v4007, %v4298
    %v4350 = vmul.f32 %v4012, %v4298
    %v4351 = vmul.f32 %v4017, %v4298
    %v4352 = vmul.f32 %v4022, %v4298
    %v4353 = vmul.f32 %v4027, %v4298
    %v4354 = vmul.f32 %v4032, %v4298
    %v4355 = vmul.f32 %v4037, %v4298
    %v4356 = vmul.f32 %v4042, %v4298
    %v4357 = vmul.f32 %v4047, %v4298
    %v4358 = vmul.f32 %v4052, %v4298
    %v4359 = vmul.f32 %v4057, %v4298
    %v4360 = vmul.f32 %v4062, %v4298
    %v4361 = vmul.f32 %v4067, %v4298
    %v4362 = vmul.f32 %v4072, %v4298
    %v4363 = vmul.f32 %v4077, %v4298
    %v4365 = vlaneseq
    %v4366 = vshrl.u32 %v4365, 7
    %v4367 = vsub.s32 0, %v4366
    %v4368 = vrot.slane %v4293, %v4367
    %v4370 = vadd.f32 %v4300, %v4368
    %v4371 = vadd.f32 %v4301, %v4368
    %v4372 = vadd.f32 %v4302, %v4368
    %v4373 = vadd.f32 %v4303, %v4368
    %v4374 = vadd.f32 %v4304, %v4368
    %v4375 = vadd.f32 %v4305, %v4368
    %v4376 = vadd.f32 %v4306, %v4368
    %v4377 = vadd.f32 %v4307, %v4368
    %v4378 = vadd.f32 %v4308, %v4368
    %v4379 = vadd.f32 %v4309, %v4368
    %v4380 = vadd.f32 %v4310, %v4368
    %v4381 = vadd.f32 %v4311, %v4368
    %v4382 = vadd.f32 %v4312, %v4368
    %v4383 = vadd.f32 %v4313, %v4368
    %v4384 = vadd.f32 %v4314, %v4368
    %v4385 = vadd.f32 %v4315, %v4368
    %v4386 = vadd.f32 %v4316, %v4368
    %v4387 = vadd.f32 %v4317, %v4368
    %v4388 = vadd.f32 %v4318, %v4368
    %v4389 = vadd.f32 %v4319, %v4368
    %v4390 = vadd.f32 %v4320, %v4368
    %v4391 = vadd.f32 %v4321, %v4368
    %v4392 = vadd.f32 %v4322, %v4368
    %v4393 = vadd.f32 %v4323, %v4368
    %v4394 = vadd.f32 %v4324, %v4368
    %v4395 = vadd.f32 %v4325, %v4368
    %v4396 = vadd.f32 %v4326, %v4368
    %v4397 = vadd.f32 %v4327, %v4368
    %v4398 = vadd.f32 %v4328, %v4368
    %v4399 = vadd.f32 %v4329, %v4368
    %v4400 = vadd.f32 %v4330, %v4368
    %v4401 = vadd.f32 %v4331, %v4368
    %v4402 = vadd.f32 %v4332, %v4368
    %v4403 = vadd.f32 %v4333, %v4368
    %v4404 = vadd.f32 %v4334, %v4368
    %v4405 = vadd.f32 %v4335, %v4368
    %v4406 = vadd.f32 %v4336, %v4368
    %v4407 = vadd.f32 %v4337, %v4368
    %v4408 = vadd.f32 %v4338, %v4368
    %v4409 = vadd.f32 %v4339, %v4368
    %v4410 = vadd.f32 %v4340, %v4368
    %v4411 = vadd.f32 %v4341, %v4368
    %v4412 = vadd.f32 %v4342, %v4368
    %v4413 = vadd.f32 %v4343, %v4368
    %v4414 = vadd.f32 %v4344, %v4368
    %v4415 = vadd.f32 %v4345, %v4368
    %v4416 = vadd.f32 %v4346, %v4368
    %v4417 = vadd.f32 %v4347, %v4368
    %v4418 = vadd.f32 %v4348, %v4368
    %v4419 = vadd.f32 %v4349, %v4368
    %v4420 = vadd.f32 %v4350, %v4368
    %v4421 = vadd.f32 %v4351, %v4368
    %v4422 = vadd.f32 %v4352, %v4368
    %v4423 = vadd.f32 %v4353, %v4368
    %v4424 = vadd.f32 %v4354, %v4368
    %v4425 = vadd.f32 %v4355, %v4368
    %v4426 = vadd.f32 %v4356, %v4368
    %v4427 = vadd.f32 %v4357, %v4368
    %v4428 = vadd.f32 %v4358, %v4368
    %v4429 = vadd.f32 %v4359, %v4368
    %v4430 = vadd.f32 %v4360, %v4368
    %v4431 = vadd.f32 %v4361, %v4368
    %v4432 = vadd.f32 %v4362, %v4368
    %v4433 = vadd.f32 %v4363, %v4368
    %v4434 = vmax.f32 %v4370, 0.0
    %v4435 = vmax.f32 %v4371, 0.0
    %v4436 = vmax.f32 %v4372, 0.0
    %v4437 = vmax.f32 %v4373, 0.0
    %v4438 = vmax.f32 %v4374, 0.0
    %v4439 = vmax.f32 %v4375, 0.0
    %v4440 = vmax.f32 %v4376, 0.0
    %v4441 = vmax.f32 %v4377, 0.0
    %v4442 = vmax.f32 %v4378, 0.0
    %v4443 = vmax.f32 %v4379, 0.0
    %v4444 = vmax.f32 %v4380, 0.0
    %v4445 = vmax.f32 %v4381, 0.0
    %v4446 = vmax.f32 %v4382, 0.0
    %v4447 = vmax.f32 %v4383, 0.0
    %v4448 = vmax.f32 %v4384, 0.0
    %v4449 = vmax.f32 %v4385, 0.0
    %v4450 = vmax.f32 %v4386, 0.0
    %v4451 = vmax.f32 %v4387, 0.0
    %v4452 = vmax.f32 %v4388, 0.0
    %v4453 = vmax.f32 %v4389, 0.0
    %v4454 = vmax.f32 %v4390, 0.0
    %v4455 = vmax.f32 %v4391, 0.0
    %v4456 = vmax.f32 %v4392, 0.0
    %v4457 = vmax.f32 %v4393, 0.0
    %v4458 = vmax.f32 %v4394, 0.0
    %v4459 = vmax.f32 %v4395, 0.0
    %v4460 = vmax.f32 %v4396, 0.0
    %v4461 = vmax.f32 %v4397, 0.0
    %v4462 = vmax.f32 %v4398, 0.0
    %v4463 = vmax.f32 %v4399, 0.0
    %v4464 = vmax.f32 %v4400, 0.0
    %v4465 = vmax.f32 %v4401, 0.0
    %v4466 = vmax.f32 %v4402, 0.0
    %v4467 = vmax.f32 %v4403, 0.0
    %v4468 = vmax.f32 %v4404, 0.0
    %v4469 = vmax.f32 %v4405, 0.0
    %v4470 = vmax.f32 %v4406, 0.0
    %v4471 = vmax.f32 %v4407, 0.0
    %v4472 = vmax.f32 %v4408, 0.0
    %v4473 = vmax.f32 %v4409, 0.0
    %v4474 = vmax.f32 %v4410, 0.0
    %v4475 = vmax.f32 %v4411, 0.0
    %v4476 = vmax.f32 %v4412, 0.0
    %v4477 = vmax.f32 %v4413, 0.0
    %v4478 = vmax.f32 %v4414, 0.0
    %v4479 = vmax.f32 %v4415, 0.0
    %v4480 = vmax.f32 %v4416, 0.0
    %v4481 = vmax.f32 %v4417, 0.0
    %v4482 = vmax.f32 %v4418, 0.0
    %v4483 = vmax.f32 %v4419, 0.0
    %v4484 = vmax.f32 %v4420, 0.0
    %v4485 = vmax.f32 %v4421, 0.0
    %v4486 = vmax.f32 %v4422, 0.0
    %v4487 = vmax.f32 %v4423, 0.0
    %v4488 = vmax.f32 %v4424, 0.0
    %v4489 = vmax.f32 %v4425, 0.0
    %v4490 = vmax.f32 %v4426, 0.0
    %v4491 = vmax.f32 %v4427, 0.0
    %v4492 = vmax.f32 %v4428, 0.0
    %v4493 = vmax.f32 %v4429, 0.0
    %v4494 = vmax.f32 %v4430, 0.0
    %v4495 = vmax.f32 %v4431, 0.0
    %v4496 = vmax.f32 %v4432, 0.0
    %v4497 = vmax.f32 %v4433, 0.0
    %4498 = vst [vmem:[#allocation3] sm:$0xff] 0.0
    %4499 = vst [vmem:[#allocation3 + $0x8] sm:$0xff] 0.0
    %4500 = vst [vmem:[#allocation3 + $0x10] sm:$0xf] 0.0
    %4501 = vst [vmem:[#allocation3 + $0x18] sm:$0xff] 0.0
    %4502 = vst [vmem:[#allocation3 + $0x20] sm:$0xff] 0.0
    %4503 = vst [vmem:[#allocation3 + $0x28] sm:$0xf] 0.0
    %4504 = vst [vmem:[#allocation3 + $0x1e0] sm:$0xff] 0.0
    %4505 = vst [vmem:[#allocation3 + $0x1e8] sm:$0xff] 0.0
    %4506 = vst [vmem:[#allocation3 + $0x1f0] sm:$0xf] 0.0
    %4507 = vst [vmem:[#allocation3 + $0x1f8] sm:$0xff] 0.0
    %4508 = vst [vmem:[#allocation3 + $0x200] sm:$0xff] 0.0
    %4509 = vst [vmem:[#allocation3 + $0x208] sm:$0xf] 0.0
    %s4510 = scalar_lea.vmem [#allocation3], 432
    %4511 = vst [vmem:[%s4510] sm:$0xff] 0.0
    %4512 = vst [vmem:[%s4510 + $0x8] sm:$0xff] 0.0
    %4513 = vst [vmem:[%s4510 + $0x10] sm:$0xf] 0.0
    %4514 = vst [vmem:[%s4510 + $0x18] sm:$0xff] 0.0
    %4515 = vst [vmem:[%s4510 + $0x20] sm:$0xff] 0.0
    %4516 = vst [vmem:[%s4510 + $0x28] sm:$0xf] 0.0
    %4517 = vst [vmem:[%s4510 + $0x1e0] sm:$0xff] 0.0
    %4518 = vst [vmem:[%s4510 + $0x1e8] sm:$0xff] 0.0
    %4519 = vst [vmem:[%s4510 + $0x1f0] sm:$0xf] 0.0
    %4520 = vst [vmem:[%s4510 + $0x1f8] sm:$0xff] 0.0
    %4521 = vst [vmem:[%s4510 + $0x200] sm:$0xff] 0.0
    %4522 = vst [vmem:[%s4510 + $0x208] sm:$0xf] 0.0
    %4523 = vst [vmem:[#allocation3] sm:$0x3] 0.0
    %4524 = vst [vmem:[#allocation3 + $0x18] sm:$0x3] 0.0
    %4525 = vst [vmem:[#allocation3 + $0x30] sm:$0x3] 0.0
    %4526 = vst [vmem:[#allocation3 + $0x48] sm:$0x3] 0.0
    %4527 = vst [vmem:[#allocation3 + $0x60] sm:$0x3] 0.0
    %4528 = vst [vmem:[#allocation3 + $0x78] sm:$0x3] 0.0
    %4529 = vst [vmem:[#allocation3 + $0x90] sm:$0x3] 0.0
    %4530 = vst [vmem:[#allocation3 + $0xa8] sm:$0x3] 0.0
    %4531 = vst [vmem:[#allocation3 + $0xc0] sm:$0x3] 0.0
    %4532 = vst [vmem:[#allocation3 + $0xd8] sm:$0x3] 0.0
    %4533 = vst [vmem:[#allocation3 + $0xf0] sm:$0x3] 0.0
    %4534 = vst [vmem:[#allocation3 + $0x108] sm:$0x3] 0.0
    %4535 = vst [vmem:[#allocation3 + $0x120] sm:$0x3] 0.0
    %4536 = vst [vmem:[#allocation3 + $0x138] sm:$0x3] 0.0
    %4537 = vst [vmem:[#allocation3 + $0x150] sm:$0x3] 0.0
    %4538 = vst [vmem:[#allocation3 + $0x168] sm:$0x3] 0.0
    %4539 = vst [vmem:[#allocation3 + $0x180] sm:$0x3] 0.0
    %4540 = vst [vmem:[#allocation3 + $0x198] sm:$0x3] 0.0
    %4541 = vst [vmem:[#allocation3 + $0x1b0] sm:$0x3] 0.0
    %4542 = vst [vmem:[#allocation3 + $0x1c8] sm:$0x3] 0.0
    %4543 = vst [vmem:[#allocation3 + $0x1e0] sm:$0x3] 0.0
    %4544 = vst [vmem:[#allocation3 + $0x1f8] sm:$0x3] 0.0
    %4545 = vst [vmem:[#allocation3 + $0x210] sm:$0x3] 0.0
    %4546 = vst [vmem:[#allocation3 + $0x228] sm:$0x3] 0.0
    %4547 = vst [vmem:[#allocation3 + $0x240] sm:$0x3] 0.0
    %4548 = vst [vmem:[#allocation3 + $0x258] sm:$0x3] 0.0
    %4549 = vst [vmem:[#allocation3 + $0x270] sm:$0x3] 0.0
    %4550 = vst [vmem:[#allocation3 + $0x288] sm:$0x3] 0.0
    %4551 = vst [vmem:[#allocation3 + $0x2a0] sm:$0x3] 0.0
    %4552 = vst [vmem:[#allocation3 + $0x2b8] sm:$0x3] 0.0
    %4553 = vst [vmem:[#allocation3 + $0x2d0] sm:$0x3] 0.0
    %4554 = vst [vmem:[#allocation3 + $0x2e8] sm:$0x3] 0.0
    %4555 = vst [vmem:[#allocation3 + $0x300] sm:$0x3] 0.0
    %4556 = vst [vmem:[#allocation3 + $0x318] sm:$0x3] 0.0
    %4557 = vst [vmem:[#allocation3 + $0x330] sm:$0x3] 0.0
    %4558 = vst [vmem:[#allocation3 + $0x348] sm:$0x3] 0.0
    %4559 = vst [vmem:[#allocation3 + $0x360] sm:$0x3] 0.0
    %4560 = vst [vmem:[#allocation3 + $0x378] sm:$0x3] 0.0
    %4561 = vst [vmem:[#allocation3 + $0x390] sm:$0x3] 0.0
    %4562 = vst [vmem:[#allocation3 + $0x3a8] sm:$0x3] 0.0
    %4563 = vst [vmem:[#allocation3 + $0x12] sm:$0x3] 0.0
    %4564 = vst [vmem:[#allocation3 + $0x2a] sm:$0x3] 0.0
    %4565 = vst [vmem:[#allocation3 + $0x42] sm:$0x3] 0.0
    %4566 = vst [vmem:[#allocation3 + $0x5a] sm:$0x3] 0.0
    %4567 = vst [vmem:[#allocation3 + $0x72] sm:$0x3] 0.0
    %4568 = vst [vmem:[#allocation3 + $0x8a] sm:$0x3] 0.0
    %4569 = vst [vmem:[#allocation3 + $0xa2] sm:$0x3] 0.0
    %4570 = vst [vmem:[#allocation3 + $0xba] sm:$0x3] 0.0
    %4571 = vst [vmem:[#allocation3 + $0xd2] sm:$0x3] 0.0
    %4572 = vst [vmem:[#allocation3 + $0xea] sm:$0x3] 0.0
    %4573 = vst [vmem:[#allocation3 + $0x102] sm:$0x3] 0.0
    %4574 = vst [vmem:[#allocation3 + $0x11a] sm:$0x3] 0.0
    %4575 = vst [vmem:[#allocation3 + $0x132] sm:$0x3] 0.0
    %4576 = vst [vmem:[#allocation3 + $0x14a] sm:$0x3] 0.0
    %4577 = vst [vmem:[#allocation3 + $0x162] sm:$0x3] 0.0
    %4578 = vst [vmem:[#allocation3 + $0x17a] sm:$0x3] 0.0
    %4579 = vst [vmem:[#allocation3 + $0x192] sm:$0x3] 0.0
    %4580 = vst [vmem:[#allocation3 + $0x1aa] sm:$0x3] 0.0
    %4581 = vst [vmem:[#allocation3 + $0x1c2] sm:$0x3] 0.0
    %4582 = vst [vmem:[#allocation3 + $0x1da] sm:$0x3] 0.0
    %4583 = vst [vmem:[#allocation3 + $0x1f2] sm:$0x3] 0.0
    %4584 = vst [vmem:[#allocation3 + $0x20a] sm:$0x3] 0.0
    %4585 = vst [vmem:[#allocation3 + $0x222] sm:$0x3] 0.0
    %4586 = vst [vmem:[#allocation3 + $0x23a] sm:$0x3] 0.0
    %4587 = vst [vmem:[#allocation3 + $0x252] sm:$0x3] 0.0
    %4588 = vst [vmem:[#allocation3 + $0x26a] sm:$0x3] 0.0
    %4589 = vst [vmem:[#allocation3 + $0x282] sm:$0x3] 0.0
    %4590 = vst [vmem:[#allocation3 + $0x29a] sm:$0x3] 0.0
    %4591 = vst [vmem:[#allocation3 + $0x2b2] sm:$0x3] 0.0
    %4592 = vst [vmem:[#allocation3 + $0x2ca] sm:$0x3] 0.0
    %4593 = vst [vmem:[#allocation3 + $0x2e2] sm:$0x3] 0.0
    %4594 = vst [vmem:[#allocation3 + $0x2fa] sm:$0x3] 0.0
    %4595 = vst [vmem:[#allocation3 + $0x312] sm:$0x3] 0.0
    %4596 = vst [vmem:[#allocation3 + $0x32a] sm:$0x3] 0.0
    %4597 = vst [vmem:[#allocation3 + $0x342] sm:$0x3] 0.0
    %4598 = vst [vmem:[#allocation3 + $0x35a] sm:$0x3] 0.0
    %4599 = vst [vmem:[#allocation3 + $0x372] sm:$0x3] 0.0
    %4600 = vst [vmem:[#allocation3 + $0x38a] sm:$0x3] 0.0
    %4601 = vst [vmem:[#allocation3 + $0x3a2] sm:$0x3] 0.0
    %4602 = vst [vmem:[#allocation3 + $0x3ba] sm:$0x3] 0.0
    %s4603 = scalar_lea.vmem [#allocation3], 48
    %4604 = vst [vmem:[%s4603 + $0x2] sm:$0xff] %v4434
    %4605 = vst [vmem:[%s4603 + $0xa] sm:$0xff] %v4435
    %4606 = vst [vmem:[%s4603 + $0x1a] sm:$0xff] %v4436
    %4607 = vst [vmem:[%s4603 + $0x22] sm:$0xff] %v4437
    %4608 = vst [vmem:[%s4603 + $0x32] sm:$0xff] %v4438
    %4609 = vst [vmem:[%s4603 + $0x3a] sm:$0xff] %v4439
    %4610 = vst [vmem:[%s4603 + $0x4a] sm:$0xff] %v4440
    %4611 = vst [vmem:[%s4603 + $0x52] sm:$0xff] %v4441
    %4612 = vst [vmem:[%s4603 + $0x62] sm:$0xff] %v4442
    %4613 = vst [vmem:[%s4603 + $0x6a] sm:$0xff] %v4443
    %4614 = vst [vmem:[%s4603 + $0x7a] sm:$0xff] %v4444
    %4615 = vst [vmem:[%s4603 + $0x82] sm:$0xff] %v4445
    %4616 = vst [vmem:[%s4603 + $0x92] sm:$0xff] %v4446
    %4617 = vst [vmem:[%s4603 + $0x9a] sm:$0xff] %v4447
    %4618 = vst [vmem:[%s4603 + $0xaa] sm:$0xff] %v4448
    %4619 = vst [vmem:[%s4603 + $0xb2] sm:$0xff] %v4449
    %4620 = vst [vmem:[%s4603 + $0xc2] sm:$0xff] %v4450
    %4621 = vst [vmem:[%s4603 + $0xca] sm:$0xff] %v4451
    %4622 = vst [vmem:[%s4603 + $0xda] sm:$0xff] %v4452
    %4623 = vst [vmem:[%s4603 + $0xe2] sm:$0xff] %v4453
    %4624 = vst [vmem:[%s4603 + $0xf2] sm:$0xff] %v4454
    %4625 = vst [vmem:[%s4603 + $0xfa] sm:$0xff] %v4455
    %4626 = vst [vmem:[%s4603 + $0x10a] sm:$0xff] %v4456
    %4627 = vst [vmem:[%s4603 + $0x112] sm:$0xff] %v4457
    %4628 = vst [vmem:[%s4603 + $0x122] sm:$0xff] %v4458
    %4629 = vst [vmem:[%s4603 + $0x12a] sm:$0xff] %v4459
    %4630 = vst [vmem:[%s4603 + $0x13a] sm:$0xff] %v4460
    %4631 = vst [vmem:[%s4603 + $0x142] sm:$0xff] %v4461
    %4632 = vst [vmem:[%s4603 + $0x152] sm:$0xff] %v4462
    %4633 = vst [vmem:[%s4603 + $0x15a] sm:$0xff] %v4463
    %4634 = vst [vmem:[%s4603 + $0x16a] sm:$0xff] %v4464
    %4635 = vst [vmem:[%s4603 + $0x172] sm:$0xff] %v4465
    %4636 = vst [vmem:[%s4603 + $0x1e2] sm:$0xff] %v4466
    %4637 = vst [vmem:[%s4603 + $0x1ea] sm:$0xff] %v4467
    %4638 = vst [vmem:[%s4603 + $0x1fa] sm:$0xff] %v4468
    %4639 = vst [vmem:[%s4603 + $0x202] sm:$0xff] %v4469
    %4640 = vst [vmem:[%s4603 + $0x212] sm:$0xff] %v4470
    %4641 = vst [vmem:[%s4603 + $0x21a] sm:$0xff] %v4471
    %4642 = vst [vmem:[%s4603 + $0x22a] sm:$0xff] %v4472
    %4643 = vst [vmem:[%s4603 + $0x232] sm:$0xff] %v4473
    %4644 = vst [vmem:[%s4603 + $0x242] sm:$0xff] %v4474
    %4645 = vst [vmem:[%s4603 + $0x24a] sm:$0xff] %v4475
    %4646 = vst [vmem:[%s4603 + $0x25a] sm:$0xff] %v4476
    %4647 = vst [vmem:[%s4603 + $0x262] sm:$0xff] %v4477
    %4648 = vst [vmem:[%s4603 + $0x272] sm:$0xff] %v4478
    %4649 = vst [vmem:[%s4603 + $0x27a] sm:$0xff] %v4479
    %4650 = vst [vmem:[%s4603 + $0x28a] sm:$0xff] %v4480
    %4651 = vst [vmem:[%s4603 + $0x292] sm:$0xff] %v4481
    %4652 = vst [vmem:[%s4603 + $0x2a2] sm:$0xff] %v4482
    %4653 = vst [vmem:[%s4603 + $0x2aa] sm:$0xff] %v4483
    %4654 = vst [vmem:[%s4603 + $0x2ba] sm:$0xff] %v4484
    %4655 = vst [vmem:[%s4603 + $0x2c2] sm:$0xff] %v4485
    %4656 = vst [vmem:[%s4603 + $0x2d2] sm:$0xff] %v4486
    %4657 = vst [vmem:[%s4603 + $0x2da] sm:$0xff] %v4487
    %4658 = vst [vmem:[%s4603 + $0x2ea] sm:$0xff] %v4488
    %4659 = vst [vmem:[%s4603 + $0x2f2] sm:$0xff] %v4489
    %4660 = vst [vmem:[%s4603 + $0x302] sm:$0xff] %v4490
    %4661 = vst [vmem:[%s4603 + $0x30a] sm:$0xff] %v4491
    %4662 = vst [vmem:[%s4603 + $0x31a] sm:$0xff] %v4492
    %4663 = vst [vmem:[%s4603 + $0x322] sm:$0xff] %v4493
    %4664 = vst [vmem:[%s4603 + $0x332] sm:$0xff] %v4494
    %4665 = vst [vmem:[%s4603 + $0x33a] sm:$0xff] %v4495
    %4666 = vst [vmem:[%s4603 + $0x34a] sm:$0xff] %v4496
    %4667 = vst [vmem:[%s4603 + $0x352] sm:$0xff] %v4497
    %v4668 = vld [vmem:[#allocation3] sm:$0xff]
    %v4669 = vld [vmem:[#allocation3 + $0x8] sm:$0xff]
    %v4670 = vld [vmem:[#allocation3 + $0x18] sm:$0xff]
    %v4671 = vld [vmem:[#allocation3 + $0x20] sm:$0xff]
    %v4672 = vld [vmem:[#allocation3 + $0x30] sm:$0xff]
    %v4673 = vld [vmem:[#allocation3 + $0x38] sm:$0xff]
    %v4674 = vld [vmem:[#allocation3 + $0x48] sm:$0xff]
    %v4675 = vld [vmem:[#allocation3 + $0x50] sm:$0xff]
    %v4676 = vld [vmem:[#allocation3 + $0x60] sm:$0xff]
    %v4677 = vld [vmem:[#allocation3 + $0x68] sm:$0xff]
    %v4678 = vld [vmem:[#allocation3 + $0x78] sm:$0xff]
    %v4679 = vld [vmem:[#allocation3 + $0x80] sm:$0xff]
    %v4680 = vld [vmem:[#allocation3 + $0x90] sm:$0xff]
    %v4681 = vld [vmem:[#allocation3 + $0x98] sm:$0xff]
    %v4682 = vld [vmem:[#allocation3 + $0xa8] sm:$0xff]
    %v4683 = vld [vmem:[#allocation3 + $0xb0] sm:$0xff]
    %v4684 = vld [vmem:[#allocation3 + $0xc0] sm:$0xff]
    %v4685 = vld [vmem:[#allocation3 + $0xc8] sm:$0xff]
    %v4686 = vld [vmem:[#allocation3 + $0xd8] sm:$0xff]
    %v4687 = vld [vmem:[#allocation3 + $0xe0] sm:$0xff]
    %v4688 = vld [vmem:[#allocation3 + $0xf0] sm:$0xff]
    %v4689 = vld [vmem:[#allocation3 + $0xf8] sm:$0xff]
    %v4690 = vld [vmem:[#allocation3 + $0x108] sm:$0xff]
    %v4691 = vld [vmem:[#allocation3 + $0x110] sm:$0xff]
    %v4692 = vld [vmem:[#allocation3 + $0x120] sm:$0xff]
    %v4693 = vld [vmem:[#allocation3 + $0x128] sm:$0xff]
    %v4694 = vld [vmem:[#allocation3 + $0x138] sm:$0xff]
    %v4695 = vld [vmem:[#allocation3 + $0x140] sm:$0xff]
    %v4696 = vld [vmem:[#allocation3 + $0x150] sm:$0xff]
    %v4697 = vld [vmem:[#allocation3 + $0x158] sm:$0xff]
    %v4698 = vld [vmem:[#allocation3 + $0x168] sm:$0xff]
    %v4699 = vld [vmem:[#allocation3 + $0x170] sm:$0xff]
    %v4700 = vld [vmem:[#allocation3 + $0x1e0] sm:$0xff]
    %v4701 = vld [vmem:[#allocation3 + $0x1e8] sm:$0xff]
    %v4702 = vld [vmem:[#allocation3 + $0x1f8] sm:$0xff]
    %v4703 = vld [vmem:[#allocation3 + $0x200] sm:$0xff]
    %v4704 = vld [vmem:[#allocation3 + $0x210] sm:$0xff]
    %v4705 = vld [vmem:[#allocation3 + $0x218] sm:$0xff]
    %v4706 = vld [vmem:[#allocation3 + $0x228] sm:$0xff]
    %v4707 = vld [vmem:[#allocation3 + $0x230] sm:$0xff]
    %v4708 = vld [vmem:[#allocation3 + $0x240] sm:$0xff]
    %v4709 = vld [vmem:[#allocation3 + $0x248] sm:$0xff]
    %v4710 = vld [vmem:[#allocation3 + $0x258] sm:$0xff]
    %v4711 = vld [vmem:[#allocation3 + $0x260] sm:$0xff]
    %v4712 = vld [vmem:[#allocation3 + $0x270] sm:$0xff]
    %v4713 = vld [vmem:[#allocation3 + $0x278] sm:$0xff]
    %v4714 = vld [vmem:[#allocation3 + $0x288] sm:$0xff]
    %v4715 = vld [vmem:[#allocation3 + $0x290] sm:$0xff]
    %v4716 = vld [vmem:[#allocation3 + $0x2a0] sm:$0xff]
    %v4717 = vld [vmem:[#allocation3 + $0x2a8] sm:$0xff]
    %v4718 = vld [vmem:[#allocation3 + $0x2b8] sm:$0xff]
    %v4719 = vld [vmem:[#allocation3 + $0x2c0] sm:$0xff]
    %v4720 = vld [vmem:[#allocation3 + $0x2d0] sm:$0xff]
    %v4721 = vld [vmem:[#allocation3 + $0x2d8] sm:$0xff]
    %v4722 = vld [vmem:[#allocation3 + $0x2e8] sm:$0xff]
    %v4723 = vld [vmem:[#allocation3 + $0x2f0] sm:$0xff]
    %v4724 = vld [vmem:[#allocation3 + $0x300] sm:$0xff]
    %v4725 = vld [vmem:[#allocation3 + $0x308] sm:$0xff]
    %v4726 = vld [vmem:[#allocation3 + $0x318] sm:$0xff]
    %v4727 = vld [vmem:[#allocation3 + $0x320] sm:$0xff]
    %v4728 = vld [vmem:[#allocation3 + $0x330] sm:$0xff]
    %v4729 = vld [vmem:[#allocation3 + $0x338] sm:$0xff]
    %v4730 = vld [vmem:[#allocation3 + $0x348] sm:$0xff]
    %v4731 = vld [vmem:[#allocation3 + $0x350] sm:$0xff]
    %4732 = vst [vmem:[#allocation4] sm:$0xff] %v4668
    %4733 = vst [vmem:[#allocation4 + $0x48] sm:$0xff] %v4669
    %4734 = vst [vmem:[#allocation4 + $0x90] sm:$0xff] %v4670
    %4735 = vst [vmem:[#allocation4 + $0xd8] sm:$0xff] %v4671
    %4736 = vst [vmem:[#allocation4 + $0x120] sm:$0xff] %v4672
    %4737 = vst [vmem:[#allocation4 + $0x168] sm:$0xff] %v4673
    %4738 = vst [vmem:[#allocation4 + $0x1b0] sm:$0xff] %v4674
    %4739 = vst [vmem:[#allocation4 + $0x1f8] sm:$0xff] %v4675
    %4740 = vst [vmem:[#allocation4 + $0x240] sm:$0xff] %v4676
    %4741 = vst [vmem:[#allocation4 + $0x288] sm:$0xff] %v4677
    %4742 = vst [vmem:[#allocation4 + $0x2d0] sm:$0xff] %v4678
    %4743 = vst [vmem:[#allocation4 + $0x318] sm:$0xff] %v4679
    %4744 = vst [vmem:[#allocation4 + $0x360] sm:$0xff] %v4680
    %4745 = vst [vmem:[#allocation4 + $0x3a8] sm:$0xff] %v4681
    %4746 = vst [vmem:[#allocation4 + $0x3f0] sm:$0xff] %v4682
    %4747 = vst [vmem:[#allocation4 + $0x438] sm:$0xff] %v4683
    %4748 = vst [vmem:[#allocation4 + $0x480] sm:$0xff] %v4684
    %4749 = vst [vmem:[#allocation4 + $0x4c8] sm:$0xff] %v4685
    %4750 = vst [vmem:[#allocation4 + $0x510] sm:$0xff] %v4686
    %4751 = vst [vmem:[#allocation4 + $0x558] sm:$0xff] %v4687
    %4752 = vst [vmem:[#allocation4 + $0x5a0] sm:$0xff] %v4688
    %4753 = vst [vmem:[#allocation4 + $0x5e8] sm:$0xff] %v4689
    %4754 = vst [vmem:[#allocation4 + $0x630] sm:$0xff] %v4690
    %4755 = vst [vmem:[#allocation4 + $0x678] sm:$0xff] %v4691
    %4756 = vst [vmem:[#allocation4 + $0x6c0] sm:$0xff] %v4692
    %4757 = vst [vmem:[#allocation4 + $0x708] sm:$0xff] %v4693
    %4758 = vst [vmem:[#allocation4 + $0x750] sm:$0xff] %v4694
    %4759 = vst [vmem:[#allocation4 + $0x798] sm:$0xff] %v4695
    %4760 = vst [vmem:[#allocation4 + $0x7e0] sm:$0xff] %v4696
    %4761 = vst [vmem:[#allocation4 + $0x828] sm:$0xff] %v4697
    %4762 = vst [vmem:[#allocation4 + $0x870] sm:$0xff] %v4698
    %4763 = vst [vmem:[#allocation4 + $0x8b8] sm:$0xff] %v4699
    %4764 = vst [vmem:[#allocation4 + $0x900] sm:$0xff] %v4700
    %4765 = vst [vmem:[#allocation4 + $0x948] sm:$0xff] %v4701
    %4766 = vst [vmem:[#allocation4 + $0x990] sm:$0xff] %v4702
    %4767 = vst [vmem:[#allocation4 + $0x9d8] sm:$0xff] %v4703
    %4768 = vst [vmem:[#allocation4 + $0xa20] sm:$0xff] %v4704
    %4769 = vst [vmem:[#allocation4 + $0xa68] sm:$0xff] %v4705
    %4770 = vst [vmem:[#allocation4 + $0xab0] sm:$0xff] %v4706
    %4771 = vst [vmem:[#allocation4 + $0xaf8] sm:$0xff] %v4707
    %4772 = vst [vmem:[#allocation4 + $0xb40] sm:$0xff] %v4708
    %4773 = vst [vmem:[#allocation4 + $0xb88] sm:$0xff] %v4709
    %4774 = vst [vmem:[#allocation4 + $0xbd0] sm:$0xff] %v4710
    %4775 = vst [vmem:[#allocation4 + $0xc18] sm:$0xff] %v4711
    %4776 = vst [vmem:[#allocation4 + $0xc60] sm:$0xff] %v4712
    %4777 = vst [vmem:[#allocation4 + $0xca8] sm:$0xff] %v4713
    %4778 = vst [vmem:[#allocation4 + $0xcf0] sm:$0xff] %v4714
    %4779 = vst [vmem:[#allocation4 + $0xd38] sm:$0xff] %v4715
    %4780 = vst [vmem:[#allocation4 + $0xd80] sm:$0xff] %v4716
    %4781 = vst [vmem:[#allocation4 + $0xdc8] sm:$0xff] %v4717
    %4782 = vst [vmem:[#allocation4 + $0xe10] sm:$0xff] %v4718
    %4783 = vst [vmem:[#allocation4 + $0xe58] sm:$0xff] %v4719
    %4784 = vst [vmem:[#allocation4 + $0xea0] sm:$0xff] %v4720
    %4785 = vst [vmem:[#allocation4 + $0xee8] sm:$0xff] %v4721
    %4786 = vst [vmem:[#allocation4 + $0xf30] sm:$0xff] %v4722
    %4787 = vst [vmem:[#allocation4 + $0xf78] sm:$0xff] %v4723
    %4788 = vst [vmem:[#allocation4 + $0xfc0] sm:$0xff] %v4724
    %4789 = vst [vmem:[#allocation4 + $0x1008] sm:$0xff] %v4725
    %4790 = vst [vmem:[#allocation4 + $0x1050] sm:$0xff] %v4726
    %4791 = vst [vmem:[#allocation4 + $0x1098] sm:$0xff] %v4727
    %4792 = vst [vmem:[#allocation4 + $0x10e0] sm:$0xff] %v4728
    %4793 = vst [vmem:[#allocation4 + $0x1128] sm:$0xff] %v4729
    %4794 = vst [vmem:[#allocation4 + $0x1170] sm:$0xff] %v4730
    %4795 = vst [vmem:[#allocation4 + $0x11b8] sm:$0xff] %v4731
    %v4796 = vld [vmem:[#allocation3 + $0x2] sm:$0xff]
    %v4797 = vld [vmem:[#allocation3 + $0xa] sm:$0xff]
    %v4798 = vld [vmem:[#allocation3 + $0x1a] sm:$0xff]
    %v4799 = vld [vmem:[#allocation3 + $0x22] sm:$0xff]
    %v4800 = vld [vmem:[#allocation3 + $0x32] sm:$0xff]
    %v4801 = vld [vmem:[#allocation3 + $0x3a] sm:$0xff]
    %v4802 = vld [vmem:[#allocation3 + $0x4a] sm:$0xff]
    %v4803 = vld [vmem:[#allocation3 + $0x52] sm:$0xff]
    %v4804 = vld [vmem:[#allocation3 + $0x62] sm:$0xff]
    %v4805 = vld [vmem:[#allocation3 + $0x6a] sm:$0xff]
    %v4806 = vld [vmem:[#allocation3 + $0x7a] sm:$0xff]
    %v4807 = vld [vmem:[#allocation3 + $0x82] sm:$0xff]
    %v4808 = vld [vmem:[#allocation3 + $0x92] sm:$0xff]
    %v4809 = vld [vmem:[#allocation3 + $0x9a] sm:$0xff]
    %v4810 = vld [vmem:[#allocation3 + $0xaa] sm:$0xff]
    %v4811 = vld [vmem:[#allocation3 + $0xb2] sm:$0xff]
    %v4812 = vld [vmem:[#allocation3 + $0xc2] sm:$0xff]
    %v4813 = vld [vmem:[#allocation3 + $0xca] sm:$0xff]
    %v4814 = vld [vmem:[#allocation3 + $0xda] sm:$0xff]
    %v4815 = vld [vmem:[#allocation3 + $0xe2] sm:$0xff]
    %v4816 = vld [vmem:[#allocation3 + $0xf2] sm:$0xff]
    %v4817 = vld [vmem:[#allocation3 + $0xfa] sm:$0xff]
    %v4818 = vld [vmem:[#allocation3 + $0x10a] sm:$0xff]
    %v4819 = vld [vmem:[#allocation3 + $0x112] sm:$0xff]
    %v4820 = vld [vmem:[#allocation3 + $0x122] sm:$0xff]
    %v4821 = vld [vmem:[#allocation3 + $0x12a] sm:$0xff]
    %v4822 = vld [vmem:[#allocation3 + $0x13a] sm:$0xff]
    %v4823 = vld [vmem:[#allocation3 + $0x142] sm:$0xff]
    %v4824 = vld [vmem:[#allocation3 + $0x152] sm:$0xff]
    %v4825 = vld [vmem:[#allocation3 + $0x15a] sm:$0xff]
    %v4826 = vld [vmem:[#allocation3 + $0x16a] sm:$0xff]
    %v4827 = vld [vmem:[#allocation3 + $0x172] sm:$0xff]
    %v4828 = vld [vmem:[#allocation3 + $0x1e2] sm:$0xff]
    %v4829 = vld [vmem:[#allocation3 + $0x1ea] sm:$0xff]
    %v4830 = vld [vmem:[#allocation3 + $0x1fa] sm:$0xff]
    %v4831 = vld [vmem:[#allocation3 + $0x202] sm:$0xff]
    %v4832 = vld [vmem:[#allocation3 + $0x212] sm:$0xff]
    %v4833 = vld [vmem:[#allocation3 + $0x21a] sm:$0xff]
    %v4834 = vld [vmem:[#allocation3 + $0x22a] sm:$0xff]
    %v4835 = vld [vmem:[#allocation3 + $0x232] sm:$0xff]
    %v4836 = vld [vmem:[#allocation3 + $0x242] sm:$0xff]
    %v4837 = vld [vmem:[#allocation3 + $0x24a] sm:$0xff]
    %v4838 = vld [vmem:[#allocation3 + $0x25a] sm:$0xff]
    %v4839 = vld [vmem:[#allocation3 + $0x262] sm:$0xff]
    %v4840 = vld [vmem:[#allocation3 + $0x272] sm:$0xff]
    %v4841 = vld [vmem:[#allocation3 + $0x27a] sm:$0xff]
    %v4842 = vld [vmem:[#allocation3 + $0x28a] sm:$0xff]
    %v4843 = vld [vmem:[#allocation3 + $0x292] sm:$0xff]
    %v4844 = vld [vmem:[#allocation3 + $0x2a2] sm:$0xff]
    %v4845 = vld [vmem:[#allocation3 + $0x2aa] sm:$0xff]
    %v4846 = vld [vmem:[#allocation3 + $0x2ba] sm:$0xff]
    %v4847 = vld [vmem:[#allocation3 + $0x2c2] sm:$0xff]
    %v4848 = vld [vmem:[#allocation3 + $0x2d2] sm:$0xff]
    %v4849 = vld [vmem:[#allocation3 + $0x2da] sm:$0xff]
    %v4850 = vld [vmem:[#allocation3 + $0x2ea] sm:$0xff]
    %v4851 = vld [vmem:[#allocation3 + $0x2f2] sm:$0xff]
    %v4852 = vld [vmem:[#allocation3 + $0x302] sm:$0xff]
    %v4853 = vld [vmem:[#allocation3 + $0x30a] sm:$0xff]
    %v4854 = vld [vmem:[#allocation3 + $0x31a] sm:$0xff]
    %v4855 = vld [vmem:[#allocation3 + $0x322] sm:$0xff]
    %v4856 = vld [vmem:[#allocation3 + $0x332] sm:$0xff]
    %v4857 = vld [vmem:[#allocation3 + $0x33a] sm:$0xff]
    %v4858 = vld [vmem:[#allocation3 + $0x34a] sm:$0xff]
    %v4859 = vld [vmem:[#allocation3 + $0x352] sm:$0xff]
    %4860 = vst [vmem:[#allocation4 + $0x8] sm:$0xff] %v4796
    %4861 = vst [vmem:[#allocation4 + $0x50] sm:$0xff] %v4797
    %4862 = vst [vmem:[#allocation4 + $0x98] sm:$0xff] %v4798
    %4863 = vst [vmem:[#allocation4 + $0xe0] sm:$0xff] %v4799
    %4864 = vst [vmem:[#allocation4 + $0x128] sm:$0xff] %v4800
    %4865 = vst [vmem:[#allocation4 + $0x170] sm:$0xff] %v4801
    %4866 = vst [vmem:[#allocation4 + $0x1b8] sm:$0xff] %v4802
    %4867 = vst [vmem:[#allocation4 + $0x200] sm:$0xff] %v4803
    %4868 = vst [vmem:[#allocation4 + $0x248] sm:$0xff] %v4804
    %4869 = vst [vmem:[#allocation4 + $0x290] sm:$0xff] %v4805
    %4870 = vst [vmem:[#allocation4 + $0x2d8] sm:$0xff] %v4806
    %4871 = vst [vmem:[#allocation4 + $0x320] sm:$0xff] %v4807
    %4872 = vst [vmem:[#allocation4 + $0x368] sm:$0xff] %v4808
    %4873 = vst [vmem:[#allocation4 + $0x3b0] sm:$0xff] %v4809
    %4874 = vst [vmem:[#allocation4 + $0x3f8] sm:$0xff] %v4810
    %4875 = vst [vmem:[#allocation4 + $0x440] sm:$0xff] %v4811
    %4876 = vst [vmem:[#allocation4 + $0x488] sm:$0xff] %v4812
    %4877 = vst [vmem:[#allocation4 + $0x4d0] sm:$0xff] %v4813
    %4878 = vst [vmem:[#allocation4 + $0x518] sm:$0xff] %v4814
    %4879 = vst [vmem:[#allocation4 + $0x560] sm:$0xff] %v4815
    %4880 = vst [vmem:[#allocation4 + $0x5a8] sm:$0xff] %v4816
    %4881 = vst [vmem:[#allocation4 + $0x5f0] sm:$0xff] %v4817
    %4882 = vst [vmem:[#allocation4 + $0x638] sm:$0xff] %v4818
    %4883 = vst [vmem:[#allocation4 + $0x680] sm:$0xff] %v4819
    %4884 = vst [vmem:[#allocation4 + $0x6c8] sm:$0xff] %v4820
    %4885 = vst [vmem:[#allocation4 + $0x710] sm:$0xff] %v4821
    %4886 = vst [vmem:[#allocation4 + $0x758] sm:$0xff] %v4822
    %4887 = vst [vmem:[#allocation4 + $0x7a0] sm:$0xff] %v4823
    %4888 = vst [vmem:[#allocation4 + $0x7e8] sm:$0xff] %v4824
    %4889 = vst [vmem:[#allocation4 + $0x830] sm:$0xff] %v4825
    %4890 = vst [vmem:[#allocation4 + $0x878] sm:$0xff] %v4826
    %4891 = vst [vmem:[#allocation4 + $0x8c0] sm:$0xff] %v4827
    %4892 = vst [vmem:[#allocation4 + $0x908] sm:$0xff] %v4828
    %4893 = vst [vmem:[#allocation4 + $0x950] sm:$0xff] %v4829
    %4894 = vst [vmem:[#allocation4 + $0x998] sm:$0xff] %v4830
    %4895 = vst [vmem:[#allocation4 + $0x9e0] sm:$0xff] %v4831
    %4896 = vst [vmem:[#allocation4 + $0xa28] sm:$0xff] %v4832
    %4897 = vst [vmem:[#allocation4 + $0xa70] sm:$0xff] %v4833
    %4898 = vst [vmem:[#allocation4 + $0xab8] sm:$0xff] %v4834
    %4899 = vst [vmem:[#allocation4 + $0xb00] sm:$0xff] %v4835
    %4900 = vst [vmem:[#allocation4 + $0xb48] sm:$0xff] %v4836
    %4901 = vst [vmem:[#allocation4 + $0xb90] sm:$0xff] %v4837
    %4902 = vst [vmem:[#allocation4 + $0xbd8] sm:$0xff] %v4838
    %4903 = vst [vmem:[#allocation4 + $0xc20] sm:$0xff] %v4839
    %4904 = vst [vmem:[#allocation4 + $0xc68] sm:$0xff] %v4840
    %4905 = vst [vmem:[#allocation4 + $0xcb0] sm:$0xff] %v4841
    %4906 = vst [vmem:[#allocation4 + $0xcf8] sm:$0xff] %v4842
    %4907 = vst [vmem:[#allocation4 + $0xd40] sm:$0xff] %v4843
    %4908 = vst [vmem:[#allocation4 + $0xd88] sm:$0xff] %v4844
    %4909 = vst [vmem:[#allocation4 + $0xdd0] sm:$0xff] %v4845
    %4910 = vst [vmem:[#allocation4 + $0xe18] sm:$0xff] %v4846
    %4911 = vst [vmem:[#allocation4 + $0xe60] sm:$0xff] %v4847
    %4912 = vst [vmem:[#allocation4 + $0xea8] sm:$0xff] %v4848
    %4913 = vst [vmem:[#allocation4 + $0xef0] sm:$0xff] %v4849
    %4914 = vst [vmem:[#allocation4 + $0xf38] sm:$0xff] %v4850
    %4915 = vst [vmem:[#allocation4 + $0xf80] sm:$0xff] %v4851
    %4916 = vst [vmem:[#allocation4 + $0xfc8] sm:$0xff] %v4852
    %4917 = vst [vmem:[#allocation4 + $0x1010] sm:$0xff] %v4853
    %4918 = vst [vmem:[#allocation4 + $0x1058] sm:$0xff] %v4854
    %4919 = vst [vmem:[#allocation4 + $0x10a0] sm:$0xff] %v4855
    %4920 = vst [vmem:[#allocation4 + $0x10e8] sm:$0xff] %v4856
    %4921 = vst [vmem:[#allocation4 + $0x1130] sm:$0xff] %v4857
    %4922 = vst [vmem:[#allocation4 + $0x1178] sm:$0xff] %v4858
    %4923 = vst [vmem:[#allocation4 + $0x11c0] sm:$0xff] %v4859
    %v4924 = vld [vmem:[#allocation3 + $0x4] sm:$0xff]
    %v4925 = vld [vmem:[#allocation3 + $0xc] sm:$0xff]
    %v4926 = vld [vmem:[#allocation3 + $0x1c] sm:$0xff]
    %v4927 = vld [vmem:[#allocation3 + $0x24] sm:$0xff]
    %v4928 = vld [vmem:[#allocation3 + $0x34] sm:$0xff]
    %v4929 = vld [vmem:[#allocation3 + $0x3c] sm:$0xff]
    %v4930 = vld [vmem:[#allocation3 + $0x4c] sm:$0xff]
    %v4931 = vld [vmem:[#allocation3 + $0x54] sm:$0xff]
    %v4932 = vld [vmem:[#allocation3 + $0x64] sm:$0xff]
    %v4933 = vld [vmem:[#allocation3 + $0x6c] sm:$0xff]
    %v4934 = vld [vmem:[#allocation3 + $0x7c] sm:$0xff]
    %v4935 = vld [vmem:[#allocation3 + $0x84] sm:$0xff]
    %v4936 = vld [vmem:[#allocation3 + $0x94] sm:$0xff]
    %v4937 = vld [vmem:[#allocation3 + $0x9c] sm:$0xff]
    %v4938 = vld [vmem:[#allocation3 + $0xac] sm:$0xff]
    %v4939 = vld [vmem:[#allocation3 + $0xb4] sm:$0xff]
    %v4940 = vld [vmem:[#allocation3 + $0xc4] sm:$0xff]
    %v4941 = vld [vmem:[#allocation3 + $0xcc] sm:$0xff]
    %v4942 = vld [vmem:[#allocation3 + $0xdc] sm:$0xff]
    %v4943 = vld [vmem:[#allocation3 + $0xe4] sm:$0xff]
    %v4944 = vld [vmem:[#allocation3 + $0xf4] sm:$0xff]
    %v4945 = vld [vmem:[#allocation3 + $0xfc] sm:$0xff]
    %v4946 = vld [vmem:[#allocation3 + $0x10c] sm:$0xff]
    %v4947 = vld [vmem:[#allocation3 + $0x114] sm:$0xff]
    %v4948 = vld [vmem:[#allocation3 + $0x124] sm:$0xff]
    %v4949 = vld [vmem:[#allocation3 + $0x12c] sm:$0xff]
    %v4950 = vld [vmem:[#allocation3 + $0x13c] sm:$0xff]
    %v4951 = vld [vmem:[#allocation3 + $0x144] sm:$0xff]
    %v4952 = vld [vmem:[#allocation3 + $0x154] sm:$0xff]
    %v4953 = vld [vmem:[#allocation3 + $0x15c] sm:$0xff]
    %v4954 = vld [vmem:[#allocation3 + $0x16c] sm:$0xff]
    %v4955 = vld [vmem:[#allocation3 + $0x174] sm:$0xff]
    %v4956 = vld [vmem:[#allocation3 + $0x1e4] sm:$0xff]
    %v4957 = vld [vmem:[#allocation3 + $0x1ec] sm:$0xff]
    %v4958 = vld [vmem:[#allocation3 + $0x1fc] sm:$0xff]
    %v4959 = vld [vmem:[#allocation3 + $0x204] sm:$0xff]
    %v4960 = vld [vmem:[#allocation3 + $0x214] sm:$0xff]
    %v4961 = vld [vmem:[#allocation3 + $0x21c] sm:$0xff]
    %v4962 = vld [vmem:[#allocation3 + $0x22c] sm:$0xff]
    %v4963 = vld [vmem:[#allocation3 + $0x234] sm:$0xff]
    %v4964 = vld [vmem:[#allocation3 + $0x244] sm:$0xff]
    %v4965 = vld [vmem:[#allocation3 + $0x24c] sm:$0xff]
    %v4966 = vld [vmem:[#allocation3 + $0x25c] sm:$0xff]
    %v4967 = vld [vmem:[#allocation3 + $0x264] sm:$0xff]
    %v4968 = vld [vmem:[#allocation3 + $0x274] sm:$0xff]
    %v4969 = vld [vmem:[#allocation3 + $0x27c] sm:$0xff]
    %v4970 = vld [vmem:[#allocation3 + $0x28c] sm:$0xff]
    %v4971 = vld [vmem:[#allocation3 + $0x294] sm:$0xff]
    %v4972 = vld [vmem:[#allocation3 + $0x2a4] sm:$0xff]
    %v4973 = vld [vmem:[#allocation3 + $0x2ac] sm:$0xff]
    %v4974 = vld [vmem:[#allocation3 + $0x2bc] sm:$0xff]
    %v4975 = vld [vmem:[#allocation3 + $0x2c4] sm:$0xff]
    %v4976 = vld [vmem:[#allocation3 + $0x2d4] sm:$0xff]
    %v4977 = vld [vmem:[#allocation3 + $0x2dc] sm:$0xff]
    %v4978 = vld [vmem:[#allocation3 + $0x2ec] sm:$0xff]
    %v4979 = vld [vmem:[#allocation3 + $0x2f4] sm:$0xff]
    %v4980 = vld [vmem:[#allocation3 + $0x304] sm:$0xff]
    %v4981 = vld [vmem:[#allocation3 + $0x30c] sm:$0xff]
    %v4982 = vld [vmem:[#allocation3 + $0x31c] sm:$0xff]
    %v4983 = vld [vmem:[#allocation3 + $0x324] sm:$0xff]
    %v4984 = vld [vmem:[#allocation3 + $0x334] sm:$0xff]
    %v4985 = vld [vmem:[#allocation3 + $0x33c] sm:$0xff]
    %v4986 = vld [vmem:[#allocation3 + $0x34c] sm:$0xff]
    %v4987 = vld [vmem:[#allocation3 + $0x354] sm:$0xff]
    %4988 = vst [vmem:[#allocation4 + $0x10] sm:$0xff] %v4924
    %4989 = vst [vmem:[#allocation4 + $0x58] sm:$0xff] %v4925
    %4990 = vst [vmem:[#allocation4 + $0xa0] sm:$0xff] %v4926
    %4991 = vst [vmem:[#allocation4 + $0xe8] sm:$0xff] %v4927
    %4992 = vst [vmem:[#allocation4 + $0x130] sm:$0xff] %v4928
    %4993 = vst [vmem:[#allocation4 + $0x178] sm:$0xff] %v4929
    %4994 = vst [vmem:[#allocation4 + $0x1c0] sm:$0xff] %v4930
    %4995 = vst [vmem:[#allocation4 + $0x208] sm:$0xff] %v4931
    %4996 = vst [vmem:[#allocation4 + $0x250] sm:$0xff] %v4932
    %4997 = vst [vmem:[#allocation4 + $0x298] sm:$0xff] %v4933
    %4998 = vst [vmem:[#allocation4 + $0x2e0] sm:$0xff] %v4934
    %4999 = vst [vmem:[#allocation4 + $0x328] sm:$0xff] %v4935
    %5000 = vst [vmem:[#allocation4 + $0x370] sm:$0xff] %v4936
    %5001 = vst [vmem:[#allocation4 + $0x3b8] sm:$0xff] %v4937
    %5002 = vst [vmem:[#allocation4 + $0x400] sm:$0xff] %v4938
    %5003 = vst [vmem:[#allocation4 + $0x448] sm:$0xff] %v4939
    %5004 = vst [vmem:[#allocation4 + $0x490] sm:$0xff] %v4940
    %5005 = vst [vmem:[#allocation4 + $0x4d8] sm:$0xff] %v4941
    %5006 = vst [vmem:[#allocation4 + $0x520] sm:$0xff] %v4942
    %5007 = vst [vmem:[#allocation4 + $0x568] sm:$0xff] %v4943
    %5008 = vst [vmem:[#allocation4 + $0x5b0] sm:$0xff] %v4944
    %5009 = vst [vmem:[#allocation4 + $0x5f8] sm:$0xff] %v4945
    %5010 = vst [vmem:[#allocation4 + $0x640] sm:$0xff] %v4946
    %5011 = vst [vmem:[#allocation4 + $0x688] sm:$0xff] %v4947
    %5012 = vst [vmem:[#allocation4 + $0x6d0] sm:$0xff] %v4948
    %5013 = vst [vmem:[#allocation4 + $0x718] sm:$0xff] %v4949
    %5014 = vst [vmem:[#allocation4 + $0x760] sm:$0xff] %v4950
    %5015 = vst [vmem:[#allocation4 + $0x7a8] sm:$0xff] %v4951
    %5016 = vst [vmem:[#allocation4 + $0x7f0] sm:$0xff] %v4952
    %5017 = vst [vmem:[#allocation4 + $0x838] sm:$0xff] %v4953
    %5018 = vst [vmem:[#allocation4 + $0x880] sm:$0xff] %v4954
    %5019 = vst [vmem:[#allocation4 + $0x8c8] sm:$0xff] %v4955
    %5020 = vst [vmem:[#allocation4 + $0x910] sm:$0xff] %v4956
    %5021 = vst [vmem:[#allocation4 + $0x958] sm:$0xff] %v4957
    %5022 = vst [vmem:[#allocation4 + $0x9a0] sm:$0xff] %v4958
    %5023 = vst [vmem:[#allocation4 + $0x9e8] sm:$0xff] %v4959
    %5024 = vst [vmem:[#allocation4 + $0xa30] sm:$0xff] %v4960
    %5025 = vst [vmem:[#allocation4 + $0xa78] sm:$0xff] %v4961
    %5026 = vst [vmem:[#allocation4 + $0xac0] sm:$0xff] %v4962
    %5027 = vst [vmem:[#allocation4 + $0xb08] sm:$0xff] %v4963
    %5028 = vst [vmem:[#allocation4 + $0xb50] sm:$0xff] %v4964
    %5029 = vst [vmem:[#allocation4 + $0xb98] sm:$0xff] %v4965
    %5030 = vst [vmem:[#allocation4 + $0xbe0] sm:$0xff] %v4966
    %5031 = vst [vmem:[#allocation4 + $0xc28] sm:$0xff] %v4967
    %5032 = vst [vmem:[#allocation4 + $0xc70] sm:$0xff] %v4968
    %5033 = vst [vmem:[#allocation4 + $0xcb8] sm:$0xff] %v4969
    %5034 = vst [vmem:[#allocation4 + $0xd00] sm:$0xff] %v4970
    %5035 = vst [vmem:[#allocation4 + $0xd48] sm:$0xff] %v4971
    %5036 = vst [vmem:[#allocation4 + $0xd90] sm:$0xff] %v4972
    %5037 = vst [vmem:[#allocation4 + $0xdd8] sm:$0xff] %v4973
    %5038 = vst [vmem:[#allocation4 + $0xe20] sm:$0xff] %v4974
    %5039 = vst [vmem:[#allocation4 + $0xe68] sm:$0xff] %v4975
    %5040 = vst [vmem:[#allocation4 + $0xeb0] sm:$0xff] %v4976
    %5041 = vst [vmem:[#allocation4 + $0xef8] sm:$0xff] %v4977
    %5042 = vst [vmem:[#allocation4 + $0xf40] sm:$0xff] %v4978
    %5043 = vst [vmem:[#allocation4 + $0xf88] sm:$0xff] %v4979
    %5044 = vst [vmem:[#allocation4 + $0xfd0] sm:$0xff] %v4980
    %5045 = vst [vmem:[#allocation4 + $0x1018] sm:$0xff] %v4981
    %5046 = vst [vmem:[#allocation4 + $0x1060] sm:$0xff] %v4982
    %5047 = vst [vmem:[#allocation4 + $0x10a8] sm:$0xff] %v4983
    %5048 = vst [vmem:[#allocation4 + $0x10f0] sm:$0xff] %v4984
    %5049 = vst [vmem:[#allocation4 + $0x1138] sm:$0xff] %v4985
    %5050 = vst [vmem:[#allocation4 + $0x1180] sm:$0xff] %v4986
    %5051 = vst [vmem:[#allocation4 + $0x11c8] sm:$0xff] %v4987
    %v5052 = vld [vmem:[%s4603] sm:$0xff]
    %v5053 = vld [vmem:[%s4603 + $0x8] sm:$0xff]
    %v5054 = vld [vmem:[%s4603 + $0x18] sm:$0xff]
    %v5055 = vld [vmem:[%s4603 + $0x20] sm:$0xff]
    %v5056 = vld [vmem:[%s4603 + $0x30] sm:$0xff]
    %v5057 = vld [vmem:[%s4603 + $0x38] sm:$0xff]
    %v5058 = vld [vmem:[%s4603 + $0x48] sm:$0xff]
    %v5059 = vld [vmem:[%s4603 + $0x50] sm:$0xff]
    %v5060 = vld [vmem:[%s4603 + $0x60] sm:$0xff]
    %v5061 = vld [vmem:[%s4603 + $0x68] sm:$0xff]
    %v5062 = vld [vmem:[%s4603 + $0x78] sm:$0xff]
    %v5063 = vld [vmem:[%s4603 + $0x80] sm:$0xff]
    %v5064 = vld [vmem:[%s4603 + $0x90] sm:$0xff]
    %v5065 = vld [vmem:[%s4603 + $0x98] sm:$0xff]
    %v5066 = vld [vmem:[%s4603 + $0xa8] sm:$0xff]
    %v5067 = vld [vmem:[%s4603 + $0xb0] sm:$0xff]
    %v5068 = vld [vmem:[%s4603 + $0xc0] sm:$0xff]
    %v5069 = vld [vmem:[%s4603 + $0xc8] sm:$0xff]
    %v5070 = vld [vmem:[%s4603 + $0xd8] sm:$0xff]
    %v5071 = vld [vmem:[%s4603 + $0xe0] sm:$0xff]
    %v5072 = vld [vmem:[%s4603 + $0xf0] sm:$0xff]
    %v5073 = vld [vmem:[%s4603 + $0xf8] sm:$0xff]
    %v5074 = vld [vmem:[%s4603 + $0x108] sm:$0xff]
    %v5075 = vld [vmem:[%s4603 + $0x110] sm:$0xff]
    %v5076 = vld [vmem:[%s4603 + $0x120] sm:$0xff]
    %v5077 = vld [vmem:[%s4603 + $0x128] sm:$0xff]
    %v5078 = vld [vmem:[%s4603 + $0x138] sm:$0xff]
    %v5079 = vld [vmem:[%s4603 + $0x140] sm:$0xff]
    %v5080 = vld [vmem:[%s4603 + $0x150] sm:$0xff]
    %v5081 = vld [vmem:[%s4603 + $0x158] sm:$0xff]
    %v5082 = vld [vmem:[%s4603 + $0x168] sm:$0xff]
    %v5083 = vld [vmem:[%s4603 + $0x170] sm:$0xff]
    %v5084 = vld [vmem:[%s4603 + $0x1e0] sm:$0xff]
    %v5085 = vld [vmem:[%s4603 + $0x1e8] sm:$0xff]
    %v5086 = vld [vmem:[%s4603 + $0x1f8] sm:$0xff]
    %v5087 = vld [vmem:[%s4603 + $0x200] sm:$0xff]
    %v5088 = vld [vmem:[%s4603 + $0x210] sm:$0xff]
    %v5089 = vld [vmem:[%s4603 + $0x218] sm:$0xff]
    %v5090 = vld [vmem:[%s4603 + $0x228] sm:$0xff]
    %v5091 = vld [vmem:[%s4603 + $0x230] sm:$0xff]
    %v5092 = vld [vmem:[%s4603 + $0x240] sm:$0xff]
    %v5093 = vld [vmem:[%s4603 + $0x248] sm:$0xff]
    %v5094 = vld [vmem:[%s4603 + $0x258] sm:$0xff]
    %v5095 = vld [vmem:[%s4603 + $0x260] sm:$0xff]
    %v5096 = vld [vmem:[%s4603 + $0x270] sm:$0xff]
    %v5097 = vld [vmem:[%s4603 + $0x278] sm:$0xff]
    %v5098 = vld [vmem:[%s4603 + $0x288] sm:$0xff]
    %v5099 = vld [vmem:[%s4603 + $0x290] sm:$0xff]
    %v5100 = vld [vmem:[%s4603 + $0x2a0] sm:$0xff]
    %v5101 = vld [vmem:[%s4603 + $0x2a8] sm:$0xff]
    %v5102 = vld [vmem:[%s4603 + $0x2b8] sm:$0xff]
    %v5103 = vld [vmem:[%s4603 + $0x2c0] sm:$0xff]
    %v5104 = vld [vmem:[%s4603 + $0x2d0] sm:$0xff]
    %v5105 = vld [vmem:[%s4603 + $0x2d8] sm:$0xff]
    %v5106 = vld [vmem:[%s4603 + $0x2e8] sm:$0xff]
    %v5107 = vld [vmem:[%s4603 + $0x2f0] sm:$0xff]
    %v5108 = vld [vmem:[%s4603 + $0x300] sm:$0xff]
    %v5109 = vld [vmem:[%s4603 + $0x308] sm:$0xff]
    %v5110 = vld [vmem:[%s4603 + $0x318] sm:$0xff]
    %v5111 = vld [vmem:[%s4603 + $0x320] sm:$0xff]
    %v5112 = vld [vmem:[%s4603 + $0x330] sm:$0xff]
    %v5113 = vld [vmem:[%s4603 + $0x338] sm:$0xff]
    %v5114 = vld [vmem:[%s4603 + $0x348] sm:$0xff]
    %v5115 = vld [vmem:[%s4603 + $0x350] sm:$0xff]
    %5116 = vst [vmem:[#allocation4 + $0x18] sm:$0xff] %v5052
    %5117 = vst [vmem:[#allocation4 + $0x60] sm:$0xff] %v5053
    %5118 = vst [vmem:[#allocation4 + $0xa8] sm:$0xff] %v5054
    %5119 = vst [vmem:[#allocation4 + $0xf0] sm:$0xff] %v5055
    %5120 = vst [vmem:[#allocation4 + $0x138] sm:$0xff] %v5056
    %5121 = vst [vmem:[#allocation4 + $0x180] sm:$0xff] %v5057
    %5122 = vst [vmem:[#allocation4 + $0x1c8] sm:$0xff] %v5058
    %5123 = vst [vmem:[#allocation4 + $0x210] sm:$0xff] %v5059
    %5124 = vst [vmem:[#allocation4 + $0x258] sm:$0xff] %v5060
    %5125 = vst [vmem:[#allocation4 + $0x2a0] sm:$0xff] %v5061
    %5126 = vst [vmem:[#allocation4 + $0x2e8] sm:$0xff] %v5062
    %5127 = vst [vmem:[#allocation4 + $0x330] sm:$0xff] %v5063
    %5128 = vst [vmem:[#allocation4 + $0x378] sm:$0xff] %v5064
    %5129 = vst [vmem:[#allocation4 + $0x3c0] sm:$0xff] %v5065
    %5130 = vst [vmem:[#allocation4 + $0x408] sm:$0xff] %v5066
    %5131 = vst [vmem:[#allocation4 + $0x450] sm:$0xff] %v5067
    %5132 = vst [vmem:[#allocation4 + $0x498] sm:$0xff] %v5068
    %5133 = vst [vmem:[#allocation4 + $0x4e0] sm:$0xff] %v5069
    %5134 = vst [vmem:[#allocation4 + $0x528] sm:$0xff] %v5070
    %5135 = vst [vmem:[#allocation4 + $0x570] sm:$0xff] %v5071
    %5136 = vst [vmem:[#allocation4 + $0x5b8] sm:$0xff] %v5072
    %5137 = vst [vmem:[#allocation4 + $0x600] sm:$0xff] %v5073
    %5138 = vst [vmem:[#allocation4 + $0x648] sm:$0xff] %v5074
    %5139 = vst [vmem:[#allocation4 + $0x690] sm:$0xff] %v5075
    %5140 = vst [vmem:[#allocation4 + $0x6d8] sm:$0xff] %v5076
    %5141 = vst [vmem:[#allocation4 + $0x720] sm:$0xff] %v5077
    %5142 = vst [vmem:[#allocation4 + $0x768] sm:$0xff] %v5078
    %5143 = vst [vmem:[#allocation4 + $0x7b0] sm:$0xff] %v5079
    %5144 = vst [vmem:[#allocation4 + $0x7f8] sm:$0xff] %v5080
    %5145 = vst [vmem:[#allocation4 + $0x840] sm:$0xff] %v5081
    %5146 = vst [vmem:[#allocation4 + $0x888] sm:$0xff] %v5082
    %5147 = vst [vmem:[#allocation4 + $0x8d0] sm:$0xff] %v5083
    %5148 = vst [vmem:[#allocation4 + $0x918] sm:$0xff] %v5084
    %5149 = vst [vmem:[#allocation4 + $0x960] sm:$0xff] %v5085
    %5150 = vst [vmem:[#allocation4 + $0x9a8] sm:$0xff] %v5086
    %5151 = vst [vmem:[#allocation4 + $0x9f0] sm:$0xff] %v5087
    %5152 = vst [vmem:[#allocation4 + $0xa38] sm:$0xff] %v5088
    %5153 = vst [vmem:[#allocation4 + $0xa80] sm:$0xff] %v5089
    %5154 = vst [vmem:[#allocation4 + $0xac8] sm:$0xff] %v5090
    %5155 = vst [vmem:[#allocation4 + $0xb10] sm:$0xff] %v5091
    %5156 = vst [vmem:[#allocation4 + $0xb58] sm:$0xff] %v5092
    %5157 = vst [vmem:[#allocation4 + $0xba0] sm:$0xff] %v5093
    %5158 = vst [vmem:[#allocation4 + $0xbe8] sm:$0xff] %v5094
    %5159 = vst [vmem:[#allocation4 + $0xc30] sm:$0xff] %v5095
    %5160 = vst [vmem:[#allocation4 + $0xc78] sm:$0xff] %v5096
    %5161 = vst [vmem:[#allocation4 + $0xcc0] sm:$0xff] %v5097
    %5162 = vst [vmem:[#allocation4 + $0xd08] sm:$0xff] %v5098
    %5163 = vst [vmem:[#allocation4 + $0xd50] sm:$0xff] %v5099
    %5164 = vst [vmem:[#allocation4 + $0xd98] sm:$0xff] %v5100
    %5165 = vst [vmem:[#allocation4 + $0xde0] sm:$0xff] %v5101
    %5166 = vst [vmem:[#allocation4 + $0xe28] sm:$0xff] %v5102
    %5167 = vst [vmem:[#allocation4 + $0xe70] sm:$0xff] %v5103
    %5168 = vst [vmem:[#allocation4 + $0xeb8] sm:$0xff] %v5104
    %5169 = vst [vmem:[#allocation4 + $0xf00] sm:$0xff] %v5105
    %5170 = vst [vmem:[#allocation4 + $0xf48] sm:$0xff] %v5106
    %5171 = vst [vmem:[#allocation4 + $0xf90] sm:$0xff] %v5107
    %5172 = vst [vmem:[#allocation4 + $0xfd8] sm:$0xff] %v5108
    %5173 = vst [vmem:[#allocation4 + $0x1020] sm:$0xff] %v5109
    %5174 = vst [vmem:[#allocation4 + $0x1068] sm:$0xff] %v5110
    %5175 = vst [vmem:[#allocation4 + $0x10b0] sm:$0xff] %v5111
    %5176 = vst [vmem:[#allocation4 + $0x10f8] sm:$0xff] %v5112
    %5177 = vst [vmem:[#allocation4 + $0x1140] sm:$0xff] %v5113
    %5178 = vst [vmem:[#allocation4 + $0x1188] sm:$0xff] %v5114
    %5179 = vst [vmem:[#allocation4 + $0x11d0] sm:$0xff] %v5115
    %v5180 = vld [vmem:[%s4603 + $0x2] sm:$0xff]
    %v5181 = vld [vmem:[%s4603 + $0xa] sm:$0xff]
    %v5182 = vld [vmem:[%s4603 + $0x1a] sm:$0xff]
    %v5183 = vld [vmem:[%s4603 + $0x22] sm:$0xff]
    %v5184 = vld [vmem:[%s4603 + $0x32] sm:$0xff]
    %v5185 = vld [vmem:[%s4603 + $0x3a] sm:$0xff]
    %v5186 = vld [vmem:[%s4603 + $0x4a] sm:$0xff]
    %v5187 = vld [vmem:[%s4603 + $0x52] sm:$0xff]
    %v5188 = vld [vmem:[%s4603 + $0x62] sm:$0xff]
    %v5189 = vld [vmem:[%s4603 + $0x6a] sm:$0xff]
    %v5190 = vld [vmem:[%s4603 + $0x7a] sm:$0xff]
    %v5191 = vld [vmem:[%s4603 + $0x82] sm:$0xff]
    %v5192 = vld [vmem:[%s4603 + $0x92] sm:$0xff]
    %v5193 = vld [vmem:[%s4603 + $0x9a] sm:$0xff]
    %v5194 = vld [vmem:[%s4603 + $0xaa] sm:$0xff]
    %v5195 = vld [vmem:[%s4603 + $0xb2] sm:$0xff]
    %v5196 = vld [vmem:[%s4603 + $0xc2] sm:$0xff]
    %v5197 = vld [vmem:[%s4603 + $0xca] sm:$0xff]
    %v5198 = vld [vmem:[%s4603 + $0xda] sm:$0xff]
    %v5199 = vld [vmem:[%s4603 + $0xe2] sm:$0xff]
    %v5200 = vld [vmem:[%s4603 + $0xf2] sm:$0xff]
    %v5201 = vld [vmem:[%s4603 + $0xfa] sm:$0xff]
    %v5202 = vld [vmem:[%s4603 + $0x10a] sm:$0xff]
    %v5203 = vld [vmem:[%s4603 + $0x112] sm:$0xff]
    %v5204 = vld [vmem:[%s4603 + $0x122] sm:$0xff]
    %v5205 = vld [vmem:[%s4603 + $0x12a] sm:$0xff]
    %v5206 = vld [vmem:[%s4603 + $0x13a] sm:$0xff]
    %v5207 = vld [vmem:[%s4603 + $0x142] sm:$0xff]
    %v5208 = vld [vmem:[%s4603 + $0x152] sm:$0xff]
    %v5209 = vld [vmem:[%s4603 + $0x15a] sm:$0xff]
    %v5210 = vld [vmem:[%s4603 + $0x16a] sm:$0xff]
    %v5211 = vld [vmem:[%s4603 + $0x172] sm:$0xff]
    %v5212 = vld [vmem:[%s4603 + $0x1e2] sm:$0xff]
    %v5213 = vld [vmem:[%s4603 + $0x1ea] sm:$0xff]
    %v5214 = vld [vmem:[%s4603 + $0x1fa] sm:$0xff]
    %v5215 = vld [vmem:[%s4603 + $0x202] sm:$0xff]
    %v5216 = vld [vmem:[%s4603 + $0x212] sm:$0xff]
    %v5217 = vld [vmem:[%s4603 + $0x21a] sm:$0xff]
    %v5218 = vld [vmem:[%s4603 + $0x22a] sm:$0xff]
    %v5219 = vld [vmem:[%s4603 + $0x232] sm:$0xff]
    %v5220 = vld [vmem:[%s4603 + $0x242] sm:$0xff]
    %v5221 = vld [vmem:[%s4603 + $0x24a] sm:$0xff]
    %v5222 = vld [vmem:[%s4603 + $0x25a] sm:$0xff]
    %v5223 = vld [vmem:[%s4603 + $0x262] sm:$0xff]
    %v5224 = vld [vmem:[%s4603 + $0x272] sm:$0xff]
    %v5225 = vld [vmem:[%s4603 + $0x27a] sm:$0xff]
    %v5226 = vld [vmem:[%s4603 + $0x28a] sm:$0xff]
    %v5227 = vld [vmem:[%s4603 + $0x292] sm:$0xff]
    %v5228 = vld [vmem:[%s4603 + $0x2a2] sm:$0xff]
    %v5229 = vld [vmem:[%s4603 + $0x2aa] sm:$0xff]
    %v5230 = vld [vmem:[%s4603 + $0x2ba] sm:$0xff]
    %v5231 = vld [vmem:[%s4603 + $0x2c2] sm:$0xff]
    %v5232 = vld [vmem:[%s4603 + $0x2d2] sm:$0xff]
    %v5233 = vld [vmem:[%s4603 + $0x2da] sm:$0xff]
    %v5234 = vld [vmem:[%s4603 + $0x2ea] sm:$0xff]
    %v5235 = vld [vmem:[%s4603 + $0x2f2] sm:$0xff]
    %v5236 = vld [vmem:[%s4603 + $0x302] sm:$0xff]
    %v5237 = vld [vmem:[%s4603 + $0x30a] sm:$0xff]
    %v5238 = vld [vmem:[%s4603 + $0x31a] sm:$0xff]
    %v5239 = vld [vmem:[%s4603 + $0x322] sm:$0xff]
    %v5240 = vld [vmem:[%s4603 + $0x332] sm:$0xff]
    %v5241 = vld [vmem:[%s4603 + $0x33a] sm:$0xff]
    %v5242 = vld [vmem:[%s4603 + $0x34a] sm:$0xff]
    %v5243 = vld [vmem:[%s4603 + $0x352] sm:$0xff]
    %5244 = vst [vmem:[#allocation4 + $0x20] sm:$0xff] %v5180
    %5245 = vst [vmem:[#allocation4 + $0x68] sm:$0xff] %v5181
    %5246 = vst [vmem:[#allocation4 + $0xb0] sm:$0xff] %v5182
    %5247 = vst [vmem:[#allocation4 + $0xf8] sm:$0xff] %v5183
    %5248 = vst [vmem:[#allocation4 + $0x140] sm:$0xff] %v5184
    %5249 = vst [vmem:[#allocation4 + $0x188] sm:$0xff] %v5185
    %5250 = vst [vmem:[#allocation4 + $0x1d0] sm:$0xff] %v5186
    %5251 = vst [vmem:[#allocation4 + $0x218] sm:$0xff] %v5187
    %5252 = vst [vmem:[#allocation4 + $0x260] sm:$0xff] %v5188
    %5253 = vst [vmem:[#allocation4 + $0x2a8] sm:$0xff] %v5189
    %5254 = vst [vmem:[#allocation4 + $0x2f0] sm:$0xff] %v5190
    %5255 = vst [vmem:[#allocation4 + $0x338] sm:$0xff] %v5191
    %5256 = vst [vmem:[#allocation4 + $0x380] sm:$0xff] %v5192
    %5257 = vst [vmem:[#allocation4 + $0x3c8] sm:$0xff] %v5193
    %5258 = vst [vmem:[#allocation4 + $0x410] sm:$0xff] %v5194
    %5259 = vst [vmem:[#allocation4 + $0x458] sm:$0xff] %v5195
    %5260 = vst [vmem:[#allocation4 + $0x4a0] sm:$0xff] %v5196
    %5261 = vst [vmem:[#allocation4 + $0x4e8] sm:$0xff] %v5197
    %5262 = vst [vmem:[#allocation4 + $0x530] sm:$0xff] %v5198
    %5263 = vst [vmem:[#allocation4 + $0x578] sm:$0xff] %v5199
    %5264 = vst [vmem:[#allocation4 + $0x5c0] sm:$0xff] %v5200
    %5265 = vst [vmem:[#allocation4 + $0x608] sm:$0xff] %v5201
    %5266 = vst [vmem:[#allocation4 + $0x650] sm:$0xff] %v5202
    %5267 = vst [vmem:[#allocation4 + $0x698] sm:$0xff] %v5203
    %5268 = vst [vmem:[#allocation4 + $0x6e0] sm:$0xff] %v5204
    %5269 = vst [vmem:[#allocation4 + $0x728] sm:$0xff] %v5205
    %5270 = vst [vmem:[#allocation4 + $0x770] sm:$0xff] %v5206
    %5271 = vst [vmem:[#allocation4 + $0x7b8] sm:$0xff] %v5207
    %5272 = vst [vmem:[#allocation4 + $0x800] sm:$0xff] %v5208
    %5273 = vst [vmem:[#allocation4 + $0x848] sm:$0xff] %v5209
    %5274 = vst [vmem:[#allocation4 + $0x890] sm:$0xff] %v5210
    %5275 = vst [vmem:[#allocation4 + $0x8d8] sm:$0xff] %v5211
    %5276 = vst [vmem:[#allocation4 + $0x920] sm:$0xff] %v5212
    %5277 = vst [vmem:[#allocation4 + $0x968] sm:$0xff] %v5213
    %5278 = vst [vmem:[#allocation4 + $0x9b0] sm:$0xff] %v5214
    %5279 = vst [vmem:[#allocation4 + $0x9f8] sm:$0xff] %v5215
    %5280 = vst [vmem:[#allocation4 + $0xa40] sm:$0xff] %v5216
    %5281 = vst [vmem:[#allocation4 + $0xa88] sm:$0xff] %v5217
    %5282 = vst [vmem:[#allocation4 + $0xad0] sm:$0xff] %v5218
    %5283 = vst [vmem:[#allocation4 + $0xb18] sm:$0xff] %v5219
    %5284 = vst [vmem:[#allocation4 + $0xb60] sm:$0xff] %v5220
    %5285 = vst [vmem:[#allocation4 + $0xba8] sm:$0xff] %v5221
    %5286 = vst [vmem:[#allocation4 + $0xbf0] sm:$0xff] %v5222
    %5287 = vst [vmem:[#allocation4 + $0xc38] sm:$0xff] %v5223
    %5288 = vst [vmem:[#allocation4 + $0xc80] sm:$0xff] %v5224
    %5289 = vst [vmem:[#allocation4 + $0xcc8] sm:$0xff] %v5225
    %5290 = vst [vmem:[#allocation4 + $0xd10] sm:$0xff] %v5226
    %5291 = vst [vmem:[#allocation4 + $0xd58] sm:$0xff] %v5227
    %5292 = vst [vmem:[#allocation4 + $0xda0] sm:$0xff] %v5228
    %5293 = vst [vmem:[#allocation4 + $0xde8] sm:$0xff] %v5229
    %5294 = vst [vmem:[#allocation4 + $0xe30] sm:$0xff] %v5230
    %5295 = vst [vmem:[#allocation4 + $0xe78] sm:$0xff] %v5231
    %5296 = vst [vmem:[#allocation4 + $0xec0] sm:$0xff] %v5232
    %5297 = vst [vmem:[#allocation4 + $0xf08] sm:$0xff] %v5233
    %5298 = vst [vmem:[#allocation4 + $0xf50] sm:$0xff] %v5234
    %5299 = vst [vmem:[#allocation4 + $0xf98] sm:$0xff] %v5235
    %5300 = vst [vmem:[#allocation4 + $0xfe0] sm:$0xff] %v5236
    %5301 = vst [vmem:[#allocation4 + $0x1028] sm:$0xff] %v5237
    %5302 = vst [vmem:[#allocation4 + $0x1070] sm:$0xff] %v5238
    %5303 = vst [vmem:[#allocation4 + $0x10b8] sm:$0xff] %v5239
    %5304 = vst [vmem:[#allocation4 + $0x1100] sm:$0xff] %v5240
    %5305 = vst [vmem:[#allocation4 + $0x1148] sm:$0xff] %v5241
    %5306 = vst [vmem:[#allocation4 + $0x1190] sm:$0xff] %v5242
    %5307 = vst [vmem:[#allocation4 + $0x11d8] sm:$0xff] %v5243
    %v5308 = vld [vmem:[%s4603 + $0x4] sm:$0xff]
    %v5309 = vld [vmem:[%s4603 + $0xc] sm:$0xff]
    %v5310 = vld [vmem:[%s4603 + $0x1c] sm:$0xff]
    %v5311 = vld [vmem:[%s4603 + $0x24] sm:$0xff]
    %v5312 = vld [vmem:[%s4603 + $0x34] sm:$0xff]
    %v5313 = vld [vmem:[%s4603 + $0x3c] sm:$0xff]
    %v5314 = vld [vmem:[%s4603 + $0x4c] sm:$0xff]
    %v5315 = vld [vmem:[%s4603 + $0x54] sm:$0xff]
    %v5316 = vld [vmem:[%s4603 + $0x64] sm:$0xff]
    %v5317 = vld [vmem:[%s4603 + $0x6c] sm:$0xff]
    %v5318 = vld [vmem:[%s4603 + $0x7c] sm:$0xff]
    %v5319 = vld [vmem:[%s4603 + $0x84] sm:$0xff]
    %v5320 = vld [vmem:[%s4603 + $0x94] sm:$0xff]
    %v5321 = vld [vmem:[%s4603 + $0x9c] sm:$0xff]
    %v5322 = vld [vmem:[%s4603 + $0xac] sm:$0xff]
    %v5323 = vld [vmem:[%s4603 + $0xb4] sm:$0xff]
    %v5324 = vld [vmem:[%s4603 + $0xc4] sm:$0xff]
    %v5325 = vld [vmem:[%s4603 + $0xcc] sm:$0xff]
    %v5326 = vld [vmem:[%s4603 + $0xdc] sm:$0xff]
    %v5327 = vld [vmem:[%s4603 + $0xe4] sm:$0xff]
    %v5328 = vld [vmem:[%s4603 + $0xf4] sm:$0xff]
    %v5329 = vld [vmem:[%s4603 + $0xfc] sm:$0xff]
    %v5330 = vld [vmem:[%s4603 + $0x10c] sm:$0xff]
    %v5331 = vld [vmem:[%s4603 + $0x114] sm:$0xff]
    %v5332 = vld [vmem:[%s4603 + $0x124] sm:$0xff]
    %v5333 = vld [vmem:[%s4603 + $0x12c] sm:$0xff]
    %v5334 = vld [vmem:[%s4603 + $0x13c] sm:$0xff]
    %v5335 = vld [vmem:[%s4603 + $0x144] sm:$0xff]
    %v5336 = vld [vmem:[%s4603 + $0x154] sm:$0xff]
    %v5337 = vld [vmem:[%s4603 + $0x15c] sm:$0xff]
    %v5338 = vld [vmem:[%s4603 + $0x16c] sm:$0xff]
    %v5339 = vld [vmem:[%s4603 + $0x174] sm:$0xff]
    %v5340 = vld [vmem:[%s4603 + $0x1e4] sm:$0xff]
    %v5341 = vld [vmem:[%s4603 + $0x1ec] sm:$0xff]
    %v5342 = vld [vmem:[%s4603 + $0x1fc] sm:$0xff]
    %v5343 = vld [vmem:[%s4603 + $0x204] sm:$0xff]
    %v5344 = vld [vmem:[%s4603 + $0x214] sm:$0xff]
    %v5345 = vld [vmem:[%s4603 + $0x21c] sm:$0xff]
    %v5346 = vld [vmem:[%s4603 + $0x22c] sm:$0xff]
    %v5347 = vld [vmem:[%s4603 + $0x234] sm:$0xff]
    %v5348 = vld [vmem:[%s4603 + $0x244] sm:$0xff]
    %v5349 = vld [vmem:[%s4603 + $0x24c] sm:$0xff]
    %v5350 = vld [vmem:[%s4603 + $0x25c] sm:$0xff]
    %v5351 = vld [vmem:[%s4603 + $0x264] sm:$0xff]
    %v5352 = vld [vmem:[%s4603 + $0x274] sm:$0xff]
    %v5353 = vld [vmem:[%s4603 + $0x27c] sm:$0xff]
    %v5354 = vld [vmem:[%s4603 + $0x28c] sm:$0xff]
    %v5355 = vld [vmem:[%s4603 + $0x294] sm:$0xff]
    %v5356 = vld [vmem:[%s4603 + $0x2a4] sm:$0xff]
    %v5357 = vld [vmem:[%s4603 + $0x2ac] sm:$0xff]
    %v5358 = vld [vmem:[%s4603 + $0x2bc] sm:$0xff]
    %v5359 = vld [vmem:[%s4603 + $0x2c4] sm:$0xff]
    %v5360 = vld [vmem:[%s4603 + $0x2d4] sm:$0xff]
    %v5361 = vld [vmem:[%s4603 + $0x2dc] sm:$0xff]
    %v5362 = vld [vmem:[%s4603 + $0x2ec] sm:$0xff]
    %v5363 = vld [vmem:[%s4603 + $0x2f4] sm:$0xff]
    %v5364 = vld [vmem:[%s4603 + $0x304] sm:$0xff]
    %v5365 = vld [vmem:[%s4603 + $0x30c] sm:$0xff]
    %v5366 = vld [vmem:[%s4603 + $0x31c] sm:$0xff]
    %v5367 = vld [vmem:[%s4603 + $0x324] sm:$0xff]
    %v5368 = vld [vmem:[%s4603 + $0x334] sm:$0xff]
    %v5369 = vld [vmem:[%s4603 + $0x33c] sm:$0xff]
    %v5370 = vld [vmem:[%s4603 + $0x34c] sm:$0xff]
    %v5371 = vld [vmem:[%s4603 + $0x354] sm:$0xff]
    %5372 = vst [vmem:[#allocation4 + $0x28] sm:$0xff] %v5308
    %5373 = vst [vmem:[#allocation4 + $0x70] sm:$0xff] %v5309
    %5374 = vst [vmem:[#allocation4 + $0xb8] sm:$0xff] %v5310
    %5375 = vst [vmem:[#allocation4 + $0x100] sm:$0xff] %v5311
    %5376 = vst [vmem:[#allocation4 + $0x148] sm:$0xff] %v5312
    %5377 = vst [vmem:[#allocation4 + $0x190] sm:$0xff] %v5313
    %5378 = vst [vmem:[#allocation4 + $0x1d8] sm:$0xff] %v5314
    %5379 = vst [vmem:[#allocation4 + $0x220] sm:$0xff] %v5315
    %5380 = vst [vmem:[#allocation4 + $0x268] sm:$0xff] %v5316
    %5381 = vst [vmem:[#allocation4 + $0x2b0] sm:$0xff] %v5317
    %5382 = vst [vmem:[#allocation4 + $0x2f8] sm:$0xff] %v5318
    %5383 = vst [vmem:[#allocation4 + $0x340] sm:$0xff] %v5319
    %5384 = vst [vmem:[#allocation4 + $0x388] sm:$0xff] %v5320
    %5385 = vst [vmem:[#allocation4 + $0x3d0] sm:$0xff] %v5321
    %5386 = vst [vmem:[#allocation4 + $0x418] sm:$0xff] %v5322
    %5387 = vst [vmem:[#allocation4 + $0x460] sm:$0xff] %v5323
    %5388 = vst [vmem:[#allocation4 + $0x4a8] sm:$0xff] %v5324
    %5389 = vst [vmem:[#allocation4 + $0x4f0] sm:$0xff] %v5325
    %5390 = vst [vmem:[#allocation4 + $0x538] sm:$0xff] %v5326
    %5391 = vst [vmem:[#allocation4 + $0x580] sm:$0xff] %v5327
    %5392 = vst [vmem:[#allocation4 + $0x5c8] sm:$0xff] %v5328
    %5393 = vst [vmem:[#allocation4 + $0x610] sm:$0xff] %v5329
    %5394 = vst [vmem:[#allocation4 + $0x658] sm:$0xff] %v5330
    %5395 = vst [vmem:[#allocation4 + $0x6a0] sm:$0xff] %v5331
    %5396 = vst [vmem:[#allocation4 + $0x6e8] sm:$0xff] %v5332
    %5397 = vst [vmem:[#allocation4 + $0x730] sm:$0xff] %v5333
    %5398 = vst [vmem:[#allocation4 + $0x778] sm:$0xff] %v5334
    %5399 = vst [vmem:[#allocation4 + $0x7c0] sm:$0xff] %v5335
    %5400 = vst [vmem:[#allocation4 + $0x808] sm:$0xff] %v5336
    %5401 = vst [vmem:[#allocation4 + $0x850] sm:$0xff] %v5337
    %5402 = vst [vmem:[#allocation4 + $0x898] sm:$0xff] %v5338
    %5403 = vst [vmem:[#allocation4 + $0x8e0] sm:$0xff] %v5339
    %5404 = vst [vmem:[#allocation4 + $0x928] sm:$0xff] %v5340
    %5405 = vst [vmem:[#allocation4 + $0x970] sm:$0xff] %v5341
    %5406 = vst [vmem:[#allocation4 + $0x9b8] sm:$0xff] %v5342
    %5407 = vst [vmem:[#allocation4 + $0xa00] sm:$0xff] %v5343
    %5408 = vst [vmem:[#allocation4 + $0xa48] sm:$0xff] %v5344
    %5409 = vst [vmem:[#allocation4 + $0xa90] sm:$0xff] %v5345
    %5410 = vst [vmem:[#allocation4 + $0xad8] sm:$0xff] %v5346
    %5411 = vst [vmem:[#allocation4 + $0xb20] sm:$0xff] %v5347
    %5412 = vst [vmem:[#allocation4 + $0xb68] sm:$0xff] %v5348
    %5413 = vst [vmem:[#allocation4 + $0xbb0] sm:$0xff] %v5349
    %5414 = vst [vmem:[#allocation4 + $0xbf8] sm:$0xff] %v5350
    %5415 = vst [vmem:[#allocation4 + $0xc40] sm:$0xff] %v5351
    %5416 = vst [vmem:[#allocation4 + $0xc88] sm:$0xff] %v5352
    %5417 = vst [vmem:[#allocation4 + $0xcd0] sm:$0xff] %v5353
    %5418 = vst [vmem:[#allocation4 + $0xd18] sm:$0xff] %v5354
    %5419 = vst [vmem:[#allocation4 + $0xd60] sm:$0xff] %v5355
    %5420 = vst [vmem:[#allocation4 + $0xda8] sm:$0xff] %v5356
    %5421 = vst [vmem:[#allocation4 + $0xdf0] sm:$0xff] %v5357
    %5422 = vst [vmem:[#allocation4 + $0xe38] sm:$0xff] %v5358
    %5423 = vst [vmem:[#allocation4 + $0xe80] sm:$0xff] %v5359
    %5424 = vst [vmem:[#allocation4 + $0xec8] sm:$0xff] %v5360
    %5425 = vst [vmem:[#allocation4 + $0xf10] sm:$0xff] %v5361
    %5426 = vst [vmem:[#allocation4 + $0xf58] sm:$0xff] %v5362
    %5427 = vst [vmem:[#allocation4 + $0xfa0] sm:$0xff] %v5363
    %5428 = vst [vmem:[#allocation4 + $0xfe8] sm:$0xff] %v5364
    %5429 = vst [vmem:[#allocation4 + $0x1030] sm:$0xff] %v5365
    %5430 = vst [vmem:[#allocation4 + $0x1078] sm:$0xff] %v5366
    %5431 = vst [vmem:[#allocation4 + $0x10c0] sm:$0xff] %v5367
    %5432 = vst [vmem:[#allocation4 + $0x1108] sm:$0xff] %v5368
    %5433 = vst [vmem:[#allocation4 + $0x1150] sm:$0xff] %v5369
    %5434 = vst [vmem:[#allocation4 + $0x1198] sm:$0xff] %v5370
    %5435 = vst [vmem:[#allocation4 + $0x11e0] sm:$0xff] %v5371
    %s5436 = scalar_lea.vmem [#allocation3], 96
    %v5437 = vld [vmem:[%s5436] sm:$0xff]
    %v5438 = vld [vmem:[%s5436 + $0x8] sm:$0xff]
    %v5439 = vld [vmem:[%s5436 + $0x18] sm:$0xff]
    %v5440 = vld [vmem:[%s5436 + $0x20] sm:$0xff]
    %v5441 = vld [vmem:[%s5436 + $0x30] sm:$0xff]
    %v5442 = vld [vmem:[%s5436 + $0x38] sm:$0xff]
    %v5443 = vld [vmem:[%s5436 + $0x48] sm:$0xff]
    %v5444 = vld [vmem:[%s5436 + $0x50] sm:$0xff]
    %v5445 = vld [vmem:[%s5436 + $0x60] sm:$0xff]
    %v5446 = vld [vmem:[%s5436 + $0x68] sm:$0xff]
    %v5447 = vld [vmem:[%s5436 + $0x78] sm:$0xff]
    %v5448 = vld [vmem:[%s5436 + $0x80] sm:$0xff]
    %v5449 = vld [vmem:[%s5436 + $0x90] sm:$0xff]
    %v5450 = vld [vmem:[%s5436 + $0x98] sm:$0xff]
    %v5451 = vld [vmem:[%s5436 + $0xa8] sm:$0xff]
    %v5452 = vld [vmem:[%s5436 + $0xb0] sm:$0xff]
    %v5453 = vld [vmem:[%s5436 + $0xc0] sm:$0xff]
    %v5454 = vld [vmem:[%s5436 + $0xc8] sm:$0xff]
    %v5455 = vld [vmem:[%s5436 + $0xd8] sm:$0xff]
    %v5456 = vld [vmem:[%s5436 + $0xe0] sm:$0xff]
    %v5457 = vld [vmem:[%s5436 + $0xf0] sm:$0xff]
    %v5458 = vld [vmem:[%s5436 + $0xf8] sm:$0xff]
    %v5459 = vld [vmem:[%s5436 + $0x108] sm:$0xff]
    %v5460 = vld [vmem:[%s5436 + $0x110] sm:$0xff]
    %v5461 = vld [vmem:[%s5436 + $0x120] sm:$0xff]
    %v5462 = vld [vmem:[%s5436 + $0x128] sm:$0xff]
    %v5463 = vld [vmem:[%s5436 + $0x138] sm:$0xff]
    %v5464 = vld [vmem:[%s5436 + $0x140] sm:$0xff]
    %v5465 = vld [vmem:[%s5436 + $0x150] sm:$0xff]
    %v5466 = vld [vmem:[%s5436 + $0x158] sm:$0xff]
    %v5467 = vld [vmem:[%s5436 + $0x168] sm:$0xff]
    %v5468 = vld [vmem:[%s5436 + $0x170] sm:$0xff]
    %v5469 = vld [vmem:[%s5436 + $0x1e0] sm:$0xff]
    %v5470 = vld [vmem:[%s5436 + $0x1e8] sm:$0xff]
    %v5471 = vld [vmem:[%s5436 + $0x1f8] sm:$0xff]
    %v5472 = vld [vmem:[%s5436 + $0x200] sm:$0xff]
    %v5473 = vld [vmem:[%s5436 + $0x210] sm:$0xff]
    %v5474 = vld [vmem:[%s5436 + $0x218] sm:$0xff]
    %v5475 = vld [vmem:[%s5436 + $0x228] sm:$0xff]
    %v5476 = vld [vmem:[%s5436 + $0x230] sm:$0xff]
    %v5477 = vld [vmem:[%s5436 + $0x240] sm:$0xff]
    %v5478 = vld [vmem:[%s5436 + $0x248] sm:$0xff]
    %v5479 = vld [vmem:[%s5436 + $0x258] sm:$0xff]
    %v5480 = vld [vmem:[%s5436 + $0x260] sm:$0xff]
    %v5481 = vld [vmem:[%s5436 + $0x270] sm:$0xff]
    %v5482 = vld [vmem:[%s5436 + $0x278] sm:$0xff]
    %v5483 = vld [vmem:[%s5436 + $0x288] sm:$0xff]
    %v5484 = vld [vmem:[%s5436 + $0x290] sm:$0xff]
    %v5485 = vld [vmem:[%s5436 + $0x2a0] sm:$0xff]
    %v5486 = vld [vmem:[%s5436 + $0x2a8] sm:$0xff]
    %v5487 = vld [vmem:[%s5436 + $0x2b8] sm:$0xff]
    %v5488 = vld [vmem:[%s5436 + $0x2c0] sm:$0xff]
    %v5489 = vld [vmem:[%s5436 + $0x2d0] sm:$0xff]
    %v5490 = vld [vmem:[%s5436 + $0x2d8] sm:$0xff]
    %v5491 = vld [vmem:[%s5436 + $0x2e8] sm:$0xff]
    %v5492 = vld [vmem:[%s5436 + $0x2f0] sm:$0xff]
    %v5493 = vld [vmem:[%s5436 + $0x300] sm:$0xff]
    %v5494 = vld [vmem:[%s5436 + $0x308] sm:$0xff]
    %v5495 = vld [vmem:[%s5436 + $0x318] sm:$0xff]
    %v5496 = vld [vmem:[%s5436 + $0x320] sm:$0xff]
    %v5497 = vld [vmem:[%s5436 + $0x330] sm:$0xff]
    %v5498 = vld [vmem:[%s5436 + $0x338] sm:$0xff]
    %v5499 = vld [vmem:[%s5436 + $0x348] sm:$0xff]
    %v5500 = vld [vmem:[%s5436 + $0x350] sm:$0xff]
    %5501 = vst [vmem:[#allocation4 + $0x30] sm:$0xff] %v5437
    %5502 = vst [vmem:[#allocation4 + $0x78] sm:$0xff] %v5438
    %5503 = vst [vmem:[#allocation4 + $0xc0] sm:$0xff] %v5439
    %5504 = vst [vmem:[#allocation4 + $0x108] sm:$0xff] %v5440
    %5505 = vst [vmem:[#allocation4 + $0x150] sm:$0xff] %v5441
    %5506 = vst [vmem:[#allocation4 + $0x198] sm:$0xff] %v5442
    %5507 = vst [vmem:[#allocation4 + $0x1e0] sm:$0xff] %v5443
    %5508 = vst [vmem:[#allocation4 + $0x228] sm:$0xff] %v5444
    %5509 = vst [vmem:[#allocation4 + $0x270] sm:$0xff] %v5445
    %5510 = vst [vmem:[#allocation4 + $0x2b8] sm:$0xff] %v5446
    %5511 = vst [vmem:[#allocation4 + $0x300] sm:$0xff] %v5447
    %5512 = vst [vmem:[#allocation4 + $0x348] sm:$0xff] %v5448
    %5513 = vst [vmem:[#allocation4 + $0x390] sm:$0xff] %v5449
    %5514 = vst [vmem:[#allocation4 + $0x3d8] sm:$0xff] %v5450
    %5515 = vst [vmem:[#allocation4 + $0x420] sm:$0xff] %v5451
    %5516 = vst [vmem:[#allocation4 + $0x468] sm:$0xff] %v5452
    %5517 = vst [vmem:[#allocation4 + $0x4b0] sm:$0xff] %v5453
    %5518 = vst [vmem:[#allocation4 + $0x4f8] sm:$0xff] %v5454
    %5519 = vst [vmem:[#allocation4 + $0x540] sm:$0xff] %v5455
    %5520 = vst [vmem:[#allocation4 + $0x588] sm:$0xff] %v5456
    %5521 = vst [vmem:[#allocation4 + $0x5d0] sm:$0xff] %v5457
    %5522 = vst [vmem:[#allocation4 + $0x618] sm:$0xff] %v5458
    %5523 = vst [vmem:[#allocation4 + $0x660] sm:$0xff] %v5459
    %5524 = vst [vmem:[#allocation4 + $0x6a8] sm:$0xff] %v5460
    %5525 = vst [vmem:[#allocation4 + $0x6f0] sm:$0xff] %v5461
    %5526 = vst [vmem:[#allocation4 + $0x738] sm:$0xff] %v5462
    %5527 = vst [vmem:[#allocation4 + $0x780] sm:$0xff] %v5463
    %5528 = vst [vmem:[#allocation4 + $0x7c8] sm:$0xff] %v5464
    %5529 = vst [vmem:[#allocation4 + $0x810] sm:$0xff] %v5465
    %5530 = vst [vmem:[#allocation4 + $0x858] sm:$0xff] %v5466
    %5531 = vst [vmem:[#allocation4 + $0x8a0] sm:$0xff] %v5467
    %5532 = vst [vmem:[#allocation4 + $0x8e8] sm:$0xff] %v5468
    %5533 = vst [vmem:[#allocation4 + $0x930] sm:$0xff] %v5469
    %5534 = vst [vmem:[#allocation4 + $0x978] sm:$0xff] %v5470
    %5535 = vst [vmem:[#allocation4 + $0x9c0] sm:$0xff] %v5471
    %5536 = vst [vmem:[#allocation4 + $0xa08] sm:$0xff] %v5472
    %5537 = vst [vmem:[#allocation4 + $0xa50] sm:$0xff] %v5473
    %5538 = vst [vmem:[#allocation4 + $0xa98] sm:$0xff] %v5474
    %5539 = vst [vmem:[#allocation4 + $0xae0] sm:$0xff] %v5475
    %5540 = vst [vmem:[#allocation4 + $0xb28] sm:$0xff] %v5476
    %5541 = vst [vmem:[#allocation4 + $0xb70] sm:$0xff] %v5477
    %5542 = vst [vmem:[#allocation4 + $0xbb8] sm:$0xff] %v5478
    %5543 = vst [vmem:[#allocation4 + $0xc00] sm:$0xff] %v5479
    %5544 = vst [vmem:[#allocation4 + $0xc48] sm:$0xff] %v5480
    %5545 = vst [vmem:[#allocation4 + $0xc90] sm:$0xff] %v5481
    %5546 = vst [vmem:[#allocation4 + $0xcd8] sm:$0xff] %v5482
    %5547 = vst [vmem:[#allocation4 + $0xd20] sm:$0xff] %v5483
    %5548 = vst [vmem:[#allocation4 + $0xd68] sm:$0xff] %v5484
    %5549 = vst [vmem:[#allocation4 + $0xdb0] sm:$0xff] %v5485
    %5550 = vst [vmem:[#allocation4 + $0xdf8] sm:$0xff] %v5486
    %5551 = vst [vmem:[#allocation4 + $0xe40] sm:$0xff] %v5487
    %5552 = vst [vmem:[#allocation4 + $0xe88] sm:$0xff] %v5488
    %5553 = vst [vmem:[#allocation4 + $0xed0] sm:$0xff] %v5489
    %5554 = vst [vmem:[#allocation4 + $0xf18] sm:$0xff] %v5490
    %5555 = vst [vmem:[#allocation4 + $0xf60] sm:$0xff] %v5491
    %5556 = vst [vmem:[#allocation4 + $0xfa8] sm:$0xff] %v5492
    %5557 = vst [vmem:[#allocation4 + $0xff0] sm:$0xff] %v5493
    %5558 = vst [vmem:[#allocation4 + $0x1038] sm:$0xff] %v5494
    %5559 = vst [vmem:[#allocation4 + $0x1080] sm:$0xff] %v5495
    %5560 = vst [vmem:[#allocation4 + $0x10c8] sm:$0xff] %v5496
    %5561 = vst [vmem:[#allocation4 + $0x1110] sm:$0xff] %v5497
    %5562 = vst [vmem:[#allocation4 + $0x1158] sm:$0xff] %v5498
    %5563 = vst [vmem:[#allocation4 + $0x11a0] sm:$0xff] %v5499
    %5564 = vst [vmem:[#allocation4 + $0x11e8] sm:$0xff] %v5500
    %v5565 = vld [vmem:[%s5436 + $0x2] sm:$0xff]
    %v5566 = vld [vmem:[%s5436 + $0xa] sm:$0xff]
    %v5567 = vld [vmem:[%s5436 + $0x1a] sm:$0xff]
    %v5568 = vld [vmem:[%s5436 + $0x22] sm:$0xff]
    %v5569 = vld [vmem:[%s5436 + $0x32] sm:$0xff]
    %v5570 = vld [vmem:[%s5436 + $0x3a] sm:$0xff]
    %v5571 = vld [vmem:[%s5436 + $0x4a] sm:$0xff]
    %v5572 = vld [vmem:[%s5436 + $0x52] sm:$0xff]
    %v5573 = vld [vmem:[%s5436 + $0x62] sm:$0xff]
    %v5574 = vld [vmem:[%s5436 + $0x6a] sm:$0xff]
    %v5575 = vld [vmem:[%s5436 + $0x7a] sm:$0xff]
    %v5576 = vld [vmem:[%s5436 + $0x82] sm:$0xff]
    %v5577 = vld [vmem:[%s5436 + $0x92] sm:$0xff]
    %v5578 = vld [vmem:[%s5436 + $0x9a] sm:$0xff]
    %v5579 = vld [vmem:[%s5436 + $0xaa] sm:$0xff]
    %v5580 = vld [vmem:[%s5436 + $0xb2] sm:$0xff]
    %v5581 = vld [vmem:[%s5436 + $0xc2] sm:$0xff]
    %v5582 = vld [vmem:[%s5436 + $0xca] sm:$0xff]
    %v5583 = vld [vmem:[%s5436 + $0xda] sm:$0xff]
    %v5584 = vld [vmem:[%s5436 + $0xe2] sm:$0xff]
    %v5585 = vld [vmem:[%s5436 + $0xf2] sm:$0xff]
    %v5586 = vld [vmem:[%s5436 + $0xfa] sm:$0xff]
    %v5587 = vld [vmem:[%s5436 + $0x10a] sm:$0xff]
    %v5588 = vld [vmem:[%s5436 + $0x112] sm:$0xff]
    %v5589 = vld [vmem:[%s5436 + $0x122] sm:$0xff]
    %v5590 = vld [vmem:[%s5436 + $0x12a] sm:$0xff]
    %v5591 = vld [vmem:[%s5436 + $0x13a] sm:$0xff]
    %v5592 = vld [vmem:[%s5436 + $0x142] sm:$0xff]
    %v5593 = vld [vmem:[%s5436 + $0x152] sm:$0xff]
    %v5594 = vld [vmem:[%s5436 + $0x15a] sm:$0xff]
    %v5595 = vld [vmem:[%s5436 + $0x16a] sm:$0xff]
    %v5596 = vld [vmem:[%s5436 + $0x172] sm:$0xff]
    %v5597 = vld [vmem:[%s5436 + $0x1e2] sm:$0xff]
    %v5598 = vld [vmem:[%s5436 + $0x1ea] sm:$0xff]
    %v5599 = vld [vmem:[%s5436 + $0x1fa] sm:$0xff]
    %v5600 = vld [vmem:[%s5436 + $0x202] sm:$0xff]
    %v5601 = vld [vmem:[%s5436 + $0x212] sm:$0xff]
    %v5602 = vld [vmem:[%s5436 + $0x21a] sm:$0xff]
    %v5603 = vld [vmem:[%s5436 + $0x22a] sm:$0xff]
    %v5604 = vld [vmem:[%s5436 + $0x232] sm:$0xff]
    %v5605 = vld [vmem:[%s5436 + $0x242] sm:$0xff]
    %v5606 = vld [vmem:[%s5436 + $0x24a] sm:$0xff]
    %v5607 = vld [vmem:[%s5436 + $0x25a] sm:$0xff]
    %v5608 = vld [vmem:[%s5436 + $0x262] sm:$0xff]
    %v5609 = vld [vmem:[%s5436 + $0x272] sm:$0xff]
    %v5610 = vld [vmem:[%s5436 + $0x27a] sm:$0xff]
    %v5611 = vld [vmem:[%s5436 + $0x28a] sm:$0xff]
    %v5612 = vld [vmem:[%s5436 + $0x292] sm:$0xff]
    %v5613 = vld [vmem:[%s5436 + $0x2a2] sm:$0xff]
    %v5614 = vld [vmem:[%s5436 + $0x2aa] sm:$0xff]
    %v5615 = vld [vmem:[%s5436 + $0x2ba] sm:$0xff]
    %v5616 = vld [vmem:[%s5436 + $0x2c2] sm:$0xff]
    %v5617 = vld [vmem:[%s5436 + $0x2d2] sm:$0xff]
    %v5618 = vld [vmem:[%s5436 + $0x2da] sm:$0xff]
    %v5619 = vld [vmem:[%s5436 + $0x2ea] sm:$0xff]
    %v5620 = vld [vmem:[%s5436 + $0x2f2] sm:$0xff]
    %v5621 = vld [vmem:[%s5436 + $0x302] sm:$0xff]
    %v5622 = vld [vmem:[%s5436 + $0x30a] sm:$0xff]
    %v5623 = vld [vmem:[%s5436 + $0x31a] sm:$0xff]
    %v5624 = vld [vmem:[%s5436 + $0x322] sm:$0xff]
    %v5625 = vld [vmem:[%s5436 + $0x332] sm:$0xff]
    %v5626 = vld [vmem:[%s5436 + $0x33a] sm:$0xff]
    %v5627 = vld [vmem:[%s5436 + $0x34a] sm:$0xff]
    %v5628 = vld [vmem:[%s5436 + $0x352] sm:$0xff]
    %5629 = vst [vmem:[#allocation4 + $0x38] sm:$0xff] %v5565
    %5630 = vst [vmem:[#allocation4 + $0x80] sm:$0xff] %v5566
    %5631 = vst [vmem:[#allocation4 + $0xc8] sm:$0xff] %v5567
    %5632 = vst [vmem:[#allocation4 + $0x110] sm:$0xff] %v5568
    %5633 = vst [vmem:[#allocation4 + $0x158] sm:$0xff] %v5569
    %5634 = vst [vmem:[#allocation4 + $0x1a0] sm:$0xff] %v5570
    %5635 = vst [vmem:[#allocation4 + $0x1e8] sm:$0xff] %v5571
    %5636 = vst [vmem:[#allocation4 + $0x230] sm:$0xff] %v5572
    %5637 = vst [vmem:[#allocation4 + $0x278] sm:$0xff] %v5573
    %5638 = vst [vmem:[#allocation4 + $0x2c0] sm:$0xff] %v5574
    %5639 = vst [vmem:[#allocation4 + $0x308] sm:$0xff] %v5575
    %5640 = vst [vmem:[#allocation4 + $0x350] sm:$0xff] %v5576
    %5641 = vst [vmem:[#allocation4 + $0x398] sm:$0xff] %v5577
    %5642 = vst [vmem:[#allocation4 + $0x3e0] sm:$0xff] %v5578
    %5643 = vst [vmem:[#allocation4 + $0x428] sm:$0xff] %v5579
    %5644 = vst [vmem:[#allocation4 + $0x470] sm:$0xff] %v5580
    %5645 = vst [vmem:[#allocation4 + $0x4b8] sm:$0xff] %v5581
    %5646 = vst [vmem:[#allocation4 + $0x500] sm:$0xff] %v5582
    %5647 = vst [vmem:[#allocation4 + $0x548] sm:$0xff] %v5583
    %5648 = vst [vmem:[#allocation4 + $0x590] sm:$0xff] %v5584
    %5649 = vst [vmem:[#allocation4 + $0x5d8] sm:$0xff] %v5585
    %5650 = vst [vmem:[#allocation4 + $0x620] sm:$0xff] %v5586
    %5651 = vst [vmem:[#allocation4 + $0x668] sm:$0xff] %v5587
    %5652 = vst [vmem:[#allocation4 + $0x6b0] sm:$0xff] %v5588
    %5653 = vst [vmem:[#allocation4 + $0x6f8] sm:$0xff] %v5589
    %5654 = vst [vmem:[#allocation4 + $0x740] sm:$0xff] %v5590
    %5655 = vst [vmem:[#allocation4 + $0x788] sm:$0xff] %v5591
    %5656 = vst [vmem:[#allocation4 + $0x7d0] sm:$0xff] %v5592
    %5657 = vst [vmem:[#allocation4 + $0x818] sm:$0xff] %v5593
    %5658 = vst [vmem:[#allocation4 + $0x860] sm:$0xff] %v5594
    %5659 = vst [vmem:[#allocation4 + $0x8a8] sm:$0xff] %v5595
    %5660 = vst [vmem:[#allocation4 + $0x8f0] sm:$0xff] %v5596
    %5661 = vst [vmem:[#allocation4 + $0x938] sm:$0xff] %v5597
    %5662 = vst [vmem:[#allocation4 + $0x980] sm:$0xff] %v5598
    %5663 = vst [vmem:[#allocation4 + $0x9c8] sm:$0xff] %v5599
    %5664 = vst [vmem:[#allocation4 + $0xa10] sm:$0xff] %v5600
    %5665 = vst [vmem:[#allocation4 + $0xa58] sm:$0xff] %v5601
    %5666 = vst [vmem:[#allocation4 + $0xaa0] sm:$0xff] %v5602
    %5667 = vst [vmem:[#allocation4 + $0xae8] sm:$0xff] %v5603
    %5668 = vst [vmem:[#allocation4 + $0xb30] sm:$0xff] %v5604
    %5669 = vst [vmem:[#allocation4 + $0xb78] sm:$0xff] %v5605
    %5670 = vst [vmem:[#allocation4 + $0xbc0] sm:$0xff] %v5606
    %5671 = vst [vmem:[#allocation4 + $0xc08] sm:$0xff] %v5607
    %5672 = vst [vmem:[#allocation4 + $0xc50] sm:$0xff] %v5608
    %5673 = vst [vmem:[#allocation4 + $0xc98] sm:$0xff] %v5609
    %5674 = vst [vmem:[#allocation4 + $0xce0] sm:$0xff] %v5610
    %5675 = vst [vmem:[#allocation4 + $0xd28] sm:$0xff] %v5611
    %5676 = vst [vmem:[#allocation4 + $0xd70] sm:$0xff] %v5612
    %5677 = vst [vmem:[#allocation4 + $0xdb8] sm:$0xff] %v5613
    %5678 = vst [vmem:[#allocation4 + $0xe00] sm:$0xff] %v5614
    %5679 = vst [vmem:[#allocation4 + $0xe48] sm:$0xff] %v5615
    %5680 = vst [vmem:[#allocation4 + $0xe90] sm:$0xff] %v5616
    %5681 = vst [vmem:[#allocation4 + $0xed8] sm:$0xff] %v5617
    %5682 = vst [vmem:[#allocation4 + $0xf20] sm:$0xff] %v5618
    %5683 = vst [vmem:[#allocation4 + $0xf68] sm:$0xff] %v5619
    %5684 = vst [vmem:[#allocation4 + $0xfb0] sm:$0xff] %v5620
    %5685 = vst [vmem:[#allocation4 + $0xff8] sm:$0xff] %v5621
    %5686 = vst [vmem:[#allocation4 + $0x1040] sm:$0xff] %v5622
    %5687 = vst [vmem:[#allocation4 + $0x1088] sm:$0xff] %v5623
    %5688 = vst [vmem:[#allocation4 + $0x10d0] sm:$0xff] %v5624
    %5689 = vst [vmem:[#allocation4 + $0x1118] sm:$0xff] %v5625
    %5690 = vst [vmem:[#allocation4 + $0x1160] sm:$0xff] %v5626
    %5691 = vst [vmem:[#allocation4 + $0x11a8] sm:$0xff] %v5627
    %5692 = vst [vmem:[#allocation4 + $0x11f0] sm:$0xff] %v5628
    %v5693 = vld [vmem:[%s5436 + $0x4] sm:$0xff]
    %v5694 = vld [vmem:[%s5436 + $0xc] sm:$0xff]
    %v5695 = vld [vmem:[%s5436 + $0x1c] sm:$0xff]
    %v5696 = vld [vmem:[%s5436 + $0x24] sm:$0xff]
    %v5697 = vld [vmem:[%s5436 + $0x34] sm:$0xff]
    %v5698 = vld [vmem:[%s5436 + $0x3c] sm:$0xff]
    %v5699 = vld [vmem:[%s5436 + $0x4c] sm:$0xff]
    %v5700 = vld [vmem:[%s5436 + $0x54] sm:$0xff]
    %v5701 = vld [vmem:[%s5436 + $0x64] sm:$0xff]
    %v5702 = vld [vmem:[%s5436 + $0x6c] sm:$0xff]
    %v5703 = vld [vmem:[%s5436 + $0x7c] sm:$0xff]
    %v5704 = vld [vmem:[%s5436 + $0x84] sm:$0xff]
    %v5705 = vld [vmem:[%s5436 + $0x94] sm:$0xff]
    %v5706 = vld [vmem:[%s5436 + $0x9c] sm:$0xff]
    %v5707 = vld [vmem:[%s5436 + $0xac] sm:$0xff]
    %v5708 = vld [vmem:[%s5436 + $0xb4] sm:$0xff]
    %v5709 = vld [vmem:[%s5436 + $0xc4] sm:$0xff]
    %v5710 = vld [vmem:[%s5436 + $0xcc] sm:$0xff]
    %v5711 = vld [vmem:[%s5436 + $0xdc] sm:$0xff]
    %v5712 = vld [vmem:[%s5436 + $0xe4] sm:$0xff]
    %v5713 = vld [vmem:[%s5436 + $0xf4] sm:$0xff]
    %v5714 = vld [vmem:[%s5436 + $0xfc] sm:$0xff]
    %v5715 = vld [vmem:[%s5436 + $0x10c] sm:$0xff]
    %v5716 = vld [vmem:[%s5436 + $0x114] sm:$0xff]
    %v5717 = vld [vmem:[%s5436 + $0x124] sm:$0xff]
    %v5718 = vld [vmem:[%s5436 + $0x12c] sm:$0xff]
    %v5719 = vld [vmem:[%s5436 + $0x13c] sm:$0xff]
    %v5720 = vld [vmem:[%s5436 + $0x144] sm:$0xff]
    %v5721 = vld [vmem:[%s5436 + $0x154] sm:$0xff]
    %v5722 = vld [vmem:[%s5436 + $0x15c] sm:$0xff]
    %v5723 = vld [vmem:[%s5436 + $0x16c] sm:$0xff]
    %v5724 = vld [vmem:[%s5436 + $0x174] sm:$0xff]
    %v5725 = vld [vmem:[%s5436 + $0x1e4] sm:$0xff]
    %v5726 = vld [vmem:[%s5436 + $0x1ec] sm:$0xff]
    %v5727 = vld [vmem:[%s5436 + $0x1fc] sm:$0xff]
    %v5728 = vld [vmem:[%s5436 + $0x204] sm:$0xff]
    %v5729 = vld [vmem:[%s5436 + $0x214] sm:$0xff]
    %v5730 = vld [vmem:[%s5436 + $0x21c] sm:$0xff]
    %v5731 = vld [vmem:[%s5436 + $0x22c] sm:$0xff]
    %v5732 = vld [vmem:[%s5436 + $0x234] sm:$0xff]
    %v5733 = vld [vmem:[%s5436 + $0x244] sm:$0xff]
    %v5734 = vld [vmem:[%s5436 + $0x24c] sm:$0xff]
    %v5735 = vld [vmem:[%s5436 + $0x25c] sm:$0xff]
    %v5736 = vld [vmem:[%s5436 + $0x264] sm:$0xff]
    %v5737 = vld [vmem:[%s5436 + $0x274] sm:$0xff]
    %v5738 = vld [vmem:[%s5436 + $0x27c] sm:$0xff]
    %v5739 = vld [vmem:[%s5436 + $0x28c] sm:$0xff]
    %v5740 = vld [vmem:[%s5436 + $0x294] sm:$0xff]
    %v5741 = vld [vmem:[%s5436 + $0x2a4] sm:$0xff]
    %v5742 = vld [vmem:[%s5436 + $0x2ac] sm:$0xff]
    %v5743 = vld [vmem:[%s5436 + $0x2bc] sm:$0xff]
    %v5744 = vld [vmem:[%s5436 + $0x2c4] sm:$0xff]
    %v5745 = vld [vmem:[%s5436 + $0x2d4] sm:$0xff]
    %v5746 = vld [vmem:[%s5436 + $0x2dc] sm:$0xff]
    %v5747 = vld [vmem:[%s5436 + $0x2ec] sm:$0xff]
    %v5748 = vld [vmem:[%s5436 + $0x2f4] sm:$0xff]
    %v5749 = vld [vmem:[%s5436 + $0x304] sm:$0xff]
    %v5750 = vld [vmem:[%s5436 + $0x30c] sm:$0xff]
    %v5751 = vld [vmem:[%s5436 + $0x31c] sm:$0xff]
    %v5752 = vld [vmem:[%s5436 + $0x324] sm:$0xff]
    %v5753 = vld [vmem:[%s5436 + $0x334] sm:$0xff]
    %v5754 = vld [vmem:[%s5436 + $0x33c] sm:$0xff]
    %v5755 = vld [vmem:[%s5436 + $0x34c] sm:$0xff]
    %v5756 = vld [vmem:[%s5436 + $0x354] sm:$0xff]
    %5757 = vst [vmem:[#allocation4 + $0x40] sm:$0xff] %v5693
    %5758 = vst [vmem:[#allocation4 + $0x88] sm:$0xff] %v5694
    %5759 = vst [vmem:[#allocation4 + $0xd0] sm:$0xff] %v5695
    %5760 = vst [vmem:[#allocation4 + $0x118] sm:$0xff] %v5696
    %5761 = vst [vmem:[#allocation4 + $0x160] sm:$0xff] %v5697
    %5762 = vst [vmem:[#allocation4 + $0x1a8] sm:$0xff] %v5698
    %5763 = vst [vmem:[#allocation4 + $0x1f0] sm:$0xff] %v5699
    %5764 = vst [vmem:[#allocation4 + $0x238] sm:$0xff] %v5700
    %5765 = vst [vmem:[#allocation4 + $0x280] sm:$0xff] %v5701
    %5766 = vst [vmem:[#allocation4 + $0x2c8] sm:$0xff] %v5702
    %5767 = vst [vmem:[#allocation4 + $0x310] sm:$0xff] %v5703
    %5768 = vst [vmem:[#allocation4 + $0x358] sm:$0xff] %v5704
    %5769 = vst [vmem:[#allocation4 + $0x3a0] sm:$0xff] %v5705
    %5770 = vst [vmem:[#allocation4 + $0x3e8] sm:$0xff] %v5706
    %5771 = vst [vmem:[#allocation4 + $0x430] sm:$0xff] %v5707
    %5772 = vst [vmem:[#allocation4 + $0x478] sm:$0xff] %v5708
    %5773 = vst [vmem:[#allocation4 + $0x4c0] sm:$0xff] %v5709
    %5774 = vst [vmem:[#allocation4 + $0x508] sm:$0xff] %v5710
    %5775 = vst [vmem:[#allocation4 + $0x550] sm:$0xff] %v5711
    %5776 = vst [vmem:[#allocation4 + $0x598] sm:$0xff] %v5712
    %5777 = vst [vmem:[#allocation4 + $0x5e0] sm:$0xff] %v5713
    %5778 = vst [vmem:[#allocation4 + $0x628] sm:$0xff] %v5714
    %5779 = vst [vmem:[#allocation4 + $0x670] sm:$0xff] %v5715
    %5780 = vst [vmem:[#allocation4 + $0x6b8] sm:$0xff] %v5716
    %5781 = vst [vmem:[#allocation4 + $0x700] sm:$0xff] %v5717
    %5782 = vst [vmem:[#allocation4 + $0x748] sm:$0xff] %v5718
    %5783 = vst [vmem:[#allocation4 + $0x790] sm:$0xff] %v5719
    %5784 = vst [vmem:[#allocation4 + $0x7d8] sm:$0xff] %v5720
    %5785 = vst [vmem:[#allocation4 + $0x820] sm:$0xff] %v5721
    %5786 = vst [vmem:[#allocation4 + $0x868] sm:$0xff] %v5722
    %5787 = vst [vmem:[#allocation4 + $0x8b0] sm:$0xff] %v5723
    %5788 = vst [vmem:[#allocation4 + $0x8f8] sm:$0xff] %v5724
    %5789 = vst [vmem:[#allocation4 + $0x940] sm:$0xff] %v5725
    %5790 = vst [vmem:[#allocation4 + $0x988] sm:$0xff] %v5726
    %5791 = vst [vmem:[#allocation4 + $0x9d0] sm:$0xff] %v5727
    %5792 = vst [vmem:[#allocation4 + $0xa18] sm:$0xff] %v5728
    %5793 = vst [vmem:[#allocation4 + $0xa60] sm:$0xff] %v5729
    %5794 = vst [vmem:[#allocation4 + $0xaa8] sm:$0xff] %v5730
    %5795 = vst [vmem:[#allocation4 + $0xaf0] sm:$0xff] %v5731
    %5796 = vst [vmem:[#allocation4 + $0xb38] sm:$0xff] %v5732
    %5797 = vst [vmem:[#allocation4 + $0xb80] sm:$0xff] %v5733
    %5798 = vst [vmem:[#allocation4 + $0xbc8] sm:$0xff] %v5734
    %5799 = vst [vmem:[#allocation4 + $0xc10] sm:$0xff] %v5735
    %5800 = vst [vmem:[#allocation4 + $0xc58] sm:$0xff] %v5736
    %5801 = vst [vmem:[#allocation4 + $0xca0] sm:$0xff] %v5737
    %5802 = vst [vmem:[#allocation4 + $0xce8] sm:$0xff] %v5738
    %5803 = vst [vmem:[#allocation4 + $0xd30] sm:$0xff] %v5739
    %5804 = vst [vmem:[#allocation4 + $0xd78] sm:$0xff] %v5740
    %5805 = vst [vmem:[#allocation4 + $0xdc0] sm:$0xff] %v5741
    %5806 = vst [vmem:[#allocation4 + $0xe08] sm:$0xff] %v5742
    %5807 = vst [vmem:[#allocation4 + $0xe50] sm:$0xff] %v5743
    %5808 = vst [vmem:[#allocation4 + $0xe98] sm:$0xff] %v5744
    %5809 = vst [vmem:[#allocation4 + $0xee0] sm:$0xff] %v5745
    %5810 = vst [vmem:[#allocation4 + $0xf28] sm:$0xff] %v5746
    %5811 = vst [vmem:[#allocation4 + $0xf70] sm:$0xff] %v5747
    %5812 = vst [vmem:[#allocation4 + $0xfb8] sm:$0xff] %v5748
    %5813 = vst [vmem:[#allocation4 + $0x1000] sm:$0xff] %v5749
    %5814 = vst [vmem:[#allocation4 + $0x1048] sm:$0xff] %v5750
    %5815 = vst [vmem:[#allocation4 + $0x1090] sm:$0xff] %v5751
    %5816 = vst [vmem:[#allocation4 + $0x10d8] sm:$0xff] %v5752
    %5817 = vst [vmem:[#allocation4 + $0x1120] sm:$0xff] %v5753
    %5818 = vst [vmem:[#allocation4 + $0x1168] sm:$0xff] %v5754
    %5819 = vst [vmem:[#allocation4 + $0x11b0] sm:$0xff] %v5755
    %5820 = vst [vmem:[#allocation4 + $0x11f8] sm:$0xff] %v5756
    %v5821 = vld [vmem:[#allocation4] sm:$0xff]
    %v5822 = vld [vmem:[#allocation4 + $0x8] sm:$0xff]
    %v5823 = vld [vmem:[#allocation4 + $0x10] sm:$0xff]
    %v5824 = vld [vmem:[#allocation4 + $0x18] sm:$0xff]
    %v5825 = vld [vmem:[#allocation4 + $0x20] sm:$0xff]
    %v5826 = vld [vmem:[#allocation4 + $0x28] sm:$0xff]
    %v5827 = vld [vmem:[#allocation4 + $0x30] sm:$0xff]
    %v5828 = vld [vmem:[#allocation4 + $0x38] sm:$0xff]
    %v5829 = vld [vmem:[#allocation4 + $0x40] sm:$0xff]
    %v5830 = vld [vmem:[#allocation4 + $0x48] sm:$0xff]
    %v5831 = vld [vmem:[#allocation4 + $0x50] sm:$0xff]
    %v5832 = vld [vmem:[#allocation4 + $0x58] sm:$0xff]
    %v5833 = vld [vmem:[#allocation4 + $0x60] sm:$0xff]
    %v5834 = vld [vmem:[#allocation4 + $0x68] sm:$0xff]
    %v5835 = vld [vmem:[#allocation4 + $0x70] sm:$0xff]
    %v5836 = vld [vmem:[#allocation4 + $0x78] sm:$0xff]
    %v5837 = vld [vmem:[#allocation4 + $0x80] sm:$0xff]
    %v5838 = vld [vmem:[#allocation4 + $0x88] sm:$0xff]
    %v5839 = vld [vmem:[#allocation4 + $0x90] sm:$0xff]
    %v5840 = vld [vmem:[#allocation4 + $0x98] sm:$0xff]
    %v5841 = vld [vmem:[#allocation4 + $0xa0] sm:$0xff]
    %v5842 = vld [vmem:[#allocation4 + $0xa8] sm:$0xff]
    %v5843 = vld [vmem:[#allocation4 + $0xb0] sm:$0xff]
    %v5844 = vld [vmem:[#allocation4 + $0xb8] sm:$0xff]
    %v5845 = vld [vmem:[#allocation4 + $0xc0] sm:$0xff]
    %v5846 = vld [vmem:[#allocation4 + $0xc8] sm:$0xff]
    %v5847 = vld [vmem:[#allocation4 + $0xd0] sm:$0xff]
    %v5848 = vld [vmem:[#allocation4 + $0xd8] sm:$0xff]
    %v5849 = vld [vmem:[#allocation4 + $0xe0] sm:$0xff]
    %v5850 = vld [vmem:[#allocation4 + $0xe8] sm:$0xff]
    %v5851 = vld [vmem:[#allocation4 + $0xf0] sm:$0xff]
    %v5852 = vld [vmem:[#allocation4 + $0xf8] sm:$0xff]
    %v5853 = vld [vmem:[#allocation4 + $0x100] sm:$0xff]
    %v5854 = vld [vmem:[#allocation4 + $0x108] sm:$0xff]
    %v5855 = vld [vmem:[#allocation4 + $0x110] sm:$0xff]
    %v5856 = vld [vmem:[#allocation4 + $0x118] sm:$0xff]
    %v5857 = vld [vmem:[#allocation4 + $0x120] sm:$0xff]
    %v5858 = vld [vmem:[#allocation4 + $0x128] sm:$0xff]
    %v5859 = vld [vmem:[#allocation4 + $0x130] sm:$0xff]
    %v5860 = vld [vmem:[#allocation4 + $0x138] sm:$0xff]
    %v5861 = vld [vmem:[#allocation4 + $0x140] sm:$0xff]
    %v5862 = vld [vmem:[#allocation4 + $0x148] sm:$0xff]
    %v5863 = vld [vmem:[#allocation4 + $0x150] sm:$0xff]
    %v5864 = vld [vmem:[#allocation4 + $0x158] sm:$0xff]
    %v5865 = vld [vmem:[#allocation4 + $0x160] sm:$0xff]
    %v5866 = vld [vmem:[#allocation4 + $0x168] sm:$0xff]
    %v5867 = vld [vmem:[#allocation4 + $0x170] sm:$0xff]
    %v5868 = vld [vmem:[#allocation4 + $0x178] sm:$0xff]
    %v5869 = vld [vmem:[#allocation4 + $0x180] sm:$0xff]
    %v5870 = vld [vmem:[#allocation4 + $0x188] sm:$0xff]
    %v5871 = vld [vmem:[#allocation4 + $0x190] sm:$0xff]
    %v5872 = vld [vmem:[#allocation4 + $0x198] sm:$0xff]
    %v5873 = vld [vmem:[#allocation4 + $0x1a0] sm:$0xff]
    %v5874 = vld [vmem:[#allocation4 + $0x1a8] sm:$0xff]
    %v5875 = vld [vmem:[#allocation4 + $0x1b0] sm:$0xff]
    %v5876 = vld [vmem:[#allocation4 + $0x1b8] sm:$0xff]
    %v5877 = vld [vmem:[#allocation4 + $0x1c0] sm:$0xff]
    %v5878 = vld [vmem:[#allocation4 + $0x1c8] sm:$0xff]
    %v5879 = vld [vmem:[#allocation4 + $0x1d0] sm:$0xff]
    %v5880 = vld [vmem:[#allocation4 + $0x1d8] sm:$0xff]
    %v5881 = vld [vmem:[#allocation4 + $0x1e0] sm:$0xff]
    %v5882 = vld [vmem:[#allocation4 + $0x1e8] sm:$0xff]
    %v5883 = vld [vmem:[#allocation4 + $0x1f0] sm:$0xff]
    %v5884 = vld [vmem:[#allocation4 + $0x1f8] sm:$0xff]
    %v5885 = vld [vmem:[#allocation4 + $0x200] sm:$0xff]
    %v5886 = vld [vmem:[#allocation4 + $0x208] sm:$0xff]
    %v5887 = vld [vmem:[#allocation4 + $0x210] sm:$0xff]
    %v5888 = vld [vmem:[#allocation4 + $0x218] sm:$0xff]
    %v5889 = vld [vmem:[#allocation4 + $0x220] sm:$0xff]
    %v5890 = vld [vmem:[#allocation4 + $0x228] sm:$0xff]
    %v5891 = vld [vmem:[#allocation4 + $0x230] sm:$0xff]
    %v5892 = vld [vmem:[#allocation4 + $0x238] sm:$0xff]
    %v5893 = vld [vmem:[#allocation4 + $0x240] sm:$0xff]
    %v5894 = vld [vmem:[#allocation4 + $0x248] sm:$0xff]
    %v5895 = vld [vmem:[#allocation4 + $0x250] sm:$0xff]
    %v5896 = vld [vmem:[#allocation4 + $0x258] sm:$0xff]
    %v5897 = vld [vmem:[#allocation4 + $0x260] sm:$0xff]
    %v5898 = vld [vmem:[#allocation4 + $0x268] sm:$0xff]
    %v5899 = vld [vmem:[#allocation4 + $0x270] sm:$0xff]
    %v5900 = vld [vmem:[#allocation4 + $0x278] sm:$0xff]
    %v5901 = vld [vmem:[#allocation4 + $0x280] sm:$0xff]
    %v5902 = vld [vmem:[#allocation4 + $0x288] sm:$0xff]
    %v5903 = vld [vmem:[#allocation4 + $0x290] sm:$0xff]
    %v5904 = vld [vmem:[#allocation4 + $0x298] sm:$0xff]
    %v5905 = vld [vmem:[#allocation4 + $0x2a0] sm:$0xff]
    %v5906 = vld [vmem:[#allocation4 + $0x2a8] sm:$0xff]
    %v5907 = vld [vmem:[#allocation4 + $0x2b0] sm:$0xff]
    %v5908 = vld [vmem:[#allocation4 + $0x2b8] sm:$0xff]
    %v5909 = vld [vmem:[#allocation4 + $0x2c0] sm:$0xff]
    %v5910 = vld [vmem:[#allocation4 + $0x2c8] sm:$0xff]
    %v5911 = vld [vmem:[#allocation4 + $0x2d0] sm:$0xff]
    %v5912 = vld [vmem:[#allocation4 + $0x2d8] sm:$0xff]
    %v5913 = vld [vmem:[#allocation4 + $0x2e0] sm:$0xff]
    %v5914 = vld [vmem:[#allocation4 + $0x2e8] sm:$0xff]
    %v5915 = vld [vmem:[#allocation4 + $0x2f0] sm:$0xff]
    %v5916 = vld [vmem:[#allocation4 + $0x2f8] sm:$0xff]
    %v5917 = vld [vmem:[#allocation4 + $0x300] sm:$0xff]
    %v5918 = vld [vmem:[#allocation4 + $0x308] sm:$0xff]
    %v5919 = vld [vmem:[#allocation4 + $0x310] sm:$0xff]
    %v5920 = vld [vmem:[#allocation4 + $0x318] sm:$0xff]
    %v5921 = vld [vmem:[#allocation4 + $0x320] sm:$0xff]
    %v5922 = vld [vmem:[#allocation4 + $0x328] sm:$0xff]
    %v5923 = vld [vmem:[#allocation4 + $0x330] sm:$0xff]
    %v5924 = vld [vmem:[#allocation4 + $0x338] sm:$0xff]
    %v5925 = vld [vmem:[#allocation4 + $0x340] sm:$0xff]
    %v5926 = vld [vmem:[#allocation4 + $0x348] sm:$0xff]
    %v5927 = vld [vmem:[#allocation4 + $0x350] sm:$0xff]
    %v5928 = vld [vmem:[#allocation4 + $0x358] sm:$0xff]
    %v5929 = vld [vmem:[#allocation4 + $0x360] sm:$0xff]
    %v5930 = vld [vmem:[#allocation4 + $0x368] sm:$0xff]
    %v5931 = vld [vmem:[#allocation4 + $0x370] sm:$0xff]
    %v5932 = vld [vmem:[#allocation4 + $0x378] sm:$0xff]
    %v5933 = vld [vmem:[#allocation4 + $0x380] sm:$0xff]
    %v5934 = vld [vmem:[#allocation4 + $0x388] sm:$0xff]
    %v5935 = vld [vmem:[#allocation4 + $0x390] sm:$0xff]
    %v5936 = vld [vmem:[#allocation4 + $0x398] sm:$0xff]
    %v5937 = vld [vmem:[#allocation4 + $0x3a0] sm:$0xff]
    %v5938 = vld [vmem:[#allocation4 + $0x3a8] sm:$0xff]
    %v5939 = vld [vmem:[#allocation4 + $0x3b0] sm:$0xff]
    %v5940 = vld [vmem:[#allocation4 + $0x3b8] sm:$0xff]
    %v5941 = vld [vmem:[#allocation4 + $0x3c0] sm:$0xff]
    %v5942 = vld [vmem:[#allocation4 + $0x3c8] sm:$0xff]
    %v5943 = vld [vmem:[#allocation4 + $0x3d0] sm:$0xff]
    %v5944 = vld [vmem:[#allocation4 + $0x3d8] sm:$0xff]
    %v5945 = vld [vmem:[#allocation4 + $0x3e0] sm:$0xff]
    %v5946 = vld [vmem:[#allocation4 + $0x3e8] sm:$0xff]
    %v5947 = vld [vmem:[#allocation4 + $0x3f0] sm:$0xff]
    %v5948 = vld [vmem:[#allocation4 + $0x3f8] sm:$0xff]
    %v5949 = vld [vmem:[#allocation4 + $0x400] sm:$0xff]
    %v5950 = vld [vmem:[#allocation4 + $0x408] sm:$0xff]
    %v5951 = vld [vmem:[#allocation4 + $0x410] sm:$0xff]
    %v5952 = vld [vmem:[#allocation4 + $0x418] sm:$0xff]
    %v5953 = vld [vmem:[#allocation4 + $0x420] sm:$0xff]
    %v5954 = vld [vmem:[#allocation4 + $0x428] sm:$0xff]
    %v5955 = vld [vmem:[#allocation4 + $0x430] sm:$0xff]
    %v5956 = vld [vmem:[#allocation4 + $0x438] sm:$0xff]
    %v5957 = vld [vmem:[#allocation4 + $0x440] sm:$0xff]
    %v5958 = vld [vmem:[#allocation4 + $0x448] sm:$0xff]
    %v5959 = vld [vmem:[#allocation4 + $0x450] sm:$0xff]
    %v5960 = vld [vmem:[#allocation4 + $0x458] sm:$0xff]
    %v5961 = vld [vmem:[#allocation4 + $0x460] sm:$0xff]
    %v5962 = vld [vmem:[#allocation4 + $0x468] sm:$0xff]
    %v5963 = vld [vmem:[#allocation4 + $0x470] sm:$0xff]
    %v5964 = vld [vmem:[#allocation4 + $0x478] sm:$0xff]
    %v5965 = vld [vmem:[#allocation4 + $0x480] sm:$0xff]
    %v5966 = vld [vmem:[#allocation4 + $0x488] sm:$0xff]
    %v5967 = vld [vmem:[#allocation4 + $0x490] sm:$0xff]
    %v5968 = vld [vmem:[#allocation4 + $0x498] sm:$0xff]
    %v5969 = vld [vmem:[#allocation4 + $0x4a0] sm:$0xff]
    %v5970 = vld [vmem:[#allocation4 + $0x4a8] sm:$0xff]
    %v5971 = vld [vmem:[#allocation4 + $0x4b0] sm:$0xff]
    %v5972 = vld [vmem:[#allocation4 + $0x4b8] sm:$0xff]
    %v5973 = vld [vmem:[#allocation4 + $0x4c0] sm:$0xff]
    %v5974 = vld [vmem:[#allocation4 + $0x4c8] sm:$0xff]
    %v5975 = vld [vmem:[#allocation4 + $0x4d0] sm:$0xff]
    %v5976 = vld [vmem:[#allocation4 + $0x4d8] sm:$0xff]
    %v5977 = vld [vmem:[#allocation4 + $0x4e0] sm:$0xff]
    %v5978 = vld [vmem:[#allocation4 + $0x4e8] sm:$0xff]
    %v5979 = vld [vmem:[#allocation4 + $0x4f0] sm:$0xff]
    %v5980 = vld [vmem:[#allocation4 + $0x4f8] sm:$0xff]
    %v5981 = vld [vmem:[#allocation4 + $0x500] sm:$0xff]
    %v5982 = vld [vmem:[#allocation4 + $0x508] sm:$0xff]
    %v5983 = vld [vmem:[#allocation4 + $0x510] sm:$0xff]
    %v5984 = vld [vmem:[#allocation4 + $0x518] sm:$0xff]
    %v5985 = vld [vmem:[#allocation4 + $0x520] sm:$0xff]
    %v5986 = vld [vmem:[#allocation4 + $0x528] sm:$0xff]
    %v5987 = vld [vmem:[#allocation4 + $0x530] sm:$0xff]
    %v5988 = vld [vmem:[#allocation4 + $0x538] sm:$0xff]
    %v5989 = vld [vmem:[#allocation4 + $0x540] sm:$0xff]
    %v5990 = vld [vmem:[#allocation4 + $0x548] sm:$0xff]
    %v5991 = vld [vmem:[#allocation4 + $0x550] sm:$0xff]
    %v5992 = vld [vmem:[#allocation4 + $0x558] sm:$0xff]
    %v5993 = vld [vmem:[#allocation4 + $0x560] sm:$0xff]
    %v5994 = vld [vmem:[#allocation4 + $0x568] sm:$0xff]
    %v5995 = vld [vmem:[#allocation4 + $0x570] sm:$0xff]
    %v5996 = vld [vmem:[#allocation4 + $0x578] sm:$0xff]
    %v5997 = vld [vmem:[#allocation4 + $0x580] sm:$0xff]
    %v5998 = vld [vmem:[#allocation4 + $0x588] sm:$0xff]
    %v5999 = vld [vmem:[#allocation4 + $0x590] sm:$0xff]
    %v6000 = vld [vmem:[#allocation4 + $0x598] sm:$0xff]
    %v6001 = vld [vmem:[#allocation4 + $0x5a0] sm:$0xff]
    %v6002 = vld [vmem:[#allocation4 + $0x5a8] sm:$0xff]
    %v6003 = vld [vmem:[#allocation4 + $0x5b0] sm:$0xff]
    %v6004 = vld [vmem:[#allocation4 + $0x5b8] sm:$0xff]
    %v6005 = vld [vmem:[#allocation4 + $0x5c0] sm:$0xff]
    %v6006 = vld [vmem:[#allocation4 + $0x5c8] sm:$0xff]
    %v6007 = vld [vmem:[#allocation4 + $0x5d0] sm:$0xff]
    %v6008 = vld [vmem:[#allocation4 + $0x5d8] sm:$0xff]
    %v6009 = vld [vmem:[#allocation4 + $0x5e0] sm:$0xff]
    %v6010 = vld [vmem:[#allocation4 + $0x5e8] sm:$0xff]
    %v6011 = vld [vmem:[#allocation4 + $0x5f0] sm:$0xff]
    %v6012 = vld [vmem:[#allocation4 + $0x5f8] sm:$0xff]
    %v6013 = vld [vmem:[#allocation4 + $0x600] sm:$0xff]
    %v6014 = vld [vmem:[#allocation4 + $0x608] sm:$0xff]
    %v6015 = vld [vmem:[#allocation4 + $0x610] sm:$0xff]
    %v6016 = vld [vmem:[#allocation4 + $0x618] sm:$0xff]
    %v6017 = vld [vmem:[#allocation4 + $0x620] sm:$0xff]
    %v6018 = vld [vmem:[#allocation4 + $0x628] sm:$0xff]
    %v6019 = vld [vmem:[#allocation4 + $0x630] sm:$0xff]
    %v6020 = vld [vmem:[#allocation4 + $0x638] sm:$0xff]
    %v6021 = vld [vmem:[#allocation4 + $0x640] sm:$0xff]
    %v6022 = vld [vmem:[#allocation4 + $0x648] sm:$0xff]
    %v6023 = vld [vmem:[#allocation4 + $0x650] sm:$0xff]
    %v6024 = vld [vmem:[#allocation4 + $0x658] sm:$0xff]
    %v6025 = vld [vmem:[#allocation4 + $0x660] sm:$0xff]
    %v6026 = vld [vmem:[#allocation4 + $0x668] sm:$0xff]
    %v6027 = vld [vmem:[#allocation4 + $0x670] sm:$0xff]
    %v6028 = vld [vmem:[#allocation4 + $0x678] sm:$0xff]
    %v6029 = vld [vmem:[#allocation4 + $0x680] sm:$0xff]
    %v6030 = vld [vmem:[#allocation4 + $0x688] sm:$0xff]
    %v6031 = vld [vmem:[#allocation4 + $0x690] sm:$0xff]
    %v6032 = vld [vmem:[#allocation4 + $0x698] sm:$0xff]
    %v6033 = vld [vmem:[#allocation4 + $0x6a0] sm:$0xff]
    %v6034 = vld [vmem:[#allocation4 + $0x6a8] sm:$0xff]
    %v6035 = vld [vmem:[#allocation4 + $0x6b0] sm:$0xff]
    %v6036 = vld [vmem:[#allocation4 + $0x6b8] sm:$0xff]
    %v6037 = vld [vmem:[#allocation4 + $0x6c0] sm:$0xff]
    %v6038 = vld [vmem:[#allocation4 + $0x6c8] sm:$0xff]
    %v6039 = vld [vmem:[#allocation4 + $0x6d0] sm:$0xff]
    %v6040 = vld [vmem:[#allocation4 + $0x6d8] sm:$0xff]
    %v6041 = vld [vmem:[#allocation4 + $0x6e0] sm:$0xff]
    %v6042 = vld [vmem:[#allocation4 + $0x6e8] sm:$0xff]
    %v6043 = vld [vmem:[#allocation4 + $0x6f0] sm:$0xff]
    %v6044 = vld [vmem:[#allocation4 + $0x6f8] sm:$0xff]
    %v6045 = vld [vmem:[#allocation4 + $0x700] sm:$0xff]
    %v6046 = vld [vmem:[#allocation4 + $0x708] sm:$0xff]
    %v6047 = vld [vmem:[#allocation4 + $0x710] sm:$0xff]
    %v6048 = vld [vmem:[#allocation4 + $0x718] sm:$0xff]
    %v6049 = vld [vmem:[#allocation4 + $0x720] sm:$0xff]
    %v6050 = vld [vmem:[#allocation4 + $0x728] sm:$0xff]
    %v6051 = vld [vmem:[#allocation4 + $0x730] sm:$0xff]
    %v6052 = vld [vmem:[#allocation4 + $0x738] sm:$0xff]
    %v6053 = vld [vmem:[#allocation4 + $0x740] sm:$0xff]
    %v6054 = vld [vmem:[#allocation4 + $0x748] sm:$0xff]
    %v6055 = vld [vmem:[#allocation4 + $0x750] sm:$0xff]
    %v6056 = vld [vmem:[#allocation4 + $0x758] sm:$0xff]
    %v6057 = vld [vmem:[#allocation4 + $0x760] sm:$0xff]
    %v6058 = vld [vmem:[#allocation4 + $0x768] sm:$0xff]
    %v6059 = vld [vmem:[#allocation4 + $0x770] sm:$0xff]
    %v6060 = vld [vmem:[#allocation4 + $0x778] sm:$0xff]
    %v6061 = vld [vmem:[#allocation4 + $0x780] sm:$0xff]
    %v6062 = vld [vmem:[#allocation4 + $0x788] sm:$0xff]
    %v6063 = vld [vmem:[#allocation4 + $0x790] sm:$0xff]
    %v6064 = vld [vmem:[#allocation4 + $0x798] sm:$0xff]
    %v6065 = vld [vmem:[#allocation4 + $0x7a0] sm:$0xff]
    %v6066 = vld [vmem:[#allocation4 + $0x7a8] sm:$0xff]
    %v6067 = vld [vmem:[#allocation4 + $0x7b0] sm:$0xff]
    %v6068 = vld [vmem:[#allocation4 + $0x7b8] sm:$0xff]
    %v6069 = vld [vmem:[#allocation4 + $0x7c0] sm:$0xff]
    %v6070 = vld [vmem:[#allocation4 + $0x7c8] sm:$0xff]
    %v6071 = vld [vmem:[#allocation4 + $0x7d0] sm:$0xff]
    %v6072 = vld [vmem:[#allocation4 + $0x7d8] sm:$0xff]
    %v6073 = vld [vmem:[#allocation4 + $0x7e0] sm:$0xff]
    %v6074 = vld [vmem:[#allocation4 + $0x7e8] sm:$0xff]
    %v6075 = vld [vmem:[#allocation4 + $0x7f0] sm:$0xff]
    %v6076 = vld [vmem:[#allocation4 + $0x7f8] sm:$0xff]
    %v6077 = vld [vmem:[#allocation4 + $0x800] sm:$0xff]
    %v6078 = vld [vmem:[#allocation4 + $0x808] sm:$0xff]
    %v6079 = vld [vmem:[#allocation4 + $0x810] sm:$0xff]
    %v6080 = vld [vmem:[#allocation4 + $0x818] sm:$0xff]
    %v6081 = vld [vmem:[#allocation4 + $0x820] sm:$0xff]
    %v6082 = vld [vmem:[#allocation4 + $0x828] sm:$0xff]
    %v6083 = vld [vmem:[#allocation4 + $0x830] sm:$0xff]
    %v6084 = vld [vmem:[#allocation4 + $0x838] sm:$0xff]
    %v6085 = vld [vmem:[#allocation4 + $0x840] sm:$0xff]
    %v6086 = vld [vmem:[#allocation4 + $0x848] sm:$0xff]
    %v6087 = vld [vmem:[#allocation4 + $0x850] sm:$0xff]
    %v6088 = vld [vmem:[#allocation4 + $0x858] sm:$0xff]
    %v6089 = vld [vmem:[#allocation4 + $0x860] sm:$0xff]
    %v6090 = vld [vmem:[#allocation4 + $0x868] sm:$0xff]
    %v6091 = vld [vmem:[#allocation4 + $0x870] sm:$0xff]
    %v6092 = vld [vmem:[#allocation4 + $0x878] sm:$0xff]
    %v6093 = vld [vmem:[#allocation4 + $0x880] sm:$0xff]
    %v6094 = vld [vmem:[#allocation4 + $0x888] sm:$0xff]
    %v6095 = vld [vmem:[#allocation4 + $0x890] sm:$0xff]
    %v6096 = vld [vmem:[#allocation4 + $0x898] sm:$0xff]
    %v6097 = vld [vmem:[#allocation4 + $0x8a0] sm:$0xff]
    %v6098 = vld [vmem:[#allocation4 + $0x8a8] sm:$0xff]
    %v6099 = vld [vmem:[#allocation4 + $0x8b0] sm:$0xff]
    %v6100 = vld [vmem:[#allocation4 + $0x8b8] sm:$0xff]
    %v6101 = vld [vmem:[#allocation4 + $0x8c0] sm:$0xff]
    %v6102 = vld [vmem:[#allocation4 + $0x8c8] sm:$0xff]
    %v6103 = vld [vmem:[#allocation4 + $0x8d0] sm:$0xff]
    %v6104 = vld [vmem:[#allocation4 + $0x8d8] sm:$0xff]
    %v6105 = vld [vmem:[#allocation4 + $0x8e0] sm:$0xff]
    %v6106 = vld [vmem:[#allocation4 + $0x8e8] sm:$0xff]
    %v6107 = vld [vmem:[#allocation4 + $0x8f0] sm:$0xff]
    %v6108 = vld [vmem:[#allocation4 + $0x8f8] sm:$0xff]
    %v6109 = vld [vmem:[#allocation4 + $0x900] sm:$0xff]
    %v6110 = vld [vmem:[#allocation4 + $0x908] sm:$0xff]
    %v6111 = vld [vmem:[#allocation4 + $0x910] sm:$0xff]
    %v6112 = vld [vmem:[#allocation4 + $0x918] sm:$0xff]
    %v6113 = vld [vmem:[#allocation4 + $0x920] sm:$0xff]
    %v6114 = vld [vmem:[#allocation4 + $0x928] sm:$0xff]
    %v6115 = vld [vmem:[#allocation4 + $0x930] sm:$0xff]
    %v6116 = vld [vmem:[#allocation4 + $0x938] sm:$0xff]
    %v6117 = vld [vmem:[#allocation4 + $0x940] sm:$0xff]
    %v6118 = vld [vmem:[#allocation4 + $0x948] sm:$0xff]
    %v6119 = vld [vmem:[#allocation4 + $0x950] sm:$0xff]
    %v6120 = vld [vmem:[#allocation4 + $0x958] sm:$0xff]
    %v6121 = vld [vmem:[#allocation4 + $0x960] sm:$0xff]
    %v6122 = vld [vmem:[#allocation4 + $0x968] sm:$0xff]
    %v6123 = vld [vmem:[#allocation4 + $0x970] sm:$0xff]
    %v6124 = vld [vmem:[#allocation4 + $0x978] sm:$0xff]
    %v6125 = vld [vmem:[#allocation4 + $0x980] sm:$0xff]
    %v6126 = vld [vmem:[#allocation4 + $0x988] sm:$0xff]
    %v6127 = vld [vmem:[#allocation4 + $0x990] sm:$0xff]
    %v6128 = vld [vmem:[#allocation4 + $0x998] sm:$0xff]
    %v6129 = vld [vmem:[#allocation4 + $0x9a0] sm:$0xff]
    %v6130 = vld [vmem:[#allocation4 + $0x9a8] sm:$0xff]
    %v6131 = vld [vmem:[#allocation4 + $0x9b0] sm:$0xff]
    %v6132 = vld [vmem:[#allocation4 + $0x9b8] sm:$0xff]
    %v6133 = vld [vmem:[#allocation4 + $0x9c0] sm:$0xff]
    %v6134 = vld [vmem:[#allocation4 + $0x9c8] sm:$0xff]
    %v6135 = vld [vmem:[#allocation4 + $0x9d0] sm:$0xff]
    %v6136 = vld [vmem:[#allocation4 + $0x9d8] sm:$0xff]
    %v6137 = vld [vmem:[#allocation4 + $0x9e0] sm:$0xff]
    %v6138 = vld [vmem:[#allocation4 + $0x9e8] sm:$0xff]
    %v6139 = vld [vmem:[#allocation4 + $0x9f0] sm:$0xff]
    %v6140 = vld [vmem:[#allocation4 + $0x9f8] sm:$0xff]
    %v6141 = vld [vmem:[#allocation4 + $0xa00] sm:$0xff]
    %v6142 = vld [vmem:[#allocation4 + $0xa08] sm:$0xff]
    %v6143 = vld [vmem:[#allocation4 + $0xa10] sm:$0xff]
    %v6144 = vld [vmem:[#allocation4 + $0xa18] sm:$0xff]
    %v6145 = vld [vmem:[#allocation4 + $0xa20] sm:$0xff]
    %v6146 = vld [vmem:[#allocation4 + $0xa28] sm:$0xff]
    %v6147 = vld [vmem:[#allocation4 + $0xa30] sm:$0xff]
    %v6148 = vld [vmem:[#allocation4 + $0xa38] sm:$0xff]
    %v6149 = vld [vmem:[#allocation4 + $0xa40] sm:$0xff]
    %v6150 = vld [vmem:[#allocation4 + $0xa48] sm:$0xff]
    %v6151 = vld [vmem:[#allocation4 + $0xa50] sm:$0xff]
    %v6152 = vld [vmem:[#allocation4 + $0xa58] sm:$0xff]
    %v6153 = vld [vmem:[#allocation4 + $0xa60] sm:$0xff]
    %v6154 = vld [vmem:[#allocation4 + $0xa68] sm:$0xff]
    %v6155 = vld [vmem:[#allocation4 + $0xa70] sm:$0xff]
    %v6156 = vld [vmem:[#allocation4 + $0xa78] sm:$0xff]
    %v6157 = vld [vmem:[#allocation4 + $0xa80] sm:$0xff]
    %v6158 = vld [vmem:[#allocation4 + $0xa88] sm:$0xff]
    %v6159 = vld [vmem:[#allocation4 + $0xa90] sm:$0xff]
    %v6160 = vld [vmem:[#allocation4 + $0xa98] sm:$0xff]
    %v6161 = vld [vmem:[#allocation4 + $0xaa0] sm:$0xff]
    %v6162 = vld [vmem:[#allocation4 + $0xaa8] sm:$0xff]
    %v6163 = vld [vmem:[#allocation4 + $0xab0] sm:$0xff]
    %v6164 = vld [vmem:[#allocation4 + $0xab8] sm:$0xff]
    %v6165 = vld [vmem:[#allocation4 + $0xac0] sm:$0xff]
    %v6166 = vld [vmem:[#allocation4 + $0xac8] sm:$0xff]
    %v6167 = vld [vmem:[#allocation4 + $0xad0] sm:$0xff]
    %v6168 = vld [vmem:[#allocation4 + $0xad8] sm:$0xff]
    %v6169 = vld [vmem:[#allocation4 + $0xae0] sm:$0xff]
    %v6170 = vld [vmem:[#allocation4 + $0xae8] sm:$0xff]
    %v6171 = vld [vmem:[#allocation4 + $0xaf0] sm:$0xff]
    %v6172 = vld [vmem:[#allocation4 + $0xaf8] sm:$0xff]
    %v6173 = vld [vmem:[#allocation4 + $0xb00] sm:$0xff]
    %v6174 = vld [vmem:[#allocation4 + $0xb08] sm:$0xff]
    %v6175 = vld [vmem:[#allocation4 + $0xb10] sm:$0xff]
    %v6176 = vld [vmem:[#allocation4 + $0xb18] sm:$0xff]
    %v6177 = vld [vmem:[#allocation4 + $0xb20] sm:$0xff]
    %v6178 = vld [vmem:[#allocation4 + $0xb28] sm:$0xff]
    %v6179 = vld [vmem:[#allocation4 + $0xb30] sm:$0xff]
    %v6180 = vld [vmem:[#allocation4 + $0xb38] sm:$0xff]
    %v6181 = vld [vmem:[#allocation4 + $0xb40] sm:$0xff]
    %v6182 = vld [vmem:[#allocation4 + $0xb48] sm:$0xff]
    %v6183 = vld [vmem:[#allocation4 + $0xb50] sm:$0xff]
    %v6184 = vld [vmem:[#allocation4 + $0xb58] sm:$0xff]
    %v6185 = vld [vmem:[#allocation4 + $0xb60] sm:$0xff]
    %v6186 = vld [vmem:[#allocation4 + $0xb68] sm:$0xff]
    %v6187 = vld [vmem:[#allocation4 + $0xb70] sm:$0xff]
    %v6188 = vld [vmem:[#allocation4 + $0xb78] sm:$0xff]
    %v6189 = vld [vmem:[#allocation4 + $0xb80] sm:$0xff]
    %v6190 = vld [vmem:[#allocation4 + $0xb88] sm:$0xff]
    %v6191 = vld [vmem:[#allocation4 + $0xb90] sm:$0xff]
    %v6192 = vld [vmem:[#allocation4 + $0xb98] sm:$0xff]
    %v6193 = vld [vmem:[#allocation4 + $0xba0] sm:$0xff]
    %v6194 = vld [vmem:[#allocation4 + $0xba8] sm:$0xff]
    %v6195 = vld [vmem:[#allocation4 + $0xbb0] sm:$0xff]
    %v6196 = vld [vmem:[#allocation4 + $0xbb8] sm:$0xff]
    %v6197 = vld [vmem:[#allocation4 + $0xbc0] sm:$0xff]
    %v6198 = vld [vmem:[#allocation4 + $0xbc8] sm:$0xff]
    %v6199 = vld [vmem:[#allocation4 + $0xbd0] sm:$0xff]
    %v6200 = vld [vmem:[#allocation4 + $0xbd8] sm:$0xff]
    %v6201 = vld [vmem:[#allocation4 + $0xbe0] sm:$0xff]
    %v6202 = vld [vmem:[#allocation4 + $0xbe8] sm:$0xff]
    %v6203 = vld [vmem:[#allocation4 + $0xbf0] sm:$0xff]
    %v6204 = vld [vmem:[#allocation4 + $0xbf8] sm:$0xff]
    %v6205 = vld [vmem:[#allocation4 + $0xc00] sm:$0xff]
    %v6206 = vld [vmem:[#allocation4 + $0xc08] sm:$0xff]
    %v6207 = vld [vmem:[#allocation4 + $0xc10] sm:$0xff]
    %v6208 = vld [vmem:[#allocation4 + $0xc18] sm:$0xff]
    %v6209 = vld [vmem:[#allocation4 + $0xc20] sm:$0xff]
    %v6210 = vld [vmem:[#allocation4 + $0xc28] sm:$0xff]
    %v6211 = vld [vmem:[#allocation4 + $0xc30] sm:$0xff]
    %v6212 = vld [vmem:[#allocation4 + $0xc38] sm:$0xff]
    %v6213 = vld [vmem:[#allocation4 + $0xc40] sm:$0xff]
    %v6214 = vld [vmem:[#allocation4 + $0xc48] sm:$0xff]
    %v6215 = vld [vmem:[#allocation4 + $0xc50] sm:$0xff]
    %v6216 = vld [vmem:[#allocation4 + $0xc58] sm:$0xff]
    %v6217 = vld [vmem:[#allocation4 + $0xc60] sm:$0xff]
    %v6218 = vld [vmem:[#allocation4 + $0xc68] sm:$0xff]
    %v6219 = vld [vmem:[#allocation4 + $0xc70] sm:$0xff]
    %v6220 = vld [vmem:[#allocation4 + $0xc78] sm:$0xff]
    %v6221 = vld [vmem:[#allocation4 + $0xc80] sm:$0xff]
    %v6222 = vld [vmem:[#allocation4 + $0xc88] sm:$0xff]
    %v6223 = vld [vmem:[#allocation4 + $0xc90] sm:$0xff]
    %v6224 = vld [vmem:[#allocation4 + $0xc98] sm:$0xff]
    %v6225 = vld [vmem:[#allocation4 + $0xca0] sm:$0xff]
    %v6226 = vld [vmem:[#allocation4 + $0xca8] sm:$0xff]
    %v6227 = vld [vmem:[#allocation4 + $0xcb0] sm:$0xff]
    %v6228 = vld [vmem:[#allocation4 + $0xcb8] sm:$0xff]
    %v6229 = vld [vmem:[#allocation4 + $0xcc0] sm:$0xff]
    %v6230 = vld [vmem:[#allocation4 + $0xcc8] sm:$0xff]
    %v6231 = vld [vmem:[#allocation4 + $0xcd0] sm:$0xff]
    %v6232 = vld [vmem:[#allocation4 + $0xcd8] sm:$0xff]
    %v6233 = vld [vmem:[#allocation4 + $0xce0] sm:$0xff]
    %v6234 = vld [vmem:[#allocation4 + $0xce8] sm:$0xff]
    %v6235 = vld [vmem:[#allocation4 + $0xcf0] sm:$0xff]
    %v6236 = vld [vmem:[#allocation4 + $0xcf8] sm:$0xff]
    %v6237 = vld [vmem:[#allocation4 + $0xd00] sm:$0xff]
    %v6238 = vld [vmem:[#allocation4 + $0xd08] sm:$0xff]
    %v6239 = vld [vmem:[#allocation4 + $0xd10] sm:$0xff]
    %v6240 = vld [vmem:[#allocation4 + $0xd18] sm:$0xff]
    %v6241 = vld [vmem:[#allocation4 + $0xd20] sm:$0xff]
    %v6242 = vld [vmem:[#allocation4 + $0xd28] sm:$0xff]
    %v6243 = vld [vmem:[#allocation4 + $0xd30] sm:$0xff]
    %v6244 = vld [vmem:[#allocation4 + $0xd38] sm:$0xff]
    %v6245 = vld [vmem:[#allocation4 + $0xd40] sm:$0xff]
    %v6246 = vld [vmem:[#allocation4 + $0xd48] sm:$0xff]
    %v6247 = vld [vmem:[#allocation4 + $0xd50] sm:$0xff]
    %v6248 = vld [vmem:[#allocation4 + $0xd58] sm:$0xff]
    %v6249 = vld [vmem:[#allocation4 + $0xd60] sm:$0xff]
    %v6250 = vld [vmem:[#allocation4 + $0xd68] sm:$0xff]
    %v6251 = vld [vmem:[#allocation4 + $0xd70] sm:$0xff]
    %v6252 = vld [vmem:[#allocation4 + $0xd78] sm:$0xff]
    %v6253 = vld [vmem:[#allocation4 + $0xd80] sm:$0xff]
    %v6254 = vld [vmem:[#allocation4 + $0xd88] sm:$0xff]
    %v6255 = vld [vmem:[#allocation4 + $0xd90] sm:$0xff]
    %v6256 = vld [vmem:[#allocation4 + $0xd98] sm:$0xff]
    %v6257 = vld [vmem:[#allocation4 + $0xda0] sm:$0xff]
    %v6258 = vld [vmem:[#allocation4 + $0xda8] sm:$0xff]
    %v6259 = vld [vmem:[#allocation4 + $0xdb0] sm:$0xff]
    %v6260 = vld [vmem:[#allocation4 + $0xdb8] sm:$0xff]
    %v6261 = vld [vmem:[#allocation4 + $0xdc0] sm:$0xff]
    %v6262 = vld [vmem:[#allocation4 + $0xdc8] sm:$0xff]
    %v6263 = vld [vmem:[#allocation4 + $0xdd0] sm:$0xff]
    %v6264 = vld [vmem:[#allocation4 + $0xdd8] sm:$0xff]
    %v6265 = vld [vmem:[#allocation4 + $0xde0] sm:$0xff]
    %v6266 = vld [vmem:[#allocation4 + $0xde8] sm:$0xff]
    %v6267 = vld [vmem:[#allocation4 + $0xdf0] sm:$0xff]
    %v6268 = vld [vmem:[#allocation4 + $0xdf8] sm:$0xff]
    %v6269 = vld [vmem:[#allocation4 + $0xe00] sm:$0xff]
    %v6270 = vld [vmem:[#allocation4 + $0xe08] sm:$0xff]
    %v6271 = vld [vmem:[#allocation4 + $0xe10] sm:$0xff]
    %v6272 = vld [vmem:[#allocation4 + $0xe18] sm:$0xff]
    %v6273 = vld [vmem:[#allocation4 + $0xe20] sm:$0xff]
    %v6274 = vld [vmem:[#allocation4 + $0xe28] sm:$0xff]
    %v6275 = vld [vmem:[#allocation4 + $0xe30] sm:$0xff]
    %v6276 = vld [vmem:[#allocation4 + $0xe38] sm:$0xff]
    %v6277 = vld [vmem:[#allocation4 + $0xe40] sm:$0xff]
    %v6278 = vld [vmem:[#allocation4 + $0xe48] sm:$0xff]
    %v6279 = vld [vmem:[#allocation4 + $0xe50] sm:$0xff]
    %v6280 = vld [vmem:[#allocation4 + $0xe58] sm:$0xff]
    %v6281 = vld [vmem:[#allocation4 + $0xe60] sm:$0xff]
    %v6282 = vld [vmem:[#allocation4 + $0xe68] sm:$0xff]
    %v6283 = vld [vmem:[#allocation4 + $0xe70] sm:$0xff]
    %v6284 = vld [vmem:[#allocation4 + $0xe78] sm:$0xff]
    %v6285 = vld [vmem:[#allocation4 + $0xe80] sm:$0xff]
    %v6286 = vld [vmem:[#allocation4 + $0xe88] sm:$0xff]
    %v6287 = vld [vmem:[#allocation4 + $0xe90] sm:$0xff]
    %v6288 = vld [vmem:[#allocation4 + $0xe98] sm:$0xff]
    %v6289 = vld [vmem:[#allocation4 + $0xea0] sm:$0xff]
    %v6290 = vld [vmem:[#allocation4 + $0xea8] sm:$0xff]
    %v6291 = vld [vmem:[#allocation4 + $0xeb0] sm:$0xff]
    %v6292 = vld [vmem:[#allocation4 + $0xeb8] sm:$0xff]
    %v6293 = vld [vmem:[#allocation4 + $0xec0] sm:$0xff]
    %v6294 = vld [vmem:[#allocation4 + $0xec8] sm:$0xff]
    %v6295 = vld [vmem:[#allocation4 + $0xed0] sm:$0xff]
    %v6296 = vld [vmem:[#allocation4 + $0xed8] sm:$0xff]
    %v6297 = vld [vmem:[#allocation4 + $0xee0] sm:$0xff]
    %v6298 = vld [vmem:[#allocation4 + $0xee8] sm:$0xff]
    %v6299 = vld [vmem:[#allocation4 + $0xef0] sm:$0xff]
    %v6300 = vld [vmem:[#allocation4 + $0xef8] sm:$0xff]
    %v6301 = vld [vmem:[#allocation4 + $0xf00] sm:$0xff]
    %v6302 = vld [vmem:[#allocation4 + $0xf08] sm:$0xff]
    %v6303 = vld [vmem:[#allocation4 + $0xf10] sm:$0xff]
    %v6304 = vld [vmem:[#allocation4 + $0xf18] sm:$0xff]
    %v6305 = vld [vmem:[#allocation4 + $0xf20] sm:$0xff]
    %v6306 = vld [vmem:[#allocation4 + $0xf28] sm:$0xff]
    %v6307 = vld [vmem:[#allocation4 + $0xf30] sm:$0xff]
    %v6308 = vld [vmem:[#allocation4 + $0xf38] sm:$0xff]
    %v6309 = vld [vmem:[#allocation4 + $0xf40] sm:$0xff]
    %v6310 = vld [vmem:[#allocation4 + $0xf48] sm:$0xff]
    %v6311 = vld [vmem:[#allocation4 + $0xf50] sm:$0xff]
    %v6312 = vld [vmem:[#allocation4 + $0xf58] sm:$0xff]
    %v6313 = vld [vmem:[#allocation4 + $0xf60] sm:$0xff]
    %v6314 = vld [vmem:[#allocation4 + $0xf68] sm:$0xff]
    %v6315 = vld [vmem:[#allocation4 + $0xf70] sm:$0xff]
    %v6316 = vld [vmem:[#allocation4 + $0xf78] sm:$0xff]
    %v6317 = vld [vmem:[#allocation4 + $0xf80] sm:$0xff]
    %v6318 = vld [vmem:[#allocation4 + $0xf88] sm:$0xff]
    %v6319 = vld [vmem:[#allocation4 + $0xf90] sm:$0xff]
    %v6320 = vld [vmem:[#allocation4 + $0xf98] sm:$0xff]
    %v6321 = vld [vmem:[#allocation4 + $0xfa0] sm:$0xff]
    %v6322 = vld [vmem:[#allocation4 + $0xfa8] sm:$0xff]
    %v6323 = vld [vmem:[#allocation4 + $0xfb0] sm:$0xff]
    %v6324 = vld [vmem:[#allocation4 + $0xfb8] sm:$0xff]
    %v6325 = vld [vmem:[#allocation4 + $0xfc0] sm:$0xff]
    %v6326 = vld [vmem:[#allocation4 + $0xfc8] sm:$0xff]
    %v6327 = vld [vmem:[#allocation4 + $0xfd0] sm:$0xff]
    %v6328 = vld [vmem:[#allocation4 + $0xfd8] sm:$0xff]
    %v6329 = vld [vmem:[#allocation4 + $0xfe0] sm:$0xff]
    %v6330 = vld [vmem:[#allocation4 + $0xfe8] sm:$0xff]
    %v6331 = vld [vmem:[#allocation4 + $0xff0] sm:$0xff]
    %v6332 = vld [vmem:[#allocation4 + $0xff8] sm:$0xff]
    %v6333 = vld [vmem:[#allocation4 + $0x1000] sm:$0xff]
    %v6334 = vld [vmem:[#allocation4 + $0x1008] sm:$0xff]
    %v6335 = vld [vmem:[#allocation4 + $0x1010] sm:$0xff]
    %v6336 = vld [vmem:[#allocation4 + $0x1018] sm:$0xff]
    %v6337 = vld [vmem:[#allocation4 + $0x1020] sm:$0xff]
    %v6338 = vld [vmem:[#allocation4 + $0x1028] sm:$0xff]
    %v6339 = vld [vmem:[#allocation4 + $0x1030] sm:$0xff]
    %v6340 = vld [vmem:[#allocation4 + $0x1038] sm:$0xff]
    %v6341 = vld [vmem:[#allocation4 + $0x1040] sm:$0xff]
    %v6342 = vld [vmem:[#allocation4 + $0x1048] sm:$0xff]
    %v6343 = vld [vmem:[#allocation4 + $0x1050] sm:$0xff]
    %v6344 = vld [vmem:[#allocation4 + $0x1058] sm:$0xff]
    %v6345 = vld [vmem:[#allocation4 + $0x1060] sm:$0xff]
    %v6346 = vld [vmem:[#allocation4 + $0x1068] sm:$0xff]
    %v6347 = vld [vmem:[#allocation4 + $0x1070] sm:$0xff]
    %v6348 = vld [vmem:[#allocation4 + $0x1078] sm:$0xff]
    %v6349 = vld [vmem:[#allocation4 + $0x1080] sm:$0xff]
    %v6350 = vld [vmem:[#allocation4 + $0x1088] sm:$0xff]
    %v6351 = vld [vmem:[#allocation4 + $0x1090] sm:$0xff]
    %v6352 = vld [vmem:[#allocation4 + $0x1098] sm:$0xff]
    %v6353 = vld [vmem:[#allocation4 + $0x10a0] sm:$0xff]
    %v6354 = vld [vmem:[#allocation4 + $0x10a8] sm:$0xff]
    %v6355 = vld [vmem:[#allocation4 + $0x10b0] sm:$0xff]
    %v6356 = vld [vmem:[#allocation4 + $0x10b8] sm:$0xff]
    %v6357 = vld [vmem:[#allocation4 + $0x10c0] sm:$0xff]
    %v6358 = vld [vmem:[#allocation4 + $0x10c8] sm:$0xff]
    %v6359 = vld [vmem:[#allocation4 + $0x10d0] sm:$0xff]
    %v6360 = vld [vmem:[#allocation4 + $0x10d8] sm:$0xff]
    %v6361 = vld [vmem:[#allocation4 + $0x10e0] sm:$0xff]
    %v6362 = vld [vmem:[#allocation4 + $0x10e8] sm:$0xff]
    %v6363 = vld [vmem:[#allocation4 + $0x10f0] sm:$0xff]
    %v6364 = vld [vmem:[#allocation4 + $0x10f8] sm:$0xff]
    %v6365 = vld [vmem:[#allocation4 + $0x1100] sm:$0xff]
    %v6366 = vld [vmem:[#allocation4 + $0x1108] sm:$0xff]
    %v6367 = vld [vmem:[#allocation4 + $0x1110] sm:$0xff]
    %v6368 = vld [vmem:[#allocation4 + $0x1118] sm:$0xff]
    %v6369 = vld [vmem:[#allocation4 + $0x1120] sm:$0xff]
    %v6370 = vld [vmem:[#allocation4 + $0x1128] sm:$0xff]
    %v6371 = vld [vmem:[#allocation4 + $0x1130] sm:$0xff]
    %v6372 = vld [vmem:[#allocation4 + $0x1138] sm:$0xff]
    %v6373 = vld [vmem:[#allocation4 + $0x1140] sm:$0xff]
    %v6374 = vld [vmem:[#allocation4 + $0x1148] sm:$0xff]
    %v6375 = vld [vmem:[#allocation4 + $0x1150] sm:$0xff]
    %v6376 = vld [vmem:[#allocation4 + $0x1158] sm:$0xff]
    %v6377 = vld [vmem:[#allocation4 + $0x1160] sm:$0xff]
    %v6378 = vld [vmem:[#allocation4 + $0x1168] sm:$0xff]
    %v6379 = vld [vmem:[#allocation4 + $0x1170] sm:$0xff]
    %v6380 = vld [vmem:[#allocation4 + $0x1178] sm:$0xff]
    %v6381 = vld [vmem:[#allocation4 + $0x1180] sm:$0xff]
    %v6382 = vld [vmem:[#allocation4 + $0x1188] sm:$0xff]
    %v6383 = vld [vmem:[#allocation4 + $0x1190] sm:$0xff]
    %v6384 = vld [vmem:[#allocation4 + $0x1198] sm:$0xff]
    %v6385 = vld [vmem:[#allocation4 + $0x11a0] sm:$0xff]
    %v6386 = vld [vmem:[#allocation4 + $0x11a8] sm:$0xff]
    %v6387 = vld [vmem:[#allocation4 + $0x11b0] sm:$0xff]
    %v6388 = vld [vmem:[#allocation4 + $0x11b8] sm:$0xff]
    %v6389 = vld [vmem:[#allocation4 + $0x11c0] sm:$0xff]
    %v6390 = vld [vmem:[#allocation4 + $0x11c8] sm:$0xff]
    %v6391 = vld [vmem:[#allocation4 + $0x11d0] sm:$0xff]
    %v6392 = vld [vmem:[#allocation4 + $0x11d8] sm:$0xff]
    %v6393 = vld [vmem:[#allocation4 + $0x11e0] sm:$0xff]
    %v6394 = vld [vmem:[#allocation4 + $0x11e8] sm:$0xff]
    %v6395 = vld [vmem:[#allocation4 + $0x11f0] sm:$0xff]
    %v6396 = vld [vmem:[#allocation4 + $0x11f8] sm:$0xff]
    %v6397 = vld [vmem:[#allocation10] sm:$0xff]
    %v6398 = vld [vmem:[#allocation10 + $0x8] sm:$0xff]
    %v6399 = vld [vmem:[#allocation10 + $0x10] sm:$0xff]
    %v6400 = vld [vmem:[#allocation10 + $0x18] sm:$0xff]
    %v6401 = vld [vmem:[#allocation10 + $0x20] sm:$0xff]
    %v6402 = vld [vmem:[#allocation10 + $0x28] sm:$0xff]
    %v6403 = vld [vmem:[#allocation10 + $0x30] sm:$0xff]
    %v6404 = vld [vmem:[#allocation10 + $0x38] sm:$0xff]
    %v6405 = vld [vmem:[#allocation10 + $0x40] sm:$0xff]
    %v6406 = vld [vmem:[#allocation10 + $0x48] sm:$0xff]
    %v6407 = vld [vmem:[#allocation10 + $0x50] sm:$0xff]
    %v6408 = vld [vmem:[#allocation10 + $0x58] sm:$0xff]
    %v6409 = vld [vmem:[#allocation10 + $0x60] sm:$0xff]
    %v6410 = vld [vmem:[#allocation10 + $0x68] sm:$0xff]
    %v6411 = vld [vmem:[#allocation10 + $0x70] sm:$0xff]
    %v6412 = vld [vmem:[#allocation10 + $0x78] sm:$0xff]
    %v6413 = vld [vmem:[#allocation10 + $0x80] sm:$0xff]
    %v6414 = vld [vmem:[#allocation10 + $0x88] sm:$0xff]
    %v6415 = vld [vmem:[#allocation10 + $0x90] sm:$0xff]
    %v6416 = vld [vmem:[#allocation10 + $0x98] sm:$0xff]
    %v6417 = vld [vmem:[#allocation10 + $0xa0] sm:$0xff]
    %v6418 = vld [vmem:[#allocation10 + $0xa8] sm:$0xff]
    %v6419 = vld [vmem:[#allocation10 + $0xb0] sm:$0xff]
    %v6420 = vld [vmem:[#allocation10 + $0xb8] sm:$0xff]
    %v6421 = vld [vmem:[#allocation10 + $0xc0] sm:$0xff]
    %v6422 = vld [vmem:[#allocation10 + $0xc8] sm:$0xff]
    %v6423 = vld [vmem:[#allocation10 + $0xd0] sm:$0xff]
    %v6424 = vld [vmem:[#allocation10 + $0xd8] sm:$0xff]
    %v6425 = vld [vmem:[#allocation10 + $0xe0] sm:$0xff]
    %v6426 = vld [vmem:[#allocation10 + $0xe8] sm:$0xff]
    %v6427 = vld [vmem:[#allocation10 + $0xf0] sm:$0xff]
    %v6428 = vld [vmem:[#allocation10 + $0xf8] sm:$0xff]
    %v6429 = vld [vmem:[#allocation10 + $0x100] sm:$0xff]
    %v6430 = vld [vmem:[#allocation10 + $0x108] sm:$0xff]
    %v6431 = vld [vmem:[#allocation10 + $0x110] sm:$0xff]
    %v6432 = vld [vmem:[#allocation10 + $0x118] sm:$0xff]
    %v6433 = vld [vmem:[#allocation10 + $0x120] sm:$0xff]
    %v6434 = vld [vmem:[#allocation10 + $0x128] sm:$0xff]
    %v6435 = vld [vmem:[#allocation10 + $0x130] sm:$0xff]
    %v6436 = vld [vmem:[#allocation10 + $0x138] sm:$0xff]
    %v6437 = vld [vmem:[#allocation10 + $0x140] sm:$0xff]
    %v6438 = vld [vmem:[#allocation10 + $0x148] sm:$0xff]
    %v6439 = vld [vmem:[#allocation10 + $0x150] sm:$0xff]
    %v6440 = vld [vmem:[#allocation10 + $0x158] sm:$0xff]
    %v6441 = vld [vmem:[#allocation10 + $0x160] sm:$0xff]
    %v6442 = vld [vmem:[#allocation10 + $0x168] sm:$0xff]
    %v6443 = vld [vmem:[#allocation10 + $0x170] sm:$0xff]
    %v6444 = vld [vmem:[#allocation10 + $0x178] sm:$0xff]
    %v6445 = vld [vmem:[#allocation10 + $0x180] sm:$0xff]
    %v6446 = vld [vmem:[#allocation10 + $0x188] sm:$0xff]
    %v6447 = vld [vmem:[#allocation10 + $0x190] sm:$0xff]
    %v6448 = vld [vmem:[#allocation10 + $0x198] sm:$0xff]
    %v6449 = vld [vmem:[#allocation10 + $0x1a0] sm:$0xff]
    %v6450 = vld [vmem:[#allocation10 + $0x1a8] sm:$0xff]
    %v6451 = vld [vmem:[#allocation10 + $0x1b0] sm:$0xff]
    %v6452 = vld [vmem:[#allocation10 + $0x1b8] sm:$0xff]
    %v6453 = vld [vmem:[#allocation10 + $0x1c0] sm:$0xff]
    %v6454 = vld [vmem:[#allocation10 + $0x1c8] sm:$0xff]
    %v6455 = vld [vmem:[#allocation10 + $0x1d0] sm:$0xff]
    %v6456 = vld [vmem:[#allocation10 + $0x1d8] sm:$0xff]
    %v6457 = vld [vmem:[#allocation10 + $0x1e0] sm:$0xff]
    %v6458 = vld [vmem:[#allocation10 + $0x1e8] sm:$0xff]
    %v6459 = vld [vmem:[#allocation10 + $0x1f0] sm:$0xff]
    %v6460 = vld [vmem:[#allocation10 + $0x1f8] sm:$0xff]
    %v6461 = vld [vmem:[#allocation10 + $0x200] sm:$0xff]
    %v6462 = vld [vmem:[#allocation10 + $0x208] sm:$0xff]
    %v6463 = vld [vmem:[#allocation10 + $0x210] sm:$0xff]
    %v6464 = vld [vmem:[#allocation10 + $0x218] sm:$0xff]
    %v6465 = vld [vmem:[#allocation10 + $0x220] sm:$0xff]
    %v6466 = vld [vmem:[#allocation10 + $0x228] sm:$0xff]
    %v6467 = vld [vmem:[#allocation10 + $0x230] sm:$0xff]
    %v6468 = vld [vmem:[#allocation10 + $0x238] sm:$0xff]
    %v6469 = vld [vmem:[#allocation10 + $0x240] sm:$0xff]
    %v6470 = vld [vmem:[#allocation10 + $0x248] sm:$0xff]
    %v6471 = vld [vmem:[#allocation10 + $0x250] sm:$0xff]
    %v6472 = vld [vmem:[#allocation10 + $0x258] sm:$0xff]
    %v6473 = vld [vmem:[#allocation10 + $0x260] sm:$0xff]
    %v6474 = vld [vmem:[#allocation10 + $0x268] sm:$0xff]
    %v6475 = vld [vmem:[#allocation10 + $0x270] sm:$0xff]
    %v6476 = vld [vmem:[#allocation10 + $0x278] sm:$0xff]
    %v6477 = vld [vmem:[#allocation10 + $0x280] sm:$0xff]
    %v6478 = vld [vmem:[#allocation10 + $0x288] sm:$0xff]
    %v6479 = vld [vmem:[#allocation10 + $0x290] sm:$0xff]
    %v6480 = vld [vmem:[#allocation10 + $0x298] sm:$0xff]
    %v6481 = vld [vmem:[#allocation10 + $0x2a0] sm:$0xff]
    %v6482 = vld [vmem:[#allocation10 + $0x2a8] sm:$0xff]
    %v6483 = vld [vmem:[#allocation10 + $0x2b0] sm:$0xff]
    %v6484 = vld [vmem:[#allocation10 + $0x2b8] sm:$0xff]
    %v6485 = vld [vmem:[#allocation10 + $0x2c0] sm:$0xff]
    %v6486 = vld [vmem:[#allocation10 + $0x2c8] sm:$0xff]
    %v6487 = vld [vmem:[#allocation10 + $0x2d0] sm:$0xff]
    %v6488 = vld [vmem:[#allocation10 + $0x2d8] sm:$0xff]
    %v6489 = vld [vmem:[#allocation10 + $0x2e0] sm:$0xff]
    %v6490 = vld [vmem:[#allocation10 + $0x2e8] sm:$0xff]
    %v6491 = vld [vmem:[#allocation10 + $0x2f0] sm:$0xff]
    %v6492 = vld [vmem:[#allocation10 + $0x2f8] sm:$0xff]
    %v6493 = vld [vmem:[#allocation10 + $0x300] sm:$0xff]
    %v6494 = vld [vmem:[#allocation10 + $0x308] sm:$0xff]
    %v6495 = vld [vmem:[#allocation10 + $0x310] sm:$0xff]
    %v6496 = vld [vmem:[#allocation10 + $0x318] sm:$0xff]
    %v6497 = vld [vmem:[#allocation10 + $0x320] sm:$0xff]
    %v6498 = vld [vmem:[#allocation10 + $0x328] sm:$0xff]
    %v6499 = vld [vmem:[#allocation10 + $0x330] sm:$0xff]
    %v6500 = vld [vmem:[#allocation10 + $0x338] sm:$0xff]
    %v6501 = vld [vmem:[#allocation10 + $0x340] sm:$0xff]
    %v6502 = vld [vmem:[#allocation10 + $0x348] sm:$0xff]
    %v6503 = vld [vmem:[#allocation10 + $0x350] sm:$0xff]
    %v6504 = vld [vmem:[#allocation10 + $0x358] sm:$0xff]
    %v6505 = vld [vmem:[#allocation10 + $0x360] sm:$0xff]
    %v6506 = vld [vmem:[#allocation10 + $0x368] sm:$0xff]
    %v6507 = vld [vmem:[#allocation10 + $0x370] sm:$0xff]
    %v6508 = vld [vmem:[#allocation10 + $0x378] sm:$0xff]
    %v6509 = vld [vmem:[#allocation10 + $0x380] sm:$0xff]
    %v6510 = vld [vmem:[#allocation10 + $0x388] sm:$0xff]
    %v6511 = vld [vmem:[#allocation10 + $0x390] sm:$0xff]
    %v6512 = vld [vmem:[#allocation10 + $0x398] sm:$0xff]
    %v6513 = vld [vmem:[#allocation10 + $0x3a0] sm:$0xff]
    %v6514 = vld [vmem:[#allocation10 + $0x3a8] sm:$0xff]
    %v6515 = vld [vmem:[#allocation10 + $0x3b0] sm:$0xff]
    %v6516 = vld [vmem:[#allocation10 + $0x3b8] sm:$0xff]
    %v6517 = vld [vmem:[#allocation10 + $0x3c0] sm:$0xff]
    %v6518 = vld [vmem:[#allocation10 + $0x3c8] sm:$0xff]
    %v6519 = vld [vmem:[#allocation10 + $0x3d0] sm:$0xff]
    %v6520 = vld [vmem:[#allocation10 + $0x3d8] sm:$0xff]
    %v6521 = vld [vmem:[#allocation10 + $0x3e0] sm:$0xff]
    %v6522 = vld [vmem:[#allocation10 + $0x3e8] sm:$0xff]
    %v6523 = vld [vmem:[#allocation10 + $0x3f0] sm:$0xff]
    %v6524 = vld [vmem:[#allocation10 + $0x3f8] sm:$0xff]
    %v6525 = vld [vmem:[#allocation10 + $0x400] sm:$0xff]
    %v6526 = vld [vmem:[#allocation10 + $0x408] sm:$0xff]
    %v6527 = vld [vmem:[#allocation10 + $0x410] sm:$0xff]
    %v6528 = vld [vmem:[#allocation10 + $0x418] sm:$0xff]
    %v6529 = vld [vmem:[#allocation10 + $0x420] sm:$0xff]
    %v6530 = vld [vmem:[#allocation10 + $0x428] sm:$0xff]
    %v6531 = vld [vmem:[#allocation10 + $0x430] sm:$0xff]
    %v6532 = vld [vmem:[#allocation10 + $0x438] sm:$0xff]
    %v6533 = vld [vmem:[#allocation10 + $0x440] sm:$0xff]
    %v6534 = vld [vmem:[#allocation10 + $0x448] sm:$0xff]
    %v6535 = vld [vmem:[#allocation10 + $0x450] sm:$0xff]
    %v6536 = vld [vmem:[#allocation10 + $0x458] sm:$0xff]
    %v6537 = vld [vmem:[#allocation10 + $0x460] sm:$0xff]
    %v6538 = vld [vmem:[#allocation10 + $0x468] sm:$0xff]
    %v6539 = vld [vmem:[#allocation10 + $0x470] sm:$0xff]
    %v6540 = vld [vmem:[#allocation10 + $0x478] sm:$0xff]
    %6541 = vmatprep.subr.mxu0 0.0
    %6542 = vmatpush1.msra.mxu0 %v6412
    %6543 = vmatprep.subr.mxu0 0.0
    %6544 = vmatpush1.msra.mxu0 %v6411
    %6545 = vmatprep.subr.mxu0 0.0
    %6546 = vmatpush1.msra.mxu0 %v6410
    %6547 = vmatprep.subr.mxu0 0.0
    %6548 = vmatpush1.msra.mxu0 %v6409
    %6549 = vmatprep.subr.mxu0 0.0
    %6550 = vmatpush1.msra.mxu0 %v6408
    %6551 = vmatprep.subr.mxu0 0.0
    %6552 = vmatpush1.msra.mxu0 %v6407
    %6553 = vmatprep.subr.mxu0 0.0
    %6554 = vmatpush1.msra.mxu0 %v6406
    %6555 = vmatprep.subr.mxu0 0.0
    %6556 = vmatpush1.msra.mxu0 %v6405
    %6557 = vmatprep.subr.mxu0 0.0
    %6558 = vmatpush1.msra.mxu0 %v6404
    %6559 = vmatprep.subr.mxu0 0.0
    %6560 = vmatpush1.msra.mxu0 %v6403
    %6561 = vmatprep.subr.mxu0 0.0
    %6562 = vmatpush1.msra.mxu0 %v6402
    %6563 = vmatprep.subr.mxu0 0.0
    %6564 = vmatpush1.msra.mxu0 %v6401
    %6565 = vmatprep.subr.mxu0 0.0
    %6566 = vmatpush1.msra.mxu0 %v6400
    %6567 = vmatprep.subr.mxu0 0.0
    %6568 = vmatpush1.msra.mxu0 %v6399
    %6569 = vmatprep.subr.mxu0 0.0
    %6570 = vmatpush1.msra.mxu0 %v6398
    %6571 = vmatprep.subr.mxu0 0.0
    %6572 = vmatpush1.msra.mxu0 %v6397
    %6573 = vmatprep.subr.mxu0 0.0
    %6574 = vmatpush2.msra.mxu0 %v6428
    %6575 = vmatprep.subr.mxu0 0.0
    %6576 = vmatpush2.msra.mxu0 %v6427
    %6577 = vmatprep.subr.mxu0 0.0
    %6578 = vmatpush2.msra.mxu0 %v6426
    %6579 = vmatprep.subr.mxu0 0.0
    %6580 = vmatpush2.msra.mxu0 %v6425
    %6581 = vmatprep.subr.mxu0 0.0
    %6582 = vmatpush2.msra.mxu0 %v6424
    %6583 = vmatprep.subr.mxu0 0.0
    %6584 = vmatpush2.msra.mxu0 %v6423
    %6585 = vmatprep.subr.mxu0 0.0
    %6586 = vmatpush2.msra.mxu0 %v6422
    %6587 = vmatprep.subr.mxu0 0.0
    %6588 = vmatpush2.msra.mxu0 %v6421
    %6589 = vmatprep.subr.mxu0 0.0
    %6590 = vmatpush2.msra.mxu0 %v6420
    %6591 = vmatprep.subr.mxu0 0.0
    %6592 = vmatpush2.msra.mxu0 %v6419
    %6593 = vmatprep.subr.mxu0 0.0
    %6594 = vmatpush2.msra.mxu0 %v6418
    %6595 = vmatprep.subr.mxu0 0.0
    %6596 = vmatpush2.msra.mxu0 %v6417
    %6597 = vmatprep.subr.mxu0 0.0
    %6598 = vmatpush2.msra.mxu0 %v6416
    %6599 = vmatprep.subr.mxu0 0.0
    %6600 = vmatpush2.msra.mxu0 %v6415
    %6601 = vmatprep.subr.mxu0 0.0
    %6602 = vmatpush2.msra.mxu0 %v6414
    %6603 = vmatprep.subr.mxu0 0.0
    %6604 = vmatpush2.msra.mxu0 %v6413
    %6605 = vmatprep.mubr.f32.mxu0 %v5822
    %6606 = vmatmul.mubr.f32.gmra.mxu0 %v5821
    %v6607 = vpop.f32.mrf.mxu0
    %v6608 = vadd.f32 0.0, %v6607
    %v6609 = vpop.f32.mrf.mxu0
    %6610 = vmatprep.mubr.f32.mxu0 %v5831
    %6611 = vmatmul.mubr.f32.gmra.mxu0 %v5830
    %v6612 = vpop.f32.mrf.mxu0
    %v6613 = vadd.f32 0.0, %v6612
    %v6614 = vpop.f32.mrf.mxu0
    %6615 = vmatprep.mubr.f32.mxu0 %v5840
    %6616 = vmatmul.mubr.f32.gmra.mxu0 %v5839
    %v6617 = vpop.f32.mrf.mxu0
    %v6618 = vadd.f32 0.0, %v6617
    %v6619 = vpop.f32.mrf.mxu0
    %6620 = vmatprep.mubr.f32.mxu0 %v5849
    %6621 = vmatmul.mubr.f32.gmra.mxu0 %v5848
    %v6622 = vpop.f32.mrf.mxu0
    %v6623 = vadd.f32 0.0, %v6622
    %v6624 = vpop.f32.mrf.mxu0
    %6625 = vmatprep.mubr.f32.mxu0 %v5858
    %6626 = vmatmul.mubr.f32.gmra.mxu0 %v5857
    %v6627 = vpop.f32.mrf.mxu0
    %v6628 = vadd.f32 0.0, %v6627
    %v6629 = vpop.f32.mrf.mxu0
    %6630 = vmatprep.mubr.f32.mxu0 %v5867
    %6631 = vmatmul.mubr.f32.gmra.mxu0 %v5866
    %v6632 = vpop.f32.mrf.mxu0
    %v6633 = vadd.f32 0.0, %v6632
    %v6634 = vpop.f32.mrf.mxu0
    %6635 = vmatprep.mubr.f32.mxu0 %v5876
    %6636 = vmatmul.mubr.f32.gmra.mxu0 %v5875
    %v6637 = vpop.f32.mrf.mxu0
    %v6638 = vadd.f32 0.0, %v6637
    %v6639 = vpop.f32.mrf.mxu0
    %6640 = vmatprep.mubr.f32.mxu0 %v5885
    %6641 = vmatmul.mubr.f32.gmra.mxu0 %v5884
    %v6642 = vpop.f32.mrf.mxu0
    %v6643 = vadd.f32 0.0, %v6642
    %v6644 = vpop.f32.mrf.mxu0
    %6645 = vmatprep.mubr.f32.mxu0 %v5894
    %6646 = vmatmul.mubr.f32.gmra.mxu0 %v5893
    %v6647 = vpop.f32.mrf.mxu0
    %v6648 = vadd.f32 0.0, %v6647
    %v6649 = vpop.f32.mrf.mxu0
    %6650 = vmatprep.mubr.f32.mxu0 %v5903
    %6651 = vmatmul.mubr.f32.gmra.mxu0 %v5902
    %v6652 = vpop.f32.mrf.mxu0
    %v6653 = vadd.f32 0.0, %v6652
    %v6654 = vpop.f32.mrf.mxu0
    %6655 = vmatprep.mubr.f32.mxu0 %v5912
    %6656 = vmatmul.mubr.f32.gmra.mxu0 %v5911
    %v6657 = vpop.f32.mrf.mxu0
    %v6658 = vadd.f32 0.0, %v6657
    %v6659 = vpop.f32.mrf.mxu0
    %6660 = vmatprep.mubr.f32.mxu0 %v5921
    %6661 = vmatmul.mubr.f32.gmra.mxu0 %v5920
    %v6662 = vpop.f32.mrf.mxu0
    %v6663 = vadd.f32 0.0, %v6662
    %v6664 = vpop.f32.mrf.mxu0
    %6665 = vmatprep.mubr.f32.mxu0 %v5930
    %6666 = vmatmul.mubr.f32.gmra.mxu0 %v5929
    %v6667 = vpop.f32.mrf.mxu0
    %v6668 = vadd.f32 0.0, %v6667
    %v6669 = vpop.f32.mrf.mxu0
    %6670 = vmatprep.mubr.f32.mxu0 %v5939
    %6671 = vmatmul.mubr.f32.gmra.mxu0 %v5938
    %v6672 = vpop.f32.mrf.mxu0
    %v6673 = vadd.f32 0.0, %v6672
    %v6674 = vpop.f32.mrf.mxu0
    %6675 = vmatprep.mubr.f32.mxu0 %v5948
    %6676 = vmatmul.mubr.f32.gmra.mxu0 %v5947
    %v6677 = vpop.f32.mrf.mxu0
    %v6678 = vadd.f32 0.0, %v6677
    %v6679 = vpop.f32.mrf.mxu0
    %6680 = vmatprep.mubr.f32.mxu0 %v5957
    %6681 = vmatmul.mubr.f32.gmra.mxu0 %v5956
    %v6682 = vpop.f32.mrf.mxu0
    %v6683 = vadd.f32 0.0, %v6682
    %v6684 = vpop.f32.mrf.mxu0
    %6685 = vmatprep.mubr.f32.mxu0 %v5966
    %6686 = vmatmul.mubr.f32.gmra.mxu0 %v5965
    %v6687 = vpop.f32.mrf.mxu0
    %v6688 = vadd.f32 0.0, %v6687
    %v6689 = vpop.f32.mrf.mxu0
    %6690 = vmatprep.mubr.f32.mxu0 %v5975
    %6691 = vmatmul.mubr.f32.gmra.mxu0 %v5974
    %v6692 = vpop.f32.mrf.mxu0
    %v6693 = vadd.f32 0.0, %v6692
    %v6694 = vpop.f32.mrf.mxu0
    %6695 = vmatprep.mubr.f32.mxu0 %v5984
    %6696 = vmatmul.mubr.f32.gmra.mxu0 %v5983
    %v6697 = vpop.f32.mrf.mxu0
    %v6698 = vadd.f32 0.0, %v6697
    %v6699 = vpop.f32.mrf.mxu0
    %6700 = vmatprep.mubr.f32.mxu0 %v5993
    %6701 = vmatmul.mubr.f32.gmra.mxu0 %v5992
    %v6702 = vpop.f32.mrf.mxu0
    %v6703 = vadd.f32 0.0, %v6702
    %v6704 = vpop.f32.mrf.mxu0
    %6705 = vmatprep.mubr.f32.mxu0 %v6002
    %6706 = vmatmul.mubr.f32.gmra.mxu0 %v6001
    %v6707 = vpop.f32.mrf.mxu0
    %v6708 = vadd.f32 0.0, %v6707
    %v6709 = vpop.f32.mrf.mxu0
    %6710 = vmatprep.mubr.f32.mxu0 %v6011
    %6711 = vmatmul.mubr.f32.gmra.mxu0 %v6010
    %v6712 = vpop.f32.mrf.mxu0
    %v6713 = vadd.f32 0.0, %v6712
    %v6714 = vpop.f32.mrf.mxu0
    %6715 = vmatprep.mubr.f32.mxu0 %v6020
    %6716 = vmatmul.mubr.f32.gmra.mxu0 %v6019
    %v6717 = vpop.f32.mrf.mxu0
    %v6718 = vadd.f32 0.0, %v6717
    %v6719 = vpop.f32.mrf.mxu0
    %6720 = vmatprep.mubr.f32.mxu0 %v6029
    %6721 = vmatmul.mubr.f32.gmra.mxu0 %v6028
    %v6722 = vpop.f32.mrf.mxu0
    %v6723 = vadd.f32 0.0, %v6722
    %v6724 = vpop.f32.mrf.mxu0
    %6725 = vmatprep.mubr.f32.mxu0 %v6038
    %6726 = vmatmul.mubr.f32.gmra.mxu0 %v6037
    %v6727 = vpop.f32.mrf.mxu0
    %v6728 = vadd.f32 0.0, %v6727
    %v6729 = vpop.f32.mrf.mxu0
    %6730 = vmatprep.mubr.f32.mxu0 %v6047
    %6731 = vmatmul.mubr.f32.gmra.mxu0 %v6046
    %v6732 = vpop.f32.mrf.mxu0
    %v6733 = vadd.f32 0.0, %v6732
    %v6734 = vpop.f32.mrf.mxu0
    %6735 = vmatprep.mubr.f32.mxu0 %v6056
    %6736 = vmatmul.mubr.f32.gmra.mxu0 %v6055
    %v6737 = vpop.f32.mrf.mxu0
    %v6738 = vadd.f32 0.0, %v6737
    %v6739 = vpop.f32.mrf.mxu0
    %6740 = vmatprep.mubr.f32.mxu0 %v6065
    %6741 = vmatmul.mubr.f32.gmra.mxu0 %v6064
    %v6742 = vpop.f32.mrf.mxu0
    %v6743 = vadd.f32 0.0, %v6742
    %v6744 = vpop.f32.mrf.mxu0
    %6745 = vmatprep.mubr.f32.mxu0 %v6074
    %6746 = vmatmul.mubr.f32.gmra.mxu0 %v6073
    %v6747 = vpop.f32.mrf.mxu0
    %v6748 = vadd.f32 0.0, %v6747
    %v6749 = vpop.f32.mrf.mxu0
    %6750 = vmatprep.mubr.f32.mxu0 %v6083
    %6751 = vmatmul.mubr.f32.gmra.mxu0 %v6082
    %v6752 = vpop.f32.mrf.mxu0
    %v6753 = vadd.f32 0.0, %v6752
    %v6754 = vpop.f32.mrf.mxu0
    %6755 = vmatprep.mubr.f32.mxu0 %v6092
    %6756 = vmatmul.mubr.f32.gmra.mxu0 %v6091
    %v6757 = vpop.f32.mrf.mxu0
    %v6758 = vadd.f32 0.0, %v6757
    %v6759 = vpop.f32.mrf.mxu0
    %6760 = vmatprep.mubr.f32.mxu0 %v6101
    %6761 = vmatmul.mubr.f32.gmra.mxu0 %v6100
    %v6762 = vpop.f32.mrf.mxu0
    %v6763 = vadd.f32 0.0, %v6762
    %v6764 = vpop.f32.mrf.mxu0
    %6765 = vmatprep.mubr.f32.mxu0 %v6110
    %6766 = vmatmul.mubr.f32.gmra.mxu0 %v6109
    %v6767 = vpop.f32.mrf.mxu0
    %v6768 = vadd.f32 0.0, %v6767
    %v6769 = vpop.f32.mrf.mxu0
    %6770 = vmatprep.mubr.f32.mxu0 %v6119
    %6771 = vmatmul.mubr.f32.gmra.mxu0 %v6118
    %v6772 = vpop.f32.mrf.mxu0
    %v6773 = vadd.f32 0.0, %v6772
    %v6774 = vpop.f32.mrf.mxu0
    %6775 = vmatprep.mubr.f32.mxu0 %v6128
    %6776 = vmatmul.mubr.f32.gmra.mxu0 %v6127
    %v6777 = vpop.f32.mrf.mxu0
    %v6778 = vadd.f32 0.0, %v6777
    %v6779 = vpop.f32.mrf.mxu0
    %6780 = vmatprep.mubr.f32.mxu0 %v6137
    %6781 = vmatmul.mubr.f32.gmra.mxu0 %v6136
    %v6782 = vpop.f32.mrf.mxu0
    %v6783 = vadd.f32 0.0, %v6782
    %v6784 = vpop.f32.mrf.mxu0
    %6785 = vmatprep.mubr.f32.mxu0 %v6146
    %6786 = vmatmul.mubr.f32.gmra.mxu0 %v6145
    %v6787 = vpop.f32.mrf.mxu0
    %v6788 = vadd.f32 0.0, %v6787
    %v6789 = vpop.f32.mrf.mxu0
    %6790 = vmatprep.mubr.f32.mxu0 %v6155
    %6791 = vmatmul.mubr.f32.gmra.mxu0 %v6154
    %v6792 = vpop.f32.mrf.mxu0
    %v6793 = vadd.f32 0.0, %v6792
    %v6794 = vpop.f32.mrf.mxu0
    %6795 = vmatprep.mubr.f32.mxu0 %v6164
    %6796 = vmatmul.mubr.f32.gmra.mxu0 %v6163
    %v6797 = vpop.f32.mrf.mxu0
    %v6798 = vadd.f32 0.0, %v6797
    %v6799 = vpop.f32.mrf.mxu0
    %6800 = vmatprep.mubr.f32.mxu0 %v6173
    %6801 = vmatmul.mubr.f32.gmra.mxu0 %v6172
    %v6802 = vpop.f32.mrf.mxu0
    %v6803 = vadd.f32 0.0, %v6802
    %v6804 = vpop.f32.mrf.mxu0
    %6805 = vmatprep.mubr.f32.mxu0 %v6182
    %6806 = vmatmul.mubr.f32.gmra.mxu0 %v6181
    %v6807 = vpop.f32.mrf.mxu0
    %v6808 = vadd.f32 0.0, %v6807
    %v6809 = vpop.f32.mrf.mxu0
    %6810 = vmatprep.mubr.f32.mxu0 %v6191
    %6811 = vmatmul.mubr.f32.gmra.mxu0 %v6190
    %v6812 = vpop.f32.mrf.mxu0
    %v6813 = vadd.f32 0.0, %v6812
    %v6814 = vpop.f32.mrf.mxu0
    %6815 = vmatprep.mubr.f32.mxu0 %v6200
    %6816 = vmatmul.mubr.f32.gmra.mxu0 %v6199
    %v6817 = vpop.f32.mrf.mxu0
    %v6818 = vadd.f32 0.0, %v6817
    %v6819 = vpop.f32.mrf.mxu0
    %6820 = vmatprep.mubr.f32.mxu0 %v6209
    %6821 = vmatmul.mubr.f32.gmra.mxu0 %v6208
    %v6822 = vpop.f32.mrf.mxu0
    %v6823 = vadd.f32 0.0, %v6822
    %v6824 = vpop.f32.mrf.mxu0
    %6825 = vmatprep.mubr.f32.mxu0 %v6218
    %6826 = vmatmul.mubr.f32.gmra.mxu0 %v6217
    %v6827 = vpop.f32.mrf.mxu0
    %v6828 = vadd.f32 0.0, %v6827
    %v6829 = vpop.f32.mrf.mxu0
    %6830 = vmatprep.mubr.f32.mxu0 %v6227
    %6831 = vmatmul.mubr.f32.gmra.mxu0 %v6226
    %v6832 = vpop.f32.mrf.mxu0
    %v6833 = vadd.f32 0.0, %v6832
    %v6834 = vpop.f32.mrf.mxu0
    %6835 = vmatprep.mubr.f32.mxu0 %v6236
    %6836 = vmatmul.mubr.f32.gmra.mxu0 %v6235
    %v6837 = vpop.f32.mrf.mxu0
    %v6838 = vadd.f32 0.0, %v6837
    %v6839 = vpop.f32.mrf.mxu0
    %6840 = vmatprep.mubr.f32.mxu0 %v6245
    %6841 = vmatmul.mubr.f32.gmra.mxu0 %v6244
    %v6842 = vpop.f32.mrf.mxu0
    %v6843 = vadd.f32 0.0, %v6842
    %v6844 = vpop.f32.mrf.mxu0
    %6845 = vmatprep.mubr.f32.mxu0 %v6254
    %6846 = vmatmul.mubr.f32.gmra.mxu0 %v6253
    %v6847 = vpop.f32.mrf.mxu0
    %v6848 = vadd.f32 0.0, %v6847
    %v6849 = vpop.f32.mrf.mxu0
    %6850 = vmatprep.mubr.f32.mxu0 %v6263
    %6851 = vmatmul.mubr.f32.gmra.mxu0 %v6262
    %v6852 = vpop.f32.mrf.mxu0
    %v6853 = vadd.f32 0.0, %v6852
    %v6854 = vpop.f32.mrf.mxu0
    %6855 = vmatprep.mubr.f32.mxu0 %v6272
    %6856 = vmatmul.mubr.f32.gmra.mxu0 %v6271
    %v6857 = vpop.f32.mrf.mxu0
    %v6858 = vadd.f32 0.0, %v6857
    %v6859 = vpop.f32.mrf.mxu0
    %6860 = vmatprep.mubr.f32.mxu0 %v6281
    %6861 = vmatmul.mubr.f32.gmra.mxu0 %v6280
    %v6862 = vpop.f32.mrf.mxu0
    %v6863 = vadd.f32 0.0, %v6862
    %v6864 = vpop.f32.mrf.mxu0
    %6865 = vmatprep.mubr.f32.mxu0 %v6290
    %6866 = vmatmul.mubr.f32.gmra.mxu0 %v6289
    %v6867 = vpop.f32.mrf.mxu0
    %v6868 = vadd.f32 0.0, %v6867
    %v6869 = vpop.f32.mrf.mxu0
    %6870 = vmatprep.mubr.f32.mxu0 %v6299
    %6871 = vmatmul.mubr.f32.gmra.mxu0 %v6298
    %v6872 = vpop.f32.mrf.mxu0
    %v6873 = vadd.f32 0.0, %v6872
    %v6874 = vpop.f32.mrf.mxu0
    %6875 = vmatprep.mubr.f32.mxu0 %v6308
    %6876 = vmatmul.mubr.f32.gmra.mxu0 %v6307
    %v6877 = vpop.f32.mrf.mxu0
    %v6878 = vadd.f32 0.0, %v6877
    %v6879 = vpop.f32.mrf.mxu0
    %6880 = vmatprep.mubr.f32.mxu0 %v6317
    %6881 = vmatmul.mubr.f32.gmra.mxu0 %v6316
    %v6882 = vpop.f32.mrf.mxu0
    %v6883 = vadd.f32 0.0, %v6882
    %v6884 = vpop.f32.mrf.mxu0
    %6885 = vmatprep.mubr.f32.mxu0 %v6326
    %6886 = vmatmul.mubr.f32.gmra.mxu0 %v6325
    %v6887 = vpop.f32.mrf.mxu0
    %v6888 = vadd.f32 0.0, %v6887
    %v6889 = vpop.f32.mrf.mxu0
    %6890 = vmatprep.mubr.f32.mxu0 %v6335
    %6891 = vmatmul.mubr.f32.gmra.mxu0 %v6334
    %v6892 = vpop.f32.mrf.mxu0
    %v6893 = vadd.f32 0.0, %v6892
    %v6894 = vpop.f32.mrf.mxu0
    %6895 = vmatprep.mubr.f32.mxu0 %v6344
    %6896 = vmatmul.mubr.f32.gmra.mxu0 %v6343
    %v6897 = vpop.f32.mrf.mxu0
    %v6898 = vadd.f32 0.0, %v6897
    %v6899 = vpop.f32.mrf.mxu0
    %6900 = vmatprep.mubr.f32.mxu0 %v6353
    %6901 = vmatmul.mubr.f32.gmra.mxu0 %v6352
    %v6902 = vpop.f32.mrf.mxu0
    %v6903 = vadd.f32 0.0, %v6902
    %v6904 = vpop.f32.mrf.mxu0
    %6905 = vmatprep.mubr.f32.mxu0 %v6362
    %6906 = vmatmul.mubr.f32.gmra.mxu0 %v6361
    %v6907 = vpop.f32.mrf.mxu0
    %v6908 = vadd.f32 0.0, %v6907
    %v6909 = vpop.f32.mrf.mxu0
    %6910 = vmatprep.mubr.f32.mxu0 %v6371
    %6911 = vmatmul.mubr.f32.gmra.mxu0 %v6370
    %v6912 = vpop.f32.mrf.mxu0
    %v6913 = vadd.f32 0.0, %v6912
    %v6914 = vpop.f32.mrf.mxu0
    %6915 = vmatprep.mubr.f32.mxu0 %v6380
    %6916 = vmatmul.mubr.f32.gmra.mxu0 %v6379
    %v6917 = vpop.f32.mrf.mxu0
    %v6918 = vadd.f32 0.0, %v6917
    %v6919 = vpop.f32.mrf.mxu0
    %6920 = vmatprep.mubr.f32.mxu0 %v6389
    %6921 = vmatmul.mubr.f32.gmra.mxu0 %v6388
    %v6922 = vpop.f32.mrf.mxu0
    %v6923 = vadd.f32 0.0, %v6922
    %v6924 = vpop.f32.mrf.mxu0
    %6925 = vdwg.mxu0
    %6926 = vmatprep.subr.mxu0 0.0
    %6927 = vmatpush1.msra.mxu0 %v6444
    %6928 = vmatprep.subr.mxu0 0.0
    %6929 = vmatpush1.msra.mxu0 %v6443
    %6930 = vmatprep.subr.mxu0 0.0
    %6931 = vmatpush1.msra.mxu0 %v6442
    %6932 = vmatprep.subr.mxu0 0.0
    %6933 = vmatpush1.msra.mxu0 %v6441
    %6934 = vmatprep.subr.mxu0 0.0
    %6935 = vmatpush1.msra.mxu0 %v6440
    %6936 = vmatprep.subr.mxu0 0.0
    %6937 = vmatpush1.msra.mxu0 %v6439
    %6938 = vmatprep.subr.mxu0 0.0
    %6939 = vmatpush1.msra.mxu0 %v6438
    %6940 = vmatprep.subr.mxu0 0.0
    %6941 = vmatpush1.msra.mxu0 %v6437
    %6942 = vmatprep.subr.mxu0 0.0
    %6943 = vmatpush1.msra.mxu0 %v6436
    %6944 = vmatprep.subr.mxu0 0.0
    %6945 = vmatpush1.msra.mxu0 %v6435
    %6946 = vmatprep.subr.mxu0 0.0
    %6947 = vmatpush1.msra.mxu0 %v6434
    %6948 = vmatprep.subr.mxu0 0.0
    %6949 = vmatpush1.msra.mxu0 %v6433
    %6950 = vmatprep.subr.mxu0 0.0
    %6951 = vmatpush1.msra.mxu0 %v6432
    %6952 = vmatprep.subr.mxu0 0.0
    %6953 = vmatpush1.msra.mxu0 %v6431
    %6954 = vmatprep.subr.mxu0 0.0
    %6955 = vmatpush1.msra.mxu0 %v6430
    %6956 = vmatprep.subr.mxu0 0.0
    %6957 = vmatpush1.msra.mxu0 %v6429
    %6958 = vmatprep.subr.mxu0 0.0
    %6959 = vmatpush2.msra.mxu0 %v6460
    %6960 = vmatprep.subr.mxu0 0.0
    %6961 = vmatpush2.msra.mxu0 %v6459
    %6962 = vmatprep.subr.mxu0 0.0
    %6963 = vmatpush2.msra.mxu0 %v6458
    %6964 = vmatprep.subr.mxu0 0.0
    %6965 = vmatpush2.msra.mxu0 %v6457
    %6966 = vmatprep.subr.mxu0 0.0
    %6967 = vmatpush2.msra.mxu0 %v6456
    %6968 = vmatprep.subr.mxu0 0.0
    %6969 = vmatpush2.msra.mxu0 %v6455
    %6970 = vmatprep.subr.mxu0 0.0
    %6971 = vmatpush2.msra.mxu0 %v6454
    %6972 = vmatprep.subr.mxu0 0.0
    %6973 = vmatpush2.msra.mxu0 %v6453
    %6974 = vmatprep.subr.mxu0 0.0
    %6975 = vmatpush2.msra.mxu0 %v6452
    %6976 = vmatprep.subr.mxu0 0.0
    %6977 = vmatpush2.msra.mxu0 %v6451
    %6978 = vmatprep.subr.mxu0 0.0
    %6979 = vmatpush2.msra.mxu0 %v6450
    %6980 = vmatprep.subr.mxu0 0.0
    %6981 = vmatpush2.msra.mxu0 %v6449
    %6982 = vmatprep.subr.mxu0 0.0
    %6983 = vmatpush2.msra.mxu0 %v6448
    %6984 = vmatprep.subr.mxu0 0.0
    %6985 = vmatpush2.msra.mxu0 %v6447
    %6986 = vmatprep.subr.mxu0 0.0
    %6987 = vmatpush2.msra.mxu0 %v6446
    %6988 = vmatprep.subr.mxu0 0.0
    %6989 = vmatpush2.msra.mxu0 %v6445
    %6990 = vmatprep.mubr.f32.mxu0 %v5824
    %6991 = vmatmul.mubr.f32.gmra.mxu0 %v5823
    %v6992 = vpop.f32.mrf.mxu0
    %v6993 = vadd.f32 %v6608, %v6992
    %v6994 = vpop.f32.mrf.mxu0
    %6995 = vmatprep.mubr.f32.mxu0 %v5833
    %6996 = vmatmul.mubr.f32.gmra.mxu0 %v5832
    %v6997 = vpop.f32.mrf.mxu0
    %v6998 = vadd.f32 %v6613, %v6997
    %v6999 = vpop.f32.mrf.mxu0
    %7000 = vmatprep.mubr.f32.mxu0 %v5842
    %7001 = vmatmul.mubr.f32.gmra.mxu0 %v5841
    %v7002 = vpop.f32.mrf.mxu0
    %v7003 = vadd.f32 %v6618, %v7002
    %v7004 = vpop.f32.mrf.mxu0
    %7005 = vmatprep.mubr.f32.mxu0 %v5851
    %7006 = vmatmul.mubr.f32.gmra.mxu0 %v5850
    %v7007 = vpop.f32.mrf.mxu0
    %v7008 = vadd.f32 %v6623, %v7007
    %v7009 = vpop.f32.mrf.mxu0
    %7010 = vmatprep.mubr.f32.mxu0 %v5860
    %7011 = vmatmul.mubr.f32.gmra.mxu0 %v5859
    %v7012 = vpop.f32.mrf.mxu0
    %v7013 = vadd.f32 %v6628, %v7012
    %v7014 = vpop.f32.mrf.mxu0
    %7015 = vmatprep.mubr.f32.mxu0 %v5869
    %7016 = vmatmul.mubr.f32.gmra.mxu0 %v5868
    %v7017 = vpop.f32.mrf.mxu0
    %v7018 = vadd.f32 %v6633, %v7017
    %v7019 = vpop.f32.mrf.mxu0
    %7020 = vmatprep.mubr.f32.mxu0 %v5878
    %7021 = vmatmul.mubr.f32.gmra.mxu0 %v5877
    %v7022 = vpop.f32.mrf.mxu0
    %v7023 = vadd.f32 %v6638, %v7022
    %v7024 = vpop.f32.mrf.mxu0
    %7025 = vmatprep.mubr.f32.mxu0 %v5887
    %7026 = vmatmul.mubr.f32.gmra.mxu0 %v5886
    %v7027 = vpop.f32.mrf.mxu0
    %v7028 = vadd.f32 %v6643, %v7027
    %v7029 = vpop.f32.mrf.mxu0
    %7030 = vmatprep.mubr.f32.mxu0 %v5896
    %7031 = vmatmul.mubr.f32.gmra.mxu0 %v5895
    %v7032 = vpop.f32.mrf.mxu0
    %v7033 = vadd.f32 %v6648, %v7032
    %v7034 = vpop.f32.mrf.mxu0
    %7035 = vmatprep.mubr.f32.mxu0 %v5905
    %7036 = vmatmul.mubr.f32.gmra.mxu0 %v5904
    %v7037 = vpop.f32.mrf.mxu0
    %v7038 = vadd.f32 %v6653, %v7037
    %v7039 = vpop.f32.mrf.mxu0
    %7040 = vmatprep.mubr.f32.mxu0 %v5914
    %7041 = vmatmul.mubr.f32.gmra.mxu0 %v5913
    %v7042 = vpop.f32.mrf.mxu0
    %v7043 = vadd.f32 %v6658, %v7042
    %v7044 = vpop.f32.mrf.mxu0
    %7045 = vmatprep.mubr.f32.mxu0 %v5923
    %7046 = vmatmul.mubr.f32.gmra.mxu0 %v5922
    %v7047 = vpop.f32.mrf.mxu0
    %v7048 = vadd.f32 %v6663, %v7047
    %v7049 = vpop.f32.mrf.mxu0
    %7050 = vmatprep.mubr.f32.mxu0 %v5932
    %7051 = vmatmul.mubr.f32.gmra.mxu0 %v5931
    %v7052 = vpop.f32.mrf.mxu0
    %v7053 = vadd.f32 %v6668, %v7052
    %v7054 = vpop.f32.mrf.mxu0
    %7055 = vmatprep.mubr.f32.mxu0 %v5941
    %7056 = vmatmul.mubr.f32.gmra.mxu0 %v5940
    %v7057 = vpop.f32.mrf.mxu0
    %v7058 = vadd.f32 %v6673, %v7057
    %v7059 = vpop.f32.mrf.mxu0
    %7060 = vmatprep.mubr.f32.mxu0 %v5950
    %7061 = vmatmul.mubr.f32.gmra.mxu0 %v5949
    %v7062 = vpop.f32.mrf.mxu0
    %v7063 = vadd.f32 %v6678, %v7062
    %v7064 = vpop.f32.mrf.mxu0
    %7065 = vmatprep.mubr.f32.mxu0 %v5959
    %7066 = vmatmul.mubr.f32.gmra.mxu0 %v5958
    %v7067 = vpop.f32.mrf.mxu0
    %v7068 = vadd.f32 %v6683, %v7067
    %v7069 = vpop.f32.mrf.mxu0
    %7070 = vmatprep.mubr.f32.mxu0 %v5968
    %7071 = vmatmul.mubr.f32.gmra.mxu0 %v5967
    %v7072 = vpop.f32.mrf.mxu0
    %v7073 = vadd.f32 %v6688, %v7072
    %v7074 = vpop.f32.mrf.mxu0
    %7075 = vmatprep.mubr.f32.mxu0 %v5977
    %7076 = vmatmul.mubr.f32.gmra.mxu0 %v5976
    %v7077 = vpop.f32.mrf.mxu0
    %v7078 = vadd.f32 %v6693, %v7077
    %v7079 = vpop.f32.mrf.mxu0
    %7080 = vmatprep.mubr.f32.mxu0 %v5986
    %7081 = vmatmul.mubr.f32.gmra.mxu0 %v5985
    %v7082 = vpop.f32.mrf.mxu0
    %v7083 = vadd.f32 %v6698, %v7082
    %v7084 = vpop.f32.mrf.mxu0
    %7085 = vmatprep.mubr.f32.mxu0 %v5995
    %7086 = vmatmul.mubr.f32.gmra.mxu0 %v5994
    %v7087 = vpop.f32.mrf.mxu0
    %v7088 = vadd.f32 %v6703, %v7087
    %v7089 = vpop.f32.mrf.mxu0
    %7090 = vmatprep.mubr.f32.mxu0 %v6004
    %7091 = vmatmul.mubr.f32.gmra.mxu0 %v6003
    %v7092 = vpop.f32.mrf.mxu0
    %v7093 = vadd.f32 %v6708, %v7092
    %v7094 = vpop.f32.mrf.mxu0
    %7095 = vmatprep.mubr.f32.mxu0 %v6013
    %7096 = vmatmul.mubr.f32.gmra.mxu0 %v6012
    %v7097 = vpop.f32.mrf.mxu0
    %v7098 = vadd.f32 %v6713, %v7097
    %v7099 = vpop.f32.mrf.mxu0
    %7100 = vmatprep.mubr.f32.mxu0 %v6022
    %7101 = vmatmul.mubr.f32.gmra.mxu0 %v6021
    %v7102 = vpop.f32.mrf.mxu0
    %v7103 = vadd.f32 %v6718, %v7102
    %v7104 = vpop.f32.mrf.mxu0
    %7105 = vmatprep.mubr.f32.mxu0 %v6031
    %7106 = vmatmul.mubr.f32.gmra.mxu0 %v6030
    %v7107 = vpop.f32.mrf.mxu0
    %v7108 = vadd.f32 %v6723, %v7107
    %v7109 = vpop.f32.mrf.mxu0
    %7110 = vmatprep.mubr.f32.mxu0 %v6040
    %7111 = vmatmul.mubr.f32.gmra.mxu0 %v6039
    %v7112 = vpop.f32.mrf.mxu0
    %v7113 = vadd.f32 %v6728, %v7112
    %v7114 = vpop.f32.mrf.mxu0
    %7115 = vmatprep.mubr.f32.mxu0 %v6049
    %7116 = vmatmul.mubr.f32.gmra.mxu0 %v6048
    %v7117 = vpop.f32.mrf.mxu0
    %v7118 = vadd.f32 %v6733, %v7117
    %v7119 = vpop.f32.mrf.mxu0
    %7120 = vmatprep.mubr.f32.mxu0 %v6058
    %7121 = vmatmul.mubr.f32.gmra.mxu0 %v6057
    %v7122 = vpop.f32.mrf.mxu0
    %v7123 = vadd.f32 %v6738, %v7122
    %v7124 = vpop.f32.mrf.mxu0
    %7125 = vmatprep.mubr.f32.mxu0 %v6067
    %7126 = vmatmul.mubr.f32.gmra.mxu0 %v6066
    %v7127 = vpop.f32.mrf.mxu0
    %v7128 = vadd.f32 %v6743, %v7127
    %v7129 = vpop.f32.mrf.mxu0
    %7130 = vmatprep.mubr.f32.mxu0 %v6076
    %7131 = vmatmul.mubr.f32.gmra.mxu0 %v6075
    %v7132 = vpop.f32.mrf.mxu0
    %v7133 = vadd.f32 %v6748, %v7132
    %v7134 = vpop.f32.mrf.mxu0
    %7135 = vmatprep.mubr.f32.mxu0 %v6085
    %7136 = vmatmul.mubr.f32.gmra.mxu0 %v6084
    %v7137 = vpop.f32.mrf.mxu0
    %v7138 = vadd.f32 %v6753, %v7137
    %v7139 = vpop.f32.mrf.mxu0
    %7140 = vmatprep.mubr.f32.mxu0 %v6094
    %7141 = vmatmul.mubr.f32.gmra.mxu0 %v6093
    %v7142 = vpop.f32.mrf.mxu0
    %v7143 = vadd.f32 %v6758, %v7142
    %v7144 = vpop.f32.mrf.mxu0
    %7145 = vmatprep.mubr.f32.mxu0 %v6103
    %7146 = vmatmul.mubr.f32.gmra.mxu0 %v6102
    %v7147 = vpop.f32.mrf.mxu0
    %v7148 = vadd.f32 %v6763, %v7147
    %v7149 = vpop.f32.mrf.mxu0
    %7150 = vmatprep.mubr.f32.mxu0 %v6112
    %7151 = vmatmul.mubr.f32.gmra.mxu0 %v6111
    %v7152 = vpop.f32.mrf.mxu0
    %v7153 = vadd.f32 %v6768, %v7152
    %v7154 = vpop.f32.mrf.mxu0
    %7155 = vmatprep.mubr.f32.mxu0 %v6121
    %7156 = vmatmul.mubr.f32.gmra.mxu0 %v6120
    %v7157 = vpop.f32.mrf.mxu0
    %v7158 = vadd.f32 %v6773, %v7157
    %v7159 = vpop.f32.mrf.mxu0
    %7160 = vmatprep.mubr.f32.mxu0 %v6130
    %7161 = vmatmul.mubr.f32.gmra.mxu0 %v6129
    %v7162 = vpop.f32.mrf.mxu0
    %v7163 = vadd.f32 %v6778, %v7162
    %v7164 = vpop.f32.mrf.mxu0
    %7165 = vmatprep.mubr.f32.mxu0 %v6139
    %7166 = vmatmul.mubr.f32.gmra.mxu0 %v6138
    %v7167 = vpop.f32.mrf.mxu0
    %v7168 = vadd.f32 %v6783, %v7167
    %v7169 = vpop.f32.mrf.mxu0
    %7170 = vmatprep.mubr.f32.mxu0 %v6148
    %7171 = vmatmul.mubr.f32.gmra.mxu0 %v6147
    %v7172 = vpop.f32.mrf.mxu0
    %v7173 = vadd.f32 %v6788, %v7172
    %v7174 = vpop.f32.mrf.mxu0
    %7175 = vmatprep.mubr.f32.mxu0 %v6157
    %7176 = vmatmul.mubr.f32.gmra.mxu0 %v6156
    %v7177 = vpop.f32.mrf.mxu0
    %v7178 = vadd.f32 %v6793, %v7177
    %v7179 = vpop.f32.mrf.mxu0
    %7180 = vmatprep.mubr.f32.mxu0 %v6166
    %7181 = vmatmul.mubr.f32.gmra.mxu0 %v6165
    %v7182 = vpop.f32.mrf.mxu0
    %v7183 = vadd.f32 %v6798, %v7182
    %v7184 = vpop.f32.mrf.mxu0
    %7185 = vmatprep.mubr.f32.mxu0 %v6175
    %7186 = vmatmul.mubr.f32.gmra.mxu0 %v6174
    %v7187 = vpop.f32.mrf.mxu0
    %v7188 = vadd.f32 %v6803, %v7187
    %v7189 = vpop.f32.mrf.mxu0
    %7190 = vmatprep.mubr.f32.mxu0 %v6184
    %7191 = vmatmul.mubr.f32.gmra.mxu0 %v6183
    %v7192 = vpop.f32.mrf.mxu0
    %v7193 = vadd.f32 %v6808, %v7192
    %v7194 = vpop.f32.mrf.mxu0
    %7195 = vmatprep.mubr.f32.mxu0 %v6193
    %7196 = vmatmul.mubr.f32.gmra.mxu0 %v6192
    %v7197 = vpop.f32.mrf.mxu0
    %v7198 = vadd.f32 %v6813, %v7197
    %v7199 = vpop.f32.mrf.mxu0
    %7200 = vmatprep.mubr.f32.mxu0 %v6202
    %7201 = vmatmul.mubr.f32.gmra.mxu0 %v6201
    %v7202 = vpop.f32.mrf.mxu0
    %v7203 = vadd.f32 %v6818, %v7202
    %v7204 = vpop.f32.mrf.mxu0
    %7205 = vmatprep.mubr.f32.mxu0 %v6211
    %7206 = vmatmul.mubr.f32.gmra.mxu0 %v6210
    %v7207 = vpop.f32.mrf.mxu0
    %v7208 = vadd.f32 %v6823, %v7207
    %v7209 = vpop.f32.mrf.mxu0
    %7210 = vmatprep.mubr.f32.mxu0 %v6220
    %7211 = vmatmul.mubr.f32.gmra.mxu0 %v6219
    %v7212 = vpop.f32.mrf.mxu0
    %v7213 = vadd.f32 %v6828, %v7212
    %v7214 = vpop.f32.mrf.mxu0
    %7215 = vmatprep.mubr.f32.mxu0 %v6229
    %7216 = vmatmul.mubr.f32.gmra.mxu0 %v6228
    %v7217 = vpop.f32.mrf.mxu0
    %v7218 = vadd.f32 %v6833, %v7217
    %v7219 = vpop.f32.mrf.mxu0
    %7220 = vmatprep.mubr.f32.mxu0 %v6238
    %7221 = vmatmul.mubr.f32.gmra.mxu0 %v6237
    %v7222 = vpop.f32.mrf.mxu0
    %v7223 = vadd.f32 %v6838, %v7222
    %v7224 = vpop.f32.mrf.mxu0
    %7225 = vmatprep.mubr.f32.mxu0 %v6247
    %7226 = vmatmul.mubr.f32.gmra.mxu0 %v6246
    %v7227 = vpop.f32.mrf.mxu0
    %v7228 = vadd.f32 %v6843, %v7227
    %v7229 = vpop.f32.mrf.mxu0
    %7230 = vmatprep.mubr.f32.mxu0 %v6256
    %7231 = vmatmul.mubr.f32.gmra.mxu0 %v6255
    %v7232 = vpop.f32.mrf.mxu0
    %v7233 = vadd.f32 %v6848, %v7232
    %v7234 = vpop.f32.mrf.mxu0
    %7235 = vmatprep.mubr.f32.mxu0 %v6265
    %7236 = vmatmul.mubr.f32.gmra.mxu0 %v6264
    %v7237 = vpop.f32.mrf.mxu0
    %v7238 = vadd.f32 %v6853, %v7237
    %v7239 = vpop.f32.mrf.mxu0
    %7240 = vmatprep.mubr.f32.mxu0 %v6274
    %7241 = vmatmul.mubr.f32.gmra.mxu0 %v6273
    %v7242 = vpop.f32.mrf.mxu0
    %v7243 = vadd.f32 %v6858, %v7242
    %v7244 = vpop.f32.mrf.mxu0
    %7245 = vmatprep.mubr.f32.mxu0 %v6283
    %7246 = vmatmul.mubr.f32.gmra.mxu0 %v6282
    %v7247 = vpop.f32.mrf.mxu0
    %v7248 = vadd.f32 %v6863, %v7247
    %v7249 = vpop.f32.mrf.mxu0
    %7250 = vmatprep.mubr.f32.mxu0 %v6292
    %7251 = vmatmul.mubr.f32.gmra.mxu0 %v6291
    %v7252 = vpop.f32.mrf.mxu0
    %v7253 = vadd.f32 %v6868, %v7252
    %v7254 = vpop.f32.mrf.mxu0
    %7255 = vmatprep.mubr.f32.mxu0 %v6301
    %7256 = vmatmul.mubr.f32.gmra.mxu0 %v6300
    %v7257 = vpop.f32.mrf.mxu0
    %v7258 = vadd.f32 %v6873, %v7257
    %v7259 = vpop.f32.mrf.mxu0
    %7260 = vmatprep.mubr.f32.mxu0 %v6310
    %7261 = vmatmul.mubr.f32.gmra.mxu0 %v6309
    %v7262 = vpop.f32.mrf.mxu0
    %v7263 = vadd.f32 %v6878, %v7262
    %v7264 = vpop.f32.mrf.mxu0
    %7265 = vmatprep.mubr.f32.mxu0 %v6319
    %7266 = vmatmul.mubr.f32.gmra.mxu0 %v6318
    %v7267 = vpop.f32.mrf.mxu0
    %v7268 = vadd.f32 %v6883, %v7267
    %v7269 = vpop.f32.mrf.mxu0
    %7270 = vmatprep.mubr.f32.mxu0 %v6328
    %7271 = vmatmul.mubr.f32.gmra.mxu0 %v6327
    %v7272 = vpop.f32.mrf.mxu0
    %v7273 = vadd.f32 %v6888, %v7272
    %v7274 = vpop.f32.mrf.mxu0
    %7275 = vmatprep.mubr.f32.mxu0 %v6337
    %7276 = vmatmul.mubr.f32.gmra.mxu0 %v6336
    %v7277 = vpop.f32.mrf.mxu0
    %v7278 = vadd.f32 %v6893, %v7277
    %v7279 = vpop.f32.mrf.mxu0
    %7280 = vmatprep.mubr.f32.mxu0 %v6346
    %7281 = vmatmul.mubr.f32.gmra.mxu0 %v6345
    %v7282 = vpop.f32.mrf.mxu0
    %v7283 = vadd.f32 %v6898, %v7282
    %v7284 = vpop.f32.mrf.mxu0
    %7285 = vmatprep.mubr.f32.mxu0 %v6355
    %7286 = vmatmul.mubr.f32.gmra.mxu0 %v6354
    %v7287 = vpop.f32.mrf.mxu0
    %v7288 = vadd.f32 %v6903, %v7287
    %v7289 = vpop.f32.mrf.mxu0
    %7290 = vmatprep.mubr.f32.mxu0 %v6364
    %7291 = vmatmul.mubr.f32.gmra.mxu0 %v6363
    %v7292 = vpop.f32.mrf.mxu0
    %v7293 = vadd.f32 %v6908, %v7292
    %v7294 = vpop.f32.mrf.mxu0
    %7295 = vmatprep.mubr.f32.mxu0 %v6373
    %7296 = vmatmul.mubr.f32.gmra.mxu0 %v6372
    %v7297 = vpop.f32.mrf.mxu0
    %v7298 = vadd.f32 %v6913, %v7297
    %v7299 = vpop.f32.mrf.mxu0
    %7300 = vmatprep.mubr.f32.mxu0 %v6382
    %7301 = vmatmul.mubr.f32.gmra.mxu0 %v6381
    %v7302 = vpop.f32.mrf.mxu0
    %v7303 = vadd.f32 %v6918, %v7302
    %v7304 = vpop.f32.mrf.mxu0
    %7305 = vmatprep.mubr.f32.mxu0 %v6391
    %7306 = vmatmul.mubr.f32.gmra.mxu0 %v6390
    %v7307 = vpop.f32.mrf.mxu0
    %v7308 = vadd.f32 %v6923, %v7307
    %v7309 = vpop.f32.mrf.mxu0
    %7310 = vdwg.mxu0
    %7311 = vmatprep.subr.mxu0 0.0
    %7312 = vmatpush1.msra.mxu0 %v6476
    %7313 = vmatprep.subr.mxu0 0.0
    %7314 = vmatpush1.msra.mxu0 %v6475
    %7315 = vmatprep.subr.mxu0 0.0
    %7316 = vmatpush1.msra.mxu0 %v6474
    %7317 = vmatprep.subr.mxu0 0.0
    %7318 = vmatpush1.msra.mxu0 %v6473
    %7319 = vmatprep.subr.mxu0 0.0
    %7320 = vmatpush1.msra.mxu0 %v6472
    %7321 = vmatprep.subr.mxu0 0.0
    %7322 = vmatpush1.msra.mxu0 %v6471
    %7323 = vmatprep.subr.mxu0 0.0
    %7324 = vmatpush1.msra.mxu0 %v6470
    %7325 = vmatprep.subr.mxu0 0.0
    %7326 = vmatpush1.msra.mxu0 %v6469
    %7327 = vmatprep.subr.mxu0 0.0
    %7328 = vmatpush1.msra.mxu0 %v6468
    %7329 = vmatprep.subr.mxu0 0.0
    %7330 = vmatpush1.msra.mxu0 %v6467
    %7331 = vmatprep.subr.mxu0 0.0
    %7332 = vmatpush1.msra.mxu0 %v6466
    %7333 = vmatprep.subr.mxu0 0.0
    %7334 = vmatpush1.msra.mxu0 %v6465
    %7335 = vmatprep.subr.mxu0 0.0
    %7336 = vmatpush1.msra.mxu0 %v6464
    %7337 = vmatprep.subr.mxu0 0.0
    %7338 = vmatpush1.msra.mxu0 %v6463
    %7339 = vmatprep.subr.mxu0 0.0
    %7340 = vmatpush1.msra.mxu0 %v6462
    %7341 = vmatprep.subr.mxu0 0.0
    %7342 = vmatpush1.msra.mxu0 %v6461
    %7343 = vmatprep.subr.mxu0 0.0
    %7344 = vmatpush2.msra.mxu0 %v6492
    %7345 = vmatprep.subr.mxu0 0.0
    %7346 = vmatpush2.msra.mxu0 %v6491
    %7347 = vmatprep.subr.mxu0 0.0
    %7348 = vmatpush2.msra.mxu0 %v6490
    %7349 = vmatprep.subr.mxu0 0.0
    %7350 = vmatpush2.msra.mxu0 %v6489
    %7351 = vmatprep.subr.mxu0 0.0
    %7352 = vmatpush2.msra.mxu0 %v6488
    %7353 = vmatprep.subr.mxu0 0.0
    %7354 = vmatpush2.msra.mxu0 %v6487
    %7355 = vmatprep.subr.mxu0 0.0
    %7356 = vmatpush2.msra.mxu0 %v6486
    %7357 = vmatprep.subr.mxu0 0.0
    %7358 = vmatpush2.msra.mxu0 %v6485
    %7359 = vmatprep.subr.mxu0 0.0
    %7360 = vmatpush2.msra.mxu0 %v6484
    %7361 = vmatprep.subr.mxu0 0.0
    %7362 = vmatpush2.msra.mxu0 %v6483
    %7363 = vmatprep.subr.mxu0 0.0
    %7364 = vmatpush2.msra.mxu0 %v6482
    %7365 = vmatprep.subr.mxu0 0.0
    %7366 = vmatpush2.msra.mxu0 %v6481
    %7367 = vmatprep.subr.mxu0 0.0
    %7368 = vmatpush2.msra.mxu0 %v6480
    %7369 = vmatprep.subr.mxu0 0.0
    %7370 = vmatpush2.msra.mxu0 %v6479
    %7371 = vmatprep.subr.mxu0 0.0
    %7372 = vmatpush2.msra.mxu0 %v6478
    %7373 = vmatprep.subr.mxu0 0.0
    %7374 = vmatpush2.msra.mxu0 %v6477
    %7375 = vmatprep.mubr.f32.mxu0 %v5826
    %7376 = vmatmul.mubr.f32.gmra.mxu0 %v5825
    %v7377 = vpop.f32.mrf.mxu0
    %v7378 = vadd.f32 %v6993, %v7377
    %v7379 = vpop.f32.mrf.mxu0
    %7380 = vmatprep.mubr.f32.mxu0 %v5835
    %7381 = vmatmul.mubr.f32.gmra.mxu0 %v5834
    %v7382 = vpop.f32.mrf.mxu0
    %v7383 = vadd.f32 %v6998, %v7382
    %v7384 = vpop.f32.mrf.mxu0
    %7385 = vmatprep.mubr.f32.mxu0 %v5844
    %7386 = vmatmul.mubr.f32.gmra.mxu0 %v5843
    %v7387 = vpop.f32.mrf.mxu0
    %v7388 = vadd.f32 %v7003, %v7387
    %v7389 = vpop.f32.mrf.mxu0
    %7390 = vmatprep.mubr.f32.mxu0 %v5853
    %7391 = vmatmul.mubr.f32.gmra.mxu0 %v5852
    %v7392 = vpop.f32.mrf.mxu0
    %v7393 = vadd.f32 %v7008, %v7392
    %v7394 = vpop.f32.mrf.mxu0
    %7395 = vmatprep.mubr.f32.mxu0 %v5862
    %7396 = vmatmul.mubr.f32.gmra.mxu0 %v5861
    %v7397 = vpop.f32.mrf.mxu0
    %v7398 = vadd.f32 %v7013, %v7397
    %v7399 = vpop.f32.mrf.mxu0
    %7400 = vmatprep.mubr.f32.mxu0 %v5871
    %7401 = vmatmul.mubr.f32.gmra.mxu0 %v5870
    %v7402 = vpop.f32.mrf.mxu0
    %v7403 = vadd.f32 %v7018, %v7402
    %v7404 = vpop.f32.mrf.mxu0
    %7405 = vmatprep.mubr.f32.mxu0 %v5880
    %7406 = vmatmul.mubr.f32.gmra.mxu0 %v5879
    %v7407 = vpop.f32.mrf.mxu0
    %v7408 = vadd.f32 %v7023, %v7407
    %v7409 = vpop.f32.mrf.mxu0
    %7410 = vmatprep.mubr.f32.mxu0 %v5889
    %7411 = vmatmul.mubr.f32.gmra.mxu0 %v5888
    %v7412 = vpop.f32.mrf.mxu0
    %v7413 = vadd.f32 %v7028, %v7412
    %v7414 = vpop.f32.mrf.mxu0
    %7415 = vmatprep.mubr.f32.mxu0 %v5898
    %7416 = vmatmul.mubr.f32.gmra.mxu0 %v5897
    %v7417 = vpop.f32.mrf.mxu0
    %v7418 = vadd.f32 %v7033, %v7417
    %v7419 = vpop.f32.mrf.mxu0
    %7420 = vmatprep.mubr.f32.mxu0 %v5907
    %7421 = vmatmul.mubr.f32.gmra.mxu0 %v5906
    %v7422 = vpop.f32.mrf.mxu0
    %v7423 = vadd.f32 %v7038, %v7422
    %v7424 = vpop.f32.mrf.mxu0
    %7425 = vmatprep.mubr.f32.mxu0 %v5916
    %7426 = vmatmul.mubr.f32.gmra.mxu0 %v5915
    %v7427 = vpop.f32.mrf.mxu0
    %v7428 = vadd.f32 %v7043, %v7427
    %v7429 = vpop.f32.mrf.mxu0
    %7430 = vmatprep.mubr.f32.mxu0 %v5925
    %7431 = vmatmul.mubr.f32.gmra.mxu0 %v5924
    %v7432 = vpop.f32.mrf.mxu0
    %v7433 = vadd.f32 %v7048, %v7432
    %v7434 = vpop.f32.mrf.mxu0
    %7435 = vmatprep.mubr.f32.mxu0 %v5934
    %7436 = vmatmul.mubr.f32.gmra.mxu0 %v5933
    %v7437 = vpop.f32.mrf.mxu0
    %v7438 = vadd.f32 %v7053, %v7437
    %v7439 = vpop.f32.mrf.mxu0
    %7440 = vmatprep.mubr.f32.mxu0 %v5943
    %7441 = vmatmul.mubr.f32.gmra.mxu0 %v5942
    %v7442 = vpop.f32.mrf.mxu0
    %v7443 = vadd.f32 %v7058, %v7442
    %v7444 = vpop.f32.mrf.mxu0
    %7445 = vmatprep.mubr.f32.mxu0 %v5952
    %7446 = vmatmul.mubr.f32.gmra.mxu0 %v5951
    %v7447 = vpop.f32.mrf.mxu0
    %v7448 = vadd.f32 %v7063, %v7447
    %v7449 = vpop.f32.mrf.mxu0
    %7450 = vmatprep.mubr.f32.mxu0 %v5961
    %7451 = vmatmul.mubr.f32.gmra.mxu0 %v5960
    %v7452 = vpop.f32.mrf.mxu0
    %v7453 = vadd.f32 %v7068, %v7452
    %v7454 = vpop.f32.mrf.mxu0
    %7455 = vmatprep.mubr.f32.mxu0 %v5970
    %7456 = vmatmul.mubr.f32.gmra.mxu0 %v5969
    %v7457 = vpop.f32.mrf.mxu0
    %v7458 = vadd.f32 %v7073, %v7457
    %v7459 = vpop.f32.mrf.mxu0
    %7460 = vmatprep.mubr.f32.mxu0 %v5979
    %7461 = vmatmul.mubr.f32.gmra.mxu0 %v5978
    %v7462 = vpop.f32.mrf.mxu0
    %v7463 = vadd.f32 %v7078, %v7462
    %v7464 = vpop.f32.mrf.mxu0
    %7465 = vmatprep.mubr.f32.mxu0 %v5988
    %7466 = vmatmul.mubr.f32.gmra.mxu0 %v5987
    %v7467 = vpop.f32.mrf.mxu0
    %v7468 = vadd.f32 %v7083, %v7467
    %v7469 = vpop.f32.mrf.mxu0
    %7470 = vmatprep.mubr.f32.mxu0 %v5997
    %7471 = vmatmul.mubr.f32.gmra.mxu0 %v5996
    %v7472 = vpop.f32.mrf.mxu0
    %v7473 = vadd.f32 %v7088, %v7472
    %v7474 = vpop.f32.mrf.mxu0
    %7475 = vmatprep.mubr.f32.mxu0 %v6006
    %7476 = vmatmul.mubr.f32.gmra.mxu0 %v6005
    %v7477 = vpop.f32.mrf.mxu0
    %v7478 = vadd.f32 %v7093, %v7477
    %v7479 = vpop.f32.mrf.mxu0
    %7480 = vmatprep.mubr.f32.mxu0 %v6015
    %7481 = vmatmul.mubr.f32.gmra.mxu0 %v6014
    %v7482 = vpop.f32.mrf.mxu0
    %v7483 = vadd.f32 %v7098, %v7482
    %v7484 = vpop.f32.mrf.mxu0
    %7485 = vmatprep.mubr.f32.mxu0 %v6024
    %7486 = vmatmul.mubr.f32.gmra.mxu0 %v6023
    %v7487 = vpop.f32.mrf.mxu0
    %v7488 = vadd.f32 %v7103, %v7487
    %v7489 = vpop.f32.mrf.mxu0
    %7490 = vmatprep.mubr.f32.mxu0 %v6033
    %7491 = vmatmul.mubr.f32.gmra.mxu0 %v6032
    %v7492 = vpop.f32.mrf.mxu0
    %v7493 = vadd.f32 %v7108, %v7492
    %v7494 = vpop.f32.mrf.mxu0
    %7495 = vmatprep.mubr.f32.mxu0 %v6042
    %7496 = vmatmul.mubr.f32.gmra.mxu0 %v6041
    %v7497 = vpop.f32.mrf.mxu0
    %v7498 = vadd.f32 %v7113, %v7497
    %v7499 = vpop.f32.mrf.mxu0
    %7500 = vmatprep.mubr.f32.mxu0 %v6051
    %7501 = vmatmul.mubr.f32.gmra.mxu0 %v6050
    %v7502 = vpop.f32.mrf.mxu0
    %v7503 = vadd.f32 %v7118, %v7502
    %v7504 = vpop.f32.mrf.mxu0
    %7505 = vmatprep.mubr.f32.mxu0 %v6060
    %7506 = vmatmul.mubr.f32.gmra.mxu0 %v6059
    %v7507 = vpop.f32.mrf.mxu0
    %v7508 = vadd.f32 %v7123, %v7507
    %v7509 = vpop.f32.mrf.mxu0
    %7510 = vmatprep.mubr.f32.mxu0 %v6069
    %7511 = vmatmul.mubr.f32.gmra.mxu0 %v6068
    %v7512 = vpop.f32.mrf.mxu0
    %v7513 = vadd.f32 %v7128, %v7512
    %v7514 = vpop.f32.mrf.mxu0
    %7515 = vmatprep.mubr.f32.mxu0 %v6078
    %7516 = vmatmul.mubr.f32.gmra.mxu0 %v6077
    %v7517 = vpop.f32.mrf.mxu0
    %v7518 = vadd.f32 %v7133, %v7517
    %v7519 = vpop.f32.mrf.mxu0
    %7520 = vmatprep.mubr.f32.mxu0 %v6087
    %7521 = vmatmul.mubr.f32.gmra.mxu0 %v6086
    %v7522 = vpop.f32.mrf.mxu0
    %v7523 = vadd.f32 %v7138, %v7522
    %v7524 = vpop.f32.mrf.mxu0
    %7525 = vmatprep.mubr.f32.mxu0 %v6096
    %7526 = vmatmul.mubr.f32.gmra.mxu0 %v6095
    %v7527 = vpop.f32.mrf.mxu0
    %v7528 = vadd.f32 %v7143, %v7527
    %v7529 = vpop.f32.mrf.mxu0
    %7530 = vmatprep.mubr.f32.mxu0 %v6105
    %7531 = vmatmul.mubr.f32.gmra.mxu0 %v6104
    %v7532 = vpop.f32.mrf.mxu0
    %v7533 = vadd.f32 %v7148, %v7532
    %v7534 = vpop.f32.mrf.mxu0
    %7535 = vmatprep.mubr.f32.mxu0 %v6114
    %7536 = vmatmul.mubr.f32.gmra.mxu0 %v6113
    %v7537 = vpop.f32.mrf.mxu0
    %v7538 = vadd.f32 %v7153, %v7537
    %v7539 = vpop.f32.mrf.mxu0
    %7540 = vmatprep.mubr.f32.mxu0 %v6123
    %7541 = vmatmul.mubr.f32.gmra.mxu0 %v6122
    %v7542 = vpop.f32.mrf.mxu0
    %v7543 = vadd.f32 %v7158, %v7542
    %v7544 = vpop.f32.mrf.mxu0
    %7545 = vmatprep.mubr.f32.mxu0 %v6132
    %7546 = vmatmul.mubr.f32.gmra.mxu0 %v6131
    %v7547 = vpop.f32.mrf.mxu0
    %v7548 = vadd.f32 %v7163, %v7547
    %v7549 = vpop.f32.mrf.mxu0
    %7550 = vmatprep.mubr.f32.mxu0 %v6141
    %7551 = vmatmul.mubr.f32.gmra.mxu0 %v6140
    %v7552 = vpop.f32.mrf.mxu0
    %v7553 = vadd.f32 %v7168, %v7552
    %v7554 = vpop.f32.mrf.mxu0
    %7555 = vmatprep.mubr.f32.mxu0 %v6150
    %7556 = vmatmul.mubr.f32.gmra.mxu0 %v6149
    %v7557 = vpop.f32.mrf.mxu0
    %v7558 = vadd.f32 %v7173, %v7557
    %v7559 = vpop.f32.mrf.mxu0
    %7560 = vmatprep.mubr.f32.mxu0 %v6159
    %7561 = vmatmul.mubr.f32.gmra.mxu0 %v6158
    %v7562 = vpop.f32.mrf.mxu0
    %v7563 = vadd.f32 %v7178, %v7562
    %v7564 = vpop.f32.mrf.mxu0
    %7565 = vmatprep.mubr.f32.mxu0 %v6168
    %7566 = vmatmul.mubr.f32.gmra.mxu0 %v6167
    %v7567 = vpop.f32.mrf.mxu0
    %v7568 = vadd.f32 %v7183, %v7567
    %v7569 = vpop.f32.mrf.mxu0
    %7570 = vmatprep.mubr.f32.mxu0 %v6177
    %7571 = vmatmul.mubr.f32.gmra.mxu0 %v6176
    %v7572 = vpop.f32.mrf.mxu0
    %v7573 = vadd.f32 %v7188, %v7572
    %v7574 = vpop.f32.mrf.mxu0
    %7575 = vmatprep.mubr.f32.mxu0 %v6186
    %7576 = vmatmul.mubr.f32.gmra.mxu0 %v6185
    %v7577 = vpop.f32.mrf.mxu0
    %v7578 = vadd.f32 %v7193, %v7577
    %v7579 = vpop.f32.mrf.mxu0
    %7580 = vmatprep.mubr.f32.mxu0 %v6195
    %7581 = vmatmul.mubr.f32.gmra.mxu0 %v6194
    %v7582 = vpop.f32.mrf.mxu0
    %v7583 = vadd.f32 %v7198, %v7582
    %v7584 = vpop.f32.mrf.mxu0
    %7585 = vmatprep.mubr.f32.mxu0 %v6204
    %7586 = vmatmul.mubr.f32.gmra.mxu0 %v6203
    %v7587 = vpop.f32.mrf.mxu0
    %v7588 = vadd.f32 %v7203, %v7587
    %v7589 = vpop.f32.mrf.mxu0
    %7590 = vmatprep.mubr.f32.mxu0 %v6213
    %7591 = vmatmul.mubr.f32.gmra.mxu0 %v6212
    %v7592 = vpop.f32.mrf.mxu0
    %v7593 = vadd.f32 %v7208, %v7592
    %v7594 = vpop.f32.mrf.mxu0
    %7595 = vmatprep.mubr.f32.mxu0 %v6222
    %7596 = vmatmul.mubr.f32.gmra.mxu0 %v6221
    %v7597 = vpop.f32.mrf.mxu0
    %v7598 = vadd.f32 %v7213, %v7597
    %v7599 = vpop.f32.mrf.mxu0
    %7600 = vmatprep.mubr.f32.mxu0 %v6231
    %7601 = vmatmul.mubr.f32.gmra.mxu0 %v6230
    %v7602 = vpop.f32.mrf.mxu0
    %v7603 = vadd.f32 %v7218, %v7602
    %v7604 = vpop.f32.mrf.mxu0
    %7605 = vmatprep.mubr.f32.mxu0 %v6240
    %7606 = vmatmul.mubr.f32.gmra.mxu0 %v6239
    %v7607 = vpop.f32.mrf.mxu0
    %v7608 = vadd.f32 %v7223, %v7607
    %v7609 = vpop.f32.mrf.mxu0
    %7610 = vmatprep.mubr.f32.mxu0 %v6249
    %7611 = vmatmul.mubr.f32.gmra.mxu0 %v6248
    %v7612 = vpop.f32.mrf.mxu0
    %v7613 = vadd.f32 %v7228, %v7612
    %v7614 = vpop.f32.mrf.mxu0
    %7615 = vmatprep.mubr.f32.mxu0 %v6258
    %7616 = vmatmul.mubr.f32.gmra.mxu0 %v6257
    %v7617 = vpop.f32.mrf.mxu0
    %v7618 = vadd.f32 %v7233, %v7617
    %v7619 = vpop.f32.mrf.mxu0
    %7620 = vmatprep.mubr.f32.mxu0 %v6267
    %7621 = vmatmul.mubr.f32.gmra.mxu0 %v6266
    %v7622 = vpop.f32.mrf.mxu0
    %v7623 = vadd.f32 %v7238, %v7622
    %v7624 = vpop.f32.mrf.mxu0
    %7625 = vmatprep.mubr.f32.mxu0 %v6276
    %7626 = vmatmul.mubr.f32.gmra.mxu0 %v6275
    %v7627 = vpop.f32.mrf.mxu0
    %v7628 = vadd.f32 %v7243, %v7627
    %v7629 = vpop.f32.mrf.mxu0
    %7630 = vmatprep.mubr.f32.mxu0 %v6285
    %7631 = vmatmul.mubr.f32.gmra.mxu0 %v6284
    %v7632 = vpop.f32.mrf.mxu0
    %v7633 = vadd.f32 %v7248, %v7632
    %v7634 = vpop.f32.mrf.mxu0
    %7635 = vmatprep.mubr.f32.mxu0 %v6294
    %7636 = vmatmul.mubr.f32.gmra.mxu0 %v6293
    %v7637 = vpop.f32.mrf.mxu0
    %v7638 = vadd.f32 %v7253, %v7637
    %v7639 = vpop.f32.mrf.mxu0
    %7640 = vmatprep.mubr.f32.mxu0 %v6303
    %7641 = vmatmul.mubr.f32.gmra.mxu0 %v6302
    %v7642 = vpop.f32.mrf.mxu0
    %v7643 = vadd.f32 %v7258, %v7642
    %v7644 = vpop.f32.mrf.mxu0
    %7645 = vmatprep.mubr.f32.mxu0 %v6312
    %7646 = vmatmul.mubr.f32.gmra.mxu0 %v6311
    %v7647 = vpop.f32.mrf.mxu0
    %v7648 = vadd.f32 %v7263, %v7647
    %v7649 = vpop.f32.mrf.mxu0
    %7650 = vmatprep.mubr.f32.mxu0 %v6321
    %7651 = vmatmul.mubr.f32.gmra.mxu0 %v6320
    %v7652 = vpop.f32.mrf.mxu0
    %v7653 = vadd.f32 %v7268, %v7652
    %v7654 = vpop.f32.mrf.mxu0
    %7655 = vmatprep.mubr.f32.mxu0 %v6330
    %7656 = vmatmul.mubr.f32.gmra.mxu0 %v6329
    %v7657 = vpop.f32.mrf.mxu0
    %v7658 = vadd.f32 %v7273, %v7657
    %v7659 = vpop.f32.mrf.mxu0
    %7660 = vmatprep.mubr.f32.mxu0 %v6339
    %7661 = vmatmul.mubr.f32.gmra.mxu0 %v6338
    %v7662 = vpop.f32.mrf.mxu0
    %v7663 = vadd.f32 %v7278, %v7662
    %v7664 = vpop.f32.mrf.mxu0
    %7665 = vmatprep.mubr.f32.mxu0 %v6348
    %7666 = vmatmul.mubr.f32.gmra.mxu0 %v6347
    %v7667 = vpop.f32.mrf.mxu0
    %v7668 = vadd.f32 %v7283, %v7667
    %v7669 = vpop.f32.mrf.mxu0
    %7670 = vmatprep.mubr.f32.mxu0 %v6357
    %7671 = vmatmul.mubr.f32.gmra.mxu0 %v6356
    %v7672 = vpop.f32.mrf.mxu0
    %v7673 = vadd.f32 %v7288, %v7672
    %v7674 = vpop.f32.mrf.mxu0
    %7675 = vmatprep.mubr.f32.mxu0 %v6366
    %7676 = vmatmul.mubr.f32.gmra.mxu0 %v6365
    %v7677 = vpop.f32.mrf.mxu0
    %v7678 = vadd.f32 %v7293, %v7677
    %v7679 = vpop.f32.mrf.mxu0
    %7680 = vmatprep.mubr.f32.mxu0 %v6375
    %7681 = vmatmul.mubr.f32.gmra.mxu0 %v6374
    %v7682 = vpop.f32.mrf.mxu0
    %v7683 = vadd.f32 %v7298, %v7682
    %v7684 = vpop.f32.mrf.mxu0
    %7685 = vmatprep.mubr.f32.mxu0 %v6384
    %7686 = vmatmul.mubr.f32.gmra.mxu0 %v6383
    %v7687 = vpop.f32.mrf.mxu0
    %v7688 = vadd.f32 %v7303, %v7687
    %v7689 = vpop.f32.mrf.mxu0
    %7690 = vmatprep.mubr.f32.mxu0 %v6393
    %7691 = vmatmul.mubr.f32.gmra.mxu0 %v6392
    %v7692 = vpop.f32.mrf.mxu0
    %v7693 = vadd.f32 %v7308, %v7692
    %v7694 = vpop.f32.mrf.mxu0
    %7695 = vdwg.mxu0
    %7696 = vmatprep.subr.mxu0 0.0
    %7697 = vmatpush1.msra.mxu0 %v6508
    %7698 = vmatprep.subr.mxu0 0.0
    %7699 = vmatpush1.msra.mxu0 %v6507
    %7700 = vmatprep.subr.mxu0 0.0
    %7701 = vmatpush1.msra.mxu0 %v6506
    %7702 = vmatprep.subr.mxu0 0.0
    %7703 = vmatpush1.msra.mxu0 %v6505
    %7704 = vmatprep.subr.mxu0 0.0
    %7705 = vmatpush1.msra.mxu0 %v6504
    %7706 = vmatprep.subr.mxu0 0.0
    %7707 = vmatpush1.msra.mxu0 %v6503
    %7708 = vmatprep.subr.mxu0 0.0
    %7709 = vmatpush1.msra.mxu0 %v6502
    %7710 = vmatprep.subr.mxu0 0.0
    %7711 = vmatpush1.msra.mxu0 %v6501
    %7712 = vmatprep.subr.mxu0 0.0
    %7713 = vmatpush1.msra.mxu0 %v6500
    %7714 = vmatprep.subr.mxu0 0.0
    %7715 = vmatpush1.msra.mxu0 %v6499
    %7716 = vmatprep.subr.mxu0 0.0
    %7717 = vmatpush1.msra.mxu0 %v6498
    %7718 = vmatprep.subr.mxu0 0.0
    %7719 = vmatpush1.msra.mxu0 %v6497
    %7720 = vmatprep.subr.mxu0 0.0
    %7721 = vmatpush1.msra.mxu0 %v6496
    %7722 = vmatprep.subr.mxu0 0.0
    %7723 = vmatpush1.msra.mxu0 %v6495
    %7724 = vmatprep.subr.mxu0 0.0
    %7725 = vmatpush1.msra.mxu0 %v6494
    %7726 = vmatprep.subr.mxu0 0.0
    %7727 = vmatpush1.msra.mxu0 %v6493
    %7728 = vmatprep.subr.mxu0 0.0
    %7729 = vmatpush2.msra.mxu0 %v6524
    %7730 = vmatprep.subr.mxu0 0.0
    %7731 = vmatpush2.msra.mxu0 %v6523
    %7732 = vmatprep.subr.mxu0 0.0
    %7733 = vmatpush2.msra.mxu0 %v6522
    %7734 = vmatprep.subr.mxu0 0.0
    %7735 = vmatpush2.msra.mxu0 %v6521
    %7736 = vmatprep.subr.mxu0 0.0
    %7737 = vmatpush2.msra.mxu0 %v6520
    %7738 = vmatprep.subr.mxu0 0.0
    %7739 = vmatpush2.msra.mxu0 %v6519
    %7740 = vmatprep.subr.mxu0 0.0
    %7741 = vmatpush2.msra.mxu0 %v6518
    %7742 = vmatprep.subr.mxu0 0.0
    %7743 = vmatpush2.msra.mxu0 %v6517
    %7744 = vmatprep.subr.mxu0 0.0
    %7745 = vmatpush2.msra.mxu0 %v6516
    %7746 = vmatprep.subr.mxu0 0.0
    %7747 = vmatpush2.msra.mxu0 %v6515
    %7748 = vmatprep.subr.mxu0 0.0
    %7749 = vmatpush2.msra.mxu0 %v6514
    %7750 = vmatprep.subr.mxu0 0.0
    %7751 = vmatpush2.msra.mxu0 %v6513
    %7752 = vmatprep.subr.mxu0 0.0
    %7753 = vmatpush2.msra.mxu0 %v6512
    %7754 = vmatprep.subr.mxu0 0.0
    %7755 = vmatpush2.msra.mxu0 %v6511
    %7756 = vmatprep.subr.mxu0 0.0
    %7757 = vmatpush2.msra.mxu0 %v6510
    %7758 = vmatprep.subr.mxu0 0.0
    %7759 = vmatpush2.msra.mxu0 %v6509
    %7760 = vmatprep.mubr.f32.mxu0 %v5828
    %7761 = vmatmul.mubr.f32.gmra.mxu0 %v5827
    %v7762 = vpop.f32.mrf.mxu0
    %v7763 = vadd.f32 %v7378, %v7762
    %v7764 = vpop.f32.mrf.mxu0
    %7765 = vmatprep.mubr.f32.mxu0 %v5837
    %7766 = vmatmul.mubr.f32.gmra.mxu0 %v5836
    %v7767 = vpop.f32.mrf.mxu0
    %v7768 = vadd.f32 %v7383, %v7767
    %v7769 = vpop.f32.mrf.mxu0
    %7770 = vmatprep.mubr.f32.mxu0 %v5846
    %7771 = vmatmul.mubr.f32.gmra.mxu0 %v5845
    %v7772 = vpop.f32.mrf.mxu0
    %v7773 = vadd.f32 %v7388, %v7772
    %v7774 = vpop.f32.mrf.mxu0
    %7775 = vmatprep.mubr.f32.mxu0 %v5855
    %7776 = vmatmul.mubr.f32.gmra.mxu0 %v5854
    %v7777 = vpop.f32.mrf.mxu0
    %v7778 = vadd.f32 %v7393, %v7777
    %v7779 = vpop.f32.mrf.mxu0
    %7780 = vmatprep.mubr.f32.mxu0 %v5864
    %7781 = vmatmul.mubr.f32.gmra.mxu0 %v5863
    %v7782 = vpop.f32.mrf.mxu0
    %v7783 = vadd.f32 %v7398, %v7782
    %v7784 = vpop.f32.mrf.mxu0
    %7785 = vmatprep.mubr.f32.mxu0 %v5873
    %7786 = vmatmul.mubr.f32.gmra.mxu0 %v5872
    %v7787 = vpop.f32.mrf.mxu0
    %v7788 = vadd.f32 %v7403, %v7787
    %v7789 = vpop.f32.mrf.mxu0
    %7790 = vmatprep.mubr.f32.mxu0 %v5882
    %7791 = vmatmul.mubr.f32.gmra.mxu0 %v5881
    %v7792 = vpop.f32.mrf.mxu0
    %v7793 = vadd.f32 %v7408, %v7792
    %v7794 = vpop.f32.mrf.mxu0
    %7795 = vmatprep.mubr.f32.mxu0 %v5891
    %7796 = vmatmul.mubr.f32.gmra.mxu0 %v5890
    %v7797 = vpop.f32.mrf.mxu0
    %v7798 = vadd.f32 %v7413, %v7797
    %v7799 = vpop.f32.mrf.mxu0
    %7800 = vmatprep.mubr.f32.mxu0 %v5900
    %7801 = vmatmul.mubr.f32.gmra.mxu0 %v5899
    %v7802 = vpop.f32.mrf.mxu0
    %v7803 = vadd.f32 %v7418, %v7802
    %v7804 = vpop.f32.mrf.mxu0
    %7805 = vmatprep.mubr.f32.mxu0 %v5909
    %7806 = vmatmul.mubr.f32.gmra.mxu0 %v5908
    %v7807 = vpop.f32.mrf.mxu0
    %v7808 = vadd.f32 %v7423, %v7807
    %v7809 = vpop.f32.mrf.mxu0
    %7810 = vmatprep.mubr.f32.mxu0 %v5918
    %7811 = vmatmul.mubr.f32.gmra.mxu0 %v5917
    %v7812 = vpop.f32.mrf.mxu0
    %v7813 = vadd.f32 %v7428, %v7812
    %v7814 = vpop.f32.mrf.mxu0
    %7815 = vmatprep.mubr.f32.mxu0 %v5927
    %7816 = vmatmul.mubr.f32.gmra.mxu0 %v5926
    %v7817 = vpop.f32.mrf.mxu0
    %v7818 = vadd.f32 %v7433, %v7817
    %v7819 = vpop.f32.mrf.mxu0
    %7820 = vmatprep.mubr.f32.mxu0 %v5936
    %7821 = vmatmul.mubr.f32.gmra.mxu0 %v5935
    %v7822 = vpop.f32.mrf.mxu0
    %v7823 = vadd.f32 %v7438, %v7822
    %v7824 = vpop.f32.mrf.mxu0
    %7825 = vmatprep.mubr.f32.mxu0 %v5945
    %7826 = vmatmul.mubr.f32.gmra.mxu0 %v5944
    %v7827 = vpop.f32.mrf.mxu0
    %v7828 = vadd.f32 %v7443, %v7827
    %v7829 = vpop.f32.mrf.mxu0
    %7830 = vmatprep.mubr.f32.mxu0 %v5954
    %7831 = vmatmul.mubr.f32.gmra.mxu0 %v5953
    %v7832 = vpop.f32.mrf.mxu0
    %v7833 = vadd.f32 %v7448, %v7832
    %v7834 = vpop.f32.mrf.mxu0
    %7835 = vmatprep.mubr.f32.mxu0 %v5963
    %7836 = vmatmul.mubr.f32.gmra.mxu0 %v5962
    %v7837 = vpop.f32.mrf.mxu0
    %v7838 = vadd.f32 %v7453, %v7837
    %v7839 = vpop.f32.mrf.mxu0
    %7840 = vmatprep.mubr.f32.mxu0 %v5972
    %7841 = vmatmul.mubr.f32.gmra.mxu0 %v5971
    %v7842 = vpop.f32.mrf.mxu0
    %v7843 = vadd.f32 %v7458, %v7842
    %v7844 = vpop.f32.mrf.mxu0
    %7845 = vmatprep.mubr.f32.mxu0 %v5981
    %7846 = vmatmul.mubr.f32.gmra.mxu0 %v5980
    %v7847 = vpop.f32.mrf.mxu0
    %v7848 = vadd.f32 %v7463, %v7847
    %v7849 = vpop.f32.mrf.mxu0
    %7850 = vmatprep.mubr.f32.mxu0 %v5990
    %7851 = vmatmul.mubr.f32.gmra.mxu0 %v5989
    %v7852 = vpop.f32.mrf.mxu0
    %v7853 = vadd.f32 %v7468, %v7852
    %v7854 = vpop.f32.mrf.mxu0
    %7855 = vmatprep.mubr.f32.mxu0 %v5999
    %7856 = vmatmul.mubr.f32.gmra.mxu0 %v5998
    %v7857 = vpop.f32.mrf.mxu0
    %v7858 = vadd.f32 %v7473, %v7857
    %v7859 = vpop.f32.mrf.mxu0
    %7860 = vmatprep.mubr.f32.mxu0 %v6008
    %7861 = vmatmul.mubr.f32.gmra.mxu0 %v6007
    %v7862 = vpop.f32.mrf.mxu0
    %v7863 = vadd.f32 %v7478, %v7862
    %v7864 = vpop.f32.mrf.mxu0
    %7865 = vmatprep.mubr.f32.mxu0 %v6017
    %7866 = vmatmul.mubr.f32.gmra.mxu0 %v6016
    %v7867 = vpop.f32.mrf.mxu0
    %v7868 = vadd.f32 %v7483, %v7867
    %v7869 = vpop.f32.mrf.mxu0
    %7870 = vmatprep.mubr.f32.mxu0 %v6026
    %7871 = vmatmul.mubr.f32.gmra.mxu0 %v6025
    %v7872 = vpop.f32.mrf.mxu0
    %v7873 = vadd.f32 %v7488, %v7872
    %v7874 = vpop.f32.mrf.mxu0
    %7875 = vmatprep.mubr.f32.mxu0 %v6035
    %7876 = vmatmul.mubr.f32.gmra.mxu0 %v6034
    %v7877 = vpop.f32.mrf.mxu0
    %v7878 = vadd.f32 %v7493, %v7877
    %v7879 = vpop.f32.mrf.mxu0
    %7880 = vmatprep.mubr.f32.mxu0 %v6044
    %7881 = vmatmul.mubr.f32.gmra.mxu0 %v6043
    %v7882 = vpop.f32.mrf.mxu0
    %v7883 = vadd.f32 %v7498, %v7882
    %v7884 = vpop.f32.mrf.mxu0
    %7885 = vmatprep.mubr.f32.mxu0 %v6053
    %7886 = vmatmul.mubr.f32.gmra.mxu0 %v6052
    %v7887 = vpop.f32.mrf.mxu0
    %v7888 = vadd.f32 %v7503, %v7887
    %v7889 = vpop.f32.mrf.mxu0
    %7890 = vmatprep.mubr.f32.mxu0 %v6062
    %7891 = vmatmul.mubr.f32.gmra.mxu0 %v6061
    %v7892 = vpop.f32.mrf.mxu0
    %v7893 = vadd.f32 %v7508, %v7892
    %v7894 = vpop.f32.mrf.mxu0
    %7895 = vmatprep.mubr.f32.mxu0 %v6071
    %7896 = vmatmul.mubr.f32.gmra.mxu0 %v6070
    %v7897 = vpop.f32.mrf.mxu0
    %v7898 = vadd.f32 %v7513, %v7897
    %v7899 = vpop.f32.mrf.mxu0
    %7900 = vmatprep.mubr.f32.mxu0 %v6080
    %7901 = vmatmul.mubr.f32.gmra.mxu0 %v6079
    %v7902 = vpop.f32.mrf.mxu0
    %v7903 = vadd.f32 %v7518, %v7902
    %v7904 = vpop.f32.mrf.mxu0
    %7905 = vmatprep.mubr.f32.mxu0 %v6089
    %7906 = vmatmul.mubr.f32.gmra.mxu0 %v6088
    %v7907 = vpop.f32.mrf.mxu0
    %v7908 = vadd.f32 %v7523, %v7907
    %v7909 = vpop.f32.mrf.mxu0
    %7910 = vmatprep.mubr.f32.mxu0 %v6098
    %7911 = vmatmul.mubr.f32.gmra.mxu0 %v6097
    %v7912 = vpop.f32.mrf.mxu0
    %v7913 = vadd.f32 %v7528, %v7912
    %v7914 = vpop.f32.mrf.mxu0
    %7915 = vmatprep.mubr.f32.mxu0 %v6107
    %7916 = vmatmul.mubr.f32.gmra.mxu0 %v6106
    %v7917 = vpop.f32.mrf.mxu0
    %v7918 = vadd.f32 %v7533, %v7917
    %v7919 = vpop.f32.mrf.mxu0
    %7920 = vmatprep.mubr.f32.mxu0 %v6116
    %7921 = vmatmul.mubr.f32.gmra.mxu0 %v6115
    %v7922 = vpop.f32.mrf.mxu0
    %v7923 = vadd.f32 %v7538, %v7922
    %v7924 = vpop.f32.mrf.mxu0
    %7925 = vmatprep.mubr.f32.mxu0 %v6125
    %7926 = vmatmul.mubr.f32.gmra.mxu0 %v6124
    %v7927 = vpop.f32.mrf.mxu0
    %v7928 = vadd.f32 %v7543, %v7927
    %v7929 = vpop.f32.mrf.mxu0
    %7930 = vmatprep.mubr.f32.mxu0 %v6134
    %7931 = vmatmul.mubr.f32.gmra.mxu0 %v6133
    %v7932 = vpop.f32.mrf.mxu0
    %v7933 = vadd.f32 %v7548, %v7932
    %v7934 = vpop.f32.mrf.mxu0
    %7935 = vmatprep.mubr.f32.mxu0 %v6143
    %7936 = vmatmul.mubr.f32.gmra.mxu0 %v6142
    %v7937 = vpop.f32.mrf.mxu0
    %v7938 = vadd.f32 %v7553, %v7937
    %v7939 = vpop.f32.mrf.mxu0
    %7940 = vmatprep.mubr.f32.mxu0 %v6152
    %7941 = vmatmul.mubr.f32.gmra.mxu0 %v6151
    %v7942 = vpop.f32.mrf.mxu0
    %v7943 = vadd.f32 %v7558, %v7942
    %v7944 = vpop.f32.mrf.mxu0
    %7945 = vmatprep.mubr.f32.mxu0 %v6161
    %7946 = vmatmul.mubr.f32.gmra.mxu0 %v6160
    %v7947 = vpop.f32.mrf.mxu0
    %v7948 = vadd.f32 %v7563, %v7947
    %v7949 = vpop.f32.mrf.mxu0
    %7950 = vmatprep.mubr.f32.mxu0 %v6170
    %7951 = vmatmul.mubr.f32.gmra.mxu0 %v6169
    %v7952 = vpop.f32.mrf.mxu0
    %v7953 = vadd.f32 %v7568, %v7952
    %v7954 = vpop.f32.mrf.mxu0
    %7955 = vmatprep.mubr.f32.mxu0 %v6179
    %7956 = vmatmul.mubr.f32.gmra.mxu0 %v6178
    %v7957 = vpop.f32.mrf.mxu0
    %v7958 = vadd.f32 %v7573, %v7957
    %v7959 = vpop.f32.mrf.mxu0
    %7960 = vmatprep.mubr.f32.mxu0 %v6188
    %7961 = vmatmul.mubr.f32.gmra.mxu0 %v6187
    %v7962 = vpop.f32.mrf.mxu0
    %v7963 = vadd.f32 %v7578, %v7962
    %v7964 = vpop.f32.mrf.mxu0
    %7965 = vmatprep.mubr.f32.mxu0 %v6197
    %7966 = vmatmul.mubr.f32.gmra.mxu0 %v6196
    %v7967 = vpop.f32.mrf.mxu0
    %v7968 = vadd.f32 %v7583, %v7967
    %v7969 = vpop.f32.mrf.mxu0
    %7970 = vmatprep.mubr.f32.mxu0 %v6206
    %7971 = vmatmul.mubr.f32.gmra.mxu0 %v6205
    %v7972 = vpop.f32.mrf.mxu0
    %v7973 = vadd.f32 %v7588, %v7972
    %v7974 = vpop.f32.mrf.mxu0
    %7975 = vmatprep.mubr.f32.mxu0 %v6215
    %7976 = vmatmul.mubr.f32.gmra.mxu0 %v6214
    %v7977 = vpop.f32.mrf.mxu0
    %v7978 = vadd.f32 %v7593, %v7977
    %v7979 = vpop.f32.mrf.mxu0
    %7980 = vmatprep.mubr.f32.mxu0 %v6224
    %7981 = vmatmul.mubr.f32.gmra.mxu0 %v6223
    %v7982 = vpop.f32.mrf.mxu0
    %v7983 = vadd.f32 %v7598, %v7982
    %v7984 = vpop.f32.mrf.mxu0
    %7985 = vmatprep.mubr.f32.mxu0 %v6233
    %7986 = vmatmul.mubr.f32.gmra.mxu0 %v6232
    %v7987 = vpop.f32.mrf.mxu0
    %v7988 = vadd.f32 %v7603, %v7987
    %v7989 = vpop.f32.mrf.mxu0
    %7990 = vmatprep.mubr.f32.mxu0 %v6242
    %7991 = vmatmul.mubr.f32.gmra.mxu0 %v6241
    %v7992 = vpop.f32.mrf.mxu0
    %v7993 = vadd.f32 %v7608, %v7992
    %v7994 = vpop.f32.mrf.mxu0
    %7995 = vmatprep.mubr.f32.mxu0 %v6251
    %7996 = vmatmul.mubr.f32.gmra.mxu0 %v6250
    %v7997 = vpop.f32.mrf.mxu0
    %v7998 = vadd.f32 %v7613, %v7997
    %v7999 = vpop.f32.mrf.mxu0
    %8000 = vmatprep.mubr.f32.mxu0 %v6260
    %8001 = vmatmul.mubr.f32.gmra.mxu0 %v6259
    %v8002 = vpop.f32.mrf.mxu0
    %v8003 = vadd.f32 %v7618, %v8002
    %v8004 = vpop.f32.mrf.mxu0
    %8005 = vmatprep.mubr.f32.mxu0 %v6269
    %8006 = vmatmul.mubr.f32.gmra.mxu0 %v6268
    %v8007 = vpop.f32.mrf.mxu0
    %v8008 = vadd.f32 %v7623, %v8007
    %v8009 = vpop.f32.mrf.mxu0
    %8010 = vmatprep.mubr.f32.mxu0 %v6278
    %8011 = vmatmul.mubr.f32.gmra.mxu0 %v6277
    %v8012 = vpop.f32.mrf.mxu0
    %v8013 = vadd.f32 %v7628, %v8012
    %v8014 = vpop.f32.mrf.mxu0
    %8015 = vmatprep.mubr.f32.mxu0 %v6287
    %8016 = vmatmul.mubr.f32.gmra.mxu0 %v6286
    %v8017 = vpop.f32.mrf.mxu0
    %v8018 = vadd.f32 %v7633, %v8017
    %v8019 = vpop.f32.mrf.mxu0
    %8020 = vmatprep.mubr.f32.mxu0 %v6296
    %8021 = vmatmul.mubr.f32.gmra.mxu0 %v6295
    %v8022 = vpop.f32.mrf.mxu0
    %v8023 = vadd.f32 %v7638, %v8022
    %v8024 = vpop.f32.mrf.mxu0
    %8025 = vmatprep.mubr.f32.mxu0 %v6305
    %8026 = vmatmul.mubr.f32.gmra.mxu0 %v6304
    %v8027 = vpop.f32.mrf.mxu0
    %v8028 = vadd.f32 %v7643, %v8027
    %v8029 = vpop.f32.mrf.mxu0
    %8030 = vmatprep.mubr.f32.mxu0 %v6314
    %8031 = vmatmul.mubr.f32.gmra.mxu0 %v6313
    %v8032 = vpop.f32.mrf.mxu0
    %v8033 = vadd.f32 %v7648, %v8032
    %v8034 = vpop.f32.mrf.mxu0
    %8035 = vmatprep.mubr.f32.mxu0 %v6323
    %8036 = vmatmul.mubr.f32.gmra.mxu0 %v6322
    %v8037 = vpop.f32.mrf.mxu0
    %v8038 = vadd.f32 %v7653, %v8037
    %v8039 = vpop.f32.mrf.mxu0
    %8040 = vmatprep.mubr.f32.mxu0 %v6332
    %8041 = vmatmul.mubr.f32.gmra.mxu0 %v6331
    %v8042 = vpop.f32.mrf.mxu0
    %v8043 = vadd.f32 %v7658, %v8042
    %v8044 = vpop.f32.mrf.mxu0
    %8045 = vmatprep.mubr.f32.mxu0 %v6341
    %8046 = vmatmul.mubr.f32.gmra.mxu0 %v6340
    %v8047 = vpop.f32.mrf.mxu0
    %v8048 = vadd.f32 %v7663, %v8047
    %v8049 = vpop.f32.mrf.mxu0
    %8050 = vmatprep.mubr.f32.mxu0 %v6350
    %8051 = vmatmul.mubr.f32.gmra.mxu0 %v6349
    %v8052 = vpop.f32.mrf.mxu0
    %v8053 = vadd.f32 %v7668, %v8052
    %v8054 = vpop.f32.mrf.mxu0
    %8055 = vmatprep.mubr.f32.mxu0 %v6359
    %8056 = vmatmul.mubr.f32.gmra.mxu0 %v6358
    %v8057 = vpop.f32.mrf.mxu0
    %v8058 = vadd.f32 %v7673, %v8057
    %v8059 = vpop.f32.mrf.mxu0
    %8060 = vmatprep.mubr.f32.mxu0 %v6368
    %8061 = vmatmul.mubr.f32.gmra.mxu0 %v6367
    %v8062 = vpop.f32.mrf.mxu0
    %v8063 = vadd.f32 %v7678, %v8062
    %v8064 = vpop.f32.mrf.mxu0
    %8065 = vmatprep.mubr.f32.mxu0 %v6377
    %8066 = vmatmul.mubr.f32.gmra.mxu0 %v6376
    %v8067 = vpop.f32.mrf.mxu0
    %v8068 = vadd.f32 %v7683, %v8067
    %v8069 = vpop.f32.mrf.mxu0
    %8070 = vmatprep.mubr.f32.mxu0 %v6386
    %8071 = vmatmul.mubr.f32.gmra.mxu0 %v6385
    %v8072 = vpop.f32.mrf.mxu0
    %v8073 = vadd.f32 %v7688, %v8072
    %v8074 = vpop.f32.mrf.mxu0
    %8075 = vmatprep.mubr.f32.mxu0 %v6395
    %8076 = vmatmul.mubr.f32.gmra.mxu0 %v6394
    %v8077 = vpop.f32.mrf.mxu0
    %v8078 = vadd.f32 %v7693, %v8077
    %v8079 = vpop.f32.mrf.mxu0
    %8080 = vdwg.mxu0
    %8081 = vmatprep.subr.mxu0 0.0
    %8082 = vmatpush1.msra.mxu0 %v6540
    %8083 = vmatprep.subr.mxu0 0.0
    %8084 = vmatpush1.msra.mxu0 %v6539
    %8085 = vmatprep.subr.mxu0 0.0
    %8086 = vmatpush1.msra.mxu0 %v6538
    %8087 = vmatprep.subr.mxu0 0.0
    %8088 = vmatpush1.msra.mxu0 %v6537
    %8089 = vmatprep.subr.mxu0 0.0
    %8090 = vmatpush1.msra.mxu0 %v6536
    %8091 = vmatprep.subr.mxu0 0.0
    %8092 = vmatpush1.msra.mxu0 %v6535
    %8093 = vmatprep.subr.mxu0 0.0
    %8094 = vmatpush1.msra.mxu0 %v6534
    %8095 = vmatprep.subr.mxu0 0.0
    %8096 = vmatpush1.msra.mxu0 %v6533
    %8097 = vmatprep.subr.mxu0 0.0
    %8098 = vmatpush1.msra.mxu0 %v6532
    %8099 = vmatprep.subr.mxu0 0.0
    %8100 = vmatpush1.msra.mxu0 %v6531
    %8101 = vmatprep.subr.mxu0 0.0
    %8102 = vmatpush1.msra.mxu0 %v6530
    %8103 = vmatprep.subr.mxu0 0.0
    %8104 = vmatpush1.msra.mxu0 %v6529
    %8105 = vmatprep.subr.mxu0 0.0
    %8106 = vmatpush1.msra.mxu0 %v6528
    %8107 = vmatprep.subr.mxu0 0.0
    %8108 = vmatpush1.msra.mxu0 %v6527
    %8109 = vmatprep.subr.mxu0 0.0
    %8110 = vmatpush1.msra.mxu0 %v6526
    %8111 = vmatprep.subr.mxu0 0.0
    %8112 = vmatpush1.msra.mxu0 %v6525
    %8113 = vmatprep.subr.mxu0 0.0
    %8114 = vmatpush2.msra.mxu0 0.0
    %8115 = vmatprep.subr.mxu0 0.0
    %8116 = vmatpush2.msra.mxu0 0.0
    %8117 = vmatprep.subr.mxu0 0.0
    %8118 = vmatpush2.msra.mxu0 0.0
    %8119 = vmatprep.subr.mxu0 0.0
    %8120 = vmatpush2.msra.mxu0 0.0
    %8121 = vmatprep.subr.mxu0 0.0
    %8122 = vmatpush2.msra.mxu0 0.0
    %8123 = vmatprep.subr.mxu0 0.0
    %8124 = vmatpush2.msra.mxu0 0.0
    %8125 = vmatprep.subr.mxu0 0.0
    %8126 = vmatpush2.msra.mxu0 0.0
    %8127 = vmatprep.subr.mxu0 0.0
    %8128 = vmatpush2.msra.mxu0 0.0
    %8129 = vmatprep.subr.mxu0 0.0
    %8130 = vmatpush2.msra.mxu0 0.0
    %8131 = vmatprep.subr.mxu0 0.0
    %8132 = vmatpush2.msra.mxu0 0.0
    %8133 = vmatprep.subr.mxu0 0.0
    %8134 = vmatpush2.msra.mxu0 0.0
    %8135 = vmatprep.subr.mxu0 0.0
    %8136 = vmatpush2.msra.mxu0 0.0
    %8137 = vmatprep.subr.mxu0 0.0
    %8138 = vmatpush2.msra.mxu0 0.0
    %8139 = vmatprep.subr.mxu0 0.0
    %8140 = vmatpush2.msra.mxu0 0.0
    %8141 = vmatprep.subr.mxu0 0.0
    %8142 = vmatpush2.msra.mxu0 0.0
    %8143 = vmatprep.subr.mxu0 0.0
    %8144 = vmatpush2.msra.mxu0 0.0
    %8145 = vmatprep.mubr.f32.mxu0 0.0
    %8146 = vmatmul.mubr.f32.gmra.mxu0 %v5829
    %v8147 = vpop.f32.mrf.mxu0
    %v8148 = vadd.f32 %v7763, %v8147
    %v8149 = vpop.f32.mrf.mxu0
    %8150 = vmatprep.mubr.f32.mxu0 0.0
    %8151 = vmatmul.mubr.f32.gmra.mxu0 %v5838
    %v8152 = vpop.f32.mrf.mxu0
    %v8153 = vadd.f32 %v7768, %v8152
    %v8154 = vpop.f32.mrf.mxu0
    %8155 = vmatprep.mubr.f32.mxu0 0.0
    %8156 = vmatmul.mubr.f32.gmra.mxu0 %v5847
    %v8157 = vpop.f32.mrf.mxu0
    %v8158 = vadd.f32 %v7773, %v8157
    %v8159 = vpop.f32.mrf.mxu0
    %8160 = vmatprep.mubr.f32.mxu0 0.0
    %8161 = vmatmul.mubr.f32.gmra.mxu0 %v5856
    %v8162 = vpop.f32.mrf.mxu0
    %v8163 = vadd.f32 %v7778, %v8162
    %v8164 = vpop.f32.mrf.mxu0
    %8165 = vmatprep.mubr.f32.mxu0 0.0
    %8166 = vmatmul.mubr.f32.gmra.mxu0 %v5865
    %v8167 = vpop.f32.mrf.mxu0
    %v8168 = vadd.f32 %v7783, %v8167
    %v8169 = vpop.f32.mrf.mxu0
    %8170 = vmatprep.mubr.f32.mxu0 0.0
    %8171 = vmatmul.mubr.f32.gmra.mxu0 %v5874
    %v8172 = vpop.f32.mrf.mxu0
    %v8173 = vadd.f32 %v7788, %v8172
    %v8174 = vpop.f32.mrf.mxu0
    %8175 = vmatprep.mubr.f32.mxu0 0.0
    %8176 = vmatmul.mubr.f32.gmra.mxu0 %v5883
    %v8177 = vpop.f32.mrf.mxu0
    %v8178 = vadd.f32 %v7793, %v8177
    %v8179 = vpop.f32.mrf.mxu0
    %8180 = vmatprep.mubr.f32.mxu0 0.0
    %8181 = vmatmul.mubr.f32.gmra.mxu0 %v5892
    %v8182 = vpop.f32.mrf.mxu0
    %v8183 = vadd.f32 %v7798, %v8182
    %v8184 = vpop.f32.mrf.mxu0
    %8185 = vmatprep.mubr.f32.mxu0 0.0
    %8186 = vmatmul.mubr.f32.gmra.mxu0 %v5901
    %v8187 = vpop.f32.mrf.mxu0
    %v8188 = vadd.f32 %v7803, %v8187
    %v8189 = vpop.f32.mrf.mxu0
    %8190 = vmatprep.mubr.f32.mxu0 0.0
    %8191 = vmatmul.mubr.f32.gmra.mxu0 %v5910
    %v8192 = vpop.f32.mrf.mxu0
    %v8193 = vadd.f32 %v7808, %v8192
    %v8194 = vpop.f32.mrf.mxu0
    %8195 = vmatprep.mubr.f32.mxu0 0.0
    %8196 = vmatmul.mubr.f32.gmra.mxu0 %v5919
    %v8197 = vpop.f32.mrf.mxu0
    %v8198 = vadd.f32 %v7813, %v8197
    %v8199 = vpop.f32.mrf.mxu0
    %8200 = vmatprep.mubr.f32.mxu0 0.0
    %8201 = vmatmul.mubr.f32.gmra.mxu0 %v5928
    %v8202 = vpop.f32.mrf.mxu0
    %v8203 = vadd.f32 %v7818, %v8202
    %v8204 = vpop.f32.mrf.mxu0
    %8205 = vmatprep.mubr.f32.mxu0 0.0
    %8206 = vmatmul.mubr.f32.gmra.mxu0 %v5937
    %v8207 = vpop.f32.mrf.mxu0
    %v8208 = vadd.f32 %v7823, %v8207
    %v8209 = vpop.f32.mrf.mxu0
    %8210 = vmatprep.mubr.f32.mxu0 0.0
    %8211 = vmatmul.mubr.f32.gmra.mxu0 %v5946
    %v8212 = vpop.f32.mrf.mxu0
    %v8213 = vadd.f32 %v7828, %v8212
    %v8214 = vpop.f32.mrf.mxu0
    %8215 = vmatprep.mubr.f32.mxu0 0.0
    %8216 = vmatmul.mubr.f32.gmra.mxu0 %v5955
    %v8217 = vpop.f32.mrf.mxu0
    %v8218 = vadd.f32 %v7833, %v8217
    %v8219 = vpop.f32.mrf.mxu0
    %8220 = vmatprep.mubr.f32.mxu0 0.0
    %8221 = vmatmul.mubr.f32.gmra.mxu0 %v5964
    %v8222 = vpop.f32.mrf.mxu0
    %v8223 = vadd.f32 %v7838, %v8222
    %v8224 = vpop.f32.mrf.mxu0
    %8225 = vmatprep.mubr.f32.mxu0 0.0
    %8226 = vmatmul.mubr.f32.gmra.mxu0 %v5973
    %v8227 = vpop.f32.mrf.mxu0
    %v8228 = vadd.f32 %v7843, %v8227
    %v8229 = vpop.f32.mrf.mxu0
    %8230 = vmatprep.mubr.f32.mxu0 0.0
    %8231 = vmatmul.mubr.f32.gmra.mxu0 %v5982
    %v8232 = vpop.f32.mrf.mxu0
    %v8233 = vadd.f32 %v7848, %v8232
    %v8234 = vpop.f32.mrf.mxu0
    %8235 = vmatprep.mubr.f32.mxu0 0.0
    %8236 = vmatmul.mubr.f32.gmra.mxu0 %v5991
    %v8237 = vpop.f32.mrf.mxu0
    %v8238 = vadd.f32 %v7853, %v8237
    %v8239 = vpop.f32.mrf.mxu0
    %8240 = vmatprep.mubr.f32.mxu0 0.0
    %8241 = vmatmul.mubr.f32.gmra.mxu0 %v6000
    %v8242 = vpop.f32.mrf.mxu0
    %v8243 = vadd.f32 %v7858, %v8242
    %v8244 = vpop.f32.mrf.mxu0
    %8245 = vmatprep.mubr.f32.mxu0 0.0
    %8246 = vmatmul.mubr.f32.gmra.mxu0 %v6009
    %v8247 = vpop.f32.mrf.mxu0
    %v8248 = vadd.f32 %v7863, %v8247
    %v8249 = vpop.f32.mrf.mxu0
    %8250 = vmatprep.mubr.f32.mxu0 0.0
    %8251 = vmatmul.mubr.f32.gmra.mxu0 %v6018
    %v8252 = vpop.f32.mrf.mxu0
    %v8253 = vadd.f32 %v7868, %v8252
    %v8254 = vpop.f32.mrf.mxu0
    %8255 = vmatprep.mubr.f32.mxu0 0.0
    %8256 = vmatmul.mubr.f32.gmra.mxu0 %v6027
    %v8257 = vpop.f32.mrf.mxu0
    %v8258 = vadd.f32 %v7873, %v8257
    %v8259 = vpop.f32.mrf.mxu0
    %8260 = vmatprep.mubr.f32.mxu0 0.0
    %8261 = vmatmul.mubr.f32.gmra.mxu0 %v6036
    %v8262 = vpop.f32.mrf.mxu0
    %v8263 = vadd.f32 %v7878, %v8262
    %v8264 = vpop.f32.mrf.mxu0
    %8265 = vmatprep.mubr.f32.mxu0 0.0
    %8266 = vmatmul.mubr.f32.gmra.mxu0 %v6045
    %v8267 = vpop.f32.mrf.mxu0
    %v8268 = vadd.f32 %v7883, %v8267
    %v8269 = vpop.f32.mrf.mxu0
    %8270 = vmatprep.mubr.f32.mxu0 0.0
    %8271 = vmatmul.mubr.f32.gmra.mxu0 %v6054
    %v8272 = vpop.f32.mrf.mxu0
    %v8273 = vadd.f32 %v7888, %v8272
    %v8274 = vpop.f32.mrf.mxu0
    %8275 = vmatprep.mubr.f32.mxu0 0.0
    %8276 = vmatmul.mubr.f32.gmra.mxu0 %v6063
    %v8277 = vpop.f32.mrf.mxu0
    %v8278 = vadd.f32 %v7893, %v8277
    %v8279 = vpop.f32.mrf.mxu0
    %8280 = vmatprep.mubr.f32.mxu0 0.0
    %8281 = vmatmul.mubr.f32.gmra.mxu0 %v6072
    %v8282 = vpop.f32.mrf.mxu0
    %v8283 = vadd.f32 %v7898, %v8282
    %v8284 = vpop.f32.mrf.mxu0
    %8285 = vmatprep.mubr.f32.mxu0 0.0
    %8286 = vmatmul.mubr.f32.gmra.mxu0 %v6081
    %v8287 = vpop.f32.mrf.mxu0
    %v8288 = vadd.f32 %v7903, %v8287
    %v8289 = vpop.f32.mrf.mxu0
    %8290 = vmatprep.mubr.f32.mxu0 0.0
    %8291 = vmatmul.mubr.f32.gmra.mxu0 %v6090
    %v8292 = vpop.f32.mrf.mxu0
    %v8293 = vadd.f32 %v7908, %v8292
    %v8294 = vpop.f32.mrf.mxu0
    %8295 = vmatprep.mubr.f32.mxu0 0.0
    %8296 = vmatmul.mubr.f32.gmra.mxu0 %v6099
    %v8297 = vpop.f32.mrf.mxu0
    %v8298 = vadd.f32 %v7913, %v8297
    %v8299 = vpop.f32.mrf.mxu0
    %8300 = vmatprep.mubr.f32.mxu0 0.0
    %8301 = vmatmul.mubr.f32.gmra.mxu0 %v6108
    %v8302 = vpop.f32.mrf.mxu0
    %v8303 = vadd.f32 %v7918, %v8302
    %v8304 = vpop.f32.mrf.mxu0
    %8305 = vmatprep.mubr.f32.mxu0 0.0
    %8306 = vmatmul.mubr.f32.gmra.mxu0 %v6117
    %v8307 = vpop.f32.mrf.mxu0
    %v8308 = vadd.f32 %v7923, %v8307
    %v8309 = vpop.f32.mrf.mxu0
    %8310 = vmatprep.mubr.f32.mxu0 0.0
    %8311 = vmatmul.mubr.f32.gmra.mxu0 %v6126
    %v8312 = vpop.f32.mrf.mxu0
    %v8313 = vadd.f32 %v7928, %v8312
    %v8314 = vpop.f32.mrf.mxu0
    %8315 = vmatprep.mubr.f32.mxu0 0.0
    %8316 = vmatmul.mubr.f32.gmra.mxu0 %v6135
    %v8317 = vpop.f32.mrf.mxu0
    %v8318 = vadd.f32 %v7933, %v8317
    %v8319 = vpop.f32.mrf.mxu0
    %8320 = vmatprep.mubr.f32.mxu0 0.0
    %8321 = vmatmul.mubr.f32.gmra.mxu0 %v6144
    %v8322 = vpop.f32.mrf.mxu0
    %v8323 = vadd.f32 %v7938, %v8322
    %v8324 = vpop.f32.mrf.mxu0
    %8325 = vmatprep.mubr.f32.mxu0 0.0
    %8326 = vmatmul.mubr.f32.gmra.mxu0 %v6153
    %v8327 = vpop.f32.mrf.mxu0
    %v8328 = vadd.f32 %v7943, %v8327
    %v8329 = vpop.f32.mrf.mxu0
    %8330 = vmatprep.mubr.f32.mxu0 0.0
    %8331 = vmatmul.mubr.f32.gmra.mxu0 %v6162
    %v8332 = vpop.f32.mrf.mxu0
    %v8333 = vadd.f32 %v7948, %v8332
    %v8334 = vpop.f32.mrf.mxu0
    %8335 = vmatprep.mubr.f32.mxu0 0.0
    %8336 = vmatmul.mubr.f32.gmra.mxu0 %v6171
    %v8337 = vpop.f32.mrf.mxu0
    %v8338 = vadd.f32 %v7953, %v8337
    %v8339 = vpop.f32.mrf.mxu0
    %8340 = vmatprep.mubr.f32.mxu0 0.0
    %8341 = vmatmul.mubr.f32.gmra.mxu0 %v6180
    %v8342 = vpop.f32.mrf.mxu0
    %v8343 = vadd.f32 %v7958, %v8342
    %v8344 = vpop.f32.mrf.mxu0
    %8345 = vmatprep.mubr.f32.mxu0 0.0
    %8346 = vmatmul.mubr.f32.gmra.mxu0 %v6189
    %v8347 = vpop.f32.mrf.mxu0
    %v8348 = vadd.f32 %v7963, %v8347
    %v8349 = vpop.f32.mrf.mxu0
    %8350 = vmatprep.mubr.f32.mxu0 0.0
    %8351 = vmatmul.mubr.f32.gmra.mxu0 %v6198
    %v8352 = vpop.f32.mrf.mxu0
    %v8353 = vadd.f32 %v7968, %v8352
    %v8354 = vpop.f32.mrf.mxu0
    %8355 = vmatprep.mubr.f32.mxu0 0.0
    %8356 = vmatmul.mubr.f32.gmra.mxu0 %v6207
    %v8357 = vpop.f32.mrf.mxu0
    %v8358 = vadd.f32 %v7973, %v8357
    %v8359 = vpop.f32.mrf.mxu0
    %8360 = vmatprep.mubr.f32.mxu0 0.0
    %8361 = vmatmul.mubr.f32.gmra.mxu0 %v6216
    %v8362 = vpop.f32.mrf.mxu0
    %v8363 = vadd.f32 %v7978, %v8362
    %v8364 = vpop.f32.mrf.mxu0
    %8365 = vmatprep.mubr.f32.mxu0 0.0
    %8366 = vmatmul.mubr.f32.gmra.mxu0 %v6225
    %v8367 = vpop.f32.mrf.mxu0
    %v8368 = vadd.f32 %v7983, %v8367
    %v8369 = vpop.f32.mrf.mxu0
    %8370 = vmatprep.mubr.f32.mxu0 0.0
    %8371 = vmatmul.mubr.f32.gmra.mxu0 %v6234
    %v8372 = vpop.f32.mrf.mxu0
    %v8373 = vadd.f32 %v7988, %v8372
    %v8374 = vpop.f32.mrf.mxu0
    %8375 = vmatprep.mubr.f32.mxu0 0.0
    %8376 = vmatmul.mubr.f32.gmra.mxu0 %v6243
    %v8377 = vpop.f32.mrf.mxu0
    %v8378 = vadd.f32 %v7993, %v8377
    %v8379 = vpop.f32.mrf.mxu0
    %8380 = vmatprep.mubr.f32.mxu0 0.0
    %8381 = vmatmul.mubr.f32.gmra.mxu0 %v6252
    %v8382 = vpop.f32.mrf.mxu0
    %v8383 = vadd.f32 %v7998, %v8382
    %v8384 = vpop.f32.mrf.mxu0
    %8385 = vmatprep.mubr.f32.mxu0 0.0
    %8386 = vmatmul.mubr.f32.gmra.mxu0 %v6261
    %v8387 = vpop.f32.mrf.mxu0
    %v8388 = vadd.f32 %v8003, %v8387
    %v8389 = vpop.f32.mrf.mxu0
    %8390 = vmatprep.mubr.f32.mxu0 0.0
    %8391 = vmatmul.mubr.f32.gmra.mxu0 %v6270
    %v8392 = vpop.f32.mrf.mxu0
    %v8393 = vadd.f32 %v8008, %v8392
    %v8394 = vpop.f32.mrf.mxu0
    %8395 = vmatprep.mubr.f32.mxu0 0.0
    %8396 = vmatmul.mubr.f32.gmra.mxu0 %v6279
    %v8397 = vpop.f32.mrf.mxu0
    %v8398 = vadd.f32 %v8013, %v8397
    %v8399 = vpop.f32.mrf.mxu0
    %8400 = vmatprep.mubr.f32.mxu0 0.0
    %8401 = vmatmul.mubr.f32.gmra.mxu0 %v6288
    %v8402 = vpop.f32.mrf.mxu0
    %v8403 = vadd.f32 %v8018, %v8402
    %v8404 = vpop.f32.mrf.mxu0
    %8405 = vmatprep.mubr.f32.mxu0 0.0
    %8406 = vmatmul.mubr.f32.gmra.mxu0 %v6297
    %v8407 = vpop.f32.mrf.mxu0
    %v8408 = vadd.f32 %v8023, %v8407
    %v8409 = vpop.f32.mrf.mxu0
    %8410 = vmatprep.mubr.f32.mxu0 0.0
    %8411 = vmatmul.mubr.f32.gmra.mxu0 %v6306
    %v8412 = vpop.f32.mrf.mxu0
    %v8413 = vadd.f32 %v8028, %v8412
    %v8414 = vpop.f32.mrf.mxu0
    %8415 = vmatprep.mubr.f32.mxu0 0.0
    %8416 = vmatmul.mubr.f32.gmra.mxu0 %v6315
    %v8417 = vpop.f32.mrf.mxu0
    %v8418 = vadd.f32 %v8033, %v8417
    %v8419 = vpop.f32.mrf.mxu0
    %8420 = vmatprep.mubr.f32.mxu0 0.0
    %8421 = vmatmul.mubr.f32.gmra.mxu0 %v6324
    %v8422 = vpop.f32.mrf.mxu0
    %v8423 = vadd.f32 %v8038, %v8422
    %v8424 = vpop.f32.mrf.mxu0
    %8425 = vmatprep.mubr.f32.mxu0 0.0
    %8426 = vmatmul.mubr.f32.gmra.mxu0 %v6333
    %v8427 = vpop.f32.mrf.mxu0
    %v8428 = vadd.f32 %v8043, %v8427
    %v8429 = vpop.f32.mrf.mxu0
    %8430 = vmatprep.mubr.f32.mxu0 0.0
    %8431 = vmatmul.mubr.f32.gmra.mxu0 %v6342
    %v8432 = vpop.f32.mrf.mxu0
    %v8433 = vadd.f32 %v8048, %v8432
    %v8434 = vpop.f32.mrf.mxu0
    %8435 = vmatprep.mubr.f32.mxu0 0.0
    %8436 = vmatmul.mubr.f32.gmra.mxu0 %v6351
    %v8437 = vpop.f32.mrf.mxu0
    %v8438 = vadd.f32 %v8053, %v8437
    %v8439 = vpop.f32.mrf.mxu0
    %8440 = vmatprep.mubr.f32.mxu0 0.0
    %8441 = vmatmul.mubr.f32.gmra.mxu0 %v6360
    %v8442 = vpop.f32.mrf.mxu0
    %v8443 = vadd.f32 %v8058, %v8442
    %v8444 = vpop.f32.mrf.mxu0
    %8445 = vmatprep.mubr.f32.mxu0 0.0
    %8446 = vmatmul.mubr.f32.gmra.mxu0 %v6369
    %v8447 = vpop.f32.mrf.mxu0
    %v8448 = vadd.f32 %v8063, %v8447
    %v8449 = vpop.f32.mrf.mxu0
    %8450 = vmatprep.mubr.f32.mxu0 0.0
    %8451 = vmatmul.mubr.f32.gmra.mxu0 %v6378
    %v8452 = vpop.f32.mrf.mxu0
    %v8453 = vadd.f32 %v8068, %v8452
    %v8454 = vpop.f32.mrf.mxu0
    %8455 = vmatprep.mubr.f32.mxu0 0.0
    %8456 = vmatmul.mubr.f32.gmra.mxu0 %v6387
    %v8457 = vpop.f32.mrf.mxu0
    %v8458 = vadd.f32 %v8073, %v8457
    %v8459 = vpop.f32.mrf.mxu0
    %8460 = vmatprep.mubr.f32.mxu0 0.0
    %8461 = vmatmul.mubr.f32.gmra.mxu0 %v6396
    %v8462 = vpop.f32.mrf.mxu0
    %v8463 = vadd.f32 %v8078, %v8462
    %v8464 = vpop.f32.mrf.mxu0
    %8465 = vdwg.mxu0
    %v8466 = vld [vmem:[%s5] sm:$0x1]
    %v8467 = vld [vmem:[%s6] sm:$0x1]
    %v8468 = vadd.f32 %v8148, %v8153
    %v8469 = vadd.f32 %v8468, %v8158
    %v8470 = vadd.f32 %v8469, %v8163
    %v8471 = vadd.f32 %v8470, %v8168
    %v8472 = vadd.f32 %v8471, %v8173
    %v8473 = vadd.f32 %v8472, %v8178
    %v8474 = vadd.f32 %v8473, %v8183
    %v8475 = vadd.f32 %v8474, %v8188
    %v8476 = vadd.f32 %v8475, %v8193
    %v8477 = vadd.f32 %v8476, %v8198
    %v8478 = vadd.f32 %v8477, %v8203
    %v8479 = vadd.f32 %v8478, %v8208
    %v8480 = vadd.f32 %v8479, %v8213
    %v8481 = vadd.f32 %v8480, %v8218
    %v8482 = vadd.f32 %v8481, %v8223
    %v8483 = vadd.f32 %v8482, %v8228
    %v8484 = vadd.f32 %v8483, %v8233
    %v8485 = vadd.f32 %v8484, %v8238
    %v8486 = vadd.f32 %v8485, %v8243
    %v8487 = vadd.f32 %v8486, %v8248
    %v8488 = vadd.f32 %v8487, %v8253
    %v8489 = vadd.f32 %v8488, %v8258
    %v8490 = vadd.f32 %v8489, %v8263
    %v8491 = vadd.f32 %v8490, %v8268
    %v8492 = vadd.f32 %v8491, %v8273
    %v8493 = vadd.f32 %v8492, %v8278
    %v8494 = vadd.f32 %v8493, %v8283
    %v8495 = vadd.f32 %v8494, %v8288
    %v8496 = vadd.f32 %v8495, %v8293
    %v8497 = vadd.f32 %v8496, %v8298
    %v8498 = vadd.f32 %v8497, %v8303
    %v8499 = vadd.f32 %v8498, %v8308
    %v8500 = vadd.f32 %v8499, %v8313
    %v8501 = vadd.f32 %v8500, %v8318
    %v8502 = vadd.f32 %v8501, %v8323
    %v8503 = vadd.f32 %v8502, %v8328
    %v8504 = vadd.f32 %v8503, %v8333
    %v8505 = vadd.f32 %v8504, %v8338
    %v8506 = vadd.f32 %v8505, %v8343
    %v8507 = vadd.f32 %v8506, %v8348
    %v8508 = vadd.f32 %v8507, %v8353
    %v8509 = vadd.f32 %v8508, %v8358
    %v8510 = vadd.f32 %v8509, %v8363
    %v8511 = vadd.f32 %v8510, %v8368
    %v8512 = vadd.f32 %v8511, %v8373
    %v8513 = vadd.f32 %v8512, %v8378
    %v8514 = vadd.f32 %v8513, %v8383
    %v8515 = vadd.f32 %v8514, %v8388
    %v8516 = vadd.f32 %v8515, %v8393
    %v8517 = vadd.f32 %v8516, %v8398
    %v8518 = vadd.f32 %v8517, %v8403
    %v8519 = vadd.f32 %v8518, %v8408
    %v8520 = vadd.f32 %v8519, %v8413
    %v8521 = vadd.f32 %v8520, %v8418
    %v8522 = vadd.f32 %v8521, %v8423
    %v8523 = vadd.f32 %v8522, %v8428
    %v8524 = vadd.f32 %v8523, %v8433
    %v8525 = vadd.f32 %v8524, %v8438
    %v8526 = vadd.f32 %v8525, %v8443
    %v8527 = vadd.f32 %v8526, %v8448
    %v8528 = vadd.f32 %v8527, %v8453
    %v8529 = vadd.f32 %v8528, %v8458
    %v8530 = vadd.f32 %v8529, %v8463
    %v8531 = vrot.slane %v8530, 4
    %v8532 = vadd.f32 %v8530, %v8531
    %v8533 = vrot.slane %v8532, 2
    %v8534 = vadd.f32 %v8532, %v8533
    %v8535 = vrot.slane %v8534, 1
    %v8536 = vadd.f32 %v8534, %v8535
    %v8537 = vmul.f32 %v8536, 0.001953125
    %v8538 = vmul.f32 %v8148, %v8148
    %v8539 = vmul.f32 %v8153, %v8153
    %v8540 = vmul.f32 %v8158, %v8158
    %v8541 = vmul.f32 %v8163, %v8163
    %v8542 = vmul.f32 %v8168, %v8168
    %v8543 = vmul.f32 %v8173, %v8173
    %v8544 = vmul.f32 %v8178, %v8178
    %v8545 = vmul.f32 %v8183, %v8183
    %v8546 = vmul.f32 %v8188, %v8188
    %v8547 = vmul.f32 %v8193, %v8193
    %v8548 = vmul.f32 %v8198, %v8198
    %v8549 = vmul.f32 %v8203, %v8203
    %v8550 = vmul.f32 %v8208, %v8208
    %v8551 = vmul.f32 %v8213, %v8213
    %v8552 = vmul.f32 %v8218, %v8218
    %v8553 = vmul.f32 %v8223, %v8223
    %v8554 = vmul.f32 %v8228, %v8228
    %v8555 = vmul.f32 %v8233, %v8233
    %v8556 = vmul.f32 %v8238, %v8238
    %v8557 = vmul.f32 %v8243, %v8243
    %v8558 = vmul.f32 %v8248, %v8248
    %v8559 = vmul.f32 %v8253, %v8253
    %v8560 = vmul.f32 %v8258, %v8258
    %v8561 = vmul.f32 %v8263, %v8263
    %v8562 = vmul.f32 %v8268, %v8268
    %v8563 = vmul.f32 %v8273, %v8273
    %v8564 = vmul.f32 %v8278, %v8278
    %v8565 = vmul.f32 %v8283, %v8283
    %v8566 = vmul.f32 %v8288, %v8288
    %v8567 = vmul.f32 %v8293, %v8293
    %v8568 = vmul.f32 %v8298, %v8298
    %v8569 = vmul.f32 %v8303, %v8303
    %v8570 = vmul.f32 %v8308, %v8308
    %v8571 = vmul.f32 %v8313, %v8313
    %v8572 = vmul.f32 %v8318, %v8318
    %v8573 = vmul.f32 %v8323, %v8323
    %v8574 = vmul.f32 %v8328, %v8328
    %v8575 = vmul.f32 %v8333, %v8333
    %v8576 = vmul.f32 %v8338, %v8338
    %v8577 = vmul.f32 %v8343, %v8343
    %v8578 = vmul.f32 %v8348, %v8348
    %v8579 = vmul.f32 %v8353, %v8353
    %v8580 = vmul.f32 %v8358, %v8358
    %v8581 = vmul.f32 %v8363, %v8363
    %v8582 = vmul.f32 %v8368, %v8368
    %v8583 = vmul.f32 %v8373, %v8373
    %v8584 = vmul.f32 %v8378, %v8378
    %v8585 = vmul.f32 %v8383, %v8383
    %v8586 = vmul.f32 %v8388, %v8388
    %v8587 = vmul.f32 %v8393, %v8393
    %v8588 = vmul.f32 %v8398, %v8398
    %v8589 = vmul.f32 %v8403, %v8403
    %v8590 = vmul.f32 %v8408, %v8408
    %v8591 = vmul.f32 %v8413, %v8413
    %v8592 = vmul.f32 %v8418, %v8418
    %v8593 = vmul.f32 %v8423, %v8423
    %v8594 = vmul.f32 %v8428, %v8428
    %v8595 = vmul.f32 %v8433, %v8433
    %v8596 = vmul.f32 %v8438, %v8438
    %v8597 = vmul.f32 %v8443, %v8443
    %v8598 = vmul.f32 %v8448, %v8448
    %v8599 = vmul.f32 %v8453, %v8453
    %v8600 = vmul.f32 %v8458, %v8458
    %v8601 = vmul.f32 %v8463, %v8463
    %v8602 = vadd.f32 %v8538, %v8539
    %v8603 = vadd.f32 %v8602, %v8540
    %v8604 = vadd.f32 %v8603, %v8541
    %v8605 = vadd.f32 %v8604, %v8542
    %v8606 = vadd.f32 %v8605, %v8543
    %v8607 = vadd.f32 %v8606, %v8544
    %v8608 = vadd.f32 %v8607, %v8545
    %v8609 = vadd.f32 %v8608, %v8546
    %v8610 = vadd.f32 %v8609, %v8547
    %v8611 = vadd.f32 %v8610, %v8548
    %v8612 = vadd.f32 %v8611, %v8549
    %v8613 = vadd.f32 %v8612, %v8550
    %v8614 = vadd.f32 %v8613, %v8551
    %v8615 = vadd.f32 %v8614, %v8552
    %v8616 = vadd.f32 %v8615, %v8553
    %v8617 = vadd.f32 %v8616, %v8554
    %v8618 = vadd.f32 %v8617, %v8555
    %v8619 = vadd.f32 %v8618, %v8556
    %v8620 = vadd.f32 %v8619, %v8557
    %v8621 = vadd.f32 %v8620, %v8558
    %v8622 = vadd.f32 %v8621, %v8559
    %v8623 = vadd.f32 %v8622, %v8560
    %v8624 = vadd.f32 %v8623, %v8561
    %v8625 = vadd.f32 %v8624, %v8562
    %v8626 = vadd.f32 %v8625, %v8563
    %v8627 = vadd.f32 %v8626, %v8564
    %v8628 = vadd.f32 %v8627, %v8565
    %v8629 = vadd.f32 %v8628, %v8566
    %v8630 = vadd.f32 %v8629, %v8567
    %v8631 = vadd.f32 %v8630, %v8568
    %v8632 = vadd.f32 %v8631, %v8569
    %v8633 = vadd.f32 %v8632, %v8570
    %v8634 = vadd.f32 %v8633, %v8571
    %v8635 = vadd.f32 %v8634, %v8572
    %v8636 = vadd.f32 %v8635, %v8573
    %v8637 = vadd.f32 %v8636, %v8574
    %v8638 = vadd.f32 %v8637, %v8575
    %v8639 = vadd.f32 %v8638, %v8576
    %v8640 = vadd.f32 %v8639, %v8577
    %v8641 = vadd.f32 %v8640, %v8578
    %v8642 = vadd.f32 %v8641, %v8579
    %v8643 = vadd.f32 %v8642, %v8580
    %v8644 = vadd.f32 %v8643, %v8581
    %v8645 = vadd.f32 %v8644, %v8582
    %v8646 = vadd.f32 %v8645, %v8583
    %v8647 = vadd.f32 %v8646, %v8584
    %v8648 = vadd.f32 %v8647, %v8585
    %v8649 = vadd.f32 %v8648, %v8586
    %v8650 = vadd.f32 %v8649, %v8587
    %v8651 = vadd.f32 %v8650, %v8588
    %v8652 = vadd.f32 %v8651, %v8589
    %v8653 = vadd.f32 %v8652, %v8590
    %v8654 = vadd.f32 %v8653, %v8591
    %v8655 = vadd.f32 %v8654, %v8592
    %v8656 = vadd.f32 %v8655, %v8593
    %v8657 = vadd.f32 %v8656, %v8594
    %v8658 = vadd.f32 %v8657, %v8595
    %v8659 = vadd.f32 %v8658, %v8596
    %v8660 = vadd.f32 %v8659, %v8597
    %v8661 = vadd.f32 %v8660, %v8598
    %v8662 = vadd.f32 %v8661, %v8599
    %v8663 = vadd.f32 %v8662, %v8600
    %v8664 = vadd.f32 %v8663, %v8601
    %v8665 = vrot.slane %v8664, 4
    %v8666 = vadd.f32 %v8664, %v8665
    %v8667 = vrot.slane %v8666, 2
    %v8668 = vadd.f32 %v8666, %v8667
    %v8669 = vrot.slane %v8668, 1
    %v8670 = vadd.f32 %v8668, %v8669
    %v8671 = vmul.f32 %v8670, 0.001953125
    %v8672 = vmul.f32 %v8537, %v8537
    %v8673 = vsub.f32 %v8671, %v8672
    %v8674 = vmax.f32 %v8673, 0.0
    %v8675 = vadd.f32 %v8674, 1e-05
    %v8676 = vrsqrt.pop %v8675
    %v8677 = vmul.f32 %v8466, %v8676
    %v8678 = vmul.f32 %v8537, %v8677
    %v8679 = vsub.f32 %v8467, %v8678
    %v8681 = vlaneseq
    %v8682 = vshrl.u32 %v8681, 7
    %v8683 = vsub.s32 0, %v8682
    %v8684 = vrot.slane %v8677, %v8683
    %v8686 = vmul.f32 %v8148, %v8684
    %v8687 = vmul.f32 %v8153, %v8684
    %v8688 = vmul.f32 %v8158, %v8684
    %v8689 = vmul.f32 %v8163, %v8684
    %v8690 = vmul.f32 %v8168, %v8684
    %v8691 = vmul.f32 %v8173, %v8684
    %v8692 = vmul.f32 %v8178, %v8684
    %v8693 = vmul.f32 %v8183, %v8684
    %v8694 = vmul.f32 %v8188, %v8684
    %v8695 = vmul.f32 %v8193, %v8684
    %v8696 = vmul.f32 %v8198, %v8684
    %v8697 = vmul.f32 %v8203, %v8684
    %v8698 = vmul.f32 %v8208, %v8684
    %v8699 = vmul.f32 %v8213, %v8684
    %v8700 = vmul.f32 %v8218, %v8684
    %v8701 = vmul.f32 %v8223, %v8684
    %v8702 = vmul.f32 %v8228, %v8684
    %v8703 = vmul.f32 %v8233, %v8684
    %v8704 = vmul.f32 %v8238, %v8684
    %v8705 = vmul.f32 %v8243, %v8684
    %v8706 = vmul.f32 %v8248, %v8684
    %v8707 = vmul.f32 %v8253, %v8684
    %v8708 = vmul.f32 %v8258, %v8684
    %v8709 = vmul.f32 %v8263, %v8684
    %v8710 = vmul.f32 %v8268, %v8684
    %v8711 = vmul.f32 %v8273, %v8684
    %v8712 = vmul.f32 %v8278, %v8684
    %v8713 = vmul.f32 %v8283, %v8684
    %v8714 = vmul.f32 %v8288, %v8684
    %v8715 = vmul.f32 %v8293, %v8684
    %v8716 = vmul.f32 %v8298, %v8684
    %v8717 = vmul.f32 %v8303, %v8684
    %v8718 = vmul.f32 %v8308, %v8684
    %v8719 = vmul.f32 %v8313, %v8684
    %v8720 = vmul.f32 %v8318, %v8684
    %v8721 = vmul.f32 %v8323, %v8684
    %v8722 = vmul.f32 %v8328, %v8684
    %v8723 = vmul.f32 %v8333, %v8684
    %v8724 = vmul.f32 %v8338, %v8684
    %v8725 = vmul.f32 %v8343, %v8684
    %v8726 = vmul.f32 %v8348, %v8684
    %v8727 = vmul.f32 %v8353, %v8684
    %v8728 = vmul.f32 %v8358, %v8684
    %v8729 = vmul.f32 %v8363, %v8684
    %v8730 = vmul.f32 %v8368, %v8684
    %v8731 = vmul.f32 %v8373, %v8684
    %v8732 = vmul.f32 %v8378, %v8684
    %v8733 = vmul.f32 %v8383, %v8684
    %v8734 = vmul.f32 %v8388, %v8684
    %v8735 = vmul.f32 %v8393, %v8684
    %v8736 = vmul.f32 %v8398, %v8684
    %v8737 = vmul.f32 %v8403, %v8684
    %v8738 = vmul.f32 %v8408, %v8684
    %v8739 = vmul.f32 %v8413, %v8684
    %v8740 = vmul.f32 %v8418, %v8684
    %v8741 = vmul.f32 %v8423, %v8684
    %v8742 = vmul.f32 %v8428, %v8684
    %v8743 = vmul.f32 %v8433, %v8684
    %v8744 = vmul.f32 %v8438, %v8684
    %v8745 = vmul.f32 %v8443, %v8684
    %v8746 = vmul.f32 %v8448, %v8684
    %v8747 = vmul.f32 %v8453, %v8684
    %v8748 = vmul.f32 %v8458, %v8684
    %v8749 = vmul.f32 %v8463, %v8684
    %v8751 = vlaneseq
    %v8752 = vshrl.u32 %v8751, 7
    %v8753 = vsub.s32 0, %v8752
    %v8754 = vrot.slane %v8679, %v8753
    %v8756 = vadd.f32 %v8686, %v8754
    %v8757 = vadd.f32 %v8687, %v8754
    %v8758 = vadd.f32 %v8688, %v8754
    %v8759 = vadd.f32 %v8689, %v8754
    %v8760 = vadd.f32 %v8690, %v8754
    %v8761 = vadd.f32 %v8691, %v8754
    %v8762 = vadd.f32 %v8692, %v8754
    %v8763 = vadd.f32 %v8693, %v8754
    %v8764 = vadd.f32 %v8694, %v8754
    %v8765 = vadd.f32 %v8695, %v8754
    %v8766 = vadd.f32 %v8696, %v8754
    %v8767 = vadd.f32 %v8697, %v8754
    %v8768 = vadd.f32 %v8698, %v8754
    %v8769 = vadd.f32 %v8699, %v8754
    %v8770 = vadd.f32 %v8700, %v8754
    %v8771 = vadd.f32 %v8701, %v8754
    %v8772 = vadd.f32 %v8702, %v8754
    %v8773 = vadd.f32 %v8703, %v8754
    %v8774 = vadd.f32 %v8704, %v8754
    %v8775 = vadd.f32 %v8705, %v8754
    %v8776 = vadd.f32 %v8706, %v8754
    %v8777 = vadd.f32 %v8707, %v8754
    %v8778 = vadd.f32 %v8708, %v8754
    %v8779 = vadd.f32 %v8709, %v8754
    %v8780 = vadd.f32 %v8710, %v8754
    %v8781 = vadd.f32 %v8711, %v8754
    %v8782 = vadd.f32 %v8712, %v8754
    %v8783 = vadd.f32 %v8713, %v8754
    %v8784 = vadd.f32 %v8714, %v8754
    %v8785 = vadd.f32 %v8715, %v8754
    %v8786 = vadd.f32 %v8716, %v8754
    %v8787 = vadd.f32 %v8717, %v8754
    %v8788 = vadd.f32 %v8718, %v8754
    %v8789 = vadd.f32 %v8719, %v8754
    %v8790 = vadd.f32 %v8720, %v8754
    %v8791 = vadd.f32 %v8721, %v8754
    %v8792 = vadd.f32 %v8722, %v8754
    %v8793 = vadd.f32 %v8723, %v8754
    %v8794 = vadd.f32 %v8724, %v8754
    %v8795 = vadd.f32 %v8725, %v8754
    %v8796 = vadd.f32 %v8726, %v8754
    %v8797 = vadd.f32 %v8727, %v8754
    %v8798 = vadd.f32 %v8728, %v8754
    %v8799 = vadd.f32 %v8729, %v8754
    %v8800 = vadd.f32 %v8730, %v8754
    %v8801 = vadd.f32 %v8731, %v8754
    %v8802 = vadd.f32 %v8732, %v8754
    %v8803 = vadd.f32 %v8733, %v8754
    %v8804 = vadd.f32 %v8734, %v8754
    %v8805 = vadd.f32 %v8735, %v8754
    %v8806 = vadd.f32 %v8736, %v8754
    %v8807 = vadd.f32 %v8737, %v8754
    %v8808 = vadd.f32 %v8738, %v8754
    %v8809 = vadd.f32 %v8739, %v8754
    %v8810 = vadd.f32 %v8740, %v8754
    %v8811 = vadd.f32 %v8741, %v8754
    %v8812 = vadd.f32 %v8742, %v8754
    %v8813 = vadd.f32 %v8743, %v8754
    %v8814 = vadd.f32 %v8744, %v8754
    %v8815 = vadd.f32 %v8745, %v8754
    %v8816 = vadd.f32 %v8746, %v8754
    %v8817 = vadd.f32 %v8747, %v8754
    %v8818 = vadd.f32 %v8748, %v8754
    %v8819 = vadd.f32 %v8749, %v8754
    %v8820 = vld [vmem:[#allocation5] sm:$0xff]
    %v8821 = vld [vmem:[#allocation5 + $0x8] sm:$0xff]
    %v8822 = vld [vmem:[#allocation5 + $0x10] sm:$0xff]
    %v8823 = vld [vmem:[#allocation5 + $0x18] sm:$0xff]
    %v8824 = vld [vmem:[#allocation5 + $0x20] sm:$0xff]
    %v8825 = vld [vmem:[#allocation5 + $0x28] sm:$0xff]
    %v8826 = vld [vmem:[#allocation5 + $0x30] sm:$0xff]
    %v8827 = vld [vmem:[#allocation5 + $0x38] sm:$0xff]
    %v8828 = vld [vmem:[#allocation5 + $0x40] sm:$0xff]
    %v8829 = vld [vmem:[#allocation5 + $0x48] sm:$0xff]
    %v8830 = vld [vmem:[#allocation5 + $0x50] sm:$0xff]
    %v8831 = vld [vmem:[#allocation5 + $0x58] sm:$0xff]
    %v8832 = vld [vmem:[#allocation5 + $0x60] sm:$0xff]
    %v8833 = vld [vmem:[#allocation5 + $0x68] sm:$0xff]
    %v8834 = vld [vmem:[#allocation5 + $0x70] sm:$0xff]
    %v8835 = vld [vmem:[#allocation5 + $0x78] sm:$0xff]
    %v8836 = vld [vmem:[#allocation5 + $0x80] sm:$0xff]
    %v8837 = vld [vmem:[#allocation5 + $0x88] sm:$0xff]
    %v8838 = vld [vmem:[#allocation5 + $0x90] sm:$0xff]
    %v8839 = vld [vmem:[#allocation5 + $0x98] sm:$0xff]
    %v8840 = vld [vmem:[#allocation5 + $0xa0] sm:$0xff]
    %v8841 = vld [vmem:[#allocation5 + $0xa8] sm:$0xff]
    %v8842 = vld [vmem:[#allocation5 + $0xb0] sm:$0xff]
    %v8843 = vld [vmem:[#allocation5 + $0xb8] sm:$0xff]
    %v8844 = vld [vmem:[#allocation5 + $0xc0] sm:$0xff]
    %v8845 = vld [vmem:[#allocation5 + $0xc8] sm:$0xff]
    %v8846 = vld [vmem:[#allocation5 + $0xd0] sm:$0xff]
    %v8847 = vld [vmem:[#allocation5 + $0xd8] sm:$0xff]
    %v8848 = vld [vmem:[#allocation5 + $0xe0] sm:$0xff]
    %v8849 = vld [vmem:[#allocation5 + $0xe8] sm:$0xff]
    %v8850 = vld [vmem:[#allocation5 + $0xf0] sm:$0xff]
    %v8851 = vld [vmem:[#allocation5 + $0xf8] sm:$0xff]
    %v8852 = vld [vmem:[#allocation5 + $0x100] sm:$0xff]
    %v8853 = vld [vmem:[#allocation5 + $0x108] sm:$0xff]
    %v8854 = vld [vmem:[#allocation5 + $0x110] sm:$0xff]
    %v8855 = vld [vmem:[#allocation5 + $0x118] sm:$0xff]
    %v8856 = vld [vmem:[#allocation5 + $0x120] sm:$0xff]
    %v8857 = vld [vmem:[#allocation5 + $0x128] sm:$0xff]
    %v8858 = vld [vmem:[#allocation5 + $0x130] sm:$0xff]
    %v8859 = vld [vmem:[#allocation5 + $0x138] sm:$0xff]
    %v8860 = vld [vmem:[#allocation5 + $0x140] sm:$0xff]
    %v8861 = vld [vmem:[#allocation5 + $0x148] sm:$0xff]
    %v8862 = vld [vmem:[#allocation5 + $0x150] sm:$0xff]
    %v8863 = vld [vmem:[#allocation5 + $0x158] sm:$0xff]
    %v8864 = vld [vmem:[#allocation5 + $0x160] sm:$0xff]
    %v8865 = vld [vmem:[#allocation5 + $0x168] sm:$0xff]
    %v8866 = vld [vmem:[#allocation5 + $0x170] sm:$0xff]
    %v8867 = vld [vmem:[#allocation5 + $0x178] sm:$0xff]
    %v8868 = vld [vmem:[#allocation5 + $0x180] sm:$0xff]
    %v8869 = vld [vmem:[#allocation5 + $0x188] sm:$0xff]
    %v8870 = vld [vmem:[#allocation5 + $0x190] sm:$0xff]
    %v8871 = vld [vmem:[#allocation5 + $0x198] sm:$0xff]
    %v8872 = vld [vmem:[#allocation5 + $0x1a0] sm:$0xff]
    %v8873 = vld [vmem:[#allocation5 + $0x1a8] sm:$0xff]
    %v8874 = vld [vmem:[#allocation5 + $0x1b0] sm:$0xff]
    %v8875 = vld [vmem:[#allocation5 + $0x1b8] sm:$0xff]
    %v8876 = vld [vmem:[#allocation5 + $0x1c0] sm:$0xff]
    %v8877 = vld [vmem:[#allocation5 + $0x1c8] sm:$0xff]
    %v8878 = vld [vmem:[#allocation5 + $0x1d0] sm:$0xff]
    %v8879 = vld [vmem:[#allocation5 + $0x1d8] sm:$0xff]
    %v8880 = vld [vmem:[#allocation5 + $0x1e0] sm:$0xff]
    %v8881 = vld [vmem:[#allocation5 + $0x1e8] sm:$0xff]
    %v8882 = vld [vmem:[#allocation5 + $0x1f0] sm:$0xff]
    %v8883 = vld [vmem:[#allocation5 + $0x1f8] sm:$0xff]
    %v8884 = vadd.f32 %v8756, %v8820
    %v8885 = vadd.f32 %v8757, %v8821
    %v8886 = vadd.f32 %v8758, %v8822
    %v8887 = vadd.f32 %v8759, %v8823
    %v8888 = vadd.f32 %v8760, %v8824
    %v8889 = vadd.f32 %v8761, %v8825
    %v8890 = vadd.f32 %v8762, %v8826
    %v8891 = vadd.f32 %v8763, %v8827
    %v8892 = vadd.f32 %v8764, %v8828
    %v8893 = vadd.f32 %v8765, %v8829
    %v8894 = vadd.f32 %v8766, %v8830
    %v8895 = vadd.f32 %v8767, %v8831
    %v8896 = vadd.f32 %v8768, %v8832
    %v8897 = vadd.f32 %v8769, %v8833
    %v8898 = vadd.f32 %v8770, %v8834
    %v8899 = vadd.f32 %v8771, %v8835
    %v8900 = vadd.f32 %v8772, %v8836
    %v8901 = vadd.f32 %v8773, %v8837
    %v8902 = vadd.f32 %v8774, %v8838
    %v8903 = vadd.f32 %v8775, %v8839
    %v8904 = vadd.f32 %v8776, %v8840
    %v8905 = vadd.f32 %v8777, %v8841
    %v8906 = vadd.f32 %v8778, %v8842
    %v8907 = vadd.f32 %v8779, %v8843
    %v8908 = vadd.f32 %v8780, %v8844
    %v8909 = vadd.f32 %v8781, %v8845
    %v8910 = vadd.f32 %v8782, %v8846
    %v8911 = vadd.f32 %v8783, %v8847
    %v8912 = vadd.f32 %v8784, %v8848
    %v8913 = vadd.f32 %v8785, %v8849
    %v8914 = vadd.f32 %v8786, %v8850
    %v8915 = vadd.f32 %v8787, %v8851
    %v8916 = vadd.f32 %v8788, %v8852
    %v8917 = vadd.f32 %v8789, %v8853
    %v8918 = vadd.f32 %v8790, %v8854
    %v8919 = vadd.f32 %v8791, %v8855
    %v8920 = vadd.f32 %v8792, %v8856
    %v8921 = vadd.f32 %v8793, %v8857
    %v8922 = vadd.f32 %v8794, %v8858
    %v8923 = vadd.f32 %v8795, %v8859
    %v8924 = vadd.f32 %v8796, %v8860
    %v8925 = vadd.f32 %v8797, %v8861
    %v8926 = vadd.f32 %v8798, %v8862
    %v8927 = vadd.f32 %v8799, %v8863
    %v8928 = vadd.f32 %v8800, %v8864
    %v8929 = vadd.f32 %v8801, %v8865
    %v8930 = vadd.f32 %v8802, %v8866
    %v8931 = vadd.f32 %v8803, %v8867
    %v8932 = vadd.f32 %v8804, %v8868
    %v8933 = vadd.f32 %v8805, %v8869
    %v8934 = vadd.f32 %v8806, %v8870
    %v8935 = vadd.f32 %v8807, %v8871
    %v8936 = vadd.f32 %v8808, %v8872
    %v8937 = vadd.f32 %v8809, %v8873
    %v8938 = vadd.f32 %v8810, %v8874
    %v8939 = vadd.f32 %v8811, %v8875
    %v8940 = vadd.f32 %v8812, %v8876
    %v8941 = vadd.f32 %v8813, %v8877
    %v8942 = vadd.f32 %v8814, %v8878
    %v8943 = vadd.f32 %v8815, %v8879
    %v8944 = vadd.f32 %v8816, %v8880
    %v8945 = vadd.f32 %v8817, %v8881
    %v8946 = vadd.f32 %v8818, %v8882
    %v8947 = vadd.f32 %v8819, %v8883
    %v8948 = vmax.f32 %v8884, 0.0
    %v8949 = vmax.f32 %v8885, 0.0
    %v8950 = vmax.f32 %v8886, 0.0
    %v8951 = vmax.f32 %v8887, 0.0
    %v8952 = vmax.f32 %v8888, 0.0
    %v8953 = vmax.f32 %v8889, 0.0
    %v8954 = vmax.f32 %v8890, 0.0
    %v8955 = vmax.f32 %v8891, 0.0
    %v8956 = vmax.f32 %v8892, 0.0
    %v8957 = vmax.f32 %v8893, 0.0
    %v8958 = vmax.f32 %v8894, 0.0
    %v8959 = vmax.f32 %v8895, 0.0
    %v8960 = vmax.f32 %v8896, 0.0
    %v8961 = vmax.f32 %v8897, 0.0
    %v8962 = vmax.f32 %v8898, 0.0
    %v8963 = vmax.f32 %v8899, 0.0
    %v8964 = vmax.f32 %v8900, 0.0
    %v8965 = vmax.f32 %v8901, 0.0
    %v8966 = vmax.f32 %v8902, 0.0
    %v8967 = vmax.f32 %v8903, 0.0
    %v8968 = vmax.f32 %v8904, 0.0
    %v8969 = vmax.f32 %v8905, 0.0
    %v8970 = vmax.f32 %v8906, 0.0
    %v8971 = vmax.f32 %v8907, 0.0
    %v8972 = vmax.f32 %v8908, 0.0
    %v8973 = vmax.f32 %v8909, 0.0
    %v8974 = vmax.f32 %v8910, 0.0
    %v8975 = vmax.f32 %v8911, 0.0
    %v8976 = vmax.f32 %v8912, 0.0
    %v8977 = vmax.f32 %v8913, 0.0
    %v8978 = vmax.f32 %v8914, 0.0
    %v8979 = vmax.f32 %v8915, 0.0
    %v8980 = vmax.f32 %v8916, 0.0
    %v8981 = vmax.f32 %v8917, 0.0
    %v8982 = vmax.f32 %v8918, 0.0
    %v8983 = vmax.f32 %v8919, 0.0
    %v8984 = vmax.f32 %v8920, 0.0
    %v8985 = vmax.f32 %v8921, 0.0
    %v8986 = vmax.f32 %v8922, 0.0
    %v8987 = vmax.f32 %v8923, 0.0
    %v8988 = vmax.f32 %v8924, 0.0
    %v8989 = vmax.f32 %v8925, 0.0
    %v8990 = vmax.f32 %v8926, 0.0
    %v8991 = vmax.f32 %v8927, 0.0
    %v8992 = vmax.f32 %v8928, 0.0
    %v8993 = vmax.f32 %v8929, 0.0
    %v8994 = vmax.f32 %v8930, 0.0
    %v8995 = vmax.f32 %v8931, 0.0
    %v8996 = vmax.f32 %v8932, 0.0
    %v8997 = vmax.f32 %v8933, 0.0
    %v8998 = vmax.f32 %v8934, 0.0
    %v8999 = vmax.f32 %v8935, 0.0
    %v9000 = vmax.f32 %v8936, 0.0
    %v9001 = vmax.f32 %v8937, 0.0
    %v9002 = vmax.f32 %v8938, 0.0
    %v9003 = vmax.f32 %v8939, 0.0
    %v9004 = vmax.f32 %v8940, 0.0
    %v9005 = vmax.f32 %v8941, 0.0
    %v9006 = vmax.f32 %v8942, 0.0
    %v9007 = vmax.f32 %v8943, 0.0
    %v9008 = vmax.f32 %v8944, 0.0
    %v9009 = vmax.f32 %v8945, 0.0
    %v9010 = vmax.f32 %v8946, 0.0
    %v9011 = vmax.f32 %v8947, 0.0
    %9012 = vst [vmem:[#allocation11] sm:$0xff] %v8948
    %9013 = vst [vmem:[#allocation11 + $0x8] sm:$0xff] %v8949
    %9014 = vst [vmem:[#allocation11 + $0x10] sm:$0xff] %v8950
    %9015 = vst [vmem:[#allocation11 + $0x18] sm:$0xff] %v8951
    %9016 = vst [vmem:[#allocation11 + $0x20] sm:$0xff] %v8952
    %9017 = vst [vmem:[#allocation11 + $0x28] sm:$0xff] %v8953
    %9018 = vst [vmem:[#allocation11 + $0x30] sm:$0xff] %v8954
    %9019 = vst [vmem:[#allocation11 + $0x38] sm:$0xff] %v8955
    %9020 = vst [vmem:[#allocation11 + $0x40] sm:$0xff] %v8956
    %9021 = vst [vmem:[#allocation11 + $0x48] sm:$0xff] %v8957
    %9022 = vst [vmem:[#allocation11 + $0x50] sm:$0xff] %v8958
    %9023 = vst [vmem:[#allocation11 + $0x58] sm:$0xff] %v8959
    %9024 = vst [vmem:[#allocation11 + $0x60] sm:$0xff] %v8960
    %9025 = vst [vmem:[#allocation11 + $0x68] sm:$0xff] %v8961
    %9026 = vst [vmem:[#allocation11 + $0x70] sm:$0xff] %v8962
    %9027 = vst [vmem:[#allocation11 + $0x78] sm:$0xff] %v8963
    %9028 = vst [vmem:[#allocation11 + $0x80] sm:$0xff] %v8964
    %9029 = vst [vmem:[#allocation11 + $0x88] sm:$0xff] %v8965
    %9030 = vst [vmem:[#allocation11 + $0x90] sm:$0xff] %v8966
    %9031 = vst [vmem:[#allocation11 + $0x98] sm:$0xff] %v8967
    %9032 = vst [vmem:[#allocation11 + $0xa0] sm:$0xff] %v8968
    %9033 = vst [vmem:[#allocation11 + $0xa8] sm:$0xff] %v8969
    %9034 = vst [vmem:[#allocation11 + $0xb0] sm:$0xff] %v8970
    %9035 = vst [vmem:[#allocation11 + $0xb8] sm:$0xff] %v8971
    %9036 = vst [vmem:[#allocation11 + $0xc0] sm:$0xff] %v8972
    %9037 = vst [vmem:[#allocation11 + $0xc8] sm:$0xff] %v8973
    %9038 = vst [vmem:[#allocation11 + $0xd0] sm:$0xff] %v8974
    %9039 = vst [vmem:[#allocation11 + $0xd8] sm:$0xff] %v8975
    %9040 = vst [vmem:[#allocation11 + $0xe0] sm:$0xff] %v8976
    %9041 = vst [vmem:[#allocation11 + $0xe8] sm:$0xff] %v8977
    %9042 = vst [vmem:[#allocation11 + $0xf0] sm:$0xff] %v8978
    %9043 = vst [vmem:[#allocation11 + $0xf8] sm:$0xff] %v8979
    %9044 = vst [vmem:[#allocation11 + $0x100] sm:$0xff] %v8980
    %9045 = vst [vmem:[#allocation11 + $0x108] sm:$0xff] %v8981
    %9046 = vst [vmem:[#allocation11 + $0x110] sm:$0xff] %v8982
    %9047 = vst [vmem:[#allocation11 + $0x118] sm:$0xff] %v8983
    %9048 = vst [vmem:[#allocation11 + $0x120] sm:$0xff] %v8984
    %9049 = vst [vmem:[#allocation11 + $0x128] sm:$0xff] %v8985
    %9050 = vst [vmem:[#allocation11 + $0x130] sm:$0xff] %v8986
    %9051 = vst [vmem:[#allocation11 + $0x138] sm:$0xff] %v8987
    %9052 = vst [vmem:[#allocation11 + $0x140] sm:$0xff] %v8988
    %9053 = vst [vmem:[#allocation11 + $0x148] sm:$0xff] %v8989
    %9054 = vst [vmem:[#allocation11 + $0x150] sm:$0xff] %v8990
    %9055 = vst [vmem:[#allocation11 + $0x158] sm:$0xff] %v8991
    %9056 = vst [vmem:[#allocation11 + $0x160] sm:$0xff] %v8992
    %9057 = vst [vmem:[#allocation11 + $0x168] sm:$0xff] %v8993
    %9058 = vst [vmem:[#allocation11 + $0x170] sm:$0xff] %v8994
    %9059 = vst [vmem:[#allocation11 + $0x178] sm:$0xff] %v8995
    %9060 = vst [vmem:[#allocation11 + $0x180] sm:$0xff] %v8996
    %9061 = vst [vmem:[#allocation11 + $0x188] sm:$0xff] %v8997
    %9062 = vst [vmem:[#allocation11 + $0x190] sm:$0xff] %v8998
    %9063 = vst [vmem:[#allocation11 + $0x198] sm:$0xff] %v8999
    %9064 = vst [vmem:[#allocation11 + $0x1a0] sm:$0xff] %v9000
    %9065 = vst [vmem:[#allocation11 + $0x1a8] sm:$0xff] %v9001
    %9066 = vst [vmem:[#allocation11 + $0x1b0] sm:$0xff] %v9002
    %9067 = vst [vmem:[#allocation11 + $0x1b8] sm:$0xff] %v9003
    %9068 = vst [vmem:[#allocation11 + $0x1c0] sm:$0xff] %v9004
    %9069 = vst [vmem:[#allocation11 + $0x1c8] sm:$0xff] %v9005
    %9070 = vst [vmem:[#allocation11 + $0x1d0] sm:$0xff] %v9006
    %9071 = vst [vmem:[#allocation11 + $0x1d8] sm:$0xff] %v9007
    %9072 = vst [vmem:[#allocation11 + $0x1e0] sm:$0xff] %v9008
    %9073 = vst [vmem:[#allocation11 + $0x1e8] sm:$0xff] %v9009
    %9074 = vst [vmem:[#allocation11 + $0x1f0] sm:$0xff] %v9010
    %9075 = vst [vmem:[#allocation11 + $0x1f8] sm:$0xff] %v9011
    // Predicated region
    $region42: #{tpu_custom_call.1} parent=1 // pred_check
      _
    $region43: #{tpu_custom_call.1} parent=1 // pred_check_branch
      %9077 = sbr.rel (0) target = $region45
    $region44: #{tpu_custom_call.1} parent=1 // pred_region
      %s9079 = ssub.s32 8192, 8192
      %9080 = vsyncadd [#allocation7], %s9079
      %s9081 = sshll.u32 [#allocation11], 4
      %s9082 = int_to_ptr.vmem [resolvable:$true] %s9081
      %9087 = dma.vmem_to_hbm [thread:$0]  %s9082, 8192, %s7, [#allocation7], 128, 128, 8
    $region45: #{tpu_custom_call.1} parent=1 // pred_fallthru
      _
    // Predicated region
    $region46: #{tpu_custom_call.1} parent=1 // pred_check
      _
    $region47: #{tpu_custom_call.1} parent=1 // pred_check_branch
      %9089 = sbr.rel (0) target = $region49
    $region48: #{tpu_custom_call.1} parent=1 // pred_region
      %9090 = dma.done [#allocation7], 8192
    $region49: #{tpu_custom_call.1} parent=1 // pred_fallthru
      _
    %9091 = vsyncpa [#allocation6], 1
    %9092 = vsyncpa [#allocation9], 1
    %9093 = vsyncpa [#allocation7], 1

</llo_original>
